<compile_context>
chip_gen: v6e
topology: v6e:2x2x1
jax: 0.10.0
libtpu: 0.0.40
codegen_flags: <defaults>
</compile_context>

<pallas_src>
import functools

import jax
import jax.numpy as jnp
from jax import lax
from jax.experimental import pallas as pl
from jax.experimental.pallas import tpu as pltpu


# ------------------------------------------------------------------
# Per-generation VMEM budgeting (review: 64 MiB on v7x, 128 MiB on v5e/v6e)
# ------------------------------------------------------------------
def _tpu_vmem_capacity_bytes():
    try:
        return int(pltpu.get_tpu_info().vmem_capacity_bytes)
    except Exception:
        return 64 * 1024 * 1024  # conservative fallback (v7x-sized)


_VMEM_CAP = _tpu_vmem_capacity_bytes()
_VMEM_LIMIT = min(int(_VMEM_CAP * 0.85), 112 * 1024 * 1024)   # compiler cap
_VMEM_BUDGET = min(int(_VMEM_CAP * 0.70), 96 * 1024 * 1024)   # sizing budget


def _choose_chunk(T, Bp, D, H, budget):
    """Pick the recurrence time-chunk from a VMEM byte budget."""
    # per-timestep streamed bytes (double-buffered bf16 inputs/outputs + f32
    # gate scratch), worst case over layer0 / layer>0
    per_step = Bp * (max(8 * D, 16 * H) + 8 * H + 32 * H)
    # resident weights + h/c state + slack
    fixed = 32 * H * H + max(16 * D * H, 32 * H * H) + 16 * Bp * H + (2 << 20)
    chunk = max(1, (budget - fixed) // max(1, per_step))
    chunk = int(min(chunk, 256, T))
    chunk = max(chunk, 1)
    # rebalance so Tp - T (padding) is minimal for the implied chunk count
    n = -(-T // chunk)
    chunk = int(-(-T // n))
    return max(chunk, 1)


# ------------------------------------------------------------------
# One bidirectional LSTM layer = one pallas_call:
#   per time-chunk: project inputs -> gates (MXU, bf16), then serial fwd+bwd
#   recurrence over the chunk with h/c persistent in VMEM scratch.
# ------------------------------------------------------------------
def _bilstm_layer_kernel(*refs, H, Bp, chunk, T, Tp, n_streams, last_layer,
                         fuse_dirs, unroll, need_mask):
    h4 = 4 * H
    idx = 0
    streams = refs[idx:idx + n_streams]; idx += n_streams
    wih = refs[idx:idx + n_streams]; idx += n_streams
    bias_f_ref = refs[idx]; bias_b_ref = refs[idx + 1]; whh_ref = refs[idx + 2]
    idx += 3
    if last_layer:
        wfcf_ref, wfcb_ref, bfc_ref = refs[idx:idx + 3]; idx += 3
        out_ref = refs[idx]; idx += 1
        of_ref = ob_ref = None
    else:
        of_ref, ob_ref = refs[idx:idx + 2]; idx += 2
    gf_s, gb_s, h_s, c_s = refs[idx:idx + 4]; idx += 4
    hb_first = refs[idx] if last_layer else None

    c = pl.program_id(0)

    @pl.when(c == 0)
    def _init():
        h_s[...] = jnp.zeros_like(h_s)
        c_s[...] = jnp.zeros_like(c_s)
        if last_layer:
            hb_first[...] = jnp.zeros_like(hb_first)

    # ---- hoisted input -> gate projection for the whole chunk (bf16 MXU,
    #      f32 accumulation, bias folded in).  First half of the streams /
    #      weights feeds the forward direction, second half the backward one.
    half = n_streams // 2

    def _project(s_refs, w_refs, b_ref):
        acc = None
        for s_ref, w_ref in zip(s_refs, w_refs):
            d = jnp.dot(s_ref[...], w_ref[...],
                        preferred_element_type=jnp.float32)
            acc = d if acc is None else acc + d
        return acc + b_ref[...]

    gf_s[...] = _project(streams[:half], wih[:half], bias_f_ref)
    gb_s[...] = _project(streams[half:], wih[half:], bias_b_ref)

    # hoist recurrent-weight loads out of the per-step loop
    if fuse_dirs:
        whh_bd = whh_ref[...]                 # (2H, 8H) block-diagonal, bf16
    else:
        whh_f = whh_ref[0]                    # (H, 4H) bf16
        whh_b = whh_ref[1]

    base = c * chunk

    def _cell(z, c_prev):
        # gate order after param-prep reorder: [i, f, o | g]
        sg = jax.nn.sigmoid(z[:, :3 * H])
        g_g = jnp.tanh(z[:, 3 * H:])
        c_new = sg[:, H:2 * H] * c_prev + sg[:, 0:H] * g_g
        h_new = sg[:, 2 * H:3 * H] * jnp.tanh(c_new)
        return h_new, c_new

    def step(i, carry):
        j = chunk - 1 - i
        rf = pl.multiple_of(i * Bp, Bp)
        rb = pl.multiple_of(j * Bp, Bp)
        h_prev = h_s[...]                      # (Bp, 2H) f32
        cf_prev = c_s[:, :H]
        cb_prev = c_s[:, H:]
        if fuse_dirs:
            zd = jnp.dot(h_prev.astype(jnp.bfloat16), whh_bd,
                         preferred_element_type=jnp.float32)   # (Bp, 8H)
            zf = zd[:, :h4] + gf_s[pl.ds(rf, Bp), :]
            zb = zd[:, h4:] + gb_s[pl.ds(rb, Bp), :]
        else:
            zf = gf_s[pl.ds(rf, Bp), :] + jnp.dot(
                h_prev[:, :H].astype(jnp.bfloat16), whh_f,
                preferred_element_type=jnp.float32)
            zb = gb_s[pl.ds(rb, Bp), :] + jnp.dot(
                h_prev[:, H:].astype(jnp.bfloat16), whh_b,
                preferred_element_type=jnp.float32)
        hf_new, cf_new = _cell(zf, cf_prev)
        hb_new, cb_new = _cell(zb, cb_prev)
        if need_mask:
            # time axis was padded to Tp: padded steps must not update state
            pos_f = base + i                 # forward time index
            pos_b = Tp - 1 - (base + i)      # backward time index
            hf_new = jnp.where(pos_f < T, hf_new, h_prev[:, :H])
            cf_new = jnp.where(pos_f < T, cf_new, cf_prev)
            hb_new = jnp.where(pos_b < T, hb_new, h_prev[:, H:])
            cb_new = jnp.where(pos_b < T, cb_new, cb_prev)
        h_s[:, :H] = hf_new
        h_s[:, H:] = hb_new
        c_s[:, :H] = cf_new
        c_s[:, H:] = cb_new
        if last_layer:
            # snapshot h_bwd at real time T-1 (backward chain's first valid step)
            take = (base + i) == (Tp - T)
            hb_first[...] = jnp.where(take, hb_new, hb_first[...])
        else:
            of_ref[pl.ds(rf, Bp), :] = hf_new.astype(of_ref.dtype)
            ob_ref[pl.ds(rb, Bp), :] = hb_new.astype(ob_ref.dtype)
        return carry

    lax.fori_loop(0, chunk, step, 0, unroll=unroll)

    if last_layer:
        @pl.when(c == pl.num_programs(0) - 1)
        def _finalize():
            # torch: fc(out[:, -1, :]) == fc(concat(h_fwd[T-1], h_bwd[T-1]))
            out = (jnp.dot(h_s[:, :H], wfcf_ref[...],
                           preferred_element_type=jnp.float32)
                   + jnp.dot(hb_first[...], wfcb_ref[...],
                             preferred_element_type=jnp.float32)
                   + bfc_ref[...])
            out_ref[...] = out.astype(out_ref.dtype)


def _bilstm_layer(inputs, lw, fc, *, H, Bp, chunk, T, Tp, last_layer):
    n_chunks = Tp // chunk
    rows = chunk * Bp

    if isinstance(inputs, tuple):
        pf, pb = inputs                       # (Tp*Bp, H) bf16 each
        data = [pf, pb, pf, pb]
        widths = [H, H, H, H]
        rev = [False, False, True, True]
        wih = [lw["wf_a"], lw["wf_b"], lw["wb_a"], lw["wb_b"]]
    else:
        D = inputs.shape[-1]
        data = [inputs, inputs]
        widths = [D, D]
        rev = [False, True]
        wih = [lw["wf"], lw["wb"]]
    n_streams = len(data)

    def _stream_spec(width, reverse):
        if reverse:
            return pl.BlockSpec((rows, width), lambda c: (n_chunks - 1 - c, 0))
        return pl.BlockSpec((rows, width), lambda c: (c, 0))

    in_specs = [_stream_spec(w, r) for w, r in zip(widths, rev)]
    in_specs += [pl.BlockSpec(w.shape, lambda c: (0, 0)) for w in wih]
    nd_whh = lw["whh"].ndim
    in_specs += [pl.BlockSpec(lw["bias_f"].shape, lambda c: (0, 0)),
                 pl.BlockSpec(lw["bias_b"].shape, lambda c: (0, 0)),
                 pl.BlockSpec(lw["whh"].shape, lambda c: (0,) * nd_whh)]
    args = list(data) + list(wih) + [lw["bias_f"], lw["bias_b"], lw["whh"]]

    if last_layer:
        wfc_f, wfc_b, bfc = fc
        in_specs += [pl.BlockSpec(wfc_f.shape, lambda c: (0, 0)),
                     pl.BlockSpec(wfc_b.shape, lambda c: (0, 0)),
                     pl.BlockSpec(bfc.shape, lambda c: (0, 0))]
        args += [wfc_f, wfc_b, bfc]
        out_dim = wfc_f.shape[-1]
        out_shape = jax.ShapeDtypeStruct((Bp, out_dim), jnp.float32)
        out_specs = pl.BlockSpec((Bp, out_dim), lambda c: (0, 0))
    else:
        out_shape = (jax.ShapeDtypeStruct((Tp * Bp, H), jnp.bfloat16),
                     jax.ShapeDtypeStruct((Tp * Bp, H), jnp.bfloat16))
        out_specs = (pl.BlockSpec((rows, H), lambda c: (c, 0)),
                     pl.BlockSpec((rows, H), lambda c: (n_chunks - 1 - c, 0)))

    scratch = [pltpu.VMEM((rows, 4 * H), jnp.float32),   # gf (bias folded)
               pltpu.VMEM((rows, 4 * H), jnp.float32),   # gb
               pltpu.VMEM((Bp, 2 * H), jnp.float32),     # [h_fwd | h_bwd]
               pltpu.VMEM((Bp, 2 * H), jnp.float32)]     # [c_fwd | c_bwd]
    if last_layer:
        scratch.append(pltpu.VMEM((Bp, H), jnp.float32))  # h_bwd at t = T-1

    kernel = functools.partial(
        _bilstm_layer_kernel, H=H, Bp=Bp, chunk=chunk, T=T, Tp=Tp,
        n_streams=n_streams, last_layer=last_layer,
        fuse_dirs=(nd_whh == 2), unroll=(True if chunk <= 32 else 8),
        need_mask=(Tp != T))

    return pl.pallas_call(
        kernel,
        out_shape=out_shape,
        grid=(n_chunks,),
        in_specs=in_specs,
        out_specs=out_specs,
        scratch_shapes=scratch,
        compiler_params=pltpu.CompilerParams(
            dimension_semantics=("arbitrary",),
            vmem_limit_bytes=_VMEM_LIMIT),
    )(*args)


# ------------------------------------------------------------------
# Forward pass (matches BiLSTM.forward semantics)
# ------------------------------------------------------------------
def bilstm_forward(prep, x):
    """x: (B, T, input_dim) batch-first, like the PyTorch module."""
    x = x.astype(jnp.float32)
    B, T, D = x.shape
    H = prep["layers"][0]["whh_H"].shape[0]          # static hidden size marker
    num_layers = len(prep["layers"])

    Bp = ((B + 15) // 16) * 16                       # bf16 sublane packing
    chunk = _choose_chunk(T, Bp, D, H, _VMEM_BUDGET)
    n_chunks = -(-T // chunk)
    Tp = n_chunks * chunk

    xp = jnp.pad(x, ((0, Bp - B), (0, Tp - T), (0, 0)))
    inp = jnp.transpose(xp, (1, 0, 2)).reshape(Tp * Bp, D).astype(jnp.bfloat16)

    fc = (prep["wfc_f"], prep["wfc_b"], prep["bfc"])
    pair = None
    out = None
    for li, lw in enumerate(prep["layers"]):
        last = (li == num_layers - 1)
        layer_in = inp if li == 0 else pair
        res = _bilstm_layer(layer_in, lw, fc if last else None,
                            H=H, Bp=Bp, chunk=chunk, T=T, Tp=Tp,
                            last_layer=last)
        if last:
            out = res
        else:
            pair = res
    return out[:B]


# ------------------------------------------------------------------
# Parameter prep (done ONCE): gate reorder (i,f,g,o)->(i,f,o,g), bias fusion,
# transposes, direction splits, block-diag Whh, bf16 MXU operands, fc split.
# ------------------------------------------------------------------
def _reorder_gates(w):
    H = w.shape[0] // 4
    return jnp.concatenate([w[:2 * H], w[3 * H:], w[2 * H:3 * H]], axis=0)


def prepare_params(params):
    H = params["layers"][0]["w_hh_f"].shape[1]
    fuse = (2 * H <= 512)        # block-diag per-step matmul for small/medium H
    prep = {"layers": []}
    for li, lp in enumerate(params["layers"]):
        bias_f = _reorder_gates(lp["b_ih_f"] + lp["b_hh_f"]).reshape(1, 4 * H)
        bias_b = _reorder_gates(lp["b_ih_b"] + lp["b_hh_b"]).reshape(1, 4 * H)
        wih_f = jnp.transpose(_reorder_gates(lp["w_ih_f"])).astype(jnp.bfloat16)
        wih_b = jnp.transpose(_reorder_gates(lp["w_ih_b"])).astype(jnp.bfloat16)
        whh_f = jnp.transpose(_reorder_gates(lp["w_hh_f"])).astype(jnp.bfloat16)
        whh_b = jnp.transpose(_reorder_gates(lp["w_hh_b"])).astype(jnp.bfloat16)
        if fuse:
            whh = jnp.zeros((2 * H, 8 * H), jnp.bfloat16)
            whh = whh.at[:H, :4 * H].set(whh_f).at[H:, 4 * H:].set(whh_b)
        else:
            whh = jnp.stack([whh_f, whh_b], axis=0)     # (2, H, 4H)
        lw = {"bias_f": bias_f.astype(jnp.float32),
              "bias_b": bias_b.astype(jnp.float32),
              "whh": whh,
              "whh_H": jnp.zeros((H,), jnp.float32)}    # static H marker
        if li == 0:
            lw["wf"], lw["wb"] = wih_f, wih_b
        else:
            lw["wf_a"], lw["wf_b"] = wih_f[:H], wih_f[H:]
            lw["wb_a"], lw["wb_b"] = wih_b[:H], wih_b[H:]
        prep["layers"].append(lw)
    wfc = params["w_fc"].astype(jnp.float32)             # (out, 2H)
    prep["wfc_f"] = jnp.transpose(wfc[:, :H])             # (H, out)
    prep["wfc_b"] = jnp.transpose(wfc[:, H:])
    prep["bfc"] = params["b_fc"].reshape(1, -1).astype(jnp.float32)
    return prep


# ------------------------------------------------------------------
# Deterministic parameter init (mirrors nn.LSTM / nn.Linear shapes & U(-k, k))
# ------------------------------------------------------------------
def init_params(key, input_dim, hidden_dim, output_dim, num_layers):
    k = 1.0 / jnp.sqrt(jnp.float32(hidden_dim))

    def uni(key, shape, kk):
        return jax.random.uniform(key, shape, jnp.float32, minval=-kk, maxval=kk)

    params = {"layers": []}
    for layer in range(num_layers):
        d_in = input_dim if layer == 0 else 2 * hidden_dim
        key, *ks = jax.random.split(key, 9)
        params["layers"].append({
            "w_ih_f": uni(ks[0], (4 * hidden_dim, d_in), k),
            "w_hh_f": uni(ks[1], (4 * hidden_dim, hidden_dim), k),
            "b_ih_f": uni(ks[2], (4 * hidden_dim,), k),
            "b_hh_f": uni(ks[3], (4 * hidden_dim,), k),
            "w_ih_b": uni(ks[4], (4 * hidden_dim, d_in), k),
            "w_hh_b": uni(ks[5], (4 * hidden_dim, hidden_dim), k),
            "b_ih_b": uni(ks[6], (4 * hidden_dim,), k),
            "b_hh_b": uni(ks[7], (4 * hidden_dim,), k),
        })
    key, kw, kb = jax.random.split(key, 3)
    kf = 1.0 / jnp.sqrt(jnp.float32(2 * hidden_dim))
    params["w_fc"] = uni(kw, (output_dim, 2 * hidden_dim), kf)
    params["b_fc"] = uni(kb, (output_dim,), kf)
    return params


# ------------------------------------------------------------------
if __name__ == "__main__":
    input_dim, hidden_dim, output_dim, num_layers = 16, 32, 8, 2
    batch, seq = 2, 8

    root = jax.random.PRNGKey(0)
    k_param, k_x = jax.random.split(root)
    params = init_params(k_param, input_dim, hidden_dim, output_dim, num_layers)
    prep = prepare_params(params)
    x = jax.random.normal(k_x, (batch, seq, input_dim), jnp.float32)

    out = jax.jit(bilstm_forward)(prep, x)
    out = jax.block_until_ready(out)
    assert out.shape == (batch, output_dim)
    print("KERNEL_OK")
</pallas_src>

<mosaic_0001>
module attributes {stable_mosaic.version = 11 : i64} {
  func.func @_bilstm_layer_kernel(%arg0: i32, %arg1: memref<128x16xbf16, #tpu.memory_space<vmem>>, %arg2: memref<128x16xbf16, #tpu.memory_space<vmem>>, %arg3: memref<16x128xbf16, #tpu.memory_space<vmem>>, %arg4: memref<16x128xbf16, #tpu.memory_space<vmem>>, %arg5: memref<1x128xf32, #tpu.memory_space<vmem>>, %arg6: memref<1x128xf32, #tpu.memory_space<vmem>>, %arg7: memref<64x256xbf16, #tpu.memory_space<vmem>>, %arg8: memref<128x32xbf16, #tpu.memory_space<vmem>>, %arg9: memref<128x32xbf16, #tpu.memory_space<vmem>>, %arg10: memref<128x128xf32, #tpu.memory_space<vmem>>, %arg11: memref<128x128xf32, #tpu.memory_space<vmem>>, %arg12: memref<16x64xf32, #tpu.memory_space<vmem>>, %arg13: memref<16x64xf32, #tpu.memory_space<vmem>>) attributes {dimension_semantics = [#tpu.dimension_semantics<arbitrary>], iteration_bounds = array<i64: 1>, scalar_prefetch = 0 : i64, scratch_operands = 4 : i64, tpu.core_type = #tpu.core_type<tc>, window_params = [{transform_indices = @transform_0, window_bounds = array<i64: 128, 16>}, {transform_indices = @transform_1, window_bounds = array<i64: 128, 16>}, {pipeline_mode = #tpu.pipeline_mode<synchronous>, transform_indices = @transform_2, window_bounds = array<i64: 16, 128>}, {pipeline_mode = #tpu.pipeline_mode<synchronous>, transform_indices = @transform_3, window_bounds = array<i64: 16, 128>}, {pipeline_mode = #tpu.pipeline_mode<synchronous>, transform_indices = @transform_4, window_bounds = array<i64: 1, 128>}, {pipeline_mode = #tpu.pipeline_mode<synchronous>, transform_indices = @transform_5, window_bounds = array<i64: 1, 128>}, {pipeline_mode = #tpu.pipeline_mode<synchronous>, transform_indices = @transform_6, window_bounds = array<i64: 64, 256>}, {transform_indices = @transform_7, window_bounds = array<i64: 128, 32>}, {transform_indices = @transform_8, window_bounds = array<i64: 128, 32>}]} {
    %c0_i32 = arith.constant 0 : i32
    %0 = arith.cmpi eq, %arg0, %c0_i32 : i32
    %1 = arith.extui %0 : i1 to i32
    %c0_i32_0 = arith.constant 0 : i32
    %2 = arith.cmpi ne, %1, %c0_i32_0 : i32
    scf.if %2 {
      %cst_210 = arith.constant 0.000000e+00 : f32
      %498 = vector.broadcast %cst_210 : f32 to vector<16x64xf32>
      %c0_211 = arith.constant 0 : index
      %c0_212 = arith.constant 0 : index
      %499 = vector.load %arg12[%c0_211, %c0_212] : memref<16x64xf32, #tpu.memory_space<vmem>>, vector<16x64xf32>
      tpu.vector_store %arg12[%c0_211, %c0_212], %498 {strides = array<i32>} : memref<16x64xf32, #tpu.memory_space<vmem>>, vector<16x64xf32>,
      %cst_213 = arith.constant 0.000000e+00 : f32
      %500 = vector.broadcast %cst_213 : f32 to vector<16x64xf32>
      %c0_214 = arith.constant 0 : index
      %c0_215 = arith.constant 0 : index
      %501 = vector.load %arg13[%c0_214, %c0_215] : memref<16x64xf32, #tpu.memory_space<vmem>>, vector<16x64xf32>
      tpu.vector_store %arg13[%c0_214, %c0_215], %500 {strides = array<i32>} : memref<16x64xf32, #tpu.memory_space<vmem>>, vector<16x64xf32>,
    } else {
    }
    %c0 = arith.constant 0 : index
    %c0_1 = arith.constant 0 : index
    %3 = vector.load %arg1[%c0, %c0_1] : memref<128x16xbf16, #tpu.memory_space<vmem>>, vector<128x16xbf16>
    %c0_2 = arith.constant 0 : index
    %c0_3 = arith.constant 0 : index
    %4 = vector.load %arg3[%c0_2, %c0_3] : memref<16x128xbf16, #tpu.memory_space<vmem>>, vector<16x128xbf16>
    %cst = arith.constant dense<0.000000e+00> : vector<128x128xf32>
    %5 = tpu.matmul %3, %4, %cst {dimension_numbers = #tpu.dot_dimension_numbers<[1], [0], [0], [1], [0, 0, 1, 1], [], []>} : vector<128x16xbf16>, vector<16x128xbf16>, vector<128x128xf32> -> vector<128x128xf32>
    %c0_4 = arith.constant 0 : index
    %c0_5 = arith.constant 0 : index
    %6 = vector.load %arg5[%c0_4, %c0_5] : memref<1x128xf32, #tpu.memory_space<vmem>>, vector<1x128xf32>
    %7 = vector.broadcast %6 : vector<1x128xf32> to vector<128x128xf32>
    %8 = arith.addf %5, %7 : vector<128x128xf32>
    %c0_6 = arith.constant 0 : index
    %c0_7 = arith.constant 0 : index
    %9 = vector.load %arg10[%c0_6, %c0_7] : memref<128x128xf32, #tpu.memory_space<vmem>>, vector<128x128xf32>
    tpu.vector_store %arg10[%c0_6, %c0_7], %8 {strides = array<i32>} : memref<128x128xf32, #tpu.memory_space<vmem>>, vector<128x128xf32>,
    %c0_8 = arith.constant 0 : index
    %c0_9 = arith.constant 0 : index
    %10 = vector.load %arg2[%c0_8, %c0_9] : memref<128x16xbf16, #tpu.memory_space<vmem>>, vector<128x16xbf16>
    %c0_10 = arith.constant 0 : index
    %c0_11 = arith.constant 0 : index
    %11 = vector.load %arg4[%c0_10, %c0_11] : memref<16x128xbf16, #tpu.memory_space<vmem>>, vector<16x128xbf16>
    %cst_12 = arith.constant dense<0.000000e+00> : vector<128x128xf32>
    %12 = tpu.matmul %10, %11, %cst_12 {dimension_numbers = #tpu.dot_dimension_numbers<[1], [0], [0], [1], [0, 0, 1, 1], [], []>} : vector<128x16xbf16>, vector<16x128xbf16>, vector<128x128xf32> -> vector<128x128xf32>
    %c0_13 = arith.constant 0 : index
    %c0_14 = arith.constant 0 : index
    %13 = vector.load %arg6[%c0_13, %c0_14] : memref<1x128xf32, #tpu.memory_space<vmem>>, vector<1x128xf32>
    %14 = vector.broadcast %13 : vector<1x128xf32> to vector<128x128xf32>
    %15 = arith.addf %12, %14 : vector<128x128xf32>
    %c0_15 = arith.constant 0 : index
    %c0_16 = arith.constant 0 : index
    %16 = vector.load %arg11[%c0_15, %c0_16] : memref<128x128xf32, #tpu.memory_space<vmem>>, vector<128x128xf32>
    tpu.vector_store %arg11[%c0_15, %c0_16], %15 {strides = array<i32>} : memref<128x128xf32, #tpu.memory_space<vmem>>, vector<128x128xf32>,
    %c0_17 = arith.constant 0 : index
    %c0_18 = arith.constant 0 : index
    %17 = vector.load %arg7[%c0_17, %c0_18] : memref<64x256xbf16, #tpu.memory_space<vmem>>, vector<64x256xbf16>
    %c0_i32_19 = arith.constant 0 : i32
    %c7_i32 = arith.constant 7 : i32
    %18 = arith.subi %c7_i32, %c0_i32_19 : i32
    %c16_i32 = arith.constant 16 : i32
    %19 = arith.muli %c0_i32_19, %c16_i32 : i32
    %20 = tpu.assume_multiple %19, 16 : i32
    %c16_i32_20 = arith.constant 16 : i32
    %21 = arith.muli %18, %c16_i32_20 : i32
    %22 = tpu.assume_multiple %21, 16 : i32
    %c0_21 = arith.constant 0 : index
    %c0_22 = arith.constant 0 : index
    %23 = vector.load %arg12[%c0_21, %c0_22] : memref<16x64xf32, #tpu.memory_space<vmem>>, vector<16x64xf32>
    %c0_23 = arith.constant 0 : index
    %c0_24 = arith.constant 0 : index
    %24 = vector.load %arg13[%c0_23, %c0_24] : memref<16x64xf32, #tpu.memory_space<vmem>>, vector<16x32xf32>
    %c0_25 = arith.constant 0 : index
    %c32 = arith.constant 32 : index
    %25 = vector.load %arg13[%c0_25, %c32] : memref<16x64xf32, #tpu.memory_space<vmem>>, vector<16x32xf32>
    %26 = arith.truncf %23 : vector<16x64xf32> to vector<16x64xbf16>
    %cst_26 = arith.constant dense<0.000000e+00> : vector<16x256xf32>
    %27 = tpu.matmul %26, %17, %cst_26 {dimension_numbers = #tpu.dot_dimension_numbers<[1], [0], [0], [1], [0, 0, 1, 1], [], []>} : vector<16x64xbf16>, vector<64x256xbf16>, vector<16x256xf32> -> vector<16x256xf32>
    %28 = vector.extract_strided_slice %27 {offsets = [0, 0], sizes = [16, 128], strides = [1, 1]} : vector<16x256xf32> to vector<16x128xf32>
    %29 = arith.index_cast %20 : i32 to index
    %c0_27 = arith.constant 0 : index
    %30 = vector.load %arg10[%29, %c0_27] : memref<128x128xf32, #tpu.memory_space<vmem>>, vector<16x128xf32>
    %31 = arith.addf %28, %30 : vector<16x128xf32>
    %32 = vector.extract_strided_slice %27 {offsets = [0, 128], sizes = [16, 128], strides = [1, 1]} : vector<16x256xf32> to vector<16x128xf32>
    %33 = arith.index_cast %22 : i32 to index
    %c0_28 = arith.constant 0 : index
    %34 = vector.load %arg11[%33, %c0_28] : memref<128x128xf32, #tpu.memory_space<vmem>>, vector<16x128xf32>
    %35 = arith.addf %32, %34 : vector<16x128xf32>
    %36 = vector.extract_strided_slice %31 {offsets = [0, 0], sizes = [16, 96], strides = [1, 1]} : vector<16x128xf32> to vector<16x96xf32>
    %37 = arith.negf %36 : vector<16x96xf32>
    %38 = math.exp %37 : vector<16x96xf32>
    %cst_29 = arith.constant 1.000000e+00 : f32
    %39 = vector.broadcast %cst_29 : f32 to vector<16x96xf32>
    %40 = arith.addf %39, %38 : vector<16x96xf32>
    %41 = arith.divf %39, %40 : vector<16x96xf32>
    %42 = vector.extract_strided_slice %31 {offsets = [0, 96], sizes = [16, 32], strides = [1, 1]} : vector<16x128xf32> to vector<16x32xf32>
    %43 = math.tanh %42 : vector<16x32xf32>
    %44 = vector.extract_strided_slice %41 {offsets = [0, 32], sizes = [16, 32], strides = [1, 1]} : vector<16x96xf32> to vector<16x32xf32>
    %45 = arith.mulf %44, %24 : vector<16x32xf32>
    %46 = vector.extract_strided_slice %41 {offsets = [0, 0], sizes = [16, 32], strides = [1, 1]} : vector<16x96xf32> to vector<16x32xf32>
    %47 = arith.mulf %46, %43 : vector<16x32xf32>
    %48 = arith.addf %45, %47 : vector<16x32xf32>
    %49 = vector.extract_strided_slice %41 {offsets = [0, 64], sizes = [16, 32], strides = [1, 1]} : vector<16x96xf32> to vector<16x32xf32>
    %50 = math.tanh %48 : vector<16x32xf32>
    %51 = arith.mulf %49, %50 : vector<16x32xf32>
    %52 = vector.extract_strided_slice %35 {offsets = [0, 0], sizes = [16, 96], strides = [1, 1]} : vector<16x128xf32> to vector<16x96xf32>
    %53 = arith.negf %52 : vector<16x96xf32>
    %54 = math.exp %53 : vector<16x96xf32>
    %cst_30 = arith.constant 1.000000e+00 : f32
    %55 = vector.broadcast %cst_30 : f32 to vector<16x96xf32>
    %56 = arith.addf %55, %54 : vector<16x96xf32>
    %57 = arith.divf %55, %56 : vector<16x96xf32>
    %58 = vector.extract_strided_slice %35 {offsets = [0, 96], sizes = [16, 32], strides = [1, 1]} : vector<16x128xf32> to vector<16x32xf32>
    %59 = math.tanh %58 : vector<16x32xf32>
    %60 = vector.extract_strided_slice %57 {offsets = [0, 32], sizes = [16, 32], strides = [1, 1]} : vector<16x96xf32> to vector<16x32xf32>
    %61 = arith.mulf %60, %25 : vector<16x32xf32>
    %62 = vector.extract_strided_slice %57 {offsets = [0, 0], sizes = [16, 32], strides = [1, 1]} : vector<16x96xf32> to vector<16x32xf32>
    %63 = arith.mulf %62, %59 : vector<16x32xf32>
    %64 = arith.addf %61, %63 : vector<16x32xf32>
    %65 = vector.extract_strided_slice %57 {offsets = [0, 64], sizes = [16, 32], strides = [1, 1]} : vector<16x96xf32> to vector<16x32xf32>
    %66 = math.tanh %64 : vector<16x32xf32>
    %67 = arith.mulf %65, %66 : vector<16x32xf32>
    %c0_31 = arith.constant 0 : index
    %c0_32 = arith.constant 0 : index
    %68 = vector.load %arg12[%c0_31, %c0_32] : memref<16x64xf32, #tpu.memory_space<vmem>>, vector<16x32xf32>
    tpu.vector_store %arg12[%c0_31, %c0_32], %51 {strides = array<i32>} : memref<16x64xf32, #tpu.memory_space<vmem>>, vector<16x32xf32>,
    %c0_33 = arith.constant 0 : index
    %c32_34 = arith.constant 32 : index
    %69 = vector.load %arg12[%c0_33, %c32_34] : memref<16x64xf32, #tpu.memory_space<vmem>>, vector<16x32xf32>
    tpu.vector_store %arg12[%c0_33, %c32_34], %67 {strides = array<i32>} : memref<16x64xf32, #tpu.memory_space<vmem>>, vector<16x32xf32>,
    %c0_35 = arith.constant 0 : index
    %c0_36 = arith.constant 0 : index
    %70 = vector.load %arg13[%c0_35, %c0_36] : memref<16x64xf32, #tpu.memory_space<vmem>>, vector<16x32xf32>
    tpu.vector_store %arg13[%c0_35, %c0_36], %48 {strides = array<i32>} : memref<16x64xf32, #tpu.memory_space<vmem>>, vector<16x32xf32>,
    %c0_37 = arith.constant 0 : index
    %c32_38 = arith.constant 32 : index
    %71 = vector.load %arg13[%c0_37, %c32_38] : memref<16x64xf32, #tpu.memory_space<vmem>>, vector<16x32xf32>
    tpu.vector_store %arg13[%c0_37, %c32_38], %64 {strides = array<i32>} : memref<16x64xf32, #tpu.memory_space<vmem>>, vector<16x32xf32>,
    %72 = arith.truncf %51 : vector<16x32xf32> to vector<16x32xbf16>
    %73 = arith.index_cast %20 : i32 to index
    %c0_39 = arith.constant 0 : index
    %74 = vector.load %arg8[%73, %c0_39] : memref<128x32xbf16, #tpu.memory_space<vmem>>, vector<16x32xbf16>
    tpu.vector_store %arg8[%73, %c0_39], %72 {strides = array<i32>} : memref<128x32xbf16, #tpu.memory_space<vmem>>, vector<16x32xbf16>,
    %75 = arith.truncf %67 : vector<16x32xf32> to vector<16x32xbf16>
    %76 = arith.index_cast %22 : i32 to index
    %c0_40 = arith.constant 0 : index
    %77 = vector.load %arg9[%76, %c0_40] : memref<128x32xbf16, #tpu.memory_space<vmem>>, vector<16x32xbf16>
    tpu.vector_store %arg9[%76, %c0_40], %75 {strides = array<i32>} : memref<128x32xbf16, #tpu.memory_space<vmem>>, vector<16x32xbf16>,
    %c1_i32 = arith.constant 1 : i32
    %c7_i32_41 = arith.constant 7 : i32
    %78 = arith.subi %c7_i32_41, %c1_i32 : i32
    %c16_i32_42 = arith.constant 16 : i32
    %79 = arith.muli %c1_i32, %c16_i32_42 : i32
    %80 = tpu.assume_multiple %79, 16 : i32
    %c16_i32_43 = arith.constant 16 : i32
    %81 = arith.muli %78, %c16_i32_43 : i32
    %82 = tpu.assume_multiple %81, 16 : i32
    %c0_44 = arith.constant 0 : index
    %c0_45 = arith.constant 0 : index
    %83 = vector.load %arg12[%c0_44, %c0_45] : memref<16x64xf32, #tpu.memory_space<vmem>>, vector<16x64xf32>
    %c0_46 = arith.constant 0 : index
    %c0_47 = arith.constant 0 : index
    %84 = vector.load %arg13[%c0_46, %c0_47] : memref<16x64xf32, #tpu.memory_space<vmem>>, vector<16x32xf32>
    %c0_48 = arith.constant 0 : index
    %c32_49 = arith.constant 32 : index
    %85 = vector.load %arg13[%c0_48, %c32_49] : memref<16x64xf32, #tpu.memory_space<vmem>>, vector<16x32xf32>
    %86 = arith.truncf %83 : vector<16x64xf32> to vector<16x64xbf16>
    %cst_50 = arith.constant dense<0.000000e+00> : vector<16x256xf32>
    %87 = tpu.matmul %86, %17, %cst_50 {dimension_numbers = #tpu.dot_dimension_numbers<[1], [0], [0], [1], [0, 0, 1, 1], [], []>} : vector<16x64xbf16>, vector<64x256xbf16>, vector<16x256xf32> -> vector<16x256xf32>
    %88 = vector.extract_strided_slice %87 {offsets = [0, 0], sizes = [16, 128], strides = [1, 1]} : vector<16x256xf32> to vector<16x128xf32>
    %89 = arith.index_cast %80 : i32 to index
    %c0_51 = arith.constant 0 : index
    %90 = vector.load %arg10[%89, %c0_51] : memref<128x128xf32, #tpu.memory_space<vmem>>, vector<16x128xf32>
    %91 = arith.addf %88, %90 : vector<16x128xf32>
    %92 = vector.extract_strided_slice %87 {offsets = [0, 128], sizes = [16, 128], strides = [1, 1]} : vector<16x256xf32> to vector<16x128xf32>
    %93 = arith.index_cast %82 : i32 to index
    %c0_52 = arith.constant 0 : index
    %94 = vector.load %arg11[%93, %c0_52] : memref<128x128xf32, #tpu.memory_space<vmem>>, vector<16x128xf32>
    %95 = arith.addf %92, %94 : vector<16x128xf32>
    %96 = vector.extract_strided_slice %91 {offsets = [0, 0], sizes = [16, 96], strides = [1, 1]} : vector<16x128xf32> to vector<16x96xf32>
    %97 = arith.negf %96 : vector<16x96xf32>
    %98 = math.exp %97 : vector<16x96xf32>
    %cst_53 = arith.constant 1.000000e+00 : f32
    %99 = vector.broadcast %cst_53 : f32 to vector<16x96xf32>
    %100 = arith.addf %99, %98 : vector<16x96xf32>
    %101 = arith.divf %99, %100 : vector<16x96xf32>
    %102 = vector.extract_strided_slice %91 {offsets = [0, 96], sizes = [16, 32], strides = [1, 1]} : vector<16x128xf32> to vector<16x32xf32>
    %103 = math.tanh %102 : vector<16x32xf32>
    %104 = vector.extract_strided_slice %101 {offsets = [0, 32], sizes = [16, 32], strides = [1, 1]} : vector<16x96xf32> to vector<16x32xf32>
    %105 = arith.mulf %104, %84 : vector<16x32xf32>
    %106 = vector.extract_strided_slice %101 {offsets = [0, 0], sizes = [16, 32], strides = [1, 1]} : vector<16x96xf32> to vector<16x32xf32>
    %107 = arith.mulf %106, %103 : vector<16x32xf32>
    %108 = arith.addf %105, %107 : vector<16x32xf32>
    %109 = vector.extract_strided_slice %101 {offsets = [0, 64], sizes = [16, 32], strides = [1, 1]} : vector<16x96xf32> to vector<16x32xf32>
    %110 = math.tanh %108 : vector<16x32xf32>
    %111 = arith.mulf %109, %110 : vector<16x32xf32>
    %112 = vector.extract_strided_slice %95 {offsets = [0, 0], sizes = [16, 96], strides = [1, 1]} : vector<16x128xf32> to vector<16x96xf32>
    %113 = arith.negf %112 : vector<16x96xf32>
    %114 = math.exp %113 : vector<16x96xf32>
    %cst_54 = arith.constant 1.000000e+00 : f32
    %115 = vector.broadcast %cst_54 : f32 to vector<16x96xf32>
    %116 = arith.addf %115, %114 : vector<16x96xf32>
    %117 = arith.divf %115, %116 : vector<16x96xf32>
    %118 = vector.extract_strided_slice %95 {offsets = [0, 96], sizes = [16, 32], strides = [1, 1]} : vector<16x128xf32> to vector<16x32xf32>
    %119 = math.tanh %118 : vector<16x32xf32>
    %120 = vector.extract_strided_slice %117 {offsets = [0, 32], sizes = [16, 32], strides = [1, 1]} : vector<16x96xf32> to vector<16x32xf32>
    %121 = arith.mulf %120, %85 : vector<16x32xf32>
    %122 = vector.extract_strided_slice %117 {offsets = [0, 0], sizes = [16, 32], strides = [1, 1]} : vector<16x96xf32> to vector<16x32xf32>
    %123 = arith.mulf %122, %119 : vector<16x32xf32>
    %124 = arith.addf %121, %123 : vector<16x32xf32>
    %125 = vector.extract_strided_slice %117 {offsets = [0, 64], sizes = [16, 32], strides = [1, 1]} : vector<16x96xf32> to vector<16x32xf32>
    %126 = math.tanh %124 : vector<16x32xf32>
    %127 = arith.mulf %125, %126 : vector<16x32xf32>
    %c0_55 = arith.constant 0 : index
    %c0_56 = arith.constant 0 : index
    %128 = vector.load %arg12[%c0_55, %c0_56] : memref<16x64xf32, #tpu.memory_space<vmem>>, vector<16x32xf32>
    tpu.vector_store %arg12[%c0_55, %c0_56], %111 {strides = array<i32>} : memref<16x64xf32, #tpu.memory_space<vmem>>, vector<16x32xf32>,
    %c0_57 = arith.constant 0 : index
    %c32_58 = arith.constant 32 : index
    %129 = vector.load %arg12[%c0_57, %c32_58] : memref<16x64xf32, #tpu.memory_space<vmem>>, vector<16x32xf32>
    tpu.vector_store %arg12[%c0_57, %c32_58], %127 {strides = array<i32>} : memref<16x64xf32, #tpu.memory_space<vmem>>, vector<16x32xf32>,
    %c0_59 = arith.constant 0 : index
    %c0_60 = arith.constant 0 : index
    %130 = vector.load %arg13[%c0_59, %c0_60] : memref<16x64xf32, #tpu.memory_space<vmem>>, vector<16x32xf32>
    tpu.vector_store %arg13[%c0_59, %c0_60], %108 {strides = array<i32>} : memref<16x64xf32, #tpu.memory_space<vmem>>, vector<16x32xf32>,
    %c0_61 = arith.constant 0 : index
    %c32_62 = arith.constant 32 : index
    %131 = vector.load %arg13[%c0_61, %c32_62] : memref<16x64xf32, #tpu.memory_space<vmem>>, vector<16x32xf32>
    tpu.vector_store %arg13[%c0_61, %c32_62], %124 {strides = array<i32>} : memref<16x64xf32, #tpu.memory_space<vmem>>, vector<16x32xf32>,
    %132 = arith.truncf %111 : vector<16x32xf32> to vector<16x32xbf16>
    %133 = arith.index_cast %80 : i32 to index
    %c0_63 = arith.constant 0 : index
    %134 = vector.load %arg8[%133, %c0_63] : memref<128x32xbf16, #tpu.memory_space<vmem>>, vector<16x32xbf16>
    tpu.vector_store %arg8[%133, %c0_63], %132 {strides = array<i32>} : memref<128x32xbf16, #tpu.memory_space<vmem>>, vector<16x32xbf16>,
    %135 = arith.truncf %127 : vector<16x32xf32> to vector<16x32xbf16>
    %136 = arith.index_cast %82 : i32 to index
    %c0_64 = arith.constant 0 : index
    %137 = vector.load %arg9[%136, %c0_64] : memref<128x32xbf16, #tpu.memory_space<vmem>>, vector<16x32xbf16>
    tpu.vector_store %arg9[%136, %c0_64], %135 {strides = array<i32>} : memref<128x32xbf16, #tpu.memory_space<vmem>>, vector<16x32xbf16>,
    %c2_i32 = arith.constant 2 : i32
    %c7_i32_65 = arith.constant 7 : i32
    %138 = arith.subi %c7_i32_65, %c2_i32 : i32
    %c16_i32_66 = arith.constant 16 : i32
    %139 = arith.muli %c2_i32, %c16_i32_66 : i32
    %140 = tpu.assume_multiple %139, 16 : i32
    %c16_i32_67 = arith.constant 16 : i32
    %141 = arith.muli %138, %c16_i32_67 : i32
    %142 = tpu.assume_multiple %141, 16 : i32
    %c0_68 = arith.constant 0 : index
    %c0_69 = arith.constant 0 : index
    %143 = vector.load %arg12[%c0_68, %c0_69] : memref<16x64xf32, #tpu.memory_space<vmem>>, vector<16x64xf32>
    %c0_70 = arith.constant 0 : index
    %c0_71 = arith.constant 0 : index
    %144 = vector.load %arg13[%c0_70, %c0_71] : memref<16x64xf32, #tpu.memory_space<vmem>>, vector<16x32xf32>
    %c0_72 = arith.constant 0 : index
    %c32_73 = arith.constant 32 : index
    %145 = vector.load %arg13[%c0_72, %c32_73] : memref<16x64xf32, #tpu.memory_space<vmem>>, vector<16x32xf32>
    %146 = arith.truncf %143 : vector<16x64xf32> to vector<16x64xbf16>
    %cst_74 = arith.constant dense<0.000000e+00> : vector<16x256xf32>
    %147 = tpu.matmul %146, %17, %cst_74 {dimension_numbers = #tpu.dot_dimension_numbers<[1], [0], [0], [1], [0, 0, 1, 1], [], []>} : vector<16x64xbf16>, vector<64x256xbf16>, vector<16x256xf32> -> vector<16x256xf32>
    %148 = vector.extract_strided_slice %147 {offsets = [0, 0], sizes = [16, 128], strides = [1, 1]} : vector<16x256xf32> to vector<16x128xf32>
    %149 = arith.index_cast %140 : i32 to index
    %c0_75 = arith.constant 0 : index
    %150 = vector.load %arg10[%149, %c0_75] : memref<128x128xf32, #tpu.memory_space<vmem>>, vector<16x128xf32>
    %151 = arith.addf %148, %150 : vector<16x128xf32>
    %152 = vector.extract_strided_slice %147 {offsets = [0, 128], sizes = [16, 128], strides = [1, 1]} : vector<16x256xf32> to vector<16x128xf32>
    %153 = arith.index_cast %142 : i32 to index
    %c0_76 = arith.constant 0 : index
    %154 = vector.load %arg11[%153, %c0_76] : memref<128x128xf32, #tpu.memory_space<vmem>>, vector<16x128xf32>
    %155 = arith.addf %152, %154 : vector<16x128xf32>
    %156 = vector.extract_strided_slice %151 {offsets = [0, 0], sizes = [16, 96], strides = [1, 1]} : vector<16x128xf32> to vector<16x96xf32>
    %157 = arith.negf %156 : vector<16x96xf32>
    %158 = math.exp %157 : vector<16x96xf32>
    %cst_77 = arith.constant 1.000000e+00 : f32
    %159 = vector.broadcast %cst_77 : f32 to vector<16x96xf32>
    %160 = arith.addf %159, %158 : vector<16x96xf32>
    %161 = arith.divf %159, %160 : vector<16x96xf32>
    %162 = vector.extract_strided_slice %151 {offsets = [0, 96], sizes = [16, 32], strides = [1, 1]} : vector<16x128xf32> to vector<16x32xf32>
    %163 = math.tanh %162 : vector<16x32xf32>
    %164 = vector.extract_strided_slice %161 {offsets = [0, 32], sizes = [16, 32], strides = [1, 1]} : vector<16x96xf32> to vector<16x32xf32>
    %165 = arith.mulf %164, %144 : vector<16x32xf32>
    %166 = vector.extract_strided_slice %161 {offsets = [0, 0], sizes = [16, 32], strides = [1, 1]} : vector<16x96xf32> to vector<16x32xf32>
    %167 = arith.mulf %166, %163 : vector<16x32xf32>
    %168 = arith.addf %165, %167 : vector<16x32xf32>
    %169 = vector.extract_strided_slice %161 {offsets = [0, 64], sizes = [16, 32], strides = [1, 1]} : vector<16x96xf32> to vector<16x32xf32>
    %170 = math.tanh %168 : vector<16x32xf32>
    %171 = arith.mulf %169, %170 : vector<16x32xf32>
    %172 = vector.extract_strided_slice %155 {offsets = [0, 0], sizes = [16, 96], strides = [1, 1]} : vector<16x128xf32> to vector<16x96xf32>
    %173 = arith.negf %172 : vector<16x96xf32>
    %174 = math.exp %173 : vector<16x96xf32>
    %cst_78 = arith.constant 1.000000e+00 : f32
    %175 = vector.broadcast %cst_78 : f32 to vector<16x96xf32>
    %176 = arith.addf %175, %174 : vector<16x96xf32>
    %177 = arith.divf %175, %176 : vector<16x96xf32>
    %178 = vector.extract_strided_slice %155 {offsets = [0, 96], sizes = [16, 32], strides = [1, 1]} : vector<16x128xf32> to vector<16x32xf32>
    %179 = math.tanh %178 : vector<16x32xf32>
    %180 = vector.extract_strided_slice %177 {offsets = [0, 32], sizes = [16, 32], strides = [1, 1]} : vector<16x96xf32> to vector<16x32xf32>
    %181 = arith.mulf %180, %145 : vector<16x32xf32>
    %182 = vector.extract_strided_slice %177 {offsets = [0, 0], sizes = [16, 32], strides = [1, 1]} : vector<16x96xf32> to vector<16x32xf32>
    %183 = arith.mulf %182, %179 : vector<16x32xf32>
    %184 = arith.addf %181, %183 : vector<16x32xf32>
    %185 = vector.extract_strided_slice %177 {offsets = [0, 64], sizes = [16, 32], strides = [1, 1]} : vector<16x96xf32> to vector<16x32xf32>
    %186 = math.tanh %184 : vector<16x32xf32>
    %187 = arith.mulf %185, %186 : vector<16x32xf32>
    %c0_79 = arith.constant 0 : index
    %c0_80 = arith.constant 0 : index
    %188 = vector.load %arg12[%c0_79, %c0_80] : memref<16x64xf32, #tpu.memory_space<vmem>>, vector<16x32xf32>
    tpu.vector_store %arg12[%c0_79, %c0_80], %171 {strides = array<i32>} : memref<16x64xf32, #tpu.memory_space<vmem>>, vector<16x32xf32>,
    %c0_81 = arith.constant 0 : index
    %c32_82 = arith.constant 32 : index
    %189 = vector.load %arg12[%c0_81, %c32_82] : memref<16x64xf32, #tpu.memory_space<vmem>>, vector<16x32xf32>
    tpu.vector_store %arg12[%c0_81, %c32_82], %187 {strides = array<i32>} : memref<16x64xf32, #tpu.memory_space<vmem>>, vector<16x32xf32>,
    %c0_83 = arith.constant 0 : index
    %c0_84 = arith.constant 0 : index
    %190 = vector.load %arg13[%c0_83, %c0_84] : memref<16x64xf32, #tpu.memory_space<vmem>>, vector<16x32xf32>
    tpu.vector_store %arg13[%c0_83, %c0_84], %168 {strides = array<i32>} : memref<16x64xf32, #tpu.memory_space<vmem>>, vector<16x32xf32>,
    %c0_85 = arith.constant 0 : index
    %c32_86 = arith.constant 32 : index
    %191 = vector.load %arg13[%c0_85, %c32_86] : memref<16x64xf32, #tpu.memory_space<vmem>>, vector<16x32xf32>
    tpu.vector_store %arg13[%c0_85, %c32_86], %184 {strides = array<i32>} : memref<16x64xf32, #tpu.memory_space<vmem>>, vector<16x32xf32>,
    %192 = arith.truncf %171 : vector<16x32xf32> to vector<16x32xbf16>
    %193 = arith.index_cast %140 : i32 to index
    %c0_87 = arith.constant 0 : index
    %194 = vector.load %arg8[%193, %c0_87] : memref<128x32xbf16, #tpu.memory_space<vmem>>, vector<16x32xbf16>
    tpu.vector_store %arg8[%193, %c0_87], %192 {strides = array<i32>} : memref<128x32xbf16, #tpu.memory_space<vmem>>, vector<16x32xbf16>,
    %195 = arith.truncf %187 : vector<16x32xf32> to vector<16x32xbf16>
    %196 = arith.index_cast %142 : i32 to index
    %c0_88 = arith.constant 0 : index
    %197 = vector.load %arg9[%196, %c0_88] : memref<128x32xbf16, #tpu.memory_space<vmem>>, vector<16x32xbf16>
    tpu.vector_store %arg9[%196, %c0_88], %195 {strides = array<i32>} : memref<128x32xbf16, #tpu.memory_space<vmem>>, vector<16x32xbf16>,
    %c3_i32 = arith.constant 3 : i32
    %c7_i32_89 = arith.constant 7 : i32
    %198 = arith.subi %c7_i32_89, %c3_i32 : i32
    %c16_i32_90 = arith.constant 16 : i32
    %199 = arith.muli %c3_i32, %c16_i32_90 : i32
    %200 = tpu.assume_multiple %199, 16 : i32
    %c16_i32_91 = arith.constant 16 : i32
    %201 = arith.muli %198, %c16_i32_91 : i32
    %202 = tpu.assume_multiple %201, 16 : i32
    %c0_92 = arith.constant 0 : index
    %c0_93 = arith.constant 0 : index
    %203 = vector.load %arg12[%c0_92, %c0_93] : memref<16x64xf32, #tpu.memory_space<vmem>>, vector<16x64xf32>
    %c0_94 = arith.constant 0 : index
    %c0_95 = arith.constant 0 : index
    %204 = vector.load %arg13[%c0_94, %c0_95] : memref<16x64xf32, #tpu.memory_space<vmem>>, vector<16x32xf32>
    %c0_96 = arith.constant 0 : index
    %c32_97 = arith.constant 32 : index
    %205 = vector.load %arg13[%c0_96, %c32_97] : memref<16x64xf32, #tpu.memory_space<vmem>>, vector<16x32xf32>
    %206 = arith.truncf %203 : vector<16x64xf32> to vector<16x64xbf16>
    %cst_98 = arith.constant dense<0.000000e+00> : vector<16x256xf32>
    %207 = tpu.matmul %206, %17, %cst_98 {dimension_numbers = #tpu.dot_dimension_numbers<[1], [0], [0], [1], [0, 0, 1, 1], [], []>} : vector<16x64xbf16>, vector<64x256xbf16>, vector<16x256xf32> -> vector<16x256xf32>
    %208 = vector.extract_strided_slice %207 {offsets = [0, 0], sizes = [16, 128], strides = [1, 1]} : vector<16x256xf32> to vector<16x128xf32>
    %209 = arith.index_cast %200 : i32 to index
    %c0_99 = arith.constant 0 : index
    %210 = vector.load %arg10[%209, %c0_99] : memref<128x128xf32, #tpu.memory_space<vmem>>, vector<16x128xf32>
    %211 = arith.addf %208, %210 : vector<16x128xf32>
    %212 = vector.extract_strided_slice %207 {offsets = [0, 128], sizes = [16, 128], strides = [1, 1]} : vector<16x256xf32> to vector<16x128xf32>
    %213 = arith.index_cast %202 : i32 to index
    %c0_100 = arith.constant 0 : index
    %214 = vector.load %arg11[%213, %c0_100] : memref<128x128xf32, #tpu.memory_space<vmem>>, vector<16x128xf32>
    %215 = arith.addf %212, %214 : vector<16x128xf32>
    %216 = vector.extract_strided_slice %211 {offsets = [0, 0], sizes = [16, 96], strides = [1, 1]} : vector<16x128xf32> to vector<16x96xf32>
    %217 = arith.negf %216 : vector<16x96xf32>
    %218 = math.exp %217 : vector<16x96xf32>
    %cst_101 = arith.constant 1.000000e+00 : f32
    %219 = vector.broadcast %cst_101 : f32 to vector<16x96xf32>
    %220 = arith.addf %219, %218 : vector<16x96xf32>
    %221 = arith.divf %219, %220 : vector<16x96xf32>
    %222 = vector.extract_strided_slice %211 {offsets = [0, 96], sizes = [16, 32], strides = [1, 1]} : vector<16x128xf32> to vector<16x32xf32>
    %223 = math.tanh %222 : vector<16x32xf32>
    %224 = vector.extract_strided_slice %221 {offsets = [0, 32], sizes = [16, 32], strides = [1, 1]} : vector<16x96xf32> to vector<16x32xf32>
    %225 = arith.mulf %224, %204 : vector<16x32xf32>
    %226 = vector.extract_strided_slice %221 {offsets = [0, 0], sizes = [16, 32], strides = [1, 1]} : vector<16x96xf32> to vector<16x32xf32>
    %227 = arith.mulf %226, %223 : vector<16x32xf32>
    %228 = arith.addf %225, %227 : vector<16x32xf32>
    %229 = vector.extract_strided_slice %221 {offsets = [0, 64], sizes = [16, 32], strides = [1, 1]} : vector<16x96xf32> to vector<16x32xf32>
    %230 = math.tanh %228 : vector<16x32xf32>
    %231 = arith.mulf %229, %230 : vector<16x32xf32>
    %232 = vector.extract_strided_slice %215 {offsets = [0, 0], sizes = [16, 96], strides = [1, 1]} : vector<16x128xf32> to vector<16x96xf32>
    %233 = arith.negf %232 : vector<16x96xf32>
    %234 = math.exp %233 : vector<16x96xf32>
    %cst_102 = arith.constant 1.000000e+00 : f32
    %235 = vector.broadcast %cst_102 : f32 to vector<16x96xf32>
    %236 = arith.addf %235, %234 : vector<16x96xf32>
    %237 = arith.divf %235, %236 : vector<16x96xf32>
    %238 = vector.extract_strided_slice %215 {offsets = [0, 96], sizes = [16, 32], strides = [1, 1]} : vector<16x128xf32> to vector<16x32xf32>
    %239 = math.tanh %238 : vector<16x32xf32>
    %240 = vector.extract_strided_slice %237 {offsets = [0, 32], sizes = [16, 32], strides = [1, 1]} : vector<16x96xf32> to vector<16x32xf32>
    %241 = arith.mulf %240, %205 : vector<16x32xf32>
    %242 = vector.extract_strided_slice %237 {offsets = [0, 0], sizes = [16, 32], strides = [1, 1]} : vector<16x96xf32> to vector<16x32xf32>
    %243 = arith.mulf %242, %239 : vector<16x32xf32>
    %244 = arith.addf %241, %243 : vector<16x32xf32>
    %245 = vector.extract_strided_slice %237 {offsets = [0, 64], sizes = [16, 32], strides = [1, 1]} : vector<16x96xf32> to vector<16x32xf32>
    %246 = math.tanh %244 : vector<16x32xf32>
    %247 = arith.mulf %245, %246 : vector<16x32xf32>
    %c0_103 = arith.constant 0 : index
    %c0_104 = arith.constant 0 : index
    %248 = vector.load %arg12[%c0_103, %c0_104] : memref<16x64xf32, #tpu.memory_space<vmem>>, vector<16x32xf32>
    tpu.vector_store %arg12[%c0_103, %c0_104], %231 {strides = array<i32>} : memref<16x64xf32, #tpu.memory_space<vmem>>, vector<16x32xf32>,
    %c0_105 = arith.constant 0 : index
    %c32_106 = arith.constant 32 : index
    %249 = vector.load %arg12[%c0_105, %c32_106] : memref<16x64xf32, #tpu.memory_space<vmem>>, vector<16x32xf32>
    tpu.vector_store %arg12[%c0_105, %c32_106], %247 {strides = array<i32>} : memref<16x64xf32, #tpu.memory_space<vmem>>, vector<16x32xf32>,
    %c0_107 = arith.constant 0 : index
    %c0_108 = arith.constant 0 : index
    %250 = vector.load %arg13[%c0_107, %c0_108] : memref<16x64xf32, #tpu.memory_space<vmem>>, vector<16x32xf32>
    tpu.vector_store %arg13[%c0_107, %c0_108], %228 {strides = array<i32>} : memref<16x64xf32, #tpu.memory_space<vmem>>, vector<16x32xf32>,
    %c0_109 = arith.constant 0 : index
    %c32_110 = arith.constant 32 : index
    %251 = vector.load %arg13[%c0_109, %c32_110] : memref<16x64xf32, #tpu.memory_space<vmem>>, vector<16x32xf32>
    tpu.vector_store %arg13[%c0_109, %c32_110], %244 {strides = array<i32>} : memref<16x64xf32, #tpu.memory_space<vmem>>, vector<16x32xf32>,
    %252 = arith.truncf %231 : vector<16x32xf32> to vector<16x32xbf16>
    %253 = arith.index_cast %200 : i32 to index
    %c0_111 = arith.constant 0 : index
    %254 = vector.load %arg8[%253, %c0_111] : memref<128x32xbf16, #tpu.memory_space<vmem>>, vector<16x32xbf16>
    tpu.vector_store %arg8[%253, %c0_111], %252 {strides = array<i32>} : memref<128x32xbf16, #tpu.memory_space<vmem>>, vector<16x32xbf16>,
    %255 = arith.truncf %247 : vector<16x32xf32> to vector<16x32xbf16>
    %256 = arith.index_cast %202 : i32 to index
    %c0_112 = arith.constant 0 : index
    %257 = vector.load %arg9[%256, %c0_112] : memref<128x32xbf16, #tpu.memory_space<vmem>>, vector<16x32xbf16>
    tpu.vector_store %arg9[%256, %c0_112], %255 {strides = array<i32>} : memref<128x32xbf16, #tpu.memory_space<vmem>>, vector<16x32xbf16>,
    %c4_i32 = arith.constant 4 : i32
    %c7_i32_113 = arith.constant 7 : i32
    %258 = arith.subi %c7_i32_113, %c4_i32 : i32
    %c16_i32_114 = arith.constant 16 : i32
    %259 = arith.muli %c4_i32, %c16_i32_114 : i32
    %260 = tpu.assume_multiple %259, 16 : i32
    %c16_i32_115 = arith.constant 16 : i32
    %261 = arith.muli %258, %c16_i32_115 : i32
    %262 = tpu.assume_multiple %261, 16 : i32
    %c0_116 = arith.constant 0 : index
    %c0_117 = arith.constant 0 : index
    %263 = vector.load %arg12[%c0_116, %c0_117] : memref<16x64xf32, #tpu.memory_space<vmem>>, vector<16x64xf32>
    %c0_118 = arith.constant 0 : index
    %c0_119 = arith.constant 0 : index
    %264 = vector.load %arg13[%c0_118, %c0_119] : memref<16x64xf32, #tpu.memory_space<vmem>>, vector<16x32xf32>
    %c0_120 = arith.constant 0 : index
    %c32_121 = arith.constant 32 : index
    %265 = vector.load %arg13[%c0_120, %c32_121] : memref<16x64xf32, #tpu.memory_space<vmem>>, vector<16x32xf32>
    %266 = arith.truncf %263 : vector<16x64xf32> to vector<16x64xbf16>
    %cst_122 = arith.constant dense<0.000000e+00> : vector<16x256xf32>
    %267 = tpu.matmul %266, %17, %cst_122 {dimension_numbers = #tpu.dot_dimension_numbers<[1], [0], [0], [1], [0, 0, 1, 1], [], []>} : vector<16x64xbf16>, vector<64x256xbf16>, vector<16x256xf32> -> vector<16x256xf32>
    %268 = vector.extract_strided_slice %267 {offsets = [0, 0], sizes = [16, 128], strides = [1, 1]} : vector<16x256xf32> to vector<16x128xf32>
    %269 = arith.index_cast %260 : i32 to index
    %c0_123 = arith.constant 0 : index
    %270 = vector.load %arg10[%269, %c0_123] : memref<128x128xf32, #tpu.memory_space<vmem>>, vector<16x128xf32>
    %271 = arith.addf %268, %270 : vector<16x128xf32>
    %272 = vector.extract_strided_slice %267 {offsets = [0, 128], sizes = [16, 128], strides = [1, 1]} : vector<16x256xf32> to vector<16x128xf32>
    %273 = arith.index_cast %262 : i32 to index
    %c0_124 = arith.constant 0 : index
    %274 = vector.load %arg11[%273, %c0_124] : memref<128x128xf32, #tpu.memory_space<vmem>>, vector<16x128xf32>
    %275 = arith.addf %272, %274 : vector<16x128xf32>
    %276 = vector.extract_strided_slice %271 {offsets = [0, 0], sizes = [16, 96], strides = [1, 1]} : vector<16x128xf32> to vector<16x96xf32>
    %277 = arith.negf %276 : vector<16x96xf32>
    %278 = math.exp %277 : vector<16x96xf32>
    %cst_125 = arith.constant 1.000000e+00 : f32
    %279 = vector.broadcast %cst_125 : f32 to vector<16x96xf32>
    %280 = arith.addf %279, %278 : vector<16x96xf32>
    %281 = arith.divf %279, %280 : vector<16x96xf32>
    %282 = vector.extract_strided_slice %271 {offsets = [0, 96], sizes = [16, 32], strides = [1, 1]} : vector<16x128xf32> to vector<16x32xf32>
    %283 = math.tanh %282 : vector<16x32xf32>
    %284 = vector.extract_strided_slice %281 {offsets = [0, 32], sizes = [16, 32], strides = [1, 1]} : vector<16x96xf32> to vector<16x32xf32>
    %285 = arith.mulf %284, %264 : vector<16x32xf32>
    %286 = vector.extract_strided_slice %281 {offsets = [0, 0], sizes = [16, 32], strides = [1, 1]} : vector<16x96xf32> to vector<16x32xf32>
    %287 = arith.mulf %286, %283 : vector<16x32xf32>
    %288 = arith.addf %285, %287 : vector<16x32xf32>
    %289 = vector.extract_strided_slice %281 {offsets = [0, 64], sizes = [16, 32], strides = [1, 1]} : vector<16x96xf32> to vector<16x32xf32>
    %290 = math.tanh %288 : vector<16x32xf32>
    %291 = arith.mulf %289, %290 : vector<16x32xf32>
    %292 = vector.extract_strided_slice %275 {offsets = [0, 0], sizes = [16, 96], strides = [1, 1]} : vector<16x128xf32> to vector<16x96xf32>
    %293 = arith.negf %292 : vector<16x96xf32>
    %294 = math.exp %293 : vector<16x96xf32>
    %cst_126 = arith.constant 1.000000e+00 : f32
    %295 = vector.broadcast %cst_126 : f32 to vector<16x96xf32>
    %296 = arith.addf %295, %294 : vector<16x96xf32>
    %297 = arith.divf %295, %296 : vector<16x96xf32>
    %298 = vector.extract_strided_slice %275 {offsets = [0, 96], sizes = [16, 32], strides = [1, 1]} : vector<16x128xf32> to vector<16x32xf32>
    %299 = math.tanh %298 : vector<16x32xf32>
    %300 = vector.extract_strided_slice %297 {offsets = [0, 32], sizes = [16, 32], strides = [1, 1]} : vector<16x96xf32> to vector<16x32xf32>
    %301 = arith.mulf %300, %265 : vector<16x32xf32>
    %302 = vector.extract_strided_slice %297 {offsets = [0, 0], sizes = [16, 32], strides = [1, 1]} : vector<16x96xf32> to vector<16x32xf32>
    %303 = arith.mulf %302, %299 : vector<16x32xf32>
    %304 = arith.addf %301, %303 : vector<16x32xf32>
    %305 = vector.extract_strided_slice %297 {offsets = [0, 64], sizes = [16, 32], strides = [1, 1]} : vector<16x96xf32> to vector<16x32xf32>
    %306 = math.tanh %304 : vector<16x32xf32>
    %307 = arith.mulf %305, %306 : vector<16x32xf32>
    %c0_127 = arith.constant 0 : index
    %c0_128 = arith.constant 0 : index
    %308 = vector.load %arg12[%c0_127, %c0_128] : memref<16x64xf32, #tpu.memory_space<vmem>>, vector<16x32xf32>
    tpu.vector_store %arg12[%c0_127, %c0_128], %291 {strides = array<i32>} : memref<16x64xf32, #tpu.memory_space<vmem>>, vector<16x32xf32>,
    %c0_129 = arith.constant 0 : index
    %c32_130 = arith.constant 32 : index
    %309 = vector.load %arg12[%c0_129, %c32_130] : memref<16x64xf32, #tpu.memory_space<vmem>>, vector<16x32xf32>
    tpu.vector_store %arg12[%c0_129, %c32_130], %307 {strides = array<i32>} : memref<16x64xf32, #tpu.memory_space<vmem>>, vector<16x32xf32>,
    %c0_131 = arith.constant 0 : index
    %c0_132 = arith.constant 0 : index
    %310 = vector.load %arg13[%c0_131, %c0_132] : memref<16x64xf32, #tpu.memory_space<vmem>>, vector<16x32xf32>
    tpu.vector_store %arg13[%c0_131, %c0_132], %288 {strides = array<i32>} : memref<16x64xf32, #tpu.memory_space<vmem>>, vector<16x32xf32>,
    %c0_133 = arith.constant 0 : index
    %c32_134 = arith.constant 32 : index
    %311 = vector.load %arg13[%c0_133, %c32_134] : memref<16x64xf32, #tpu.memory_space<vmem>>, vector<16x32xf32>
    tpu.vector_store %arg13[%c0_133, %c32_134], %304 {strides = array<i32>} : memref<16x64xf32, #tpu.memory_space<vmem>>, vector<16x32xf32>,
    %312 = arith.truncf %291 : vector<16x32xf32> to vector<16x32xbf16>
    %313 = arith.index_cast %260 : i32 to index
    %c0_135 = arith.constant 0 : index
    %314 = vector.load %arg8[%313, %c0_135] : memref<128x32xbf16, #tpu.memory_space<vmem>>, vector<16x32xbf16>
    tpu.vector_store %arg8[%313, %c0_135], %312 {strides = array<i32>} : memref<128x32xbf16, #tpu.memory_space<vmem>>, vector<16x32xbf16>,
    %315 = arith.truncf %307 : vector<16x32xf32> to vector<16x32xbf16>
    %316 = arith.index_cast %262 : i32 to index
    %c0_136 = arith.constant 0 : index
    %317 = vector.load %arg9[%316, %c0_136] : memref<128x32xbf16, #tpu.memory_space<vmem>>, vector<16x32xbf16>
    tpu.vector_store %arg9[%316, %c0_136], %315 {strides = array<i32>} : memref<128x32xbf16, #tpu.memory_space<vmem>>, vector<16x32xbf16>,
    %c5_i32 = arith.constant 5 : i32
    %c7_i32_137 = arith.constant 7 : i32
    %318 = arith.subi %c7_i32_137, %c5_i32 : i32
    %c16_i32_138 = arith.constant 16 : i32
    %319 = arith.muli %c5_i32, %c16_i32_138 : i32
    %320 = tpu.assume_multiple %319, 16 : i32
    %c16_i32_139 = arith.constant 16 : i32
    %321 = arith.muli %318, %c16_i32_139 : i32
    %322 = tpu.assume_multiple %321, 16 : i32
    %c0_140 = arith.constant 0 : index
    %c0_141 = arith.constant 0 : index
    %323 = vector.load %arg12[%c0_140, %c0_141] : memref<16x64xf32, #tpu.memory_space<vmem>>, vector<16x64xf32>
    %c0_142 = arith.constant 0 : index
    %c0_143 = arith.constant 0 : index
    %324 = vector.load %arg13[%c0_142, %c0_143] : memref<16x64xf32, #tpu.memory_space<vmem>>, vector<16x32xf32>
    %c0_144 = arith.constant 0 : index
    %c32_145 = arith.constant 32 : index
    %325 = vector.load %arg13[%c0_144, %c32_145] : memref<16x64xf32, #tpu.memory_space<vmem>>, vector<16x32xf32>
    %326 = arith.truncf %323 : vector<16x64xf32> to vector<16x64xbf16>
    %cst_146 = arith.constant dense<0.000000e+00> : vector<16x256xf32>
    %327 = tpu.matmul %326, %17, %cst_146 {dimension_numbers = #tpu.dot_dimension_numbers<[1], [0], [0], [1], [0, 0, 1, 1], [], []>} : vector<16x64xbf16>, vector<64x256xbf16>, vector<16x256xf32> -> vector<16x256xf32>
    %328 = vector.extract_strided_slice %327 {offsets = [0, 0], sizes = [16, 128], strides = [1, 1]} : vector<16x256xf32> to vector<16x128xf32>
    %329 = arith.index_cast %320 : i32 to index
    %c0_147 = arith.constant 0 : index
    %330 = vector.load %arg10[%329, %c0_147] : memref<128x128xf32, #tpu.memory_space<vmem>>, vector<16x128xf32>
    %331 = arith.addf %328, %330 : vector<16x128xf32>
    %332 = vector.extract_strided_slice %327 {offsets = [0, 128], sizes = [16, 128], strides = [1, 1]} : vector<16x256xf32> to vector<16x128xf32>
    %333 = arith.index_cast %322 : i32 to index
    %c0_148 = arith.constant 0 : index
    %334 = vector.load %arg11[%333, %c0_148] : memref<128x128xf32, #tpu.memory_space<vmem>>, vector<16x128xf32>
    %335 = arith.addf %332, %334 : vector<16x128xf32>
    %336 = vector.extract_strided_slice %331 {offsets = [0, 0], sizes = [16, 96], strides = [1, 1]} : vector<16x128xf32> to vector<16x96xf32>
    %337 = arith.negf %336 : vector<16x96xf32>
    %338 = math.exp %337 : vector<16x96xf32>
    %cst_149 = arith.constant 1.000000e+00 : f32
    %339 = vector.broadcast %cst_149 : f32 to vector<16x96xf32>
    %340 = arith.addf %339, %338 : vector<16x96xf32>
    %341 = arith.divf %339, %340 : vector<16x96xf32>
    %342 = vector.extract_strided_slice %331 {offsets = [0, 96], sizes = [16, 32], strides = [1, 1]} : vector<16x128xf32> to vector<16x32xf32>
    %343 = math.tanh %342 : vector<16x32xf32>
    %344 = vector.extract_strided_slice %341 {offsets = [0, 32], sizes = [16, 32], strides = [1, 1]} : vector<16x96xf32> to vector<16x32xf32>
    %345 = arith.mulf %344, %324 : vector<16x32xf32>
    %346 = vector.extract_strided_slice %341 {offsets = [0, 0], sizes = [16, 32], strides = [1, 1]} : vector<16x96xf32> to vector<16x32xf32>
    %347 = arith.mulf %346, %343 : vector<16x32xf32>
    %348 = arith.addf %345, %347 : vector<16x32xf32>
    %349 = vector.extract_strided_slice %341 {offsets = [0, 64], sizes = [16, 32], strides = [1, 1]} : vector<16x96xf32> to vector<16x32xf32>
    %350 = math.tanh %348 : vector<16x32xf32>
    %351 = arith.mulf %349, %350 : vector<16x32xf32>
    %352 = vector.extract_strided_slice %335 {offsets = [0, 0], sizes = [16, 96], strides = [1, 1]} : vector<16x128xf32> to vector<16x96xf32>
    %353 = arith.negf %352 : vector<16x96xf32>
    %354 = math.exp %353 : vector<16x96xf32>
    %cst_150 = arith.constant 1.000000e+00 : f32
    %355 = vector.broadcast %cst_150 : f32 to vector<16x96xf32>
    %356 = arith.addf %355, %354 : vector<16x96xf32>
    %357 = arith.divf %355, %356 : vector<16x96xf32>
    %358 = vector.extract_strided_slice %335 {offsets = [0, 96], sizes = [16, 32], strides = [1, 1]} : vector<16x128xf32> to vector<16x32xf32>
    %359 = math.tanh %358 : vector<16x32xf32>
    %360 = vector.extract_strided_slice %357 {offsets = [0, 32], sizes = [16, 32], strides = [1, 1]} : vector<16x96xf32> to vector<16x32xf32>
    %361 = arith.mulf %360, %325 : vector<16x32xf32>
    %362 = vector.extract_strided_slice %357 {offsets = [0, 0], sizes = [16, 32], strides = [1, 1]} : vector<16x96xf32> to vector<16x32xf32>
    %363 = arith.mulf %362, %359 : vector<16x32xf32>
    %364 = arith.addf %361, %363 : vector<16x32xf32>
    %365 = vector.extract_strided_slice %357 {offsets = [0, 64], sizes = [16, 32], strides = [1, 1]} : vector<16x96xf32> to vector<16x32xf32>
    %366 = math.tanh %364 : vector<16x32xf32>
    %367 = arith.mulf %365, %366 : vector<16x32xf32>
    %c0_151 = arith.constant 0 : index
    %c0_152 = arith.constant 0 : index
    %368 = vector.load %arg12[%c0_151, %c0_152] : memref<16x64xf32, #tpu.memory_space<vmem>>, vector<16x32xf32>
    tpu.vector_store %arg12[%c0_151, %c0_152], %351 {strides = array<i32>} : memref<16x64xf32, #tpu.memory_space<vmem>>, vector<16x32xf32>,
    %c0_153 = arith.constant 0 : index
    %c32_154 = arith.constant 32 : index
    %369 = vector.load %arg12[%c0_153, %c32_154] : memref<16x64xf32, #tpu.memory_space<vmem>>, vector<16x32xf32>
    tpu.vector_store %arg12[%c0_153, %c32_154], %367 {strides = array<i32>} : memref<16x64xf32, #tpu.memory_space<vmem>>, vector<16x32xf32>,
    %c0_155 = arith.constant 0 : index
    %c0_156 = arith.constant 0 : index
    %370 = vector.load %arg13[%c0_155, %c0_156] : memref<16x64xf32, #tpu.memory_space<vmem>>, vector<16x32xf32>
    tpu.vector_store %arg13[%c0_155, %c0_156], %348 {strides = array<i32>} : memref<16x64xf32, #tpu.memory_space<vmem>>, vector<16x32xf32>,
    %c0_157 = arith.constant 0 : index
    %c32_158 = arith.constant 32 : index
    %371 = vector.load %arg13[%c0_157, %c32_158] : memref<16x64xf32, #tpu.memory_space<vmem>>, vector<16x32xf32>
    tpu.vector_store %arg13[%c0_157, %c32_158], %364 {strides = array<i32>} : memref<16x64xf32, #tpu.memory_space<vmem>>, vector<16x32xf32>,
    %372 = arith.truncf %351 : vector<16x32xf32> to vector<16x32xbf16>
    %373 = arith.index_cast %320 : i32 to index
    %c0_159 = arith.constant 0 : index
    %374 = vector.load %arg8[%373, %c0_159] : memref<128x32xbf16, #tpu.memory_space<vmem>>, vector<16x32xbf16>
    tpu.vector_store %arg8[%373, %c0_159], %372 {strides = array<i32>} : memref<128x32xbf16, #tpu.memory_space<vmem>>, vector<16x32xbf16>,
    %375 = arith.truncf %367 : vector<16x32xf32> to vector<16x32xbf16>
    %376 = arith.index_cast %322 : i32 to index
    %c0_160 = arith.constant 0 : index
    %377 = vector.load %arg9[%376, %c0_160] : memref<128x32xbf16, #tpu.memory_space<vmem>>, vector<16x32xbf16>
    tpu.vector_store %arg9[%376, %c0_160], %375 {strides = array<i32>} : memref<128x32xbf16, #tpu.memory_space<vmem>>, vector<16x32xbf16>,
    %c6_i32 = arith.constant 6 : i32
    %c7_i32_161 = arith.constant 7 : i32
    %378 = arith.subi %c7_i32_161, %c6_i32 : i32
    %c16_i32_162 = arith.constant 16 : i32
    %379 = arith.muli %c6_i32, %c16_i32_162 : i32
    %380 = tpu.assume_multiple %379, 16 : i32
    %c16_i32_163 = arith.constant 16 : i32
    %381 = arith.muli %378, %c16_i32_163 : i32
    %382 = tpu.assume_multiple %381, 16 : i32
    %c0_164 = arith.constant 0 : index
    %c0_165 = arith.constant 0 : index
    %383 = vector.load %arg12[%c0_164, %c0_165] : memref<16x64xf32, #tpu.memory_space<vmem>>, vector<16x64xf32>
    %c0_166 = arith.constant 0 : index
    %c0_167 = arith.constant 0 : index
    %384 = vector.load %arg13[%c0_166, %c0_167] : memref<16x64xf32, #tpu.memory_space<vmem>>, vector<16x32xf32>
    %c0_168 = arith.constant 0 : index
    %c32_169 = arith.constant 32 : index
    %385 = vector.load %arg13[%c0_168, %c32_169] : memref<16x64xf32, #tpu.memory_space<vmem>>, vector<16x32xf32>
    %386 = arith.truncf %383 : vector<16x64xf32> to vector<16x64xbf16>
    %cst_170 = arith.constant dense<0.000000e+00> : vector<16x256xf32>
    %387 = tpu.matmul %386, %17, %cst_170 {dimension_numbers = #tpu.dot_dimension_numbers<[1], [0], [0], [1], [0, 0, 1, 1], [], []>} : vector<16x64xbf16>, vector<64x256xbf16>, vector<16x256xf32> -> vector<16x256xf32>
    %388 = vector.extract_strided_slice %387 {offsets = [0, 0], sizes = [16, 128], strides = [1, 1]} : vector<16x256xf32> to vector<16x128xf32>
    %389 = arith.index_cast %380 : i32 to index
    %c0_171 = arith.constant 0 : index
    %390 = vector.load %arg10[%389, %c0_171] : memref<128x128xf32, #tpu.memory_space<vmem>>, vector<16x128xf32>
    %391 = arith.addf %388, %390 : vector<16x128xf32>
    %392 = vector.extract_strided_slice %387 {offsets = [0, 128], sizes = [16, 128], strides = [1, 1]} : vector<16x256xf32> to vector<16x128xf32>
    %393 = arith.index_cast %382 : i32 to index
    %c0_172 = arith.constant 0 : index
    %394 = vector.load %arg11[%393, %c0_172] : memref<128x128xf32, #tpu.memory_space<vmem>>, vector<16x128xf32>
    %395 = arith.addf %392, %394 : vector<16x128xf32>
    %396 = vector.extract_strided_slice %391 {offsets = [0, 0], sizes = [16, 96], strides = [1, 1]} : vector<16x128xf32> to vector<16x96xf32>
    %397 = arith.negf %396 : vector<16x96xf32>
    %398 = math.exp %397 : vector<16x96xf32>
    %cst_173 = arith.constant 1.000000e+00 : f32
    %399 = vector.broadcast %cst_173 : f32 to vector<16x96xf32>
    %400 = arith.addf %399, %398 : vector<16x96xf32>
    %401 = arith.divf %399, %400 : vector<16x96xf32>
    %402 = vector.extract_strided_slice %391 {offsets = [0, 96], sizes = [16, 32], strides = [1, 1]} : vector<16x128xf32> to vector<16x32xf32>
    %403 = math.tanh %402 : vector<16x32xf32>
    %404 = vector.extract_strided_slice %401 {offsets = [0, 32], sizes = [16, 32], strides = [1, 1]} : vector<16x96xf32> to vector<16x32xf32>
    %405 = arith.mulf %404, %384 : vector<16x32xf32>
    %406 = vector.extract_strided_slice %401 {offsets = [0, 0], sizes = [16, 32], strides = [1, 1]} : vector<16x96xf32> to vector<16x32xf32>
    %407 = arith.mulf %406, %403 : vector<16x32xf32>
    %408 = arith.addf %405, %407 : vector<16x32xf32>
    %409 = vector.extract_strided_slice %401 {offsets = [0, 64], sizes = [16, 32], strides = [1, 1]} : vector<16x96xf32> to vector<16x32xf32>
    %410 = math.tanh %408 : vector<16x32xf32>
    %411 = arith.mulf %409, %410 : vector<16x32xf32>
    %412 = vector.extract_strided_slice %395 {offsets = [0, 0], sizes = [16, 96], strides = [1, 1]} : vector<16x128xf32> to vector<16x96xf32>
    %413 = arith.negf %412 : vector<16x96xf32>
    %414 = math.exp %413 : vector<16x96xf32>
    %cst_174 = arith.constant 1.000000e+00 : f32
    %415 = vector.broadcast %cst_174 : f32 to vector<16x96xf32>
    %416 = arith.addf %415, %414 : vector<16x96xf32>
    %417 = arith.divf %415, %416 : vector<16x96xf32>
    %418 = vector.extract_strided_slice %395 {offsets = [0, 96], sizes = [16, 32], strides = [1, 1]} : vector<16x128xf32> to vector<16x32xf32>
    %419 = math.tanh %418 : vector<16x32xf32>
    %420 = vector.extract_strided_slice %417 {offsets = [0, 32], sizes = [16, 32], strides = [1, 1]} : vector<16x96xf32> to vector<16x32xf32>
    %421 = arith.mulf %420, %385 : vector<16x32xf32>
    %422 = vector.extract_strided_slice %417 {offsets = [0, 0], sizes = [16, 32], strides = [1, 1]} : vector<16x96xf32> to vector<16x32xf32>
    %423 = arith.mulf %422, %419 : vector<16x32xf32>
    %424 = arith.addf %421, %423 : vector<16x32xf32>
    %425 = vector.extract_strided_slice %417 {offsets = [0, 64], sizes = [16, 32], strides = [1, 1]} : vector<16x96xf32> to vector<16x32xf32>
    %426 = math.tanh %424 : vector<16x32xf32>
    %427 = arith.mulf %425, %426 : vector<16x32xf32>
    %c0_175 = arith.constant 0 : index
    %c0_176 = arith.constant 0 : index
    %428 = vector.load %arg12[%c0_175, %c0_176] : memref<16x64xf32, #tpu.memory_space<vmem>>, vector<16x32xf32>
    tpu.vector_store %arg12[%c0_175, %c0_176], %411 {strides = array<i32>} : memref<16x64xf32, #tpu.memory_space<vmem>>, vector<16x32xf32>,
    %c0_177 = arith.constant 0 : index
    %c32_178 = arith.constant 32 : index
    %429 = vector.load %arg12[%c0_177, %c32_178] : memref<16x64xf32, #tpu.memory_space<vmem>>, vector<16x32xf32>
    tpu.vector_store %arg12[%c0_177, %c32_178], %427 {strides = array<i32>} : memref<16x64xf32, #tpu.memory_space<vmem>>, vector<16x32xf32>,
    %c0_179 = arith.constant 0 : index
    %c0_180 = arith.constant 0 : index
    %430 = vector.load %arg13[%c0_179, %c0_180] : memref<16x64xf32, #tpu.memory_space<vmem>>, vector<16x32xf32>
    tpu.vector_store %arg13[%c0_179, %c0_180], %408 {strides = array<i32>} : memref<16x64xf32, #tpu.memory_space<vmem>>, vector<16x32xf32>,
    %c0_181 = arith.constant 0 : index
    %c32_182 = arith.constant 32 : index
    %431 = vector.load %arg13[%c0_181, %c32_182] : memref<16x64xf32, #tpu.memory_space<vmem>>, vector<16x32xf32>
    tpu.vector_store %arg13[%c0_181, %c32_182], %424 {strides = array<i32>} : memref<16x64xf32, #tpu.memory_space<vmem>>, vector<16x32xf32>,
    %432 = arith.truncf %411 : vector<16x32xf32> to vector<16x32xbf16>
    %433 = arith.index_cast %380 : i32 to index
    %c0_183 = arith.constant 0 : index
    %434 = vector.load %arg8[%433, %c0_183] : memref<128x32xbf16, #tpu.memory_space<vmem>>, vector<16x32xbf16>
    tpu.vector_store %arg8[%433, %c0_183], %432 {strides = array<i32>} : memref<128x32xbf16, #tpu.memory_space<vmem>>, vector<16x32xbf16>,
    %435 = arith.truncf %427 : vector<16x32xf32> to vector<16x32xbf16>
    %436 = arith.index_cast %382 : i32 to index
    %c0_184 = arith.constant 0 : index
    %437 = vector.load %arg9[%436, %c0_184] : memref<128x32xbf16, #tpu.memory_space<vmem>>, vector<16x32xbf16>
    tpu.vector_store %arg9[%436, %c0_184], %435 {strides = array<i32>} : memref<128x32xbf16, #tpu.memory_space<vmem>>, vector<16x32xbf16>,
    %c7_i32_185 = arith.constant 7 : i32
    %c7_i32_186 = arith.constant 7 : i32
    %438 = arith.subi %c7_i32_186, %c7_i32_185 : i32
    %c16_i32_187 = arith.constant 16 : i32
    %439 = arith.muli %c7_i32_185, %c16_i32_187 : i32
    %440 = tpu.assume_multiple %439, 16 : i32
    %c16_i32_188 = arith.constant 16 : i32
    %441 = arith.muli %438, %c16_i32_188 : i32
    %442 = tpu.assume_multiple %441, 16 : i32
    %c0_189 = arith.constant 0 : index
    %c0_190 = arith.constant 0 : index
    %443 = vector.load %arg12[%c0_189, %c0_190] : memref<16x64xf32, #tpu.memory_space<vmem>>, vector<16x64xf32>
    %c0_191 = arith.constant 0 : index
    %c0_192 = arith.constant 0 : index
    %444 = vector.load %arg13[%c0_191, %c0_192] : memref<16x64xf32, #tpu.memory_space<vmem>>, vector<16x32xf32>
    %c0_193 = arith.constant 0 : index
    %c32_194 = arith.constant 32 : index
    %445 = vector.load %arg13[%c0_193, %c32_194] : memref<16x64xf32, #tpu.memory_space<vmem>>, vector<16x32xf32>
    %446 = arith.truncf %443 : vector<16x64xf32> to vector<16x64xbf16>
    %cst_195 = arith.constant dense<0.000000e+00> : vector<16x256xf32>
    %447 = tpu.matmul %446, %17, %cst_195 {dimension_numbers = #tpu.dot_dimension_numbers<[1], [0], [0], [1], [0, 0, 1, 1], [], []>} : vector<16x64xbf16>, vector<64x256xbf16>, vector<16x256xf32> -> vector<16x256xf32>
    %448 = vector.extract_strided_slice %447 {offsets = [0, 0], sizes = [16, 128], strides = [1, 1]} : vector<16x256xf32> to vector<16x128xf32>
    %449 = arith.index_cast %440 : i32 to index
    %c0_196 = arith.constant 0 : index
    %450 = vector.load %arg10[%449, %c0_196] : memref<128x128xf32, #tpu.memory_space<vmem>>, vector<16x128xf32>
    %451 = arith.addf %448, %450 : vector<16x128xf32>
    %452 = vector.extract_strided_slice %447 {offsets = [0, 128], sizes = [16, 128], strides = [1, 1]} : vector<16x256xf32> to vector<16x128xf32>
    %453 = arith.index_cast %442 : i32 to index
    %c0_197 = arith.constant 0 : index
    %454 = vector.load %arg11[%453, %c0_197] : memref<128x128xf32, #tpu.memory_space<vmem>>, vector<16x128xf32>
    %455 = arith.addf %452, %454 : vector<16x128xf32>
    %456 = vector.extract_strided_slice %451 {offsets = [0, 0], sizes = [16, 96], strides = [1, 1]} : vector<16x128xf32> to vector<16x96xf32>
    %457 = arith.negf %456 : vector<16x96xf32>
    %458 = math.exp %457 : vector<16x96xf32>
    %cst_198 = arith.constant 1.000000e+00 : f32
    %459 = vector.broadcast %cst_198 : f32 to vector<16x96xf32>
    %460 = arith.addf %459, %458 : vector<16x96xf32>
    %461 = arith.divf %459, %460 : vector<16x96xf32>
    %462 = vector.extract_strided_slice %451 {offsets = [0, 96], sizes = [16, 32], strides = [1, 1]} : vector<16x128xf32> to vector<16x32xf32>
    %463 = math.tanh %462 : vector<16x32xf32>
    %464 = vector.extract_strided_slice %461 {offsets = [0, 32], sizes = [16, 32], strides = [1, 1]} : vector<16x96xf32> to vector<16x32xf32>
    %465 = arith.mulf %464, %444 : vector<16x32xf32>
    %466 = vector.extract_strided_slice %461 {offsets = [0, 0], sizes = [16, 32], strides = [1, 1]} : vector<16x96xf32> to vector<16x32xf32>
    %467 = arith.mulf %466, %463 : vector<16x32xf32>
    %468 = arith.addf %465, %467 : vector<16x32xf32>
    %469 = vector.extract_strided_slice %461 {offsets = [0, 64], sizes = [16, 32], strides = [1, 1]} : vector<16x96xf32> to vector<16x32xf32>
    %470 = math.tanh %468 : vector<16x32xf32>
    %471 = arith.mulf %469, %470 : vector<16x32xf32>
    %472 = vector.extract_strided_slice %455 {offsets = [0, 0], sizes = [16, 96], strides = [1, 1]} : vector<16x128xf32> to vector<16x96xf32>
    %473 = arith.negf %472 : vector<16x96xf32>
    %474 = math.exp %473 : vector<16x96xf32>
    %cst_199 = arith.constant 1.000000e+00 : f32
    %475 = vector.broadcast %cst_199 : f32 to vector<16x96xf32>
    %476 = arith.addf %475, %474 : vector<16x96xf32>
    %477 = arith.divf %475, %476 : vector<16x96xf32>
    %478 = vector.extract_strided_slice %455 {offsets = [0, 96], sizes = [16, 32], strides = [1, 1]} : vector<16x128xf32> to vector<16x32xf32>
    %479 = math.tanh %478 : vector<16x32xf32>
    %480 = vector.extract_strided_slice %477 {offsets = [0, 32], sizes = [16, 32], strides = [1, 1]} : vector<16x96xf32> to vector<16x32xf32>
    %481 = arith.mulf %480, %445 : vector<16x32xf32>
    %482 = vector.extract_strided_slice %477 {offsets = [0, 0], sizes = [16, 32], strides = [1, 1]} : vector<16x96xf32> to vector<16x32xf32>
    %483 = arith.mulf %482, %479 : vector<16x32xf32>
    %484 = arith.addf %481, %483 : vector<16x32xf32>
    %485 = vector.extract_strided_slice %477 {offsets = [0, 64], sizes = [16, 32], strides = [1, 1]} : vector<16x96xf32> to vector<16x32xf32>
    %486 = math.tanh %484 : vector<16x32xf32>
    %487 = arith.mulf %485, %486 : vector<16x32xf32>
    %c0_200 = arith.constant 0 : index
    %c0_201 = arith.constant 0 : index
    %488 = vector.load %arg12[%c0_200, %c0_201] : memref<16x64xf32, #tpu.memory_space<vmem>>, vector<16x32xf32>
    tpu.vector_store %arg12[%c0_200, %c0_201], %471 {strides = array<i32>} : memref<16x64xf32, #tpu.memory_space<vmem>>, vector<16x32xf32>,
    %c0_202 = arith.constant 0 : index
    %c32_203 = arith.constant 32 : index
    %489 = vector.load %arg12[%c0_202, %c32_203] : memref<16x64xf32, #tpu.memory_space<vmem>>, vector<16x32xf32>
    tpu.vector_store %arg12[%c0_202, %c32_203], %487 {strides = array<i32>} : memref<16x64xf32, #tpu.memory_space<vmem>>, vector<16x32xf32>,
    %c0_204 = arith.constant 0 : index
    %c0_205 = arith.constant 0 : index
    %490 = vector.load %arg13[%c0_204, %c0_205] : memref<16x64xf32, #tpu.memory_space<vmem>>, vector<16x32xf32>
    tpu.vector_store %arg13[%c0_204, %c0_205], %468 {strides = array<i32>} : memref<16x64xf32, #tpu.memory_space<vmem>>, vector<16x32xf32>,
    %c0_206 = arith.constant 0 : index
    %c32_207 = arith.constant 32 : index
    %491 = vector.load %arg13[%c0_206, %c32_207] : memref<16x64xf32, #tpu.memory_space<vmem>>, vector<16x32xf32>
    tpu.vector_store %arg13[%c0_206, %c32_207], %484 {strides = array<i32>} : memref<16x64xf32, #tpu.memory_space<vmem>>, vector<16x32xf32>,
    %492 = arith.truncf %471 : vector<16x32xf32> to vector<16x32xbf16>
    %493 = arith.index_cast %440 : i32 to index
    %c0_208 = arith.constant 0 : index
    %494 = vector.load %arg8[%493, %c0_208] : memref<128x32xbf16, #tpu.memory_space<vmem>>, vector<16x32xbf16>
    tpu.vector_store %arg8[%493, %c0_208], %492 {strides = array<i32>} : memref<128x32xbf16, #tpu.memory_space<vmem>>, vector<16x32xbf16>,
    %495 = arith.truncf %487 : vector<16x32xf32> to vector<16x32xbf16>
    %496 = arith.index_cast %442 : i32 to index
    %c0_209 = arith.constant 0 : index
    %497 = vector.load %arg9[%496, %c0_209] : memref<128x32xbf16, #tpu.memory_space<vmem>>, vector<16x32xbf16>
    tpu.vector_store %arg9[%496, %c0_209], %495 {strides = array<i32>} : memref<128x32xbf16, #tpu.memory_space<vmem>>, vector<16x32xbf16>,
    %c8_i32 = arith.constant 8 : i32
    return
  }
  func.func @transform_0(%arg0: i32) -> (i32, i32) {
    %c0_i32 = arith.constant 0 : i32
    %c0_i32_0 = arith.constant 0 : i32
    return %arg0, %c0_i32 : i32, i32
  }
  func.func @transform_1(%arg0: i32) -> (i32, i32) {
    %c0_i32 = arith.constant 0 : i32
    %0 = arith.subi %c0_i32, %arg0 : i32
    %c0_i32_0 = arith.constant 0 : i32
    %c0_i32_1 = arith.constant 0 : i32
    return %0, %c0_i32_0 : i32, i32
  }
  func.func @transform_2(%arg0: i32) -> (i32, i32) {
    %c0_i32 = arith.constant 0 : i32
    %c0_i32_0 = arith.constant 0 : i32
    %c0_i32_1 = arith.constant 0 : i32
    return %c0_i32, %c0_i32_0 : i32, i32
  }
  func.func @transform_3(%arg0: i32) -> (i32, i32) {
    %c0_i32 = arith.constant 0 : i32
    %c0_i32_0 = arith.constant 0 : i32
    %c0_i32_1 = arith.constant 0 : i32
    return %c0_i32, %c0_i32_0 : i32, i32
  }
  func.func @transform_4(%arg0: i32) -> (i32, i32) {
    %c0_i32 = arith.constant 0 : i32
    %c0_i32_0 = arith.constant 0 : i32
    %c0_i32_1 = arith.constant 0 : i32
    return %c0_i32, %c0_i32_0 : i32, i32
  }
  func.func @transform_5(%arg0: i32) -> (i32, i32) {
    %c0_i32 = arith.constant 0 : i32
    %c0_i32_0 = arith.constant 0 : i32
    %c0_i32_1 = arith.constant 0 : i32
    return %c0_i32, %c0_i32_0 : i32, i32
  }
  func.func @transform_6(%arg0: i32) -> (i32, i32) {
    %c0_i32 = arith.constant 0 : i32
    %c0_i32_0 = arith.constant 0 : i32
    %c0_i32_1 = arith.constant 0 : i32
    return %c0_i32, %c0_i32_0 : i32, i32
  }
  func.func @transform_7(%arg0: i32) -> (i32, i32) {
    %c0_i32 = arith.constant 0 : i32
    %c0_i32_0 = arith.constant 0 : i32
    return %arg0, %c0_i32 : i32, i32
  }
  func.func @transform_8(%arg0: i32) -> (i32, i32) {
    %c0_i32 = arith.constant 0 : i32
    %0 = arith.subi %c0_i32, %arg0 : i32
    %c0_i32_0 = arith.constant 0 : i32
    %c0_i32_1 = arith.constant 0 : i32
    return %0, %c0_i32_0 : i32, i32
  }
}

module attributes {stable_mosaic.version = 11 : i64} {
  func.func @_bilstm_layer_kernel(%arg0: i32, %arg1: memref<128x32xbf16, #tpu.memory_space<vmem>>, %arg2: memref<128x32xbf16, #tpu.memory_space<vmem>>, %arg3: memref<128x32xbf16, #tpu.memory_space<vmem>>, %arg4: memref<128x32xbf16, #tpu.memory_space<vmem>>, %arg5: memref<32x128xbf16, #tpu.memory_space<vmem>>, %arg6: memref<32x128xbf16, #tpu.memory_space<vmem>>, %arg7: memref<32x128xbf16, #tpu.memory_space<vmem>>, %arg8: memref<32x128xbf16, #tpu.memory_space<vmem>>, %arg9: memref<1x128xf32, #tpu.memory_space<vmem>>, %arg10: memref<1x128xf32, #tpu.memory_space<vmem>>, %arg11: memref<64x256xbf16, #tpu.memory_space<vmem>>, %arg12: memref<32x8xf32, #tpu.memory_space<vmem>>, %arg13: memref<32x8xf32, #tpu.memory_space<vmem>>, %arg14: memref<1x8xf32, #tpu.memory_space<vmem>>, %arg15: memref<16x8xf32, #tpu.memory_space<vmem>>, %arg16: memref<128x128xf32, #tpu.memory_space<vmem>>, %arg17: memref<128x128xf32, #tpu.memory_space<vmem>>, %arg18: memref<16x64xf32, #tpu.memory_space<vmem>>, %arg19: memref<16x64xf32, #tpu.memory_space<vmem>>, %arg20: memref<16x32xf32, #tpu.memory_space<vmem>>) attributes {dimension_semantics = [#tpu.dimension_semantics<arbitrary>], iteration_bounds = array<i64: 1>, scalar_prefetch = 0 : i64, scratch_operands = 5 : i64, tpu.core_type = #tpu.core_type<tc>, window_params = [{transform_indices = @transform_0, window_bounds = array<i64: 128, 32>}, {transform_indices = @transform_1, window_bounds = array<i64: 128, 32>}, {transform_indices = @transform_2, window_bounds = array<i64: 128, 32>}, {transform_indices = @transform_3, window_bounds = array<i64: 128, 32>}, {pipeline_mode = #tpu.pipeline_mode<synchronous>, transform_indices = @transform_4, window_bounds = array<i64: 32, 128>}, {pipeline_mode = #tpu.pipeline_mode<synchronous>, transform_indices = @transform_5, window_bounds = array<i64: 32, 128>}, {pipeline_mode = #tpu.pipeline_mode<synchronous>, transform_indices = @transform_6, window_bounds = array<i64: 32, 128>}, {pipeline_mode = #tpu.pipeline_mode<synchronous>, transform_indices = @transform_7, window_bounds = array<i64: 32, 128>}, {pipeline_mode = #tpu.pipeline_mode<synchronous>, transform_indices = @transform_8, window_bounds = array<i64: 1, 128>}, {pipeline_mode = #tpu.pipeline_mode<synchronous>, transform_indices = @transform_9, window_bounds = array<i64: 1, 128>}, {pipeline_mode = #tpu.pipeline_mode<synchronous>, transform_indices = @transform_10, window_bounds = array<i64: 64, 256>}, {pipeline_mode = #tpu.pipeline_mode<synchronous>, transform_indices = @transform_11, window_bounds = array<i64: 32, 8>}, {pipeline_mode = #tpu.pipeline_mode<synchronous>, transform_indices = @transform_12, window_bounds = array<i64: 32, 8>}, {pipeline_mode = #tpu.pipeline_mode<synchronous>, transform_indices = @transform_13, window_bounds = array<i64: 1, 8>}, {pipeline_mode = #tpu.pipeline_mode<synchronous>, transform_indices = @transform_14, window_bounds = array<i64: 16, 8>}]} {
    %c0_i32 = arith.constant 0 : i32
    %0 = arith.cmpi eq, %arg0, %c0_i32 : i32
    %1 = arith.extui %0 : i1 to i32
    %c0_i32_0 = arith.constant 0 : i32
    %2 = arith.cmpi ne, %1, %c0_i32_0 : i32
    scf.if %2 {
      %cst_247 = arith.constant 0.000000e+00 : f32
      %502 = vector.broadcast %cst_247 : f32 to vector<16x64xf32>
      %c0_248 = arith.constant 0 : index
      %c0_249 = arith.constant 0 : index
      %503 = vector.load %arg18[%c0_248, %c0_249] : memref<16x64xf32, #tpu.memory_space<vmem>>, vector<16x64xf32>
      tpu.vector_store %arg18[%c0_248, %c0_249], %502 {strides = array<i32>} : memref<16x64xf32, #tpu.memory_space<vmem>>, vector<16x64xf32>,
      %cst_250 = arith.constant 0.000000e+00 : f32
      %504 = vector.broadcast %cst_250 : f32 to vector<16x64xf32>
      %c0_251 = arith.constant 0 : index
      %c0_252 = arith.constant 0 : index
      %505 = vector.load %arg19[%c0_251, %c0_252] : memref<16x64xf32, #tpu.memory_space<vmem>>, vector<16x64xf32>
      tpu.vector_store %arg19[%c0_251, %c0_252], %504 {strides = array<i32>} : memref<16x64xf32, #tpu.memory_space<vmem>>, vector<16x64xf32>,
      %cst_253 = arith.constant 0.000000e+00 : f32
      %506 = vector.broadcast %cst_253 : f32 to vector<16x32xf32>
      %c0_254 = arith.constant 0 : index
      %c0_255 = arith.constant 0 : index
      %507 = vector.load %arg20[%c0_254, %c0_255] : memref<16x32xf32, #tpu.memory_space<vmem>>, vector<16x32xf32>
      tpu.vector_store %arg20[%c0_254, %c0_255], %506 {strides = array<i32>} : memref<16x32xf32, #tpu.memory_space<vmem>>, vector<16x32xf32>,
    } else {
    }
    %c0 = arith.constant 0 : index
    %c0_1 = arith.constant 0 : index
    %3 = vector.load %arg1[%c0, %c0_1] : memref<128x32xbf16, #tpu.memory_space<vmem>>, vector<128x32xbf16>
    %c0_2 = arith.constant 0 : index
    %c0_3 = arith.constant 0 : index
    %4 = vector.load %arg5[%c0_2, %c0_3] : memref<32x128xbf16, #tpu.memory_space<vmem>>, vector<32x128xbf16>
    %cst = arith.constant dense<0.000000e+00> : vector<128x128xf32>
    %5 = tpu.matmul %3, %4, %cst {dimension_numbers = #tpu.dot_dimension_numbers<[1], [0], [0], [1], [0, 0, 1, 1], [], []>} : vector<128x32xbf16>, vector<32x128xbf16>, vector<128x128xf32> -> vector<128x128xf32>
    %c0_4 = arith.constant 0 : index
    %c0_5 = arith.constant 0 : index
    %6 = vector.load %arg2[%c0_4, %c0_5] : memref<128x32xbf16, #tpu.memory_space<vmem>>, vector<128x32xbf16>
    %c0_6 = arith.constant 0 : index
    %c0_7 = arith.constant 0 : index
    %7 = vector.load %arg6[%c0_6, %c0_7] : memref<32x128xbf16, #tpu.memory_space<vmem>>, vector<32x128xbf16>
    %cst_8 = arith.constant dense<0.000000e+00> : vector<128x128xf32>
    %8 = tpu.matmul %6, %7, %cst_8 {dimension_numbers = #tpu.dot_dimension_numbers<[1], [0], [0], [1], [0, 0, 1, 1], [], []>} : vector<128x32xbf16>, vector<32x128xbf16>, vector<128x128xf32> -> vector<128x128xf32>
    %9 = arith.addf %5, %8 : vector<128x128xf32>
    %c0_9 = arith.constant 0 : index
    %c0_10 = arith.constant 0 : index
    %10 = vector.load %arg9[%c0_9, %c0_10] : memref<1x128xf32, #tpu.memory_space<vmem>>, vector<1x128xf32>
    %11 = vector.broadcast %10 : vector<1x128xf32> to vector<128x128xf32>
    %12 = arith.addf %9, %11 : vector<128x128xf32>
    %c0_11 = arith.constant 0 : index
    %c0_12 = arith.constant 0 : index
    %13 = vector.load %arg16[%c0_11, %c0_12] : memref<128x128xf32, #tpu.memory_space<vmem>>, vector<128x128xf32>
    tpu.vector_store %arg16[%c0_11, %c0_12], %12 {strides = array<i32>} : memref<128x128xf32, #tpu.memory_space<vmem>>, vector<128x128xf32>,
    %c0_13 = arith.constant 0 : index
    %c0_14 = arith.constant 0 : index
    %14 = vector.load %arg3[%c0_13, %c0_14] : memref<128x32xbf16, #tpu.memory_space<vmem>>, vector<128x32xbf16>
    %c0_15 = arith.constant 0 : index
    %c0_16 = arith.constant 0 : index
    %15 = vector.load %arg7[%c0_15, %c0_16] : memref<32x128xbf16, #tpu.memory_space<vmem>>, vector<32x128xbf16>
    %cst_17 = arith.constant dense<0.000000e+00> : vector<128x128xf32>
    %16 = tpu.matmul %14, %15, %cst_17 {dimension_numbers = #tpu.dot_dimension_numbers<[1], [0], [0], [1], [0, 0, 1, 1], [], []>} : vector<128x32xbf16>, vector<32x128xbf16>, vector<128x128xf32> -> vector<128x128xf32>
    %c0_18 = arith.constant 0 : index
    %c0_19 = arith.constant 0 : index
    %17 = vector.load %arg4[%c0_18, %c0_19] : memref<128x32xbf16, #tpu.memory_space<vmem>>, vector<128x32xbf16>
    %c0_20 = arith.constant 0 : index
    %c0_21 = arith.constant 0 : index
    %18 = vector.load %arg8[%c0_20, %c0_21] : memref<32x128xbf16, #tpu.memory_space<vmem>>, vector<32x128xbf16>
    %cst_22 = arith.constant dense<0.000000e+00> : vector<128x128xf32>
    %19 = tpu.matmul %17, %18, %cst_22 {dimension_numbers = #tpu.dot_dimension_numbers<[1], [0], [0], [1], [0, 0, 1, 1], [], []>} : vector<128x32xbf16>, vector<32x128xbf16>, vector<128x128xf32> -> vector<128x128xf32>
    %20 = arith.addf %16, %19 : vector<128x128xf32>
    %c0_23 = arith.constant 0 : index
    %c0_24 = arith.constant 0 : index
    %21 = vector.load %arg10[%c0_23, %c0_24] : memref<1x128xf32, #tpu.memory_space<vmem>>, vector<1x128xf32>
    %22 = vector.broadcast %21 : vector<1x128xf32> to vector<128x128xf32>
    %23 = arith.addf %20, %22 : vector<128x128xf32>
    %c0_25 = arith.constant 0 : index
    %c0_26 = arith.constant 0 : index
    %24 = vector.load %arg17[%c0_25, %c0_26] : memref<128x128xf32, #tpu.memory_space<vmem>>, vector<128x128xf32>
    tpu.vector_store %arg17[%c0_25, %c0_26], %23 {strides = array<i32>} : memref<128x128xf32, #tpu.memory_space<vmem>>, vector<128x128xf32>,
    %c0_27 = arith.constant 0 : index
    %c0_28 = arith.constant 0 : index
    %25 = vector.load %arg11[%c0_27, %c0_28] : memref<64x256xbf16, #tpu.memory_space<vmem>>, vector<64x256xbf16>
    %c8_i32 = arith.constant 8 : i32
    %26 = arith.muli %arg0, %c8_i32 : i32
    %c0_i32_29 = arith.constant 0 : i32
    %c7_i32 = arith.constant 7 : i32
    %27 = arith.subi %c7_i32, %c0_i32_29 : i32
    %c16_i32 = arith.constant 16 : i32
    %28 = arith.muli %c0_i32_29, %c16_i32 : i32
    %29 = tpu.assume_multiple %28, 16 : i32
    %c16_i32_30 = arith.constant 16 : i32
    %30 = arith.muli %27, %c16_i32_30 : i32
    %31 = tpu.assume_multiple %30, 16 : i32
    %c0_31 = arith.constant 0 : index
    %c0_32 = arith.constant 0 : index
    %32 = vector.load %arg18[%c0_31, %c0_32] : memref<16x64xf32, #tpu.memory_space<vmem>>, vector<16x64xf32>
    %c0_33 = arith.constant 0 : index
    %c0_34 = arith.constant 0 : index
    %33 = vector.load %arg19[%c0_33, %c0_34] : memref<16x64xf32, #tpu.memory_space<vmem>>, vector<16x32xf32>
    %c0_35 = arith.constant 0 : index
    %c32 = arith.constant 32 : index
    %34 = vector.load %arg19[%c0_35, %c32] : memref<16x64xf32, #tpu.memory_space<vmem>>, vector<16x32xf32>
    %35 = arith.truncf %32 : vector<16x64xf32> to vector<16x64xbf16>
    %cst_36 = arith.constant dense<0.000000e+00> : vector<16x256xf32>
    %36 = tpu.matmul %35, %25, %cst_36 {dimension_numbers = #tpu.dot_dimension_numbers<[1], [0], [0], [1], [0, 0, 1, 1], [], []>} : vector<16x64xbf16>, vector<64x256xbf16>, vector<16x256xf32> -> vector<16x256xf32>
    %37 = vector.extract_strided_slice %36 {offsets = [0, 0], sizes = [16, 128], strides = [1, 1]} : vector<16x256xf32> to vector<16x128xf32>
    %38 = arith.index_cast %29 : i32 to index
    %c0_37 = arith.constant 0 : index
    %39 = vector.load %arg16[%38, %c0_37] : memref<128x128xf32, #tpu.memory_space<vmem>>, vector<16x128xf32>
    %40 = arith.addf %37, %39 : vector<16x128xf32>
    %41 = vector.extract_strided_slice %36 {offsets = [0, 128], sizes = [16, 128], strides = [1, 1]} : vector<16x256xf32> to vector<16x128xf32>
    %42 = arith.index_cast %31 : i32 to index
    %c0_38 = arith.constant 0 : index
    %43 = vector.load %arg17[%42, %c0_38] : memref<128x128xf32, #tpu.memory_space<vmem>>, vector<16x128xf32>
    %44 = arith.addf %41, %43 : vector<16x128xf32>
    %45 = vector.extract_strided_slice %40 {offsets = [0, 0], sizes = [16, 96], strides = [1, 1]} : vector<16x128xf32> to vector<16x96xf32>
    %46 = arith.negf %45 : vector<16x96xf32>
    %47 = math.exp %46 : vector<16x96xf32>
    %cst_39 = arith.constant 1.000000e+00 : f32
    %48 = vector.broadcast %cst_39 : f32 to vector<16x96xf32>
    %49 = arith.addf %48, %47 : vector<16x96xf32>
    %50 = arith.divf %48, %49 : vector<16x96xf32>
    %51 = vector.extract_strided_slice %40 {offsets = [0, 96], sizes = [16, 32], strides = [1, 1]} : vector<16x128xf32> to vector<16x32xf32>
    %52 = math.tanh %51 : vector<16x32xf32>
    %53 = vector.extract_strided_slice %50 {offsets = [0, 32], sizes = [16, 32], strides = [1, 1]} : vector<16x96xf32> to vector<16x32xf32>
    %54 = arith.mulf %53, %33 : vector<16x32xf32>
    %55 = vector.extract_strided_slice %50 {offsets = [0, 0], sizes = [16, 32], strides = [1, 1]} : vector<16x96xf32> to vector<16x32xf32>
    %56 = arith.mulf %55, %52 : vector<16x32xf32>
    %57 = arith.addf %54, %56 : vector<16x32xf32>
    %58 = vector.extract_strided_slice %50 {offsets = [0, 64], sizes = [16, 32], strides = [1, 1]} : vector<16x96xf32> to vector<16x32xf32>
    %59 = math.tanh %57 : vector<16x32xf32>
    %60 = arith.mulf %58, %59 : vector<16x32xf32>
    %61 = vector.extract_strided_slice %44 {offsets = [0, 0], sizes = [16, 96], strides = [1, 1]} : vector<16x128xf32> to vector<16x96xf32>
    %62 = arith.negf %61 : vector<16x96xf32>
    %63 = math.exp %62 : vector<16x96xf32>
    %cst_40 = arith.constant 1.000000e+00 : f32
    %64 = vector.broadcast %cst_40 : f32 to vector<16x96xf32>
    %65 = arith.addf %64, %63 : vector<16x96xf32>
    %66 = arith.divf %64, %65 : vector<16x96xf32>
    %67 = vector.extract_strided_slice %44 {offsets = [0, 96], sizes = [16, 32], strides = [1, 1]} : vector<16x128xf32> to vector<16x32xf32>
    %68 = math.tanh %67 : vector<16x32xf32>
    %69 = vector.extract_strided_slice %66 {offsets = [0, 32], sizes = [16, 32], strides = [1, 1]} : vector<16x96xf32> to vector<16x32xf32>
    %70 = arith.mulf %69, %34 : vector<16x32xf32>
    %71 = vector.extract_strided_slice %66 {offsets = [0, 0], sizes = [16, 32], strides = [1, 1]} : vector<16x96xf32> to vector<16x32xf32>
    %72 = arith.mulf %71, %68 : vector<16x32xf32>
    %73 = arith.addf %70, %72 : vector<16x32xf32>
    %74 = vector.extract_strided_slice %66 {offsets = [0, 64], sizes = [16, 32], strides = [1, 1]} : vector<16x96xf32> to vector<16x32xf32>
    %75 = math.tanh %73 : vector<16x32xf32>
    %76 = arith.mulf %74, %75 : vector<16x32xf32>
    %c0_41 = arith.constant 0 : index
    %c0_42 = arith.constant 0 : index
    %77 = vector.load %arg18[%c0_41, %c0_42] : memref<16x64xf32, #tpu.memory_space<vmem>>, vector<16x32xf32>
    tpu.vector_store %arg18[%c0_41, %c0_42], %60 {strides = array<i32>} : memref<16x64xf32, #tpu.memory_space<vmem>>, vector<16x32xf32>,
    %c0_43 = arith.constant 0 : index
    %c32_44 = arith.constant 32 : index
    %78 = vector.load %arg18[%c0_43, %c32_44] : memref<16x64xf32, #tpu.memory_space<vmem>>, vector<16x32xf32>
    tpu.vector_store %arg18[%c0_43, %c32_44], %76 {strides = array<i32>} : memref<16x64xf32, #tpu.memory_space<vmem>>, vector<16x32xf32>,
    %c0_45 = arith.constant 0 : index
    %c0_46 = arith.constant 0 : index
    %79 = vector.load %arg19[%c0_45, %c0_46] : memref<16x64xf32, #tpu.memory_space<vmem>>, vector<16x32xf32>
    tpu.vector_store %arg19[%c0_45, %c0_46], %57 {strides = array<i32>} : memref<16x64xf32, #tpu.memory_space<vmem>>, vector<16x32xf32>,
    %c0_47 = arith.constant 0 : index
    %c32_48 = arith.constant 32 : index
    %80 = vector.load %arg19[%c0_47, %c32_48] : memref<16x64xf32, #tpu.memory_space<vmem>>, vector<16x32xf32>
    tpu.vector_store %arg19[%c0_47, %c32_48], %73 {strides = array<i32>} : memref<16x64xf32, #tpu.memory_space<vmem>>, vector<16x32xf32>,
    %81 = arith.addi %26, %c0_i32_29 : i32
    %c0_i32_49 = arith.constant 0 : i32
    %82 = arith.cmpi eq, %81, %c0_i32_49 : i32
    %c0_50 = arith.constant 0 : index
    %c0_51 = arith.constant 0 : index
    %83 = vector.load %arg20[%c0_50, %c0_51] : memref<16x32xf32, #tpu.memory_space<vmem>>, vector<16x32xf32>
    %84 = arith.select %82, %76, %83 : vector<16x32xf32>
    %c0_52 = arith.constant 0 : index
    %c0_53 = arith.constant 0 : index
    %85 = vector.load %arg20[%c0_52, %c0_53] : memref<16x32xf32, #tpu.memory_space<vmem>>, vector<16x32xf32>
    tpu.vector_store %arg20[%c0_52, %c0_53], %84 {strides = array<i32>} : memref<16x32xf32, #tpu.memory_space<vmem>>, vector<16x32xf32>,
    %c1_i32 = arith.constant 1 : i32
    %c7_i32_54 = arith.constant 7 : i32
    %86 = arith.subi %c7_i32_54, %c1_i32 : i32
    %c16_i32_55 = arith.constant 16 : i32
    %87 = arith.muli %c1_i32, %c16_i32_55 : i32
    %88 = tpu.assume_multiple %87, 16 : i32
    %c16_i32_56 = arith.constant 16 : i32
    %89 = arith.muli %86, %c16_i32_56 : i32
    %90 = tpu.assume_multiple %89, 16 : i32
    %c0_57 = arith.constant 0 : index
    %c0_58 = arith.constant 0 : index
    %91 = vector.load %arg18[%c0_57, %c0_58] : memref<16x64xf32, #tpu.memory_space<vmem>>, vector<16x64xf32>
    %c0_59 = arith.constant 0 : index
    %c0_60 = arith.constant 0 : index
    %92 = vector.load %arg19[%c0_59, %c0_60] : memref<16x64xf32, #tpu.memory_space<vmem>>, vector<16x32xf32>
    %c0_61 = arith.constant 0 : index
    %c32_62 = arith.constant 32 : index
    %93 = vector.load %arg19[%c0_61, %c32_62] : memref<16x64xf32, #tpu.memory_space<vmem>>, vector<16x32xf32>
    %94 = arith.truncf %91 : vector<16x64xf32> to vector<16x64xbf16>
    %cst_63 = arith.constant dense<0.000000e+00> : vector<16x256xf32>
    %95 = tpu.matmul %94, %25, %cst_63 {dimension_numbers = #tpu.dot_dimension_numbers<[1], [0], [0], [1], [0, 0, 1, 1], [], []>} : vector<16x64xbf16>, vector<64x256xbf16>, vector<16x256xf32> -> vector<16x256xf32>
    %96 = vector.extract_strided_slice %95 {offsets = [0, 0], sizes = [16, 128], strides = [1, 1]} : vector<16x256xf32> to vector<16x128xf32>
    %97 = arith.index_cast %88 : i32 to index
    %c0_64 = arith.constant 0 : index
    %98 = vector.load %arg16[%97, %c0_64] : memref<128x128xf32, #tpu.memory_space<vmem>>, vector<16x128xf32>
    %99 = arith.addf %96, %98 : vector<16x128xf32>
    %100 = vector.extract_strided_slice %95 {offsets = [0, 128], sizes = [16, 128], strides = [1, 1]} : vector<16x256xf32> to vector<16x128xf32>
    %101 = arith.index_cast %90 : i32 to index
    %c0_65 = arith.constant 0 : index
    %102 = vector.load %arg17[%101, %c0_65] : memref<128x128xf32, #tpu.memory_space<vmem>>, vector<16x128xf32>
    %103 = arith.addf %100, %102 : vector<16x128xf32>
    %104 = vector.extract_strided_slice %99 {offsets = [0, 0], sizes = [16, 96], strides = [1, 1]} : vector<16x128xf32> to vector<16x96xf32>
    %105 = arith.negf %104 : vector<16x96xf32>
    %106 = math.exp %105 : vector<16x96xf32>
    %cst_66 = arith.constant 1.000000e+00 : f32
    %107 = vector.broadcast %cst_66 : f32 to vector<16x96xf32>
    %108 = arith.addf %107, %106 : vector<16x96xf32>
    %109 = arith.divf %107, %108 : vector<16x96xf32>
    %110 = vector.extract_strided_slice %99 {offsets = [0, 96], sizes = [16, 32], strides = [1, 1]} : vector<16x128xf32> to vector<16x32xf32>
    %111 = math.tanh %110 : vector<16x32xf32>
    %112 = vector.extract_strided_slice %109 {offsets = [0, 32], sizes = [16, 32], strides = [1, 1]} : vector<16x96xf32> to vector<16x32xf32>
    %113 = arith.mulf %112, %92 : vector<16x32xf32>
    %114 = vector.extract_strided_slice %109 {offsets = [0, 0], sizes = [16, 32], strides = [1, 1]} : vector<16x96xf32> to vector<16x32xf32>
    %115 = arith.mulf %114, %111 : vector<16x32xf32>
    %116 = arith.addf %113, %115 : vector<16x32xf32>
    %117 = vector.extract_strided_slice %109 {offsets = [0, 64], sizes = [16, 32], strides = [1, 1]} : vector<16x96xf32> to vector<16x32xf32>
    %118 = math.tanh %116 : vector<16x32xf32>
    %119 = arith.mulf %117, %118 : vector<16x32xf32>
    %120 = vector.extract_strided_slice %103 {offsets = [0, 0], sizes = [16, 96], strides = [1, 1]} : vector<16x128xf32> to vector<16x96xf32>
    %121 = arith.negf %120 : vector<16x96xf32>
    %122 = math.exp %121 : vector<16x96xf32>
    %cst_67 = arith.constant 1.000000e+00 : f32
    %123 = vector.broadcast %cst_67 : f32 to vector<16x96xf32>
    %124 = arith.addf %123, %122 : vector<16x96xf32>
    %125 = arith.divf %123, %124 : vector<16x96xf32>
    %126 = vector.extract_strided_slice %103 {offsets = [0, 96], sizes = [16, 32], strides = [1, 1]} : vector<16x128xf32> to vector<16x32xf32>
    %127 = math.tanh %126 : vector<16x32xf32>
    %128 = vector.extract_strided_slice %125 {offsets = [0, 32], sizes = [16, 32], strides = [1, 1]} : vector<16x96xf32> to vector<16x32xf32>
    %129 = arith.mulf %128, %93 : vector<16x32xf32>
    %130 = vector.extract_strided_slice %125 {offsets = [0, 0], sizes = [16, 32], strides = [1, 1]} : vector<16x96xf32> to vector<16x32xf32>
    %131 = arith.mulf %130, %127 : vector<16x32xf32>
    %132 = arith.addf %129, %131 : vector<16x32xf32>
    %133 = vector.extract_strided_slice %125 {offsets = [0, 64], sizes = [16, 32], strides = [1, 1]} : vector<16x96xf32> to vector<16x32xf32>
    %134 = math.tanh %132 : vector<16x32xf32>
    %135 = arith.mulf %133, %134 : vector<16x32xf32>
    %c0_68 = arith.constant 0 : index
    %c0_69 = arith.constant 0 : index
    %136 = vector.load %arg18[%c0_68, %c0_69] : memref<16x64xf32, #tpu.memory_space<vmem>>, vector<16x32xf32>
    tpu.vector_store %arg18[%c0_68, %c0_69], %119 {strides = array<i32>} : memref<16x64xf32, #tpu.memory_space<vmem>>, vector<16x32xf32>,
    %c0_70 = arith.constant 0 : index
    %c32_71 = arith.constant 32 : index
    %137 = vector.load %arg18[%c0_70, %c32_71] : memref<16x64xf32, #tpu.memory_space<vmem>>, vector<16x32xf32>
    tpu.vector_store %arg18[%c0_70, %c32_71], %135 {strides = array<i32>} : memref<16x64xf32, #tpu.memory_space<vmem>>, vector<16x32xf32>,
    %c0_72 = arith.constant 0 : index
    %c0_73 = arith.constant 0 : index
    %138 = vector.load %arg19[%c0_72, %c0_73] : memref<16x64xf32, #tpu.memory_space<vmem>>, vector<16x32xf32>
    tpu.vector_store %arg19[%c0_72, %c0_73], %116 {strides = array<i32>} : memref<16x64xf32, #tpu.memory_space<vmem>>, vector<16x32xf32>,
    %c0_74 = arith.constant 0 : index
    %c32_75 = arith.constant 32 : index
    %139 = vector.load %arg19[%c0_74, %c32_75] : memref<16x64xf32, #tpu.memory_space<vmem>>, vector<16x32xf32>
    tpu.vector_store %arg19[%c0_74, %c32_75], %132 {strides = array<i32>} : memref<16x64xf32, #tpu.memory_space<vmem>>, vector<16x32xf32>,
    %140 = arith.addi %26, %c1_i32 : i32
    %c0_i32_76 = arith.constant 0 : i32
    %141 = arith.cmpi eq, %140, %c0_i32_76 : i32
    %c0_77 = arith.constant 0 : index
    %c0_78 = arith.constant 0 : index
    %142 = vector.load %arg20[%c0_77, %c0_78] : memref<16x32xf32, #tpu.memory_space<vmem>>, vector<16x32xf32>
    %143 = arith.select %141, %135, %142 : vector<16x32xf32>
    %c0_79 = arith.constant 0 : index
    %c0_80 = arith.constant 0 : index
    %144 = vector.load %arg20[%c0_79, %c0_80] : memref<16x32xf32, #tpu.memory_space<vmem>>, vector<16x32xf32>
    tpu.vector_store %arg20[%c0_79, %c0_80], %143 {strides = array<i32>} : memref<16x32xf32, #tpu.memory_space<vmem>>, vector<16x32xf32>,
    %c2_i32 = arith.constant 2 : i32
    %c7_i32_81 = arith.constant 7 : i32
    %145 = arith.subi %c7_i32_81, %c2_i32 : i32
    %c16_i32_82 = arith.constant 16 : i32
    %146 = arith.muli %c2_i32, %c16_i32_82 : i32
    %147 = tpu.assume_multiple %146, 16 : i32
    %c16_i32_83 = arith.constant 16 : i32
    %148 = arith.muli %145, %c16_i32_83 : i32
    %149 = tpu.assume_multiple %148, 16 : i32
    %c0_84 = arith.constant 0 : index
    %c0_85 = arith.constant 0 : index
    %150 = vector.load %arg18[%c0_84, %c0_85] : memref<16x64xf32, #tpu.memory_space<vmem>>, vector<16x64xf32>
    %c0_86 = arith.constant 0 : index
    %c0_87 = arith.constant 0 : index
    %151 = vector.load %arg19[%c0_86, %c0_87] : memref<16x64xf32, #tpu.memory_space<vmem>>, vector<16x32xf32>
    %c0_88 = arith.constant 0 : index
    %c32_89 = arith.constant 32 : index
    %152 = vector.load %arg19[%c0_88, %c32_89] : memref<16x64xf32, #tpu.memory_space<vmem>>, vector<16x32xf32>
    %153 = arith.truncf %150 : vector<16x64xf32> to vector<16x64xbf16>
    %cst_90 = arith.constant dense<0.000000e+00> : vector<16x256xf32>
    %154 = tpu.matmul %153, %25, %cst_90 {dimension_numbers = #tpu.dot_dimension_numbers<[1], [0], [0], [1], [0, 0, 1, 1], [], []>} : vector<16x64xbf16>, vector<64x256xbf16>, vector<16x256xf32> -> vector<16x256xf32>
    %155 = vector.extract_strided_slice %154 {offsets = [0, 0], sizes = [16, 128], strides = [1, 1]} : vector<16x256xf32> to vector<16x128xf32>
    %156 = arith.index_cast %147 : i32 to index
    %c0_91 = arith.constant 0 : index
    %157 = vector.load %arg16[%156, %c0_91] : memref<128x128xf32, #tpu.memory_space<vmem>>, vector<16x128xf32>
    %158 = arith.addf %155, %157 : vector<16x128xf32>
    %159 = vector.extract_strided_slice %154 {offsets = [0, 128], sizes = [16, 128], strides = [1, 1]} : vector<16x256xf32> to vector<16x128xf32>
    %160 = arith.index_cast %149 : i32 to index
    %c0_92 = arith.constant 0 : index
    %161 = vector.load %arg17[%160, %c0_92] : memref<128x128xf32, #tpu.memory_space<vmem>>, vector<16x128xf32>
    %162 = arith.addf %159, %161 : vector<16x128xf32>
    %163 = vector.extract_strided_slice %158 {offsets = [0, 0], sizes = [16, 96], strides = [1, 1]} : vector<16x128xf32> to vector<16x96xf32>
    %164 = arith.negf %163 : vector<16x96xf32>
    %165 = math.exp %164 : vector<16x96xf32>
    %cst_93 = arith.constant 1.000000e+00 : f32
    %166 = vector.broadcast %cst_93 : f32 to vector<16x96xf32>
    %167 = arith.addf %166, %165 : vector<16x96xf32>
    %168 = arith.divf %166, %167 : vector<16x96xf32>
    %169 = vector.extract_strided_slice %158 {offsets = [0, 96], sizes = [16, 32], strides = [1, 1]} : vector<16x128xf32> to vector<16x32xf32>
    %170 = math.tanh %169 : vector<16x32xf32>
    %171 = vector.extract_strided_slice %168 {offsets = [0, 32], sizes = [16, 32], strides = [1, 1]} : vector<16x96xf32> to vector<16x32xf32>
    %172 = arith.mulf %171, %151 : vector<16x32xf32>
    %173 = vector.extract_strided_slice %168 {offsets = [0, 0], sizes = [16, 32], strides = [1, 1]} : vector<16x96xf32> to vector<16x32xf32>
    %174 = arith.mulf %173, %170 : vector<16x32xf32>
    %175 = arith.addf %172, %174 : vector<16x32xf32>
    %176 = vector.extract_strided_slice %168 {offsets = [0, 64], sizes = [16, 32], strides = [1, 1]} : vector<16x96xf32> to vector<16x32xf32>
    %177 = math.tanh %175 : vector<16x32xf32>
    %178 = arith.mulf %176, %177 : vector<16x32xf32>
    %179 = vector.extract_strided_slice %162 {offsets = [0, 0], sizes = [16, 96], strides = [1, 1]} : vector<16x128xf32> to vector<16x96xf32>
    %180 = arith.negf %179 : vector<16x96xf32>
    %181 = math.exp %180 : vector<16x96xf32>
    %cst_94 = arith.constant 1.000000e+00 : f32
    %182 = vector.broadcast %cst_94 : f32 to vector<16x96xf32>
    %183 = arith.addf %182, %181 : vector<16x96xf32>
    %184 = arith.divf %182, %183 : vector<16x96xf32>
    %185 = vector.extract_strided_slice %162 {offsets = [0, 96], sizes = [16, 32], strides = [1, 1]} : vector<16x128xf32> to vector<16x32xf32>
    %186 = math.tanh %185 : vector<16x32xf32>
    %187 = vector.extract_strided_slice %184 {offsets = [0, 32], sizes = [16, 32], strides = [1, 1]} : vector<16x96xf32> to vector<16x32xf32>
    %188 = arith.mulf %187, %152 : vector<16x32xf32>
    %189 = vector.extract_strided_slice %184 {offsets = [0, 0], sizes = [16, 32], strides = [1, 1]} : vector<16x96xf32> to vector<16x32xf32>
    %190 = arith.mulf %189, %186 : vector<16x32xf32>
    %191 = arith.addf %188, %190 : vector<16x32xf32>
    %192 = vector.extract_strided_slice %184 {offsets = [0, 64], sizes = [16, 32], strides = [1, 1]} : vector<16x96xf32> to vector<16x32xf32>
    %193 = math.tanh %191 : vector<16x32xf32>
    %194 = arith.mulf %192, %193 : vector<16x32xf32>
    %c0_95 = arith.constant 0 : index
    %c0_96 = arith.constant 0 : index
    %195 = vector.load %arg18[%c0_95, %c0_96] : memref<16x64xf32, #tpu.memory_space<vmem>>, vector<16x32xf32>
    tpu.vector_store %arg18[%c0_95, %c0_96], %178 {strides = array<i32>} : memref<16x64xf32, #tpu.memory_space<vmem>>, vector<16x32xf32>,
    %c0_97 = arith.constant 0 : index
    %c32_98 = arith.constant 32 : index
    %196 = vector.load %arg18[%c0_97, %c32_98] : memref<16x64xf32, #tpu.memory_space<vmem>>, vector<16x32xf32>
    tpu.vector_store %arg18[%c0_97, %c32_98], %194 {strides = array<i32>} : memref<16x64xf32, #tpu.memory_space<vmem>>, vector<16x32xf32>,
    %c0_99 = arith.constant 0 : index
    %c0_100 = arith.constant 0 : index
    %197 = vector.load %arg19[%c0_99, %c0_100] : memref<16x64xf32, #tpu.memory_space<vmem>>, vector<16x32xf32>
    tpu.vector_store %arg19[%c0_99, %c0_100], %175 {strides = array<i32>} : memref<16x64xf32, #tpu.memory_space<vmem>>, vector<16x32xf32>,
    %c0_101 = arith.constant 0 : index
    %c32_102 = arith.constant 32 : index
    %198 = vector.load %arg19[%c0_101, %c32_102] : memref<16x64xf32, #tpu.memory_space<vmem>>, vector<16x32xf32>
    tpu.vector_store %arg19[%c0_101, %c32_102], %191 {strides = array<i32>} : memref<16x64xf32, #tpu.memory_space<vmem>>, vector<16x32xf32>,
    %199 = arith.addi %26, %c2_i32 : i32
    %c0_i32_103 = arith.constant 0 : i32
    %200 = arith.cmpi eq, %199, %c0_i32_103 : i32
    %c0_104 = arith.constant 0 : index
    %c0_105 = arith.constant 0 : index
    %201 = vector.load %arg20[%c0_104, %c0_105] : memref<16x32xf32, #tpu.memory_space<vmem>>, vector<16x32xf32>
    %202 = arith.select %200, %194, %201 : vector<16x32xf32>
    %c0_106 = arith.constant 0 : index
    %c0_107 = arith.constant 0 : index
    %203 = vector.load %arg20[%c0_106, %c0_107] : memref<16x32xf32, #tpu.memory_space<vmem>>, vector<16x32xf32>
    tpu.vector_store %arg20[%c0_106, %c0_107], %202 {strides = array<i32>} : memref<16x32xf32, #tpu.memory_space<vmem>>, vector<16x32xf32>,
    %c3_i32 = arith.constant 3 : i32
    %c7_i32_108 = arith.constant 7 : i32
    %204 = arith.subi %c7_i32_108, %c3_i32 : i32
    %c16_i32_109 = arith.constant 16 : i32
    %205 = arith.muli %c3_i32, %c16_i32_109 : i32
    %206 = tpu.assume_multiple %205, 16 : i32
    %c16_i32_110 = arith.constant 16 : i32
    %207 = arith.muli %204, %c16_i32_110 : i32
    %208 = tpu.assume_multiple %207, 16 : i32
    %c0_111 = arith.constant 0 : index
    %c0_112 = arith.constant 0 : index
    %209 = vector.load %arg18[%c0_111, %c0_112] : memref<16x64xf32, #tpu.memory_space<vmem>>, vector<16x64xf32>
    %c0_113 = arith.constant 0 : index
    %c0_114 = arith.constant 0 : index
    %210 = vector.load %arg19[%c0_113, %c0_114] : memref<16x64xf32, #tpu.memory_space<vmem>>, vector<16x32xf32>
    %c0_115 = arith.constant 0 : index
    %c32_116 = arith.constant 32 : index
    %211 = vector.load %arg19[%c0_115, %c32_116] : memref<16x64xf32, #tpu.memory_space<vmem>>, vector<16x32xf32>
    %212 = arith.truncf %209 : vector<16x64xf32> to vector<16x64xbf16>
    %cst_117 = arith.constant dense<0.000000e+00> : vector<16x256xf32>
    %213 = tpu.matmul %212, %25, %cst_117 {dimension_numbers = #tpu.dot_dimension_numbers<[1], [0], [0], [1], [0, 0, 1, 1], [], []>} : vector<16x64xbf16>, vector<64x256xbf16>, vector<16x256xf32> -> vector<16x256xf32>
    %214 = vector.extract_strided_slice %213 {offsets = [0, 0], sizes = [16, 128], strides = [1, 1]} : vector<16x256xf32> to vector<16x128xf32>
    %215 = arith.index_cast %206 : i32 to index
    %c0_118 = arith.constant 0 : index
    %216 = vector.load %arg16[%215, %c0_118] : memref<128x128xf32, #tpu.memory_space<vmem>>, vector<16x128xf32>
    %217 = arith.addf %214, %216 : vector<16x128xf32>
    %218 = vector.extract_strided_slice %213 {offsets = [0, 128], sizes = [16, 128], strides = [1, 1]} : vector<16x256xf32> to vector<16x128xf32>
    %219 = arith.index_cast %208 : i32 to index
    %c0_119 = arith.constant 0 : index
    %220 = vector.load %arg17[%219, %c0_119] : memref<128x128xf32, #tpu.memory_space<vmem>>, vector<16x128xf32>
    %221 = arith.addf %218, %220 : vector<16x128xf32>
    %222 = vector.extract_strided_slice %217 {offsets = [0, 0], sizes = [16, 96], strides = [1, 1]} : vector<16x128xf32> to vector<16x96xf32>
    %223 = arith.negf %222 : vector<16x96xf32>
    %224 = math.exp %223 : vector<16x96xf32>
    %cst_120 = arith.constant 1.000000e+00 : f32
    %225 = vector.broadcast %cst_120 : f32 to vector<16x96xf32>
    %226 = arith.addf %225, %224 : vector<16x96xf32>
    %227 = arith.divf %225, %226 : vector<16x96xf32>
    %228 = vector.extract_strided_slice %217 {offsets = [0, 96], sizes = [16, 32], strides = [1, 1]} : vector<16x128xf32> to vector<16x32xf32>
    %229 = math.tanh %228 : vector<16x32xf32>
    %230 = vector.extract_strided_slice %227 {offsets = [0, 32], sizes = [16, 32], strides = [1, 1]} : vector<16x96xf32> to vector<16x32xf32>
    %231 = arith.mulf %230, %210 : vector<16x32xf32>
    %232 = vector.extract_strided_slice %227 {offsets = [0, 0], sizes = [16, 32], strides = [1, 1]} : vector<16x96xf32> to vector<16x32xf32>
    %233 = arith.mulf %232, %229 : vector<16x32xf32>
    %234 = arith.addf %231, %233 : vector<16x32xf32>
    %235 = vector.extract_strided_slice %227 {offsets = [0, 64], sizes = [16, 32], strides = [1, 1]} : vector<16x96xf32> to vector<16x32xf32>
    %236 = math.tanh %234 : vector<16x32xf32>
    %237 = arith.mulf %235, %236 : vector<16x32xf32>
    %238 = vector.extract_strided_slice %221 {offsets = [0, 0], sizes = [16, 96], strides = [1, 1]} : vector<16x128xf32> to vector<16x96xf32>
    %239 = arith.negf %238 : vector<16x96xf32>
    %240 = math.exp %239 : vector<16x96xf32>
    %cst_121 = arith.constant 1.000000e+00 : f32
    %241 = vector.broadcast %cst_121 : f32 to vector<16x96xf32>
    %242 = arith.addf %241, %240 : vector<16x96xf32>
    %243 = arith.divf %241, %242 : vector<16x96xf32>
    %244 = vector.extract_strided_slice %221 {offsets = [0, 96], sizes = [16, 32], strides = [1, 1]} : vector<16x128xf32> to vector<16x32xf32>
    %245 = math.tanh %244 : vector<16x32xf32>
    %246 = vector.extract_strided_slice %243 {offsets = [0, 32], sizes = [16, 32], strides = [1, 1]} : vector<16x96xf32> to vector<16x32xf32>
    %247 = arith.mulf %246, %211 : vector<16x32xf32>
    %248 = vector.extract_strided_slice %243 {offsets = [0, 0], sizes = [16, 32], strides = [1, 1]} : vector<16x96xf32> to vector<16x32xf32>
    %249 = arith.mulf %248, %245 : vector<16x32xf32>
    %250 = arith.addf %247, %249 : vector<16x32xf32>
    %251 = vector.extract_strided_slice %243 {offsets = [0, 64], sizes = [16, 32], strides = [1, 1]} : vector<16x96xf32> to vector<16x32xf32>
    %252 = math.tanh %250 : vector<16x32xf32>
    %253 = arith.mulf %251, %252 : vector<16x32xf32>
    %c0_122 = arith.constant 0 : index
    %c0_123 = arith.constant 0 : index
    %254 = vector.load %arg18[%c0_122, %c0_123] : memref<16x64xf32, #tpu.memory_space<vmem>>, vector<16x32xf32>
    tpu.vector_store %arg18[%c0_122, %c0_123], %237 {strides = array<i32>} : memref<16x64xf32, #tpu.memory_space<vmem>>, vector<16x32xf32>,
    %c0_124 = arith.constant 0 : index
    %c32_125 = arith.constant 32 : index
    %255 = vector.load %arg18[%c0_124, %c32_125] : memref<16x64xf32, #tpu.memory_space<vmem>>, vector<16x32xf32>
    tpu.vector_store %arg18[%c0_124, %c32_125], %253 {strides = array<i32>} : memref<16x64xf32, #tpu.memory_space<vmem>>, vector<16x32xf32>,
    %c0_126 = arith.constant 0 : index
    %c0_127 = arith.constant 0 : index
    %256 = vector.load %arg19[%c0_126, %c0_127] : memref<16x64xf32, #tpu.memory_space<vmem>>, vector<16x32xf32>
    tpu.vector_store %arg19[%c0_126, %c0_127], %234 {strides = array<i32>} : memref<16x64xf32, #tpu.memory_space<vmem>>, vector<16x32xf32>,
    %c0_128 = arith.constant 0 : index
    %c32_129 = arith.constant 32 : index
    %257 = vector.load %arg19[%c0_128, %c32_129] : memref<16x64xf32, #tpu.memory_space<vmem>>, vector<16x32xf32>
    tpu.vector_store %arg19[%c0_128, %c32_129], %250 {strides = array<i32>} : memref<16x64xf32, #tpu.memory_space<vmem>>, vector<16x32xf32>,
    %258 = arith.addi %26, %c3_i32 : i32
    %c0_i32_130 = arith.constant 0 : i32
    %259 = arith.cmpi eq, %258, %c0_i32_130 : i32
    %c0_131 = arith.constant 0 : index
    %c0_132 = arith.constant 0 : index
    %260 = vector.load %arg20[%c0_131, %c0_132] : memref<16x32xf32, #tpu.memory_space<vmem>>, vector<16x32xf32>
    %261 = arith.select %259, %253, %260 : vector<16x32xf32>
    %c0_133 = arith.constant 0 : index
    %c0_134 = arith.constant 0 : index
    %262 = vector.load %arg20[%c0_133, %c0_134] : memref<16x32xf32, #tpu.memory_space<vmem>>, vector<16x32xf32>
    tpu.vector_store %arg20[%c0_133, %c0_134], %261 {strides = array<i32>} : memref<16x32xf32, #tpu.memory_space<vmem>>, vector<16x32xf32>,
    %c4_i32 = arith.constant 4 : i32
    %c7_i32_135 = arith.constant 7 : i32
    %263 = arith.subi %c7_i32_135, %c4_i32 : i32
    %c16_i32_136 = arith.constant 16 : i32
    %264 = arith.muli %c4_i32, %c16_i32_136 : i32
    %265 = tpu.assume_multiple %264, 16 : i32
    %c16_i32_137 = arith.constant 16 : i32
    %266 = arith.muli %263, %c16_i32_137 : i32
    %267 = tpu.assume_multiple %266, 16 : i32
    %c0_138 = arith.constant 0 : index
    %c0_139 = arith.constant 0 : index
    %268 = vector.load %arg18[%c0_138, %c0_139] : memref<16x64xf32, #tpu.memory_space<vmem>>, vector<16x64xf32>
    %c0_140 = arith.constant 0 : index
    %c0_141 = arith.constant 0 : index
    %269 = vector.load %arg19[%c0_140, %c0_141] : memref<16x64xf32, #tpu.memory_space<vmem>>, vector<16x32xf32>
    %c0_142 = arith.constant 0 : index
    %c32_143 = arith.constant 32 : index
    %270 = vector.load %arg19[%c0_142, %c32_143] : memref<16x64xf32, #tpu.memory_space<vmem>>, vector<16x32xf32>
    %271 = arith.truncf %268 : vector<16x64xf32> to vector<16x64xbf16>
    %cst_144 = arith.constant dense<0.000000e+00> : vector<16x256xf32>
    %272 = tpu.matmul %271, %25, %cst_144 {dimension_numbers = #tpu.dot_dimension_numbers<[1], [0], [0], [1], [0, 0, 1, 1], [], []>} : vector<16x64xbf16>, vector<64x256xbf16>, vector<16x256xf32> -> vector<16x256xf32>
    %273 = vector.extract_strided_slice %272 {offsets = [0, 0], sizes = [16, 128], strides = [1, 1]} : vector<16x256xf32> to vector<16x128xf32>
    %274 = arith.index_cast %265 : i32 to index
    %c0_145 = arith.constant 0 : index
    %275 = vector.load %arg16[%274, %c0_145] : memref<128x128xf32, #tpu.memory_space<vmem>>, vector<16x128xf32>
    %276 = arith.addf %273, %275 : vector<16x128xf32>
    %277 = vector.extract_strided_slice %272 {offsets = [0, 128], sizes = [16, 128], strides = [1, 1]} : vector<16x256xf32> to vector<16x128xf32>
    %278 = arith.index_cast %267 : i32 to index
    %c0_146 = arith.constant 0 : index
    %279 = vector.load %arg17[%278, %c0_146] : memref<128x128xf32, #tpu.memory_space<vmem>>, vector<16x128xf32>
    %280 = arith.addf %277, %279 : vector<16x128xf32>
    %281 = vector.extract_strided_slice %276 {offsets = [0, 0], sizes = [16, 96], strides = [1, 1]} : vector<16x128xf32> to vector<16x96xf32>
    %282 = arith.negf %281 : vector<16x96xf32>
    %283 = math.exp %282 : vector<16x96xf32>
    %cst_147 = arith.constant 1.000000e+00 : f32
    %284 = vector.broadcast %cst_147 : f32 to vector<16x96xf32>
    %285 = arith.addf %284, %283 : vector<16x96xf32>
    %286 = arith.divf %284, %285 : vector<16x96xf32>
    %287 = vector.extract_strided_slice %276 {offsets = [0, 96], sizes = [16, 32], strides = [1, 1]} : vector<16x128xf32> to vector<16x32xf32>
    %288 = math.tanh %287 : vector<16x32xf32>
    %289 = vector.extract_strided_slice %286 {offsets = [0, 32], sizes = [16, 32], strides = [1, 1]} : vector<16x96xf32> to vector<16x32xf32>
    %290 = arith.mulf %289, %269 : vector<16x32xf32>
    %291 = vector.extract_strided_slice %286 {offsets = [0, 0], sizes = [16, 32], strides = [1, 1]} : vector<16x96xf32> to vector<16x32xf32>
    %292 = arith.mulf %291, %288 : vector<16x32xf32>
    %293 = arith.addf %290, %292 : vector<16x32xf32>
    %294 = vector.extract_strided_slice %286 {offsets = [0, 64], sizes = [16, 32], strides = [1, 1]} : vector<16x96xf32> to vector<16x32xf32>
    %295 = math.tanh %293 : vector<16x32xf32>
    %296 = arith.mulf %294, %295 : vector<16x32xf32>
    %297 = vector.extract_strided_slice %280 {offsets = [0, 0], sizes = [16, 96], strides = [1, 1]} : vector<16x128xf32> to vector<16x96xf32>
    %298 = arith.negf %297 : vector<16x96xf32>
    %299 = math.exp %298 : vector<16x96xf32>
    %cst_148 = arith.constant 1.000000e+00 : f32
    %300 = vector.broadcast %cst_148 : f32 to vector<16x96xf32>
    %301 = arith.addf %300, %299 : vector<16x96xf32>
    %302 = arith.divf %300, %301 : vector<16x96xf32>
    %303 = vector.extract_strided_slice %280 {offsets = [0, 96], sizes = [16, 32], strides = [1, 1]} : vector<16x128xf32> to vector<16x32xf32>
    %304 = math.tanh %303 : vector<16x32xf32>
    %305 = vector.extract_strided_slice %302 {offsets = [0, 32], sizes = [16, 32], strides = [1, 1]} : vector<16x96xf32> to vector<16x32xf32>
    %306 = arith.mulf %305, %270 : vector<16x32xf32>
    %307 = vector.extract_strided_slice %302 {offsets = [0, 0], sizes = [16, 32], strides = [1, 1]} : vector<16x96xf32> to vector<16x32xf32>
    %308 = arith.mulf %307, %304 : vector<16x32xf32>
    %309 = arith.addf %306, %308 : vector<16x32xf32>
    %310 = vector.extract_strided_slice %302 {offsets = [0, 64], sizes = [16, 32], strides = [1, 1]} : vector<16x96xf32> to vector<16x32xf32>
    %311 = math.tanh %309 : vector<16x32xf32>
    %312 = arith.mulf %310, %311 : vector<16x32xf32>
    %c0_149 = arith.constant 0 : index
    %c0_150 = arith.constant 0 : index
    %313 = vector.load %arg18[%c0_149, %c0_150] : memref<16x64xf32, #tpu.memory_space<vmem>>, vector<16x32xf32>
    tpu.vector_store %arg18[%c0_149, %c0_150], %296 {strides = array<i32>} : memref<16x64xf32, #tpu.memory_space<vmem>>, vector<16x32xf32>,
    %c0_151 = arith.constant 0 : index
    %c32_152 = arith.constant 32 : index
    %314 = vector.load %arg18[%c0_151, %c32_152] : memref<16x64xf32, #tpu.memory_space<vmem>>, vector<16x32xf32>
    tpu.vector_store %arg18[%c0_151, %c32_152], %312 {strides = array<i32>} : memref<16x64xf32, #tpu.memory_space<vmem>>, vector<16x32xf32>,
    %c0_153 = arith.constant 0 : index
    %c0_154 = arith.constant 0 : index
    %315 = vector.load %arg19[%c0_153, %c0_154] : memref<16x64xf32, #tpu.memory_space<vmem>>, vector<16x32xf32>
    tpu.vector_store %arg19[%c0_153, %c0_154], %293 {strides = array<i32>} : memref<16x64xf32, #tpu.memory_space<vmem>>, vector<16x32xf32>,
    %c0_155 = arith.constant 0 : index
    %c32_156 = arith.constant 32 : index
    %316 = vector.load %arg19[%c0_155, %c32_156] : memref<16x64xf32, #tpu.memory_space<vmem>>, vector<16x32xf32>
    tpu.vector_store %arg19[%c0_155, %c32_156], %309 {strides = array<i32>} : memref<16x64xf32, #tpu.memory_space<vmem>>, vector<16x32xf32>,
    %317 = arith.addi %26, %c4_i32 : i32
    %c0_i32_157 = arith.constant 0 : i32
    %318 = arith.cmpi eq, %317, %c0_i32_157 : i32
    %c0_158 = arith.constant 0 : index
    %c0_159 = arith.constant 0 : index
    %319 = vector.load %arg20[%c0_158, %c0_159] : memref<16x32xf32, #tpu.memory_space<vmem>>, vector<16x32xf32>
    %320 = arith.select %318, %312, %319 : vector<16x32xf32>
    %c0_160 = arith.constant 0 : index
    %c0_161 = arith.constant 0 : index
    %321 = vector.load %arg20[%c0_160, %c0_161] : memref<16x32xf32, #tpu.memory_space<vmem>>, vector<16x32xf32>
    tpu.vector_store %arg20[%c0_160, %c0_161], %320 {strides = array<i32>} : memref<16x32xf32, #tpu.memory_space<vmem>>, vector<16x32xf32>,
    %c5_i32 = arith.constant 5 : i32
    %c7_i32_162 = arith.constant 7 : i32
    %322 = arith.subi %c7_i32_162, %c5_i32 : i32
    %c16_i32_163 = arith.constant 16 : i32
    %323 = arith.muli %c5_i32, %c16_i32_163 : i32
    %324 = tpu.assume_multiple %323, 16 : i32
    %c16_i32_164 = arith.constant 16 : i32
    %325 = arith.muli %322, %c16_i32_164 : i32
    %326 = tpu.assume_multiple %325, 16 : i32
    %c0_165 = arith.constant 0 : index
    %c0_166 = arith.constant 0 : index
    %327 = vector.load %arg18[%c0_165, %c0_166] : memref<16x64xf32, #tpu.memory_space<vmem>>, vector<16x64xf32>
    %c0_167 = arith.constant 0 : index
    %c0_168 = arith.constant 0 : index
    %328 = vector.load %arg19[%c0_167, %c0_168] : memref<16x64xf32, #tpu.memory_space<vmem>>, vector<16x32xf32>
    %c0_169 = arith.constant 0 : index
    %c32_170 = arith.constant 32 : index
    %329 = vector.load %arg19[%c0_169, %c32_170] : memref<16x64xf32, #tpu.memory_space<vmem>>, vector<16x32xf32>
    %330 = arith.truncf %327 : vector<16x64xf32> to vector<16x64xbf16>
    %cst_171 = arith.constant dense<0.000000e+00> : vector<16x256xf32>
    %331 = tpu.matmul %330, %25, %cst_171 {dimension_numbers = #tpu.dot_dimension_numbers<[1], [0], [0], [1], [0, 0, 1, 1], [], []>} : vector<16x64xbf16>, vector<64x256xbf16>, vector<16x256xf32> -> vector<16x256xf32>
    %332 = vector.extract_strided_slice %331 {offsets = [0, 0], sizes = [16, 128], strides = [1, 1]} : vector<16x256xf32> to vector<16x128xf32>
    %333 = arith.index_cast %324 : i32 to index
    %c0_172 = arith.constant 0 : index
    %334 = vector.load %arg16[%333, %c0_172] : memref<128x128xf32, #tpu.memory_space<vmem>>, vector<16x128xf32>
    %335 = arith.addf %332, %334 : vector<16x128xf32>
    %336 = vector.extract_strided_slice %331 {offsets = [0, 128], sizes = [16, 128], strides = [1, 1]} : vector<16x256xf32> to vector<16x128xf32>
    %337 = arith.index_cast %326 : i32 to index
    %c0_173 = arith.constant 0 : index
    %338 = vector.load %arg17[%337, %c0_173] : memref<128x128xf32, #tpu.memory_space<vmem>>, vector<16x128xf32>
    %339 = arith.addf %336, %338 : vector<16x128xf32>
    %340 = vector.extract_strided_slice %335 {offsets = [0, 0], sizes = [16, 96], strides = [1, 1]} : vector<16x128xf32> to vector<16x96xf32>
    %341 = arith.negf %340 : vector<16x96xf32>
    %342 = math.exp %341 : vector<16x96xf32>
    %cst_174 = arith.constant 1.000000e+00 : f32
    %343 = vector.broadcast %cst_174 : f32 to vector<16x96xf32>
    %344 = arith.addf %343, %342 : vector<16x96xf32>
    %345 = arith.divf %343, %344 : vector<16x96xf32>
    %346 = vector.extract_strided_slice %335 {offsets = [0, 96], sizes = [16, 32], strides = [1, 1]} : vector<16x128xf32> to vector<16x32xf32>
    %347 = math.tanh %346 : vector<16x32xf32>
    %348 = vector.extract_strided_slice %345 {offsets = [0, 32], sizes = [16, 32], strides = [1, 1]} : vector<16x96xf32> to vector<16x32xf32>
    %349 = arith.mulf %348, %328 : vector<16x32xf32>
    %350 = vector.extract_strided_slice %345 {offsets = [0, 0], sizes = [16, 32], strides = [1, 1]} : vector<16x96xf32> to vector<16x32xf32>
    %351 = arith.mulf %350, %347 : vector<16x32xf32>
    %352 = arith.addf %349, %351 : vector<16x32xf32>
    %353 = vector.extract_strided_slice %345 {offsets = [0, 64], sizes = [16, 32], strides = [1, 1]} : vector<16x96xf32> to vector<16x32xf32>
    %354 = math.tanh %352 : vector<16x32xf32>
    %355 = arith.mulf %353, %354 : vector<16x32xf32>
    %356 = vector.extract_strided_slice %339 {offsets = [0, 0], sizes = [16, 96], strides = [1, 1]} : vector<16x128xf32> to vector<16x96xf32>
    %357 = arith.negf %356 : vector<16x96xf32>
    %358 = math.exp %357 : vector<16x96xf32>
    %cst_175 = arith.constant 1.000000e+00 : f32
    %359 = vector.broadcast %cst_175 : f32 to vector<16x96xf32>
    %360 = arith.addf %359, %358 : vector<16x96xf32>
    %361 = arith.divf %359, %360 : vector<16x96xf32>
    %362 = vector.extract_strided_slice %339 {offsets = [0, 96], sizes = [16, 32], strides = [1, 1]} : vector<16x128xf32> to vector<16x32xf32>
    %363 = math.tanh %362 : vector<16x32xf32>
    %364 = vector.extract_strided_slice %361 {offsets = [0, 32], sizes = [16, 32], strides = [1, 1]} : vector<16x96xf32> to vector<16x32xf32>
    %365 = arith.mulf %364, %329 : vector<16x32xf32>
    %366 = vector.extract_strided_slice %361 {offsets = [0, 0], sizes = [16, 32], strides = [1, 1]} : vector<16x96xf32> to vector<16x32xf32>
    %367 = arith.mulf %366, %363 : vector<16x32xf32>
    %368 = arith.addf %365, %367 : vector<16x32xf32>
    %369 = vector.extract_strided_slice %361 {offsets = [0, 64], sizes = [16, 32], strides = [1, 1]} : vector<16x96xf32> to vector<16x32xf32>
    %370 = math.tanh %368 : vector<16x32xf32>
    %371 = arith.mulf %369, %370 : vector<16x32xf32>
    %c0_176 = arith.constant 0 : index
    %c0_177 = arith.constant 0 : index
    %372 = vector.load %arg18[%c0_176, %c0_177] : memref<16x64xf32, #tpu.memory_space<vmem>>, vector<16x32xf32>
    tpu.vector_store %arg18[%c0_176, %c0_177], %355 {strides = array<i32>} : memref<16x64xf32, #tpu.memory_space<vmem>>, vector<16x32xf32>,
    %c0_178 = arith.constant 0 : index
    %c32_179 = arith.constant 32 : index
    %373 = vector.load %arg18[%c0_178, %c32_179] : memref<16x64xf32, #tpu.memory_space<vmem>>, vector<16x32xf32>
    tpu.vector_store %arg18[%c0_178, %c32_179], %371 {strides = array<i32>} : memref<16x64xf32, #tpu.memory_space<vmem>>, vector<16x32xf32>,
    %c0_180 = arith.constant 0 : index
    %c0_181 = arith.constant 0 : index
    %374 = vector.load %arg19[%c0_180, %c0_181] : memref<16x64xf32, #tpu.memory_space<vmem>>, vector<16x32xf32>
    tpu.vector_store %arg19[%c0_180, %c0_181], %352 {strides = array<i32>} : memref<16x64xf32, #tpu.memory_space<vmem>>, vector<16x32xf32>,
    %c0_182 = arith.constant 0 : index
    %c32_183 = arith.constant 32 : index
    %375 = vector.load %arg19[%c0_182, %c32_183] : memref<16x64xf32, #tpu.memory_space<vmem>>, vector<16x32xf32>
    tpu.vector_store %arg19[%c0_182, %c32_183], %368 {strides = array<i32>} : memref<16x64xf32, #tpu.memory_space<vmem>>, vector<16x32xf32>,
    %376 = arith.addi %26, %c5_i32 : i32
    %c0_i32_184 = arith.constant 0 : i32
    %377 = arith.cmpi eq, %376, %c0_i32_184 : i32
    %c0_185 = arith.constant 0 : index
    %c0_186 = arith.constant 0 : index
    %378 = vector.load %arg20[%c0_185, %c0_186] : memref<16x32xf32, #tpu.memory_space<vmem>>, vector<16x32xf32>
    %379 = arith.select %377, %371, %378 : vector<16x32xf32>
    %c0_187 = arith.constant 0 : index
    %c0_188 = arith.constant 0 : index
    %380 = vector.load %arg20[%c0_187, %c0_188] : memref<16x32xf32, #tpu.memory_space<vmem>>, vector<16x32xf32>
    tpu.vector_store %arg20[%c0_187, %c0_188], %379 {strides = array<i32>} : memref<16x32xf32, #tpu.memory_space<vmem>>, vector<16x32xf32>,
    %c6_i32 = arith.constant 6 : i32
    %c7_i32_189 = arith.constant 7 : i32
    %381 = arith.subi %c7_i32_189, %c6_i32 : i32
    %c16_i32_190 = arith.constant 16 : i32
    %382 = arith.muli %c6_i32, %c16_i32_190 : i32
    %383 = tpu.assume_multiple %382, 16 : i32
    %c16_i32_191 = arith.constant 16 : i32
    %384 = arith.muli %381, %c16_i32_191 : i32
    %385 = tpu.assume_multiple %384, 16 : i32
    %c0_192 = arith.constant 0 : index
    %c0_193 = arith.constant 0 : index
    %386 = vector.load %arg18[%c0_192, %c0_193] : memref<16x64xf32, #tpu.memory_space<vmem>>, vector<16x64xf32>
    %c0_194 = arith.constant 0 : index
    %c0_195 = arith.constant 0 : index
    %387 = vector.load %arg19[%c0_194, %c0_195] : memref<16x64xf32, #tpu.memory_space<vmem>>, vector<16x32xf32>
    %c0_196 = arith.constant 0 : index
    %c32_197 = arith.constant 32 : index
    %388 = vector.load %arg19[%c0_196, %c32_197] : memref<16x64xf32, #tpu.memory_space<vmem>>, vector<16x32xf32>
    %389 = arith.truncf %386 : vector<16x64xf32> to vector<16x64xbf16>
    %cst_198 = arith.constant dense<0.000000e+00> : vector<16x256xf32>
    %390 = tpu.matmul %389, %25, %cst_198 {dimension_numbers = #tpu.dot_dimension_numbers<[1], [0], [0], [1], [0, 0, 1, 1], [], []>} : vector<16x64xbf16>, vector<64x256xbf16>, vector<16x256xf32> -> vector<16x256xf32>
    %391 = vector.extract_strided_slice %390 {offsets = [0, 0], sizes = [16, 128], strides = [1, 1]} : vector<16x256xf32> to vector<16x128xf32>
    %392 = arith.index_cast %383 : i32 to index
    %c0_199 = arith.constant 0 : index
    %393 = vector.load %arg16[%392, %c0_199] : memref<128x128xf32, #tpu.memory_space<vmem>>, vector<16x128xf32>
    %394 = arith.addf %391, %393 : vector<16x128xf32>
    %395 = vector.extract_strided_slice %390 {offsets = [0, 128], sizes = [16, 128], strides = [1, 1]} : vector<16x256xf32> to vector<16x128xf32>
    %396 = arith.index_cast %385 : i32 to index
    %c0_200 = arith.constant 0 : index
    %397 = vector.load %arg17[%396, %c0_200] : memref<128x128xf32, #tpu.memory_space<vmem>>, vector<16x128xf32>
    %398 = arith.addf %395, %397 : vector<16x128xf32>
    %399 = vector.extract_strided_slice %394 {offsets = [0, 0], sizes = [16, 96], strides = [1, 1]} : vector<16x128xf32> to vector<16x96xf32>
    %400 = arith.negf %399 : vector<16x96xf32>
    %401 = math.exp %400 : vector<16x96xf32>
    %cst_201 = arith.constant 1.000000e+00 : f32
    %402 = vector.broadcast %cst_201 : f32 to vector<16x96xf32>
    %403 = arith.addf %402, %401 : vector<16x96xf32>
    %404 = arith.divf %402, %403 : vector<16x96xf32>
    %405 = vector.extract_strided_slice %394 {offsets = [0, 96], sizes = [16, 32], strides = [1, 1]} : vector<16x128xf32> to vector<16x32xf32>
    %406 = math.tanh %405 : vector<16x32xf32>
    %407 = vector.extract_strided_slice %404 {offsets = [0, 32], sizes = [16, 32], strides = [1, 1]} : vector<16x96xf32> to vector<16x32xf32>
    %408 = arith.mulf %407, %387 : vector<16x32xf32>
    %409 = vector.extract_strided_slice %404 {offsets = [0, 0], sizes = [16, 32], strides = [1, 1]} : vector<16x96xf32> to vector<16x32xf32>
    %410 = arith.mulf %409, %406 : vector<16x32xf32>
    %411 = arith.addf %408, %410 : vector<16x32xf32>
    %412 = vector.extract_strided_slice %404 {offsets = [0, 64], sizes = [16, 32], strides = [1, 1]} : vector<16x96xf32> to vector<16x32xf32>
    %413 = math.tanh %411 : vector<16x32xf32>
    %414 = arith.mulf %412, %413 : vector<16x32xf32>
    %415 = vector.extract_strided_slice %398 {offsets = [0, 0], sizes = [16, 96], strides = [1, 1]} : vector<16x128xf32> to vector<16x96xf32>
    %416 = arith.negf %415 : vector<16x96xf32>
    %417 = math.exp %416 : vector<16x96xf32>
    %cst_202 = arith.constant 1.000000e+00 : f32
    %418 = vector.broadcast %cst_202 : f32 to vector<16x96xf32>
    %419 = arith.addf %418, %417 : vector<16x96xf32>
    %420 = arith.divf %418, %419 : vector<16x96xf32>
    %421 = vector.extract_strided_slice %398 {offsets = [0, 96], sizes = [16, 32], strides = [1, 1]} : vector<16x128xf32> to vector<16x32xf32>
    %422 = math.tanh %421 : vector<16x32xf32>
    %423 = vector.extract_strided_slice %420 {offsets = [0, 32], sizes = [16, 32], strides = [1, 1]} : vector<16x96xf32> to vector<16x32xf32>
    %424 = arith.mulf %423, %388 : vector<16x32xf32>
    %425 = vector.extract_strided_slice %420 {offsets = [0, 0], sizes = [16, 32], strides = [1, 1]} : vector<16x96xf32> to vector<16x32xf32>
    %426 = arith.mulf %425, %422 : vector<16x32xf32>
    %427 = arith.addf %424, %426 : vector<16x32xf32>
    %428 = vector.extract_strided_slice %420 {offsets = [0, 64], sizes = [16, 32], strides = [1, 1]} : vector<16x96xf32> to vector<16x32xf32>
    %429 = math.tanh %427 : vector<16x32xf32>
    %430 = arith.mulf %428, %429 : vector<16x32xf32>
    %c0_203 = arith.constant 0 : index
    %c0_204 = arith.constant 0 : index
    %431 = vector.load %arg18[%c0_203, %c0_204] : memref<16x64xf32, #tpu.memory_space<vmem>>, vector<16x32xf32>
    tpu.vector_store %arg18[%c0_203, %c0_204], %414 {strides = array<i32>} : memref<16x64xf32, #tpu.memory_space<vmem>>, vector<16x32xf32>,
    %c0_205 = arith.constant 0 : index
    %c32_206 = arith.constant 32 : index
    %432 = vector.load %arg18[%c0_205, %c32_206] : memref<16x64xf32, #tpu.memory_space<vmem>>, vector<16x32xf32>
    tpu.vector_store %arg18[%c0_205, %c32_206], %430 {strides = array<i32>} : memref<16x64xf32, #tpu.memory_space<vmem>>, vector<16x32xf32>,
    %c0_207 = arith.constant 0 : index
    %c0_208 = arith.constant 0 : index
    %433 = vector.load %arg19[%c0_207, %c0_208] : memref<16x64xf32, #tpu.memory_space<vmem>>, vector<16x32xf32>
    tpu.vector_store %arg19[%c0_207, %c0_208], %411 {strides = array<i32>} : memref<16x64xf32, #tpu.memory_space<vmem>>, vector<16x32xf32>,
    %c0_209 = arith.constant 0 : index
    %c32_210 = arith.constant 32 : index
    %434 = vector.load %arg19[%c0_209, %c32_210] : memref<16x64xf32, #tpu.memory_space<vmem>>, vector<16x32xf32>
    tpu.vector_store %arg19[%c0_209, %c32_210], %427 {strides = array<i32>} : memref<16x64xf32, #tpu.memory_space<vmem>>, vector<16x32xf32>,
    %435 = arith.addi %26, %c6_i32 : i32
    %c0_i32_211 = arith.constant 0 : i32
    %436 = arith.cmpi eq, %435, %c0_i32_211 : i32
    %c0_212 = arith.constant 0 : index
    %c0_213 = arith.constant 0 : index
    %437 = vector.load %arg20[%c0_212, %c0_213] : memref<16x32xf32, #tpu.memory_space<vmem>>, vector<16x32xf32>
    %438 = arith.select %436, %430, %437 : vector<16x32xf32>
    %c0_214 = arith.constant 0 : index
    %c0_215 = arith.constant 0 : index
    %439 = vector.load %arg20[%c0_214, %c0_215] : memref<16x32xf32, #tpu.memory_space<vmem>>, vector<16x32xf32>
    tpu.vector_store %arg20[%c0_214, %c0_215], %438 {strides = array<i32>} : memref<16x32xf32, #tpu.memory_space<vmem>>, vector<16x32xf32>,
    %c7_i32_216 = arith.constant 7 : i32
    %c7_i32_217 = arith.constant 7 : i32
    %440 = arith.subi %c7_i32_217, %c7_i32_216 : i32
    %c16_i32_218 = arith.constant 16 : i32
    %441 = arith.muli %c7_i32_216, %c16_i32_218 : i32
    %442 = tpu.assume_multiple %441, 16 : i32
    %c16_i32_219 = arith.constant 16 : i32
    %443 = arith.muli %440, %c16_i32_219 : i32
    %444 = tpu.assume_multiple %443, 16 : i32
    %c0_220 = arith.constant 0 : index
    %c0_221 = arith.constant 0 : index
    %445 = vector.load %arg18[%c0_220, %c0_221] : memref<16x64xf32, #tpu.memory_space<vmem>>, vector<16x64xf32>
    %c0_222 = arith.constant 0 : index
    %c0_223 = arith.constant 0 : index
    %446 = vector.load %arg19[%c0_222, %c0_223] : memref<16x64xf32, #tpu.memory_space<vmem>>, vector<16x32xf32>
    %c0_224 = arith.constant 0 : index
    %c32_225 = arith.constant 32 : index
    %447 = vector.load %arg19[%c0_224, %c32_225] : memref<16x64xf32, #tpu.memory_space<vmem>>, vector<16x32xf32>
    %448 = arith.truncf %445 : vector<16x64xf32> to vector<16x64xbf16>
    %cst_226 = arith.constant dense<0.000000e+00> : vector<16x256xf32>
    %449 = tpu.matmul %448, %25, %cst_226 {dimension_numbers = #tpu.dot_dimension_numbers<[1], [0], [0], [1], [0, 0, 1, 1], [], []>} : vector<16x64xbf16>, vector<64x256xbf16>, vector<16x256xf32> -> vector<16x256xf32>
    %450 = vector.extract_strided_slice %449 {offsets = [0, 0], sizes = [16, 128], strides = [1, 1]} : vector<16x256xf32> to vector<16x128xf32>
    %451 = arith.index_cast %442 : i32 to index
    %c0_227 = arith.constant 0 : index
    %452 = vector.load %arg16[%451, %c0_227] : memref<128x128xf32, #tpu.memory_space<vmem>>, vector<16x128xf32>
    %453 = arith.addf %450, %452 : vector<16x128xf32>
    %454 = vector.extract_strided_slice %449 {offsets = [0, 128], sizes = [16, 128], strides = [1, 1]} : vector<16x256xf32> to vector<16x128xf32>
    %455 = arith.index_cast %444 : i32 to index
    %c0_228 = arith.constant 0 : index
    %456 = vector.load %arg17[%455, %c0_228] : memref<128x128xf32, #tpu.memory_space<vmem>>, vector<16x128xf32>
    %457 = arith.addf %454, %456 : vector<16x128xf32>
    %458 = vector.extract_strided_slice %453 {offsets = [0, 0], sizes = [16, 96], strides = [1, 1]} : vector<16x128xf32> to vector<16x96xf32>
    %459 = arith.negf %458 : vector<16x96xf32>
    %460 = math.exp %459 : vector<16x96xf32>
    %cst_229 = arith.constant 1.000000e+00 : f32
    %461 = vector.broadcast %cst_229 : f32 to vector<16x96xf32>
    %462 = arith.addf %461, %460 : vector<16x96xf32>
    %463 = arith.divf %461, %462 : vector<16x96xf32>
    %464 = vector.extract_strided_slice %453 {offsets = [0, 96], sizes = [16, 32], strides = [1, 1]} : vector<16x128xf32> to vector<16x32xf32>
    %465 = math.tanh %464 : vector<16x32xf32>
    %466 = vector.extract_strided_slice %463 {offsets = [0, 32], sizes = [16, 32], strides = [1, 1]} : vector<16x96xf32> to vector<16x32xf32>
    %467 = arith.mulf %466, %446 : vector<16x32xf32>
    %468 = vector.extract_strided_slice %463 {offsets = [0, 0], sizes = [16, 32], strides = [1, 1]} : vector<16x96xf32> to vector<16x32xf32>
    %469 = arith.mulf %468, %465 : vector<16x32xf32>
    %470 = arith.addf %467, %469 : vector<16x32xf32>
    %471 = vector.extract_strided_slice %463 {offsets = [0, 64], sizes = [16, 32], strides = [1, 1]} : vector<16x96xf32> to vector<16x32xf32>
    %472 = math.tanh %470 : vector<16x32xf32>
    %473 = arith.mulf %471, %472 : vector<16x32xf32>
    %474 = vector.extract_strided_slice %457 {offsets = [0, 0], sizes = [16, 96], strides = [1, 1]} : vector<16x128xf32> to vector<16x96xf32>
    %475 = arith.negf %474 : vector<16x96xf32>
    %476 = math.exp %475 : vector<16x96xf32>
    %cst_230 = arith.constant 1.000000e+00 : f32
    %477 = vector.broadcast %cst_230 : f32 to vector<16x96xf32>
    %478 = arith.addf %477, %476 : vector<16x96xf32>
    %479 = arith.divf %477, %478 : vector<16x96xf32>
    %480 = vector.extract_strided_slice %457 {offsets = [0, 96], sizes = [16, 32], strides = [1, 1]} : vector<16x128xf32> to vector<16x32xf32>
    %481 = math.tanh %480 : vector<16x32xf32>
    %482 = vector.extract_strided_slice %479 {offsets = [0, 32], sizes = [16, 32], strides = [1, 1]} : vector<16x96xf32> to vector<16x32xf32>
    %483 = arith.mulf %482, %447 : vector<16x32xf32>
    %484 = vector.extract_strided_slice %479 {offsets = [0, 0], sizes = [16, 32], strides = [1, 1]} : vector<16x96xf32> to vector<16x32xf32>
    %485 = arith.mulf %484, %481 : vector<16x32xf32>
    %486 = arith.addf %483, %485 : vector<16x32xf32>
    %487 = vector.extract_strided_slice %479 {offsets = [0, 64], sizes = [16, 32], strides = [1, 1]} : vector<16x96xf32> to vector<16x32xf32>
    %488 = math.tanh %486 : vector<16x32xf32>
    %489 = arith.mulf %487, %488 : vector<16x32xf32>
    %c0_231 = arith.constant 0 : index
    %c0_232 = arith.constant 0 : index
    %490 = vector.load %arg18[%c0_231, %c0_232] : memref<16x64xf32, #tpu.memory_space<vmem>>, vector<16x32xf32>
    tpu.vector_store %arg18[%c0_231, %c0_232], %473 {strides = array<i32>} : memref<16x64xf32, #tpu.memory_space<vmem>>, vector<16x32xf32>,
    %c0_233 = arith.constant 0 : index
    %c32_234 = arith.constant 32 : index
    %491 = vector.load %arg18[%c0_233, %c32_234] : memref<16x64xf32, #tpu.memory_space<vmem>>, vector<16x32xf32>
    tpu.vector_store %arg18[%c0_233, %c32_234], %489 {strides = array<i32>} : memref<16x64xf32, #tpu.memory_space<vmem>>, vector<16x32xf32>,
    %c0_235 = arith.constant 0 : index
    %c0_236 = arith.constant 0 : index
    %492 = vector.load %arg19[%c0_235, %c0_236] : memref<16x64xf32, #tpu.memory_space<vmem>>, vector<16x32xf32>
    tpu.vector_store %arg19[%c0_235, %c0_236], %470 {strides = array<i32>} : memref<16x64xf32, #tpu.memory_space<vmem>>, vector<16x32xf32>,
    %c0_237 = arith.constant 0 : index
    %c32_238 = arith.constant 32 : index
    %493 = vector.load %arg19[%c0_237, %c32_238] : memref<16x64xf32, #tpu.memory_space<vmem>>, vector<16x32xf32>
    tpu.vector_store %arg19[%c0_237, %c32_238], %486 {strides = array<i32>} : memref<16x64xf32, #tpu.memory_space<vmem>>, vector<16x32xf32>,
    %494 = arith.addi %26, %c7_i32_216 : i32
    %c0_i32_239 = arith.constant 0 : i32
    %495 = arith.cmpi eq, %494, %c0_i32_239 : i32
    %c0_240 = arith.constant 0 : index
    %c0_241 = arith.constant 0 : index
    %496 = vector.load %arg20[%c0_240, %c0_241] : memref<16x32xf32, #tpu.memory_space<vmem>>, vector<16x32xf32>
    %497 = arith.select %495, %489, %496 : vector<16x32xf32>
    %c0_242 = arith.constant 0 : index
    %c0_243 = arith.constant 0 : index
    %498 = vector.load %arg20[%c0_242, %c0_243] : memref<16x32xf32, #tpu.memory_space<vmem>>, vector<16x32xf32>
    tpu.vector_store %arg20[%c0_242, %c0_243], %497 {strides = array<i32>} : memref<16x32xf32, #tpu.memory_space<vmem>>, vector<16x32xf32>,
    %c8_i32_244 = arith.constant 8 : i32
    %c0_i32_245 = arith.constant 0 : i32
    %499 = arith.cmpi eq, %arg0, %c0_i32_245 : i32
    %500 = arith.extui %499 : i1 to i32
    %c0_i32_246 = arith.constant 0 : i32
    %501 = arith.cmpi ne, %500, %c0_i32_246 : i32
    scf.if %501 {
      %c0_247 = arith.constant 0 : index
      %c0_248 = arith.constant 0 : index
      %502 = vector.load %arg18[%c0_247, %c0_248] : memref<16x64xf32, #tpu.memory_space<vmem>>, vector<16x32xf32>
      %c0_249 = arith.constant 0 : index
      %c0_250 = arith.constant 0 : index
      %503 = vector.load %arg12[%c0_249, %c0_250] : memref<32x8xf32, #tpu.memory_space<vmem>>, vector<32x8xf32>
      %cst_251 = arith.constant dense<0.000000e+00> : vector<16x8xf32>
      %504 = tpu.matmul %502, %503, %cst_251 {dimension_numbers = #tpu.dot_dimension_numbers<[1], [0], [0], [1], [0, 0, 1, 1], [], []>} : vector<16x32xf32>, vector<32x8xf32>, vector<16x8xf32> -> vector<16x8xf32>
      %c0_252 = arith.constant 0 : index
      %c0_253 = arith.constant 0 : index
      %505 = vector.load %arg20[%c0_252, %c0_253] : memref<16x32xf32, #tpu.memory_space<vmem>>, vector<16x32xf32>
      %c0_254 = arith.constant 0 : index
      %c0_255 = arith.constant 0 : index
      %506 = vector.load %arg13[%c0_254, %c0_255] : memref<32x8xf32, #tpu.memory_space<vmem>>, vector<32x8xf32>
      %cst_256 = arith.constant dense<0.000000e+00> : vector<16x8xf32>
      %507 = tpu.matmul %505, %506, %cst_256 {dimension_numbers = #tpu.dot_dimension_numbers<[1], [0], [0], [1], [0, 0, 1, 1], [], []>} : vector<16x32xf32>, vector<32x8xf32>, vector<16x8xf32> -> vector<16x8xf32>
      %508 = arith.addf %504, %507 : vector<16x8xf32>
      %c0_257 = arith.constant 0 : index
      %c0_258 = arith.constant 0 : index
      %509 = vector.load %arg14[%c0_257, %c0_258] : memref<1x8xf32, #tpu.memory_space<vmem>>, vector<1x8xf32>
      %510 = vector.broadcast %509 : vector<1x8xf32> to vector<16x8xf32>
      %511 = arith.addf %508, %510 : vector<16x8xf32>
      %c0_259 = arith.constant 0 : index
      %c0_260 = arith.constant 0 : index
      %512 = vector.load %arg15[%c0_259, %c0_260] : memref<16x8xf32, #tpu.memory_space<vmem>>, vector<16x8xf32>
      tpu.vector_store %arg15[%c0_259, %c0_260], %511 {strides = array<i32>} : memref<16x8xf32, #tpu.memory_space<vmem>>, vector<16x8xf32>,
    } else {
    }
    return
  }
  func.func @transform_0(%arg0: i32) -> (i32, i32) {
    %c0_i32 = arith.constant 0 : i32
    %c0_i32_0 = arith.constant 0 : i32
    return %arg0, %c0_i32 : i32, i32
  }
  func.func @transform_1(%arg0: i32) -> (i32, i32) {
    %c0_i32 = arith.constant 0 : i32
    %c0_i32_0 = arith.constant 0 : i32
    return %arg0, %c0_i32 : i32, i32
  }
  func.func @transform_2(%arg0: i32) -> (i32, i32) {
    %c0_i32 = arith.constant 0 : i32
    %0 = arith.subi %c0_i32, %arg0 : i32
    %c0_i32_0 = arith.constant 0 : i32
    %c0_i32_1 = arith.constant 0 : i32
    return %0, %c0_i32_0 : i32, i32
  }
  func.func @transform_3(%arg0: i32) -> (i32, i32) {
    %c0_i32 = arith.constant 0 : i32
    %0 = arith.subi %c0_i32, %arg0 : i32
    %c0_i32_0 = arith.constant 0 : i32
    %c0_i32_1 = arith.constant 0 : i32
    return %0, %c0_i32_0 : i32, i32
  }
  func.func @transform_4(%arg0: i32) -> (i32, i32) {
    %c0_i32 = arith.constant 0 : i32
    %c0_i32_0 = arith.constant 0 : i32
    %c0_i32_1 = arith.constant 0 : i32
    return %c0_i32, %c0_i32_0 : i32, i32
  }
  func.func @transform_5(%arg0: i32) -> (i32, i32) {
    %c0_i32 = arith.constant 0 : i32
    %c0_i32_0 = arith.constant 0 : i32
    %c0_i32_1 = arith.constant 0 : i32
    return %c0_i32, %c0_i32_0 : i32, i32
  }
  func.func @transform_6(%arg0: i32) -> (i32, i32) {
    %c0_i32 = arith.constant 0 : i32
    %c0_i32_0 = arith.constant 0 : i32
    %c0_i32_1 = arith.constant 0 : i32
    return %c0_i32, %c0_i32_0 : i32, i32
  }
  func.func @transform_7(%arg0: i32) -> (i32, i32) {
    %c0_i32 = arith.constant 0 : i32
    %c0_i32_0 = arith.constant 0 : i32
    %c0_i32_1 = arith.constant 0 : i32
    return %c0_i32, %c0_i32_0 : i32, i32
  }
  func.func @transform_8(%arg0: i32) -> (i32, i32) {
    %c0_i32 = arith.constant 0 : i32
    %c0_i32_0 = arith.constant 0 : i32
    %c0_i32_1 = arith.constant 0 : i32
    return %c0_i32, %c0_i32_0 : i32, i32
  }
  func.func @transform_9(%arg0: i32) -> (i32, i32) {
    %c0_i32 = arith.constant 0 : i32
    %c0_i32_0 = arith.constant 0 : i32
    %c0_i32_1 = arith.constant 0 : i32
    return %c0_i32, %c0_i32_0 : i32, i32
  }
  func.func @transform_10(%arg0: i32) -> (i32, i32) {
    %c0_i32 = arith.constant 0 : i32
    %c0_i32_0 = arith.constant 0 : i32
    %c0_i32_1 = arith.constant 0 : i32
    return %c0_i32, %c0_i32_0 : i32, i32
  }
  func.func @transform_11(%arg0: i32) -> (i32, i32) {
    %c0_i32 = arith.constant 0 : i32
    %c0_i32_0 = arith.constant 0 : i32
    %c0_i32_1 = arith.constant 0 : i32
    return %c0_i32, %c0_i32_0 : i32, i32
  }
  func.func @transform_12(%arg0: i32) -> (i32, i32) {
    %c0_i32 = arith.constant 0 : i32
    %c0_i32_0 = arith.constant 0 : i32
    %c0_i32_1 = arith.constant 0 : i32
    return %c0_i32, %c0_i32_0 : i32, i32
  }
  func.func @transform_13(%arg0: i32) -> (i32, i32) {
    %c0_i32 = arith.constant 0 : i32
    %c0_i32_0 = arith.constant 0 : i32
    %c0_i32_1 = arith.constant 0 : i32
    return %c0_i32, %c0_i32_0 : i32, i32
  }
  func.func @transform_14(%arg0: i32) -> (i32, i32) {
    %c0_i32 = arith.constant 0 : i32
    %c0_i32_0 = arith.constant 0 : i32
    %c0_i32_1 = arith.constant 0 : i32
    return %c0_i32, %c0_i32_0 : i32, i32
  }
}

</mosaic_0001>

<llo_original>
// kernel: bilstm_forward.2
$region0: #{bilstm_forward.2}
  #allocation0 [shape = 'u32[]', space=smem, size = 0x4, offset = 0x4, fixed_abs, tag = 'smem constant byte address 0x4 - core index']
  #allocation1 [shape = 'u32[144,128]{1,0:T(1,128)}', space=vmem, size = 0x12000, scoped, tag = 'internal scratch']
  #allocation2 [shape = 'f32[128,128]{1,0:T(8,128)}', space=vmem, size = 0x10000, scoped, tag = 'scratch operand']
  #allocation3 [shape = 'f32[128,128]{1,0:T(8,128)}', space=vmem, size = 0x10000, scoped, tag = 'scratch operand']
  #allocation4 [shape = 'f32[16,64]{1,0:T(8,128)}', space=vmem, size = 0x2000, scoped, tag = 'scratch operand']
  #allocation5 [shape = 'f32[16,64]{1,0:T(8,128)}', space=vmem, size = 0x2000, scoped, tag = 'scratch operand']
  %s0 = inlined_call_operand.vmem [shape: bf16[128,16], index: 0, kind: input, shape index: {}, may-alias: {0,1}]
  %s1 = inlined_call_operand.vmem [shape: bf16[128,16], index: 1, kind: input, shape index: {}, may-alias: {0,1}]
  %s2 = inlined_call_operand.vmem [shape: bf16[16,128], index: 2, kind: input, shape index: {}]
  %s3 = inlined_call_operand.vmem [shape: bf16[16,128], index: 3, kind: input, shape index: {}]
  %s4 = inlined_call_operand.vmem [shape: f32[1,128], index: 4, kind: input, shape index: {}]
  %s5 = inlined_call_operand.vmem [shape: f32[1,128], index: 5, kind: input, shape index: {}]
  %s6 = inlined_call_operand.vmem [shape: bf16[64,256], index: 6, kind: input, shape index: {}]
  %s7 = inlined_call_operand.vmem [shape: bf16[128,32], index: 7, kind: output, shape index: {0}]
  %s8 = inlined_call_operand.vmem [shape: bf16[128,32], index: 8, kind: output, shape index: {1}]
  %9 = xla_tuple %s7, %s8
  %s10 = sld [smem:[#allocation0]]
  $region50: #{bilstm_forward.2} parent=0
    _
  %s12 = ssub.s32 1, %s10
  %s13 = scalar_select 0, %s12, %s10
  // Predicated region
  $region2: #{bilstm_forward.2} parent=0 // pred_check
    _
  $region3: #{bilstm_forward.2} parent=0 // pred_check_branch
    %15 = sbr.rel (0) target = $region5
  $region4: #{bilstm_forward.2} parent=0 // pred_region
    _
  $region5: #{bilstm_forward.2} parent=0 // pred_fallthru
    _
  // Predicated region
  $region6: #{bilstm_forward.2} parent=0 // pred_check
    _
  $region7: #{bilstm_forward.2} parent=0 // pred_check_branch
    %17 = sbr.rel (0) target = $region9
  $region8: #{bilstm_forward.2} parent=0 // pred_region
    %s18 = ssub.s32 0, 0
    %s19 = smul.u32 16, %s18
    %p20 = scmp.lt.s32.totalorder %s19, 15
    %s21 = scalar_select %p20, %s19, 15
    %s22 = smul.addr %s21, 4
    %s23 = scalar_lea.vmem %s1, %s22
    %s24 = ssub.s32 0, 0
    %s25 = smul.u32 16, %s24
  $region9: #{bilstm_forward.2} parent=0 // pred_fallthru
    _
  // Predicated region
  $region10: #{bilstm_forward.2} parent=0 // pred_check
    _
  $region11: #{bilstm_forward.2} parent=0 // pred_check_branch
    %27 = sbr.rel (0) target = $region13
  $region12: #{bilstm_forward.2} parent=0 // pred_region
    _
  $region13: #{bilstm_forward.2} parent=0 // pred_fallthru
    _
  // Predicated region
  $region14: #{bilstm_forward.2} parent=0 // pred_check
    _
  $region15: #{bilstm_forward.2} parent=0 // pred_check_branch
    %29 = sbr.rel (0) target = $region17
  $region16: #{bilstm_forward.2} parent=0 // pred_region
    _
  $region17: #{bilstm_forward.2} parent=0 // pred_fallthru
    _
  // Predicated region
  $region18: #{bilstm_forward.2} parent=0 // pred_check
    _
  $region19: #{bilstm_forward.2} parent=0 // pred_check_branch
    %31 = sbr.rel (0) target = $region21
  $region20: #{bilstm_forward.2} parent=0 // pred_region
    _
  $region21: #{bilstm_forward.2} parent=0 // pred_fallthru
    _
  // Predicated region
  $region22: #{bilstm_forward.2} parent=0 // pred_check
    _
  $region23: #{bilstm_forward.2} parent=0 // pred_check_branch
    %33 = sbr.rel (0) target = $region25
  $region24: #{bilstm_forward.2} parent=0 // pred_region
    _
  $region25: #{bilstm_forward.2} parent=0 // pred_fallthru
    _
  // Predicated region
  $region26: #{bilstm_forward.2} parent=0 // pred_check
    _
  $region27: #{bilstm_forward.2} parent=0 // pred_check_branch
    %35 = sbr.rel (0) target = $region29
  $region28: #{bilstm_forward.2} parent=0 // pred_region
    _
  $region29: #{bilstm_forward.2} parent=0 // pred_fallthru
    _
  %s36 = ssub.s32 0, 0
  %s37 = smul.u32 16, %s36
  %p38 = scmp.lt.s32.totalorder %s37, 15
  %s39 = scalar_select %p38, %s37, 15
  %s40 = smul.addr %s39, 4
  %s41 = scalar_lea.vmem %s1, %s40
  %s42 = ssub.s32 0, 0
  %s43 = smul.u32 16, %s42
  %p44 = scmp.lt.s32.totalorder %s43, 15
  %s45 = scalar_select %p44, %s43, 15
  %s46 = smul.addr %s45, 4
  %s47 = scalar_lea.vmem %s8, %s46
  %s48 = ssub.s32 0, 0
  %s49 = smul.u32 16, %s48
  %p50 = scmp.lt.s32.totalorder %s49, 15
  %s51 = scalar_select %p50, %s49, 15
  %s52 = smul.addr %s51, 4
  %s53 = scalar_lea.vmem %s1, %s52
  %s54 = ssub.s32 0, 0
  %s55 = smul.u32 16, %s54
  %s56 = ssub.s32 0, 0
  %s57 = smul.u32 16, %s56
  %p58 = scmp.lt.s32.totalorder %s57, 15
  %s59 = scalar_select %p58, %s57, 15
  %s60 = smul.addr %s59, 4
  %s61 = scalar_lea.vmem %s8, %s60
  %s62 = ssub.s32 0, 0
  %s63 = smul.u32 16, %s62
  %p65 = scmp.eq.s32.totalorder 0, 0
  // Predicated region
  $region30: #{bilstm_forward.2} parent=0 // pred_check
    %p66 = pneg %p65
  $region31: #{bilstm_forward.2} parent=0 // pred_check_branch
    %68 = sbr.rel (%p66) target = $region33
  $region32: #{bilstm_forward.2} parent=0 // pred_region
    %vm69 = vcmask 523264
    %70 = vst.msk [vmem:[#allocation4] sm:$0xff] %vm69, 0.0
    %71 = vst.msk [vmem:[#allocation4 + $0x8] sm:$0xff] %vm69, 0.0
    %72 = vst.msk [vmem:[#allocation5] sm:$0xff] %vm69, 0.0
    %73 = vst.msk [vmem:[#allocation5 + $0x8] sm:$0xff] %vm69, 0.0
  $region33: #{bilstm_forward.2} parent=0 // pred_fallthru
    _
  %v74 = vld [vmem:[%s0] sm:$0xf]
  %v75 = vld [vmem:[%s0 + $0x4] sm:$0xf]
  %v76 = vld [vmem:[%s0 + $0x8] sm:$0xf]
  %v77 = vld [vmem:[%s0 + $0xc] sm:$0xf]
  %v78 = vld [vmem:[%s0 + $0x10] sm:$0xf]
  %v79 = vld [vmem:[%s0 + $0x14] sm:$0xf]
  %v80 = vld [vmem:[%s0 + $0x18] sm:$0xf]
  %v81 = vld [vmem:[%s0 + $0x1c] sm:$0xf]
  %v82 = vld [vmem:[%s0 + $0x20] sm:$0xf]
  %v83 = vld [vmem:[%s0 + $0x24] sm:$0xf]
  %v84 = vld [vmem:[%s0 + $0x28] sm:$0xf]
  %v85 = vld [vmem:[%s0 + $0x2c] sm:$0xf]
  %v86 = vld [vmem:[%s0 + $0x30] sm:$0xf]
  %v87 = vld [vmem:[%s0 + $0x34] sm:$0xf]
  %v88 = vld [vmem:[%s0 + $0x38] sm:$0xf]
  %v89 = vld [vmem:[%s0 + $0x3c] sm:$0xf]
  %v90 = vld [vmem:[%s2] sm:$0xf]
  %v91 = vld [vmem:[%s2 + $0x4] sm:$0xf]
  %v92 = vld [vmem:[%s4] sm:$0x1]
  %v94 = vlaneseq
  %v95 = vshrl.u32 %v94, 7
  %v96 = vsub.s32 0, %v95
  %v97 = vrot.slane %v92, %v96
  %v115 = vunpack.c.l.b16 %v74
  %v116 = vunpack.c.l.b16 %v75
  %v117 = vunpack.c.l.b16 %v76
  %v118 = vunpack.c.l.b16 %v77
  %v119 = vunpack.c.l.b16 %v78
  %v120 = vunpack.c.l.b16 %v79
  %v121 = vunpack.c.l.b16 %v80
  %v122 = vunpack.c.l.b16 %v81
  %v123 = vunpack.c.l.b16 %v82
  %v124 = vunpack.c.l.b16 %v83
  %v125 = vunpack.c.l.b16 %v84
  %v126 = vunpack.c.l.b16 %v85
  %v127 = vunpack.c.l.b16 %v86
  %v128 = vunpack.c.l.b16 %v87
  %v129 = vunpack.c.l.b16 %v88
  %v130 = vunpack.c.l.b16 %v89
  %v131 = vpack.c.b16 %v116, %v115
  %v132 = vpack.c.b16 %v118, %v117
  %v133 = vpack.c.b16 %v120, %v119
  %v134 = vpack.c.b16 %v122, %v121
  %v135 = vpack.c.b16 %v124, %v123
  %v136 = vpack.c.b16 %v126, %v125
  %v137 = vpack.c.b16 %v128, %v127
  %v138 = vpack.c.b16 %v130, %v129
  %v141 = vunpack.c.l.b16 %v90
  %v142 = vunpack.c.l.b16 %v91
  %v143 = vpack.c.b16 %v142, %v141
  %vm145 = vcmask 130048
  %v147 = vsel %vm145, %v131, 0
  %v150 = vsel %vm145, %v132, 0
  %v153 = vsel %vm145, %v133, 0
  %v156 = vsel %vm145, %v134, 0
  %v159 = vsel %vm145, %v135, 0
  %v162 = vsel %vm145, %v136, 0
  %v165 = vsel %vm145, %v137, 0
  %v168 = vsel %vm145, %v138, 0
  %170 = vmatprep.subr.bf16.mxu0 0
  %171 = vmatpush1.bf16.msra.mxu0 0
  %172 = vmatprep.subr.bf16.mxu0 0
  %173 = vmatpush1.bf16.msra.mxu0 0
  %174 = vmatprep.subr.bf16.mxu0 0
  %175 = vmatpush1.bf16.msra.mxu0 0
  %176 = vmatprep.subr.bf16.mxu0 0
  %177 = vmatpush1.bf16.msra.mxu0 0
  %178 = vmatprep.subr.bf16.mxu0 0
  %179 = vmatpush1.bf16.msra.mxu0 0
  %180 = vmatprep.subr.bf16.mxu0 0
  %181 = vmatpush1.bf16.msra.mxu0 0
  %182 = vmatprep.subr.bf16.mxu0 0
  %183 = vmatpush1.bf16.msra.mxu0 0
  %184 = vmatprep.subr.bf16.mxu0 0
  %185 = vmatpush1.bf16.msra.mxu0 %v143
  %186 = vmatprep.subr.bf16.mxu0 0
  %187 = vmatpush2.bf16.msra.mxu0 0
  %188 = vmatprep.subr.bf16.mxu0 0
  %189 = vmatpush2.bf16.msra.mxu0 0
  %190 = vmatprep.subr.bf16.mxu0 0
  %191 = vmatpush2.bf16.msra.mxu0 0
  %192 = vmatprep.subr.bf16.mxu0 0
  %193 = vmatpush2.bf16.msra.mxu0 0
  %194 = vmatprep.subr.bf16.mxu0 0
  %195 = vmatpush2.bf16.msra.mxu0 0
  %196 = vmatprep.subr.bf16.mxu0 0
  %197 = vmatpush2.bf16.msra.mxu0 0
  %198 = vmatprep.subr.bf16.mxu0 0
  %199 = vmatpush2.bf16.msra.mxu0 0
  %200 = vmatprep.subr.bf16.mxu0 0
  %201 = vmatpush2.bf16.msra.mxu0 0
  %202 = vmatprep.mubr.bf16.mxu0 0
  %203 = vmatmul.mubr.bf16.gmra.mxu0 %v147
  %v204 = vpop.f32.mrf.mxu0
  %v205 = vadd.f32 %v97, %v204
  %v206 = vpop.f32.mrf.mxu0
  %v207 = vpop.f32.mrf.mxu0
  %v208 = vadd.f32 %v97, %v207
  %v209 = vpop.f32.mrf.mxu0
  %210 = vmatprep.mubr.bf16.mxu0 0
  %211 = vmatmul.mubr.bf16.gmra.mxu0 %v150
  %v212 = vpop.f32.mrf.mxu0
  %v213 = vadd.f32 %v97, %v212
  %v214 = vpop.f32.mrf.mxu0
  %v215 = vpop.f32.mrf.mxu0
  %v216 = vadd.f32 %v97, %v215
  %v217 = vpop.f32.mrf.mxu0
  %218 = vmatprep.mubr.bf16.mxu0 0
  %219 = vmatmul.mubr.bf16.gmra.mxu0 %v153
  %v220 = vpop.f32.mrf.mxu0
  %v221 = vadd.f32 %v97, %v220
  %v222 = vpop.f32.mrf.mxu0
  %v223 = vpop.f32.mrf.mxu0
  %v224 = vadd.f32 %v97, %v223
  %v225 = vpop.f32.mrf.mxu0
  %226 = vmatprep.mubr.bf16.mxu0 0
  %227 = vmatmul.mubr.bf16.gmra.mxu0 %v156
  %v228 = vpop.f32.mrf.mxu0
  %v229 = vadd.f32 %v97, %v228
  %v230 = vpop.f32.mrf.mxu0
  %v231 = vpop.f32.mrf.mxu0
  %v232 = vadd.f32 %v97, %v231
  %v233 = vpop.f32.mrf.mxu0
  %234 = vmatprep.mubr.bf16.mxu0 0
  %235 = vmatmul.mubr.bf16.gmra.mxu0 %v159
  %v236 = vpop.f32.mrf.mxu0
  %v237 = vadd.f32 %v97, %v236
  %v238 = vpop.f32.mrf.mxu0
  %v239 = vpop.f32.mrf.mxu0
  %v240 = vadd.f32 %v97, %v239
  %v241 = vpop.f32.mrf.mxu0
  %242 = vmatprep.mubr.bf16.mxu0 0
  %243 = vmatmul.mubr.bf16.gmra.mxu0 %v162
  %v244 = vpop.f32.mrf.mxu0
  %v245 = vadd.f32 %v97, %v244
  %v246 = vpop.f32.mrf.mxu0
  %v247 = vpop.f32.mrf.mxu0
  %v248 = vadd.f32 %v97, %v247
  %v249 = vpop.f32.mrf.mxu0
  %250 = vmatprep.mubr.bf16.mxu0 0
  %251 = vmatmul.mubr.bf16.gmra.mxu0 %v165
  %v252 = vpop.f32.mrf.mxu0
  %v253 = vadd.f32 %v97, %v252
  %v254 = vpop.f32.mrf.mxu0
  %v255 = vpop.f32.mrf.mxu0
  %v256 = vadd.f32 %v97, %v255
  %v257 = vpop.f32.mrf.mxu0
  %258 = vmatprep.mubr.bf16.mxu0 0
  %259 = vmatmul.mubr.bf16.gmra.mxu0 %v168
  %v260 = vpop.f32.mrf.mxu0
  %v261 = vadd.f32 %v97, %v260
  %v262 = vpop.f32.mrf.mxu0
  %v263 = vpop.f32.mrf.mxu0
  %v264 = vadd.f32 %v97, %v263
  %v265 = vpop.f32.mrf.mxu0
  %266 = vdwg.mxu0
  %267 = vst [vmem:[#allocation2] sm:$0xff] %v205
  %268 = vst [vmem:[#allocation2 + $0x8] sm:$0xff] %v208
  %269 = vst [vmem:[#allocation2 + $0x10] sm:$0xff] %v213
  %270 = vst [vmem:[#allocation2 + $0x18] sm:$0xff] %v216
  %271 = vst [vmem:[#allocation2 + $0x20] sm:$0xff] %v221
  %272 = vst [vmem:[#allocation2 + $0x28] sm:$0xff] %v224
  %273 = vst [vmem:[#allocation2 + $0x30] sm:$0xff] %v229
  %274 = vst [vmem:[#allocation2 + $0x38] sm:$0xff] %v232
  %275 = vst [vmem:[#allocation2 + $0x40] sm:$0xff] %v237
  %276 = vst [vmem:[#allocation2 + $0x48] sm:$0xff] %v240
  %277 = vst [vmem:[#allocation2 + $0x50] sm:$0xff] %v245
  %278 = vst [vmem:[#allocation2 + $0x58] sm:$0xff] %v248
  %279 = vst [vmem:[#allocation2 + $0x60] sm:$0xff] %v253
  %280 = vst [vmem:[#allocation2 + $0x68] sm:$0xff] %v256
  %281 = vst [vmem:[#allocation2 + $0x70] sm:$0xff] %v261
  %282 = vst [vmem:[#allocation2 + $0x78] sm:$0xff] %v264
  %v283 = vld [vmem:[%s53] sm:$0xf]
  %v284 = vld [vmem:[%s53 + $0x4] sm:$0xf]
  %v285 = vld [vmem:[%s53 + $0x8] sm:$0xf]
  %v286 = vld [vmem:[%s53 + $0xc] sm:$0xf]
  %v287 = vld [vmem:[%s53 + $0x10] sm:$0xf]
  %v288 = vld [vmem:[%s53 + $0x14] sm:$0xf]
  %v289 = vld [vmem:[%s53 + $0x18] sm:$0xf]
  %v290 = vld [vmem:[%s53 + $0x1c] sm:$0xf]
  %v291 = vld [vmem:[%s53 + $0x20] sm:$0xf]
  %v292 = vld [vmem:[%s53 + $0x24] sm:$0xf]
  %v293 = vld [vmem:[%s53 + $0x28] sm:$0xf]
  %v294 = vld [vmem:[%s53 + $0x2c] sm:$0xf]
  %v295 = vld [vmem:[%s53 + $0x30] sm:$0xf]
  %v296 = vld [vmem:[%s53 + $0x34] sm:$0xf]
  %v297 = vld [vmem:[%s53 + $0x38] sm:$0xf]
  %v298 = vld [vmem:[%s53 + $0x3c] sm:$0xf]
  %v299 = vld [vmem:[%s3] sm:$0xf]
  %v300 = vld [vmem:[%s3 + $0x4] sm:$0xf]
  %v301 = vld [vmem:[%s5] sm:$0x1]
  %v303 = vlaneseq
  %v304 = vshrl.u32 %v303, 7
  %v305 = vsub.s32 0, %v304
  %v306 = vrot.slane %v301, %v305
  %v324 = vunpack.c.l.b16 %v283
  %v325 = vunpack.c.l.b16 %v284
  %v326 = vunpack.c.l.b16 %v285
  %v327 = vunpack.c.l.b16 %v286
  %v328 = vunpack.c.l.b16 %v287
  %v329 = vunpack.c.l.b16 %v288
  %v330 = vunpack.c.l.b16 %v289
  %v331 = vunpack.c.l.b16 %v290
  %v332 = vunpack.c.l.b16 %v291
  %v333 = vunpack.c.l.b16 %v292
  %v334 = vunpack.c.l.b16 %v293
  %v335 = vunpack.c.l.b16 %v294
  %v336 = vunpack.c.l.b16 %v295
  %v337 = vunpack.c.l.b16 %v296
  %v338 = vunpack.c.l.b16 %v297
  %v339 = vunpack.c.l.b16 %v298
  %v340 = vpack.c.b16 %v325, %v324
  %v341 = vpack.c.b16 %v327, %v326
  %v342 = vpack.c.b16 %v329, %v328
  %v343 = vpack.c.b16 %v331, %v330
  %v344 = vpack.c.b16 %v333, %v332
  %v345 = vpack.c.b16 %v335, %v334
  %v346 = vpack.c.b16 %v337, %v336
  %v347 = vpack.c.b16 %v339, %v338
  %v350 = vunpack.c.l.b16 %v299
  %v351 = vunpack.c.l.b16 %v300
  %v352 = vpack.c.b16 %v351, %v350
  %v355 = vsel %vm145, %v340, 0
  %v358 = vsel %vm145, %v341, 0
  %v361 = vsel %vm145, %v342, 0
  %v364 = vsel %vm145, %v343, 0
  %v367 = vsel %vm145, %v344, 0
  %v370 = vsel %vm145, %v345, 0
  %v373 = vsel %vm145, %v346, 0
  %v376 = vsel %vm145, %v347, 0
  %378 = vmatprep.subr.bf16.mxu0 0
  %379 = vmatpush1.bf16.msra.mxu0 0
  %380 = vmatprep.subr.bf16.mxu0 0
  %381 = vmatpush1.bf16.msra.mxu0 0
  %382 = vmatprep.subr.bf16.mxu0 0
  %383 = vmatpush1.bf16.msra.mxu0 0
  %384 = vmatprep.subr.bf16.mxu0 0
  %385 = vmatpush1.bf16.msra.mxu0 0
  %386 = vmatprep.subr.bf16.mxu0 0
  %387 = vmatpush1.bf16.msra.mxu0 0
  %388 = vmatprep.subr.bf16.mxu0 0
  %389 = vmatpush1.bf16.msra.mxu0 0
  %390 = vmatprep.subr.bf16.mxu0 0
  %391 = vmatpush1.bf16.msra.mxu0 0
  %392 = vmatprep.subr.bf16.mxu0 0
  %393 = vmatpush1.bf16.msra.mxu0 %v352
  %394 = vmatprep.subr.bf16.mxu0 0
  %395 = vmatpush2.bf16.msra.mxu0 0
  %396 = vmatprep.subr.bf16.mxu0 0
  %397 = vmatpush2.bf16.msra.mxu0 0
  %398 = vmatprep.subr.bf16.mxu0 0
  %399 = vmatpush2.bf16.msra.mxu0 0
  %400 = vmatprep.subr.bf16.mxu0 0
  %401 = vmatpush2.bf16.msra.mxu0 0
  %402 = vmatprep.subr.bf16.mxu0 0
  %403 = vmatpush2.bf16.msra.mxu0 0
  %404 = vmatprep.subr.bf16.mxu0 0
  %405 = vmatpush2.bf16.msra.mxu0 0
  %406 = vmatprep.subr.bf16.mxu0 0
  %407 = vmatpush2.bf16.msra.mxu0 0
  %408 = vmatprep.subr.bf16.mxu0 0
  %409 = vmatpush2.bf16.msra.mxu0 0
  %410 = vmatprep.mubr.bf16.mxu0 0
  %411 = vmatmul.mubr.bf16.gmra.mxu0 %v355
  %v412 = vpop.f32.mrf.mxu0
  %v413 = vadd.f32 %v306, %v412
  %v414 = vpop.f32.mrf.mxu0
  %v415 = vpop.f32.mrf.mxu0
  %v416 = vadd.f32 %v306, %v415
  %v417 = vpop.f32.mrf.mxu0
  %418 = vmatprep.mubr.bf16.mxu0 0
  %419 = vmatmul.mubr.bf16.gmra.mxu0 %v358
  %v420 = vpop.f32.mrf.mxu0
  %v421 = vadd.f32 %v306, %v420
  %v422 = vpop.f32.mrf.mxu0
  %v423 = vpop.f32.mrf.mxu0
  %v424 = vadd.f32 %v306, %v423
  %v425 = vpop.f32.mrf.mxu0
  %426 = vmatprep.mubr.bf16.mxu0 0
  %427 = vmatmul.mubr.bf16.gmra.mxu0 %v361
  %v428 = vpop.f32.mrf.mxu0
  %v429 = vadd.f32 %v306, %v428
  %v430 = vpop.f32.mrf.mxu0
  %v431 = vpop.f32.mrf.mxu0
  %v432 = vadd.f32 %v306, %v431
  %v433 = vpop.f32.mrf.mxu0
  %434 = vmatprep.mubr.bf16.mxu0 0
  %435 = vmatmul.mubr.bf16.gmra.mxu0 %v364
  %v436 = vpop.f32.mrf.mxu0
  %v437 = vadd.f32 %v306, %v436
  %v438 = vpop.f32.mrf.mxu0
  %v439 = vpop.f32.mrf.mxu0
  %v440 = vadd.f32 %v306, %v439
  %v441 = vpop.f32.mrf.mxu0
  %442 = vmatprep.mubr.bf16.mxu0 0
  %443 = vmatmul.mubr.bf16.gmra.mxu0 %v367
  %v444 = vpop.f32.mrf.mxu0
  %v445 = vadd.f32 %v306, %v444
  %v446 = vpop.f32.mrf.mxu0
  %v447 = vpop.f32.mrf.mxu0
  %v448 = vadd.f32 %v306, %v447
  %v449 = vpop.f32.mrf.mxu0
  %450 = vmatprep.mubr.bf16.mxu0 0
  %451 = vmatmul.mubr.bf16.gmra.mxu0 %v370
  %v452 = vpop.f32.mrf.mxu0
  %v453 = vadd.f32 %v306, %v452
  %v454 = vpop.f32.mrf.mxu0
  %v455 = vpop.f32.mrf.mxu0
  %v456 = vadd.f32 %v306, %v455
  %v457 = vpop.f32.mrf.mxu0
  %458 = vmatprep.mubr.bf16.mxu0 0
  %459 = vmatmul.mubr.bf16.gmra.mxu0 %v373
  %v460 = vpop.f32.mrf.mxu0
  %v461 = vadd.f32 %v306, %v460
  %v462 = vpop.f32.mrf.mxu0
  %v463 = vpop.f32.mrf.mxu0
  %v464 = vadd.f32 %v306, %v463
  %v465 = vpop.f32.mrf.mxu0
  %466 = vmatprep.mubr.bf16.mxu0 0
  %467 = vmatmul.mubr.bf16.gmra.mxu0 %v376
  %v468 = vpop.f32.mrf.mxu0
  %v469 = vadd.f32 %v306, %v468
  %v470 = vpop.f32.mrf.mxu0
  %v471 = vpop.f32.mrf.mxu0
  %v472 = vadd.f32 %v306, %v471
  %v473 = vpop.f32.mrf.mxu0
  %474 = vdwg.mxu0
  %475 = vst [vmem:[#allocation3] sm:$0xff] %v413
  %476 = vst [vmem:[#allocation3 + $0x8] sm:$0xff] %v416
  %477 = vst [vmem:[#allocation3 + $0x10] sm:$0xff] %v421
  %478 = vst [vmem:[#allocation3 + $0x18] sm:$0xff] %v424
  %479 = vst [vmem:[#allocation3 + $0x20] sm:$0xff] %v429
  %480 = vst [vmem:[#allocation3 + $0x28] sm:$0xff] %v432
  %481 = vst [vmem:[#allocation3 + $0x30] sm:$0xff] %v437
  %482 = vst [vmem:[#allocation3 + $0x38] sm:$0xff] %v440
  %483 = vst [vmem:[#allocation3 + $0x40] sm:$0xff] %v445
  %484 = vst [vmem:[#allocation3 + $0x48] sm:$0xff] %v448
  %485 = vst [vmem:[#allocation3 + $0x50] sm:$0xff] %v453
  %486 = vst [vmem:[#allocation3 + $0x58] sm:$0xff] %v456
  %487 = vst [vmem:[#allocation3 + $0x60] sm:$0xff] %v461
  %488 = vst [vmem:[#allocation3 + $0x68] sm:$0xff] %v464
  %489 = vst [vmem:[#allocation3 + $0x70] sm:$0xff] %v469
  %490 = vst [vmem:[#allocation3 + $0x78] sm:$0xff] %v472
  %v491 = vld [vmem:[%s6] sm:$0xff]
  %v492 = vld [vmem:[%s6 + $0x8] sm:$0xff]
  %v493 = vld [vmem:[%s6 + $0x10] sm:$0xff]
  %v494 = vld [vmem:[%s6 + $0x18] sm:$0xff]
  %v495 = vld [vmem:[%s6 + $0x20] sm:$0xff]
  %v496 = vld [vmem:[%s6 + $0x28] sm:$0xff]
  %v497 = vld [vmem:[%s6 + $0x30] sm:$0xff]
  %v498 = vld [vmem:[%s6 + $0x38] sm:$0xff]
  %v499 = vld [vmem:[#allocation4] sm:$0xff]
  %v500 = vld [vmem:[#allocation4 + $0x8] sm:$0xff]
  %v501 = vld [vmem:[#allocation5] sm:$0xff]
  %v502 = vld [vmem:[#allocation5 + $0x8] sm:$0xff]
  %v503 = vpack.c.bf16 %v500, %v499
  %v512 = vunpack.c.l.b16 %v491
  %v513 = vunpack.c.h.b16 %v491
  %v514 = vunpack.c.l.b16 %v492
  %v515 = vunpack.c.h.b16 %v492
  %v516 = vunpack.c.l.b16 %v493
  %v517 = vunpack.c.h.b16 %v493
  %v518 = vunpack.c.l.b16 %v494
  %v519 = vunpack.c.h.b16 %v494
  %v520 = vunpack.c.l.b16 %v495
  %v521 = vunpack.c.h.b16 %v495
  %v522 = vunpack.c.l.b16 %v496
  %v523 = vunpack.c.h.b16 %v496
  %v524 = vunpack.c.l.b16 %v497
  %v525 = vunpack.c.h.b16 %v497
  %v526 = vunpack.c.l.b16 %v498
  %v527 = vunpack.c.h.b16 %v498
  %v528 = vpack.c.b16 %v514, %v512
  %v529 = vpack.c.b16 %v515, %v513
  %v530 = vpack.c.b16 %v518, %v516
  %v531 = vpack.c.b16 %v519, %v517
  %v532 = vpack.c.b16 %v522, %v520
  %v533 = vpack.c.b16 %v523, %v521
  %v534 = vpack.c.b16 %v526, %v524
  %v535 = vpack.c.b16 %v527, %v525
  %vm544 = vcmask 523264
  %v546 = vsel %vm544, %v503, 0
  %548 = vmatprep.subr.bf16.mxu0 0
  %549 = vmatpush1.bf16.msra.mxu0 0
  %550 = vmatprep.subr.bf16.mxu0 0
  %551 = vmatpush1.bf16.msra.mxu0 0
  %552 = vmatprep.subr.bf16.mxu0 0
  %553 = vmatpush1.bf16.msra.mxu0 0
  %554 = vmatprep.subr.bf16.mxu0 0
  %555 = vmatpush1.bf16.msra.mxu0 0
  %556 = vmatprep.subr.bf16.mxu0 %v535
  %557 = vmatpush1.bf16.msra.mxu0 %v534
  %558 = vmatprep.subr.bf16.mxu0 %v533
  %559 = vmatpush1.bf16.msra.mxu0 %v532
  %560 = vmatprep.subr.bf16.mxu0 %v531
  %561 = vmatpush1.bf16.msra.mxu0 %v530
  %562 = vmatprep.subr.bf16.mxu0 %v529
  %563 = vmatpush1.bf16.msra.mxu0 %v528
  %564 = vmatprep.subr.bf16.mxu0 0
  %565 = vmatpush2.bf16.msra.mxu0 0
  %566 = vmatprep.subr.bf16.mxu0 0
  %567 = vmatpush2.bf16.msra.mxu0 0
  %568 = vmatprep.subr.bf16.mxu0 0
  %569 = vmatpush2.bf16.msra.mxu0 0
  %570 = vmatprep.subr.bf16.mxu0 0
  %571 = vmatpush2.bf16.msra.mxu0 0
  %572 = vmatprep.subr.bf16.mxu0 0
  %573 = vmatpush2.bf16.msra.mxu0 0
  %574 = vmatprep.subr.bf16.mxu0 0
  %575 = vmatpush2.bf16.msra.mxu0 0
  %576 = vmatprep.subr.bf16.mxu0 0
  %577 = vmatpush2.bf16.msra.mxu0 0
  %578 = vmatprep.subr.bf16.mxu0 0
  %579 = vmatpush2.bf16.msra.mxu0 0
  %580 = vmatprep.mubr.bf16.mxu0 0
  %581 = vmatmul.mubr.bf16.gmra.mxu0 %v546
  %v582 = vpop.f32.mrf.mxu0
  %v583 = vadd.f32 0.0, %v582
  %v584 = vpop.f32.mrf.mxu0
  %v585 = vadd.f32 0.0, %v584
  %v586 = vpop.f32.mrf.mxu0
  %v587 = vadd.f32 0.0, %v586
  %v588 = vpop.f32.mrf.mxu0
  %v589 = vadd.f32 0.0, %v588
  %590 = vdwg.mxu0
  %v591 = vld [vmem:[#allocation2] sm:$0xff]
  %v592 = vld [vmem:[#allocation2 + $0x8] sm:$0xff]
  %v593 = vadd.f32 %v583, %v591
  %v594 = vadd.f32 %v587, %v592
  %s595 = scalar_lea.vmem [#allocation3], 112
  %v596 = vld [vmem:[%s595] sm:$0xff]
  %v597 = vld [vmem:[%s595 + $0x8] sm:$0xff]
  %v598 = vadd.f32 %v585, %v596
  %v599 = vadd.f32 %v589, %v597
  %v600 = vxor.u32 %v593, 2147483648
  %v601 = vxor.u32 %v594, 2147483648
  %v602 = vmul.f32 %v600, 1.442695
  %v603 = vpow.pop %v602
  %v604 = vmul.f32 %v601, 1.442695
  %v605 = vpow.pop %v604
  %v606 = vadd.f32 %v603, 1.0
  %v607 = vadd.f32 %v605, 1.0
  %v608 = vrcp.pop %v606
  %v609 = vmul.f32 1.0, %v608
  %v610 = vrcp.pop %v607
  %v611 = vmul.f32 1.0, %v610
  %v612 = vtanh.pop %v593
  %v613 = vtanh.pop %v594
  %616 = vrot.lane.b32.xlu0 %v501, 32
  %v617 = vpop.permute.xlu0 %616
  %618 = vrot.lane.b32.xlu0 %v502, 32
  %v619 = vpop.permute.xlu0 %618
  %v622 = vmul.f32 %v609, %v617
  %v623 = vmul.f32 %v611, %v619
  %626 = vrot.lane.b32.xlu0 %v612, 32
  %v627 = vpop.permute.xlu0 %626
  %628 = vrot.lane.b32.xlu0 %v613, 32
  %v629 = vpop.permute.xlu0 %628
  %v632 = vmul.f32 %v609, %v627
  %v633 = vmul.f32 %v611, %v629
  %636 = vrot.lane.b32.xlu0 %v632, 32
  %v637 = vpop.permute.xlu0 %636
  %638 = vrot.lane.b32.xlu0 %v633, 32
  %v639 = vpop.permute.xlu0 %638
  %v642 = vadd.f32 %v622, %v637
  %v643 = vadd.f32 %v623, %v639
  %v644 = vtanh.pop %v642
  %v645 = vtanh.pop %v643
  %648 = vrot.lane.b32.xlu0 %v644, 32
  %v649 = vpop.permute.xlu0 %648
  %650 = vrot.lane.b32.xlu0 %v645, 32
  %v651 = vpop.permute.xlu0 %650
  %v654 = vmul.f32 %v609, %v649
  %v655 = vmul.f32 %v611, %v651
  %v656 = vxor.u32 %v598, 2147483648
  %v657 = vxor.u32 %v599, 2147483648
  %v658 = vmul.f32 %v656, 1.442695
  %v659 = vpow.pop %v658
  %v660 = vmul.f32 %v657, 1.442695
  %v661 = vpow.pop %v660
  %v662 = vadd.f32 %v659, 1.0
  %v663 = vadd.f32 %v661, 1.0
  %v664 = vrcp.pop %v662
  %v665 = vmul.f32 1.0, %v664
  %v666 = vrcp.pop %v663
  %v667 = vmul.f32 1.0, %v666
  %v668 = vtanh.pop %v598
  %v669 = vtanh.pop %v599
  %v670 = vmul.f32 %v665, %v501
  %v671 = vmul.f32 %v667, %v502
  %674 = vrot.lane.b32.xlu0 %v668, 32
  %v675 = vpop.permute.xlu0 %674
  %676 = vrot.lane.b32.xlu0 %v669, 32
  %v677 = vpop.permute.xlu0 %676
  %v680 = vmul.f32 %v665, %v675
  %v681 = vmul.f32 %v667, %v677
  %684 = vrot.lane.b32.xlu0 %v680, 32
  %v685 = vpop.permute.xlu0 %684
  %686 = vrot.lane.b32.xlu0 %v681, 32
  %v687 = vpop.permute.xlu0 %686
  %v690 = vadd.f32 %v670, %v685
  %v691 = vadd.f32 %v671, %v687
  %v692 = vtanh.pop %v690
  %v693 = vtanh.pop %v691
  %696 = vrot.lane.b32.xlu0 %v692, 32
  %v697 = vpop.permute.xlu0 %696
  %698 = vrot.lane.b32.xlu0 %v693, 32
  %v699 = vpop.permute.xlu0 %698
  %v702 = vmul.f32 %v665, %v697
  %v703 = vmul.f32 %v667, %v699
  %706 = vrot.lane.b32.xlu0 %v654, 64
  %v707 = vpop.permute.xlu0 %706
  %708 = vrot.lane.b32.xlu0 %v655, 64
  %v709 = vpop.permute.xlu0 %708
  %vm712 = vcmask 261120
  %713 = vst.msk [vmem:[#allocation4] sm:$0xff] %vm712, %v707
  %714 = vst.msk [vmem:[#allocation4 + $0x8] sm:$0xff] %vm712, %v709
  %717 = vrot.lane.b32.xlu0 %v702, 96
  %v718 = vpop.permute.xlu0 %717
  %719 = vrot.lane.b32.xlu0 %v703, 96
  %v720 = vpop.permute.xlu0 %719
  %vm723 = vcmask 523520
  %724 = vst.msk [vmem:[#allocation4] sm:$0xff] %vm723, %v718
  %725 = vst.msk [vmem:[#allocation4 + $0x8] sm:$0xff] %vm723, %v720
  %728 = vrot.lane.b32.xlu0 %v642, 96
  %v729 = vpop.permute.xlu0 %728
  %730 = vrot.lane.b32.xlu0 %v643, 96
  %v731 = vpop.permute.xlu0 %730
  %734 = vst.msk [vmem:[#allocation5] sm:$0xff] %vm712, %v729
  %735 = vst.msk [vmem:[#allocation5 + $0x8] sm:$0xff] %vm712, %v731
  %736 = vst.msk [vmem:[#allocation5] sm:$0xff] %vm723, %v690
  %737 = vst.msk [vmem:[#allocation5 + $0x8] sm:$0xff] %vm723, %v691
  %v738 = vpack.c.bf16 %v655, %v654
  %v740 = vunpack.c.l.b16 %v738
  %v741 = vunpack.c.h.b16 %v738
  %v742 = vpack.c.b16 %v740, %v740
  %v743 = vpack.c.b16 %v741, %v741
  %744 = vrot.lane.b32.xlu0 %v742, 64
  %v745 = vpop.permute.xlu0 %744
  %746 = vrot.lane.b32.xlu0 %v743, 64
  %v747 = vpop.permute.xlu0 %746
  %vm750 = vcmask 257024
  %751 = vst.msk [vmem:[%s7] sm:$0xf] %vm750, %v745
  %752 = vst.msk [vmem:[%s7 + $0x4] sm:$0xf] %vm750, %v747
  %v753 = vpack.c.bf16 %v703, %v702
  %v755 = vunpack.c.l.b16 %v753
  %v756 = vunpack.c.h.b16 %v753
  %v757 = vpack.c.b16 %v755, %v755
  %v758 = vpack.c.b16 %v756, %v756
  %759 = vrot.lane.b32.xlu0 %v757, 64
  %v760 = vpop.permute.xlu0 %759
  %761 = vrot.lane.b32.xlu0 %v758, 64
  %v762 = vpop.permute.xlu0 %761
  %s765 = scalar_lea.vmem %s61, 56
  %766 = vst.msk [vmem:[%s765] sm:$0xf] %vm750, %v760
  %767 = vst.msk [vmem:[%s765 + $0x4] sm:$0xf] %vm750, %v762
  %v768 = vld [vmem:[#allocation4] sm:$0xff]
  %v769 = vld [vmem:[#allocation4 + $0x8] sm:$0xff]
  %v770 = vld [vmem:[#allocation5] sm:$0xff]
  %v771 = vld [vmem:[#allocation5 + $0x8] sm:$0xff]
  %v772 = vpack.c.bf16 %v769, %v768
  %v774 = vsel %vm544, %v772, 0
  %776 = vmatprep.subr.bf16.mxu0 0
  %777 = vmatpush1.bf16.msra.mxu0 0
  %778 = vmatprep.subr.bf16.mxu0 0
  %779 = vmatpush1.bf16.msra.mxu0 0
  %780 = vmatprep.subr.bf16.mxu0 0
  %781 = vmatpush1.bf16.msra.mxu0 0
  %782 = vmatprep.subr.bf16.mxu0 0
  %783 = vmatpush1.bf16.msra.mxu0 0
  %784 = vmatprep.subr.bf16.mxu0 %v535
  %785 = vmatpush1.bf16.msra.mxu0 %v534
  %786 = vmatprep.subr.bf16.mxu0 %v533
  %787 = vmatpush1.bf16.msra.mxu0 %v532
  %788 = vmatprep.subr.bf16.mxu0 %v531
  %789 = vmatpush1.bf16.msra.mxu0 %v530
  %790 = vmatprep.subr.bf16.mxu0 %v529
  %791 = vmatpush1.bf16.msra.mxu0 %v528
  %792 = vmatprep.subr.bf16.mxu0 0
  %793 = vmatpush2.bf16.msra.mxu0 0
  %794 = vmatprep.subr.bf16.mxu0 0
  %795 = vmatpush2.bf16.msra.mxu0 0
  %796 = vmatprep.subr.bf16.mxu0 0
  %797 = vmatpush2.bf16.msra.mxu0 0
  %798 = vmatprep.subr.bf16.mxu0 0
  %799 = vmatpush2.bf16.msra.mxu0 0
  %800 = vmatprep.subr.bf16.mxu0 0
  %801 = vmatpush2.bf16.msra.mxu0 0
  %802 = vmatprep.subr.bf16.mxu0 0
  %803 = vmatpush2.bf16.msra.mxu0 0
  %804 = vmatprep.subr.bf16.mxu0 0
  %805 = vmatpush2.bf16.msra.mxu0 0
  %806 = vmatprep.subr.bf16.mxu0 0
  %807 = vmatpush2.bf16.msra.mxu0 0
  %808 = vmatprep.mubr.bf16.mxu0 0
  %809 = vmatmul.mubr.bf16.gmra.mxu0 %v774
  %v810 = vpop.f32.mrf.mxu0
  %v811 = vadd.f32 0.0, %v810
  %v812 = vpop.f32.mrf.mxu0
  %v813 = vadd.f32 0.0, %v812
  %v814 = vpop.f32.mrf.mxu0
  %v815 = vadd.f32 0.0, %v814
  %v816 = vpop.f32.mrf.mxu0
  %v817 = vadd.f32 0.0, %v816
  %818 = vdwg.mxu0
  %s819 = scalar_lea.vmem [#allocation2], 16
  %v820 = vld [vmem:[%s819] sm:$0xff]
  %v821 = vld [vmem:[%s819 + $0x8] sm:$0xff]
  %v822 = vadd.f32 %v811, %v820
  %v823 = vadd.f32 %v815, %v821
  %s824 = scalar_lea.vmem [#allocation3], 96
  %v825 = vld [vmem:[%s824] sm:$0xff]
  %v826 = vld [vmem:[%s824 + $0x8] sm:$0xff]
  %v827 = vadd.f32 %v813, %v825
  %v828 = vadd.f32 %v817, %v826
  %v829 = vxor.u32 %v822, 2147483648
  %v830 = vxor.u32 %v823, 2147483648
  %v831 = vmul.f32 %v829, 1.442695
  %v832 = vpow.pop %v831
  %v833 = vmul.f32 %v830, 1.442695
  %v834 = vpow.pop %v833
  %v835 = vadd.f32 %v832, 1.0
  %v836 = vadd.f32 %v834, 1.0
  %v837 = vrcp.pop %v835
  %v838 = vmul.f32 1.0, %v837
  %v839 = vrcp.pop %v836
  %v840 = vmul.f32 1.0, %v839
  %v841 = vtanh.pop %v822
  %v842 = vtanh.pop %v823
  %845 = vrot.lane.b32.xlu0 %v770, 32
  %v846 = vpop.permute.xlu0 %845
  %847 = vrot.lane.b32.xlu0 %v771, 32
  %v848 = vpop.permute.xlu0 %847
  %v851 = vmul.f32 %v838, %v846
  %v852 = vmul.f32 %v840, %v848
  %855 = vrot.lane.b32.xlu0 %v841, 32
  %v856 = vpop.permute.xlu0 %855
  %857 = vrot.lane.b32.xlu0 %v842, 32
  %v858 = vpop.permute.xlu0 %857
  %v861 = vmul.f32 %v838, %v856
  %v862 = vmul.f32 %v840, %v858
  %865 = vrot.lane.b32.xlu0 %v861, 32
  %v866 = vpop.permute.xlu0 %865
  %867 = vrot.lane.b32.xlu0 %v862, 32
  %v868 = vpop.permute.xlu0 %867
  %v871 = vadd.f32 %v851, %v866
  %v872 = vadd.f32 %v852, %v868
  %v873 = vtanh.pop %v871
  %v874 = vtanh.pop %v872
  %877 = vrot.lane.b32.xlu0 %v873, 32
  %v878 = vpop.permute.xlu0 %877
  %879 = vrot.lane.b32.xlu0 %v874, 32
  %v880 = vpop.permute.xlu0 %879
  %v883 = vmul.f32 %v838, %v878
  %v884 = vmul.f32 %v840, %v880
  %v885 = vxor.u32 %v827, 2147483648
  %v886 = vxor.u32 %v828, 2147483648
  %v887 = vmul.f32 %v885, 1.442695
  %v888 = vpow.pop %v887
  %v889 = vmul.f32 %v886, 1.442695
  %v890 = vpow.pop %v889
  %v891 = vadd.f32 %v888, 1.0
  %v892 = vadd.f32 %v890, 1.0
  %v893 = vrcp.pop %v891
  %v894 = vmul.f32 1.0, %v893
  %v895 = vrcp.pop %v892
  %v896 = vmul.f32 1.0, %v895
  %v897 = vtanh.pop %v827
  %v898 = vtanh.pop %v828
  %v899 = vmul.f32 %v894, %v770
  %v900 = vmul.f32 %v896, %v771
  %903 = vrot.lane.b32.xlu0 %v897, 32
  %v904 = vpop.permute.xlu0 %903
  %905 = vrot.lane.b32.xlu0 %v898, 32
  %v906 = vpop.permute.xlu0 %905
  %v909 = vmul.f32 %v894, %v904
  %v910 = vmul.f32 %v896, %v906
  %913 = vrot.lane.b32.xlu0 %v909, 32
  %v914 = vpop.permute.xlu0 %913
  %915 = vrot.lane.b32.xlu0 %v910, 32
  %v916 = vpop.permute.xlu0 %915
  %v919 = vadd.f32 %v899, %v914
  %v920 = vadd.f32 %v900, %v916
  %v921 = vtanh.pop %v919
  %v922 = vtanh.pop %v920
  %925 = vrot.lane.b32.xlu0 %v921, 32
  %v926 = vpop.permute.xlu0 %925
  %927 = vrot.lane.b32.xlu0 %v922, 32
  %v928 = vpop.permute.xlu0 %927
  %v931 = vmul.f32 %v894, %v926
  %v932 = vmul.f32 %v896, %v928
  %935 = vrot.lane.b32.xlu0 %v883, 64
  %v936 = vpop.permute.xlu0 %935
  %937 = vrot.lane.b32.xlu0 %v884, 64
  %v938 = vpop.permute.xlu0 %937
  %941 = vst.msk [vmem:[#allocation4] sm:$0xff] %vm712, %v936
  %942 = vst.msk [vmem:[#allocation4 + $0x8] sm:$0xff] %vm712, %v938
  %945 = vrot.lane.b32.xlu0 %v931, 96
  %v946 = vpop.permute.xlu0 %945
  %947 = vrot.lane.b32.xlu0 %v932, 96
  %v948 = vpop.permute.xlu0 %947
  %951 = vst.msk [vmem:[#allocation4] sm:$0xff] %vm723, %v946
  %952 = vst.msk [vmem:[#allocation4 + $0x8] sm:$0xff] %vm723, %v948
  %955 = vrot.lane.b32.xlu0 %v871, 96
  %v956 = vpop.permute.xlu0 %955
  %957 = vrot.lane.b32.xlu0 %v872, 96
  %v958 = vpop.permute.xlu0 %957
  %961 = vst.msk [vmem:[#allocation5] sm:$0xff] %vm712, %v956
  %962 = vst.msk [vmem:[#allocation5 + $0x8] sm:$0xff] %vm712, %v958
  %963 = vst.msk [vmem:[#allocation5] sm:$0xff] %vm723, %v919
  %964 = vst.msk [vmem:[#allocation5 + $0x8] sm:$0xff] %vm723, %v920
  %v965 = vpack.c.bf16 %v884, %v883
  %v967 = vunpack.c.l.b16 %v965
  %v968 = vunpack.c.h.b16 %v965
  %v969 = vpack.c.b16 %v967, %v967
  %v970 = vpack.c.b16 %v968, %v968
  %971 = vrot.lane.b32.xlu0 %v969, 64
  %v972 = vpop.permute.xlu0 %971
  %973 = vrot.lane.b32.xlu0 %v970, 64
  %v974 = vpop.permute.xlu0 %973
  %s977 = scalar_lea.vmem %s7, 8
  %978 = vst.msk [vmem:[%s977] sm:$0xf] %vm750, %v972
  %979 = vst.msk [vmem:[%s977 + $0x4] sm:$0xf] %vm750, %v974
  %v980 = vpack.c.bf16 %v932, %v931
  %v982 = vunpack.c.l.b16 %v980
  %v983 = vunpack.c.h.b16 %v980
  %v984 = vpack.c.b16 %v982, %v982
  %v985 = vpack.c.b16 %v983, %v983
  %986 = vrot.lane.b32.xlu0 %v984, 64
  %v987 = vpop.permute.xlu0 %986
  %988 = vrot.lane.b32.xlu0 %v985, 64
  %v989 = vpop.permute.xlu0 %988
  %s992 = scalar_lea.vmem %s61, 48
  %993 = vst.msk [vmem:[%s992] sm:$0xf] %vm750, %v987
  %994 = vst.msk [vmem:[%s992 + $0x4] sm:$0xf] %vm750, %v989
  %v995 = vld [vmem:[#allocation4] sm:$0xff]
  %v996 = vld [vmem:[#allocation4 + $0x8] sm:$0xff]
  %v997 = vld [vmem:[#allocation5] sm:$0xff]
  %v998 = vld [vmem:[#allocation5 + $0x8] sm:$0xff]
  %v999 = vpack.c.bf16 %v996, %v995
  %v1001 = vsel %vm544, %v999, 0
  %1003 = vmatprep.subr.bf16.mxu0 0
  %1004 = vmatpush1.bf16.msra.mxu0 0
  %1005 = vmatprep.subr.bf16.mxu0 0
  %1006 = vmatpush1.bf16.msra.mxu0 0
  %1007 = vmatprep.subr.bf16.mxu0 0
  %1008 = vmatpush1.bf16.msra.mxu0 0
  %1009 = vmatprep.subr.bf16.mxu0 0
  %1010 = vmatpush1.bf16.msra.mxu0 0
  %1011 = vmatprep.subr.bf16.mxu0 %v535
  %1012 = vmatpush1.bf16.msra.mxu0 %v534
  %1013 = vmatprep.subr.bf16.mxu0 %v533
  %1014 = vmatpush1.bf16.msra.mxu0 %v532
  %1015 = vmatprep.subr.bf16.mxu0 %v531
  %1016 = vmatpush1.bf16.msra.mxu0 %v530
  %1017 = vmatprep.subr.bf16.mxu0 %v529
  %1018 = vmatpush1.bf16.msra.mxu0 %v528
  %1019 = vmatprep.subr.bf16.mxu0 0
  %1020 = vmatpush2.bf16.msra.mxu0 0
  %1021 = vmatprep.subr.bf16.mxu0 0
  %1022 = vmatpush2.bf16.msra.mxu0 0
  %1023 = vmatprep.subr.bf16.mxu0 0
  %1024 = vmatpush2.bf16.msra.mxu0 0
  %1025 = vmatprep.subr.bf16.mxu0 0
  %1026 = vmatpush2.bf16.msra.mxu0 0
  %1027 = vmatprep.subr.bf16.mxu0 0
  %1028 = vmatpush2.bf16.msra.mxu0 0
  %1029 = vmatprep.subr.bf16.mxu0 0
  %1030 = vmatpush2.bf16.msra.mxu0 0
  %1031 = vmatprep.subr.bf16.mxu0 0
  %1032 = vmatpush2.bf16.msra.mxu0 0
  %1033 = vmatprep.subr.bf16.mxu0 0
  %1034 = vmatpush2.bf16.msra.mxu0 0
  %1035 = vmatprep.mubr.bf16.mxu0 0
  %1036 = vmatmul.mubr.bf16.gmra.mxu0 %v1001
  %v1037 = vpop.f32.mrf.mxu0
  %v1038 = vadd.f32 0.0, %v1037
  %v1039 = vpop.f32.mrf.mxu0
  %v1040 = vadd.f32 0.0, %v1039
  %v1041 = vpop.f32.mrf.mxu0
  %v1042 = vadd.f32 0.0, %v1041
  %v1043 = vpop.f32.mrf.mxu0
  %v1044 = vadd.f32 0.0, %v1043
  %1045 = vdwg.mxu0
  %s1046 = scalar_lea.vmem [#allocation2], 32
  %v1047 = vld [vmem:[%s1046] sm:$0xff]
  %v1048 = vld [vmem:[%s1046 + $0x8] sm:$0xff]
  %v1049 = vadd.f32 %v1038, %v1047
  %v1050 = vadd.f32 %v1042, %v1048
  %s1051 = scalar_lea.vmem [#allocation3], 80
  %v1052 = vld [vmem:[%s1051] sm:$0xff]
  %v1053 = vld [vmem:[%s1051 + $0x8] sm:$0xff]
  %v1054 = vadd.f32 %v1040, %v1052
  %v1055 = vadd.f32 %v1044, %v1053
  %v1056 = vxor.u32 %v1049, 2147483648
  %v1057 = vxor.u32 %v1050, 2147483648
  %v1058 = vmul.f32 %v1056, 1.442695
  %v1059 = vpow.pop %v1058
  %v1060 = vmul.f32 %v1057, 1.442695
  %v1061 = vpow.pop %v1060
  %v1062 = vadd.f32 %v1059, 1.0
  %v1063 = vadd.f32 %v1061, 1.0
  %v1064 = vrcp.pop %v1062
  %v1065 = vmul.f32 1.0, %v1064
  %v1066 = vrcp.pop %v1063
  %v1067 = vmul.f32 1.0, %v1066
  %v1068 = vtanh.pop %v1049
  %v1069 = vtanh.pop %v1050
  %1072 = vrot.lane.b32.xlu0 %v997, 32
  %v1073 = vpop.permute.xlu0 %1072
  %1074 = vrot.lane.b32.xlu0 %v998, 32
  %v1075 = vpop.permute.xlu0 %1074
  %v1078 = vmul.f32 %v1065, %v1073
  %v1079 = vmul.f32 %v1067, %v1075
  %1082 = vrot.lane.b32.xlu0 %v1068, 32
  %v1083 = vpop.permute.xlu0 %1082
  %1084 = vrot.lane.b32.xlu0 %v1069, 32
  %v1085 = vpop.permute.xlu0 %1084
  %v1088 = vmul.f32 %v1065, %v1083
  %v1089 = vmul.f32 %v1067, %v1085
  %1092 = vrot.lane.b32.xlu0 %v1088, 32
  %v1093 = vpop.permute.xlu0 %1092
  %1094 = vrot.lane.b32.xlu0 %v1089, 32
  %v1095 = vpop.permute.xlu0 %1094
  %v1098 = vadd.f32 %v1078, %v1093
  %v1099 = vadd.f32 %v1079, %v1095
  %v1100 = vtanh.pop %v1098
  %v1101 = vtanh.pop %v1099
  %1104 = vrot.lane.b32.xlu0 %v1100, 32
  %v1105 = vpop.permute.xlu0 %1104
  %1106 = vrot.lane.b32.xlu0 %v1101, 32
  %v1107 = vpop.permute.xlu0 %1106
  %v1110 = vmul.f32 %v1065, %v1105
  %v1111 = vmul.f32 %v1067, %v1107
  %v1112 = vxor.u32 %v1054, 2147483648
  %v1113 = vxor.u32 %v1055, 2147483648
  %v1114 = vmul.f32 %v1112, 1.442695
  %v1115 = vpow.pop %v1114
  %v1116 = vmul.f32 %v1113, 1.442695
  %v1117 = vpow.pop %v1116
  %v1118 = vadd.f32 %v1115, 1.0
  %v1119 = vadd.f32 %v1117, 1.0
  %v1120 = vrcp.pop %v1118
  %v1121 = vmul.f32 1.0, %v1120
  %v1122 = vrcp.pop %v1119
  %v1123 = vmul.f32 1.0, %v1122
  %v1124 = vtanh.pop %v1054
  %v1125 = vtanh.pop %v1055
  %v1126 = vmul.f32 %v1121, %v997
  %v1127 = vmul.f32 %v1123, %v998
  %1130 = vrot.lane.b32.xlu0 %v1124, 32
  %v1131 = vpop.permute.xlu0 %1130
  %1132 = vrot.lane.b32.xlu0 %v1125, 32
  %v1133 = vpop.permute.xlu0 %1132
  %v1136 = vmul.f32 %v1121, %v1131
  %v1137 = vmul.f32 %v1123, %v1133
  %1140 = vrot.lane.b32.xlu0 %v1136, 32
  %v1141 = vpop.permute.xlu0 %1140
  %1142 = vrot.lane.b32.xlu0 %v1137, 32
  %v1143 = vpop.permute.xlu0 %1142
  %v1146 = vadd.f32 %v1126, %v1141
  %v1147 = vadd.f32 %v1127, %v1143
  %v1148 = vtanh.pop %v1146
  %v1149 = vtanh.pop %v1147
  %1152 = vrot.lane.b32.xlu0 %v1148, 32
  %v1153 = vpop.permute.xlu0 %1152
  %1154 = vrot.lane.b32.xlu0 %v1149, 32
  %v1155 = vpop.permute.xlu0 %1154
  %v1158 = vmul.f32 %v1121, %v1153
  %v1159 = vmul.f32 %v1123, %v1155
  %1162 = vrot.lane.b32.xlu0 %v1110, 64
  %v1163 = vpop.permute.xlu0 %1162
  %1164 = vrot.lane.b32.xlu0 %v1111, 64
  %v1165 = vpop.permute.xlu0 %1164
  %1168 = vst.msk [vmem:[#allocation4] sm:$0xff] %vm712, %v1163
  %1169 = vst.msk [vmem:[#allocation4 + $0x8] sm:$0xff] %vm712, %v1165
  %1172 = vrot.lane.b32.xlu0 %v1158, 96
  %v1173 = vpop.permute.xlu0 %1172
  %1174 = vrot.lane.b32.xlu0 %v1159, 96
  %v1175 = vpop.permute.xlu0 %1174
  %1178 = vst.msk [vmem:[#allocation4] sm:$0xff] %vm723, %v1173
  %1179 = vst.msk [vmem:[#allocation4 + $0x8] sm:$0xff] %vm723, %v1175
  %1182 = vrot.lane.b32.xlu0 %v1098, 96
  %v1183 = vpop.permute.xlu0 %1182
  %1184 = vrot.lane.b32.xlu0 %v1099, 96
  %v1185 = vpop.permute.xlu0 %1184
  %1188 = vst.msk [vmem:[#allocation5] sm:$0xff] %vm712, %v1183
  %1189 = vst.msk [vmem:[#allocation5 + $0x8] sm:$0xff] %vm712, %v1185
  %1190 = vst.msk [vmem:[#allocation5] sm:$0xff] %vm723, %v1146
  %1191 = vst.msk [vmem:[#allocation5 + $0x8] sm:$0xff] %vm723, %v1147
  %v1192 = vpack.c.bf16 %v1111, %v1110
  %v1194 = vunpack.c.l.b16 %v1192
  %v1195 = vunpack.c.h.b16 %v1192
  %v1196 = vpack.c.b16 %v1194, %v1194
  %v1197 = vpack.c.b16 %v1195, %v1195
  %1198 = vrot.lane.b32.xlu0 %v1196, 64
  %v1199 = vpop.permute.xlu0 %1198
  %1200 = vrot.lane.b32.xlu0 %v1197, 64
  %v1201 = vpop.permute.xlu0 %1200
  %s1204 = scalar_lea.vmem %s7, 16
  %1205 = vst.msk [vmem:[%s1204] sm:$0xf] %vm750, %v1199
  %1206 = vst.msk [vmem:[%s1204 + $0x4] sm:$0xf] %vm750, %v1201
  %v1207 = vpack.c.bf16 %v1159, %v1158
  %v1209 = vunpack.c.l.b16 %v1207
  %v1210 = vunpack.c.h.b16 %v1207
  %v1211 = vpack.c.b16 %v1209, %v1209
  %v1212 = vpack.c.b16 %v1210, %v1210
  %1213 = vrot.lane.b32.xlu0 %v1211, 64
  %v1214 = vpop.permute.xlu0 %1213
  %1215 = vrot.lane.b32.xlu0 %v1212, 64
  %v1216 = vpop.permute.xlu0 %1215
  %s1219 = scalar_lea.vmem %s61, 40
  %1220 = vst.msk [vmem:[%s1219] sm:$0xf] %vm750, %v1214
  %1221 = vst.msk [vmem:[%s1219 + $0x4] sm:$0xf] %vm750, %v1216
  %v1222 = vld [vmem:[#allocation4] sm:$0xff]
  %v1223 = vld [vmem:[#allocation4 + $0x8] sm:$0xff]
  %v1224 = vld [vmem:[#allocation5] sm:$0xff]
  %v1225 = vld [vmem:[#allocation5 + $0x8] sm:$0xff]
  %v1226 = vpack.c.bf16 %v1223, %v1222
  %v1228 = vsel %vm544, %v1226, 0
  %1230 = vmatprep.subr.bf16.mxu0 0
  %1231 = vmatpush1.bf16.msra.mxu0 0
  %1232 = vmatprep.subr.bf16.mxu0 0
  %1233 = vmatpush1.bf16.msra.mxu0 0
  %1234 = vmatprep.subr.bf16.mxu0 0
  %1235 = vmatpush1.bf16.msra.mxu0 0
  %1236 = vmatprep.subr.bf16.mxu0 0
  %1237 = vmatpush1.bf16.msra.mxu0 0
  %1238 = vmatprep.subr.bf16.mxu0 %v535
  %1239 = vmatpush1.bf16.msra.mxu0 %v534
  %1240 = vmatprep.subr.bf16.mxu0 %v533
  %1241 = vmatpush1.bf16.msra.mxu0 %v532
  %1242 = vmatprep.subr.bf16.mxu0 %v531
  %1243 = vmatpush1.bf16.msra.mxu0 %v530
  %1244 = vmatprep.subr.bf16.mxu0 %v529
  %1245 = vmatpush1.bf16.msra.mxu0 %v528
  %1246 = vmatprep.subr.bf16.mxu0 0
  %1247 = vmatpush2.bf16.msra.mxu0 0
  %1248 = vmatprep.subr.bf16.mxu0 0
  %1249 = vmatpush2.bf16.msra.mxu0 0
  %1250 = vmatprep.subr.bf16.mxu0 0
  %1251 = vmatpush2.bf16.msra.mxu0 0
  %1252 = vmatprep.subr.bf16.mxu0 0
  %1253 = vmatpush2.bf16.msra.mxu0 0
  %1254 = vmatprep.subr.bf16.mxu0 0
  %1255 = vmatpush2.bf16.msra.mxu0 0
  %1256 = vmatprep.subr.bf16.mxu0 0
  %1257 = vmatpush2.bf16.msra.mxu0 0
  %1258 = vmatprep.subr.bf16.mxu0 0
  %1259 = vmatpush2.bf16.msra.mxu0 0
  %1260 = vmatprep.subr.bf16.mxu0 0
  %1261 = vmatpush2.bf16.msra.mxu0 0
  %1262 = vmatprep.mubr.bf16.mxu0 0
  %1263 = vmatmul.mubr.bf16.gmra.mxu0 %v1228
  %v1264 = vpop.f32.mrf.mxu0
  %v1265 = vadd.f32 0.0, %v1264
  %v1266 = vpop.f32.mrf.mxu0
  %v1267 = vadd.f32 0.0, %v1266
  %v1268 = vpop.f32.mrf.mxu0
  %v1269 = vadd.f32 0.0, %v1268
  %v1270 = vpop.f32.mrf.mxu0
  %v1271 = vadd.f32 0.0, %v1270
  %1272 = vdwg.mxu0
  %s1273 = scalar_lea.vmem [#allocation2], 48
  %v1274 = vld [vmem:[%s1273] sm:$0xff]
  %v1275 = vld [vmem:[%s1273 + $0x8] sm:$0xff]
  %v1276 = vadd.f32 %v1265, %v1274
  %v1277 = vadd.f32 %v1269, %v1275
  %s1278 = scalar_lea.vmem [#allocation3], 64
  %v1279 = vld [vmem:[%s1278] sm:$0xff]
  %v1280 = vld [vmem:[%s1278 + $0x8] sm:$0xff]
  %v1281 = vadd.f32 %v1267, %v1279
  %v1282 = vadd.f32 %v1271, %v1280
  %v1283 = vxor.u32 %v1276, 2147483648
  %v1284 = vxor.u32 %v1277, 2147483648
  %v1285 = vmul.f32 %v1283, 1.442695
  %v1286 = vpow.pop %v1285
  %v1287 = vmul.f32 %v1284, 1.442695
  %v1288 = vpow.pop %v1287
  %v1289 = vadd.f32 %v1286, 1.0
  %v1290 = vadd.f32 %v1288, 1.0
  %v1291 = vrcp.pop %v1289
  %v1292 = vmul.f32 1.0, %v1291
  %v1293 = vrcp.pop %v1290
  %v1294 = vmul.f32 1.0, %v1293
  %v1295 = vtanh.pop %v1276
  %v1296 = vtanh.pop %v1277
  %1299 = vrot.lane.b32.xlu0 %v1224, 32
  %v1300 = vpop.permute.xlu0 %1299
  %1301 = vrot.lane.b32.xlu0 %v1225, 32
  %v1302 = vpop.permute.xlu0 %1301
  %v1305 = vmul.f32 %v1292, %v1300
  %v1306 = vmul.f32 %v1294, %v1302
  %1309 = vrot.lane.b32.xlu0 %v1295, 32
  %v1310 = vpop.permute.xlu0 %1309
  %1311 = vrot.lane.b32.xlu0 %v1296, 32
  %v1312 = vpop.permute.xlu0 %1311
  %v1315 = vmul.f32 %v1292, %v1310
  %v1316 = vmul.f32 %v1294, %v1312
  %1319 = vrot.lane.b32.xlu0 %v1315, 32
  %v1320 = vpop.permute.xlu0 %1319
  %1321 = vrot.lane.b32.xlu0 %v1316, 32
  %v1322 = vpop.permute.xlu0 %1321
  %v1325 = vadd.f32 %v1305, %v1320
  %v1326 = vadd.f32 %v1306, %v1322
  %v1327 = vtanh.pop %v1325
  %v1328 = vtanh.pop %v1326
  %1331 = vrot.lane.b32.xlu0 %v1327, 32
  %v1332 = vpop.permute.xlu0 %1331
  %1333 = vrot.lane.b32.xlu0 %v1328, 32
  %v1334 = vpop.permute.xlu0 %1333
  %v1337 = vmul.f32 %v1292, %v1332
  %v1338 = vmul.f32 %v1294, %v1334
  %v1339 = vxor.u32 %v1281, 2147483648
  %v1340 = vxor.u32 %v1282, 2147483648
  %v1341 = vmul.f32 %v1339, 1.442695
  %v1342 = vpow.pop %v1341
  %v1343 = vmul.f32 %v1340, 1.442695
  %v1344 = vpow.pop %v1343
  %v1345 = vadd.f32 %v1342, 1.0
  %v1346 = vadd.f32 %v1344, 1.0
  %v1347 = vrcp.pop %v1345
  %v1348 = vmul.f32 1.0, %v1347
  %v1349 = vrcp.pop %v1346
  %v1350 = vmul.f32 1.0, %v1349
  %v1351 = vtanh.pop %v1281
  %v1352 = vtanh.pop %v1282
  %v1353 = vmul.f32 %v1348, %v1224
  %v1354 = vmul.f32 %v1350, %v1225
  %1357 = vrot.lane.b32.xlu0 %v1351, 32
  %v1358 = vpop.permute.xlu0 %1357
  %1359 = vrot.lane.b32.xlu0 %v1352, 32
  %v1360 = vpop.permute.xlu0 %1359
  %v1363 = vmul.f32 %v1348, %v1358
  %v1364 = vmul.f32 %v1350, %v1360
  %1367 = vrot.lane.b32.xlu0 %v1363, 32
  %v1368 = vpop.permute.xlu0 %1367
  %1369 = vrot.lane.b32.xlu0 %v1364, 32
  %v1370 = vpop.permute.xlu0 %1369
  %v1373 = vadd.f32 %v1353, %v1368
  %v1374 = vadd.f32 %v1354, %v1370
  %v1375 = vtanh.pop %v1373
  %v1376 = vtanh.pop %v1374
  %1379 = vrot.lane.b32.xlu0 %v1375, 32
  %v1380 = vpop.permute.xlu0 %1379
  %1381 = vrot.lane.b32.xlu0 %v1376, 32
  %v1382 = vpop.permute.xlu0 %1381
  %v1385 = vmul.f32 %v1348, %v1380
  %v1386 = vmul.f32 %v1350, %v1382
  %1389 = vrot.lane.b32.xlu0 %v1337, 64
  %v1390 = vpop.permute.xlu0 %1389
  %1391 = vrot.lane.b32.xlu0 %v1338, 64
  %v1392 = vpop.permute.xlu0 %1391
  %1395 = vst.msk [vmem:[#allocation4] sm:$0xff] %vm712, %v1390
  %1396 = vst.msk [vmem:[#allocation4 + $0x8] sm:$0xff] %vm712, %v1392
  %1399 = vrot.lane.b32.xlu0 %v1385, 96
  %v1400 = vpop.permute.xlu0 %1399
  %1401 = vrot.lane.b32.xlu0 %v1386, 96
  %v1402 = vpop.permute.xlu0 %1401
  %1405 = vst.msk [vmem:[#allocation4] sm:$0xff] %vm723, %v1400
  %1406 = vst.msk [vmem:[#allocation4 + $0x8] sm:$0xff] %vm723, %v1402
  %1409 = vrot.lane.b32.xlu0 %v1325, 96
  %v1410 = vpop.permute.xlu0 %1409
  %1411 = vrot.lane.b32.xlu0 %v1326, 96
  %v1412 = vpop.permute.xlu0 %1411
  %1415 = vst.msk [vmem:[#allocation5] sm:$0xff] %vm712, %v1410
  %1416 = vst.msk [vmem:[#allocation5 + $0x8] sm:$0xff] %vm712, %v1412
  %1417 = vst.msk [vmem:[#allocation5] sm:$0xff] %vm723, %v1373
  %1418 = vst.msk [vmem:[#allocation5 + $0x8] sm:$0xff] %vm723, %v1374
  %v1419 = vpack.c.bf16 %v1338, %v1337
  %v1421 = vunpack.c.l.b16 %v1419
  %v1422 = vunpack.c.h.b16 %v1419
  %v1423 = vpack.c.b16 %v1421, %v1421
  %v1424 = vpack.c.b16 %v1422, %v1422
  %1425 = vrot.lane.b32.xlu0 %v1423, 64
  %v1426 = vpop.permute.xlu0 %1425
  %1427 = vrot.lane.b32.xlu0 %v1424, 64
  %v1428 = vpop.permute.xlu0 %1427
  %s1431 = scalar_lea.vmem %s7, 24
  %1432 = vst.msk [vmem:[%s1431] sm:$0xf] %vm750, %v1426
  %1433 = vst.msk [vmem:[%s1431 + $0x4] sm:$0xf] %vm750, %v1428
  %v1434 = vpack.c.bf16 %v1386, %v1385
  %v1436 = vunpack.c.l.b16 %v1434
  %v1437 = vunpack.c.h.b16 %v1434
  %v1438 = vpack.c.b16 %v1436, %v1436
  %v1439 = vpack.c.b16 %v1437, %v1437
  %1440 = vrot.lane.b32.xlu0 %v1438, 64
  %v1441 = vpop.permute.xlu0 %1440
  %1442 = vrot.lane.b32.xlu0 %v1439, 64
  %v1443 = vpop.permute.xlu0 %1442
  %s1446 = scalar_lea.vmem %s61, 32
  %1447 = vst.msk [vmem:[%s1446] sm:$0xf] %vm750, %v1441
  %1448 = vst.msk [vmem:[%s1446 + $0x4] sm:$0xf] %vm750, %v1443
  %v1449 = vld [vmem:[#allocation4] sm:$0xff]
  %v1450 = vld [vmem:[#allocation4 + $0x8] sm:$0xff]
  %v1451 = vld [vmem:[#allocation5] sm:$0xff]
  %v1452 = vld [vmem:[#allocation5 + $0x8] sm:$0xff]
  %v1453 = vpack.c.bf16 %v1450, %v1449
  %v1455 = vsel %vm544, %v1453, 0
  %1457 = vmatprep.subr.bf16.mxu0 0
  %1458 = vmatpush1.bf16.msra.mxu0 0
  %1459 = vmatprep.subr.bf16.mxu0 0
  %1460 = vmatpush1.bf16.msra.mxu0 0
  %1461 = vmatprep.subr.bf16.mxu0 0
  %1462 = vmatpush1.bf16.msra.mxu0 0
  %1463 = vmatprep.subr.bf16.mxu0 0
  %1464 = vmatpush1.bf16.msra.mxu0 0
  %1465 = vmatprep.subr.bf16.mxu0 %v535
  %1466 = vmatpush1.bf16.msra.mxu0 %v534
  %1467 = vmatprep.subr.bf16.mxu0 %v533
  %1468 = vmatpush1.bf16.msra.mxu0 %v532
  %1469 = vmatprep.subr.bf16.mxu0 %v531
  %1470 = vmatpush1.bf16.msra.mxu0 %v530
  %1471 = vmatprep.subr.bf16.mxu0 %v529
  %1472 = vmatpush1.bf16.msra.mxu0 %v528
  %1473 = vmatprep.subr.bf16.mxu0 0
  %1474 = vmatpush2.bf16.msra.mxu0 0
  %1475 = vmatprep.subr.bf16.mxu0 0
  %1476 = vmatpush2.bf16.msra.mxu0 0
  %1477 = vmatprep.subr.bf16.mxu0 0
  %1478 = vmatpush2.bf16.msra.mxu0 0
  %1479 = vmatprep.subr.bf16.mxu0 0
  %1480 = vmatpush2.bf16.msra.mxu0 0
  %1481 = vmatprep.subr.bf16.mxu0 0
  %1482 = vmatpush2.bf16.msra.mxu0 0
  %1483 = vmatprep.subr.bf16.mxu0 0
  %1484 = vmatpush2.bf16.msra.mxu0 0
  %1485 = vmatprep.subr.bf16.mxu0 0
  %1486 = vmatpush2.bf16.msra.mxu0 0
  %1487 = vmatprep.subr.bf16.mxu0 0
  %1488 = vmatpush2.bf16.msra.mxu0 0
  %1489 = vmatprep.mubr.bf16.mxu0 0
  %1490 = vmatmul.mubr.bf16.gmra.mxu0 %v1455
  %v1491 = vpop.f32.mrf.mxu0
  %v1492 = vadd.f32 0.0, %v1491
  %v1493 = vpop.f32.mrf.mxu0
  %v1494 = vadd.f32 0.0, %v1493
  %v1495 = vpop.f32.mrf.mxu0
  %v1496 = vadd.f32 0.0, %v1495
  %v1497 = vpop.f32.mrf.mxu0
  %v1498 = vadd.f32 0.0, %v1497
  %1499 = vdwg.mxu0
  %s1500 = scalar_lea.vmem [#allocation2], 64
  %v1501 = vld [vmem:[%s1500] sm:$0xff]
  %v1502 = vld [vmem:[%s1500 + $0x8] sm:$0xff]
  %v1503 = vadd.f32 %v1492, %v1501
  %v1504 = vadd.f32 %v1496, %v1502
  %s1505 = scalar_lea.vmem [#allocation3], 48
  %v1506 = vld [vmem:[%s1505] sm:$0xff]
  %v1507 = vld [vmem:[%s1505 + $0x8] sm:$0xff]
  %v1508 = vadd.f32 %v1494, %v1506
  %v1509 = vadd.f32 %v1498, %v1507
  %v1510 = vxor.u32 %v1503, 2147483648
  %v1511 = vxor.u32 %v1504, 2147483648
  %v1512 = vmul.f32 %v1510, 1.442695
  %v1513 = vpow.pop %v1512
  %v1514 = vmul.f32 %v1511, 1.442695
  %v1515 = vpow.pop %v1514
  %v1516 = vadd.f32 %v1513, 1.0
  %v1517 = vadd.f32 %v1515, 1.0
  %v1518 = vrcp.pop %v1516
  %v1519 = vmul.f32 1.0, %v1518
  %v1520 = vrcp.pop %v1517
  %v1521 = vmul.f32 1.0, %v1520
  %v1522 = vtanh.pop %v1503
  %v1523 = vtanh.pop %v1504
  %1526 = vrot.lane.b32.xlu0 %v1451, 32
  %v1527 = vpop.permute.xlu0 %1526
  %1528 = vrot.lane.b32.xlu0 %v1452, 32
  %v1529 = vpop.permute.xlu0 %1528
  %v1532 = vmul.f32 %v1519, %v1527
  %v1533 = vmul.f32 %v1521, %v1529
  %1536 = vrot.lane.b32.xlu0 %v1522, 32
  %v1537 = vpop.permute.xlu0 %1536
  %1538 = vrot.lane.b32.xlu0 %v1523, 32
  %v1539 = vpop.permute.xlu0 %1538
  %v1542 = vmul.f32 %v1519, %v1537
  %v1543 = vmul.f32 %v1521, %v1539
  %1546 = vrot.lane.b32.xlu0 %v1542, 32
  %v1547 = vpop.permute.xlu0 %1546
  %1548 = vrot.lane.b32.xlu0 %v1543, 32
  %v1549 = vpop.permute.xlu0 %1548
  %v1552 = vadd.f32 %v1532, %v1547
  %v1553 = vadd.f32 %v1533, %v1549
  %v1554 = vtanh.pop %v1552
  %v1555 = vtanh.pop %v1553
  %1558 = vrot.lane.b32.xlu0 %v1554, 32
  %v1559 = vpop.permute.xlu0 %1558
  %1560 = vrot.lane.b32.xlu0 %v1555, 32
  %v1561 = vpop.permute.xlu0 %1560
  %v1564 = vmul.f32 %v1519, %v1559
  %v1565 = vmul.f32 %v1521, %v1561
  %v1566 = vxor.u32 %v1508, 2147483648
  %v1567 = vxor.u32 %v1509, 2147483648
  %v1568 = vmul.f32 %v1566, 1.442695
  %v1569 = vpow.pop %v1568
  %v1570 = vmul.f32 %v1567, 1.442695
  %v1571 = vpow.pop %v1570
  %v1572 = vadd.f32 %v1569, 1.0
  %v1573 = vadd.f32 %v1571, 1.0
  %v1574 = vrcp.pop %v1572
  %v1575 = vmul.f32 1.0, %v1574
  %v1576 = vrcp.pop %v1573
  %v1577 = vmul.f32 1.0, %v1576
  %v1578 = vtanh.pop %v1508
  %v1579 = vtanh.pop %v1509
  %v1580 = vmul.f32 %v1575, %v1451
  %v1581 = vmul.f32 %v1577, %v1452
  %1584 = vrot.lane.b32.xlu0 %v1578, 32
  %v1585 = vpop.permute.xlu0 %1584
  %1586 = vrot.lane.b32.xlu0 %v1579, 32
  %v1587 = vpop.permute.xlu0 %1586
  %v1590 = vmul.f32 %v1575, %v1585
  %v1591 = vmul.f32 %v1577, %v1587
  %1594 = vrot.lane.b32.xlu0 %v1590, 32
  %v1595 = vpop.permute.xlu0 %1594
  %1596 = vrot.lane.b32.xlu0 %v1591, 32
  %v1597 = vpop.permute.xlu0 %1596
  %v1600 = vadd.f32 %v1580, %v1595
  %v1601 = vadd.f32 %v1581, %v1597
  %v1602 = vtanh.pop %v1600
  %v1603 = vtanh.pop %v1601
  %1606 = vrot.lane.b32.xlu0 %v1602, 32
  %v1607 = vpop.permute.xlu0 %1606
  %1608 = vrot.lane.b32.xlu0 %v1603, 32
  %v1609 = vpop.permute.xlu0 %1608
  %v1612 = vmul.f32 %v1575, %v1607
  %v1613 = vmul.f32 %v1577, %v1609
  %1616 = vrot.lane.b32.xlu0 %v1564, 64
  %v1617 = vpop.permute.xlu0 %1616
  %1618 = vrot.lane.b32.xlu0 %v1565, 64
  %v1619 = vpop.permute.xlu0 %1618
  %1622 = vst.msk [vmem:[#allocation4] sm:$0xff] %vm712, %v1617
  %1623 = vst.msk [vmem:[#allocation4 + $0x8] sm:$0xff] %vm712, %v1619
  %1626 = vrot.lane.b32.xlu0 %v1612, 96
  %v1627 = vpop.permute.xlu0 %1626
  %1628 = vrot.lane.b32.xlu0 %v1613, 96
  %v1629 = vpop.permute.xlu0 %1628
  %1632 = vst.msk [vmem:[#allocation4] sm:$0xff] %vm723, %v1627
  %1633 = vst.msk [vmem:[#allocation4 + $0x8] sm:$0xff] %vm723, %v1629
  %1636 = vrot.lane.b32.xlu0 %v1552, 96
  %v1637 = vpop.permute.xlu0 %1636
  %1638 = vrot.lane.b32.xlu0 %v1553, 96
  %v1639 = vpop.permute.xlu0 %1638
  %1642 = vst.msk [vmem:[#allocation5] sm:$0xff] %vm712, %v1637
  %1643 = vst.msk [vmem:[#allocation5 + $0x8] sm:$0xff] %vm712, %v1639
  %1644 = vst.msk [vmem:[#allocation5] sm:$0xff] %vm723, %v1600
  %1645 = vst.msk [vmem:[#allocation5 + $0x8] sm:$0xff] %vm723, %v1601
  %v1646 = vpack.c.bf16 %v1565, %v1564
  %v1648 = vunpack.c.l.b16 %v1646
  %v1649 = vunpack.c.h.b16 %v1646
  %v1650 = vpack.c.b16 %v1648, %v1648
  %v1651 = vpack.c.b16 %v1649, %v1649
  %1652 = vrot.lane.b32.xlu0 %v1650, 64
  %v1653 = vpop.permute.xlu0 %1652
  %1654 = vrot.lane.b32.xlu0 %v1651, 64
  %v1655 = vpop.permute.xlu0 %1654
  %s1658 = scalar_lea.vmem %s7, 32
  %1659 = vst.msk [vmem:[%s1658] sm:$0xf] %vm750, %v1653
  %1660 = vst.msk [vmem:[%s1658 + $0x4] sm:$0xf] %vm750, %v1655
  %v1661 = vpack.c.bf16 %v1613, %v1612
  %v1663 = vunpack.c.l.b16 %v1661
  %v1664 = vunpack.c.h.b16 %v1661
  %v1665 = vpack.c.b16 %v1663, %v1663
  %v1666 = vpack.c.b16 %v1664, %v1664
  %1667 = vrot.lane.b32.xlu0 %v1665, 64
  %v1668 = vpop.permute.xlu0 %1667
  %1669 = vrot.lane.b32.xlu0 %v1666, 64
  %v1670 = vpop.permute.xlu0 %1669
  %s1673 = scalar_lea.vmem %s61, 24
  %1674 = vst.msk [vmem:[%s1673] sm:$0xf] %vm750, %v1668
  %1675 = vst.msk [vmem:[%s1673 + $0x4] sm:$0xf] %vm750, %v1670
  %v1676 = vld [vmem:[#allocation4] sm:$0xff]
  %v1677 = vld [vmem:[#allocation4 + $0x8] sm:$0xff]
  %v1678 = vld [vmem:[#allocation5] sm:$0xff]
  %v1679 = vld [vmem:[#allocation5 + $0x8] sm:$0xff]
  %v1680 = vpack.c.bf16 %v1677, %v1676
  %v1682 = vsel %vm544, %v1680, 0
  %1684 = vmatprep.subr.bf16.mxu0 0
  %1685 = vmatpush1.bf16.msra.mxu0 0
  %1686 = vmatprep.subr.bf16.mxu0 0
  %1687 = vmatpush1.bf16.msra.mxu0 0
  %1688 = vmatprep.subr.bf16.mxu0 0
  %1689 = vmatpush1.bf16.msra.mxu0 0
  %1690 = vmatprep.subr.bf16.mxu0 0
  %1691 = vmatpush1.bf16.msra.mxu0 0
  %1692 = vmatprep.subr.bf16.mxu0 %v535
  %1693 = vmatpush1.bf16.msra.mxu0 %v534
  %1694 = vmatprep.subr.bf16.mxu0 %v533
  %1695 = vmatpush1.bf16.msra.mxu0 %v532
  %1696 = vmatprep.subr.bf16.mxu0 %v531
  %1697 = vmatpush1.bf16.msra.mxu0 %v530
  %1698 = vmatprep.subr.bf16.mxu0 %v529
  %1699 = vmatpush1.bf16.msra.mxu0 %v528
  %1700 = vmatprep.subr.bf16.mxu0 0
  %1701 = vmatpush2.bf16.msra.mxu0 0
  %1702 = vmatprep.subr.bf16.mxu0 0
  %1703 = vmatpush2.bf16.msra.mxu0 0
  %1704 = vmatprep.subr.bf16.mxu0 0
  %1705 = vmatpush2.bf16.msra.mxu0 0
  %1706 = vmatprep.subr.bf16.mxu0 0
  %1707 = vmatpush2.bf16.msra.mxu0 0
  %1708 = vmatprep.subr.bf16.mxu0 0
  %1709 = vmatpush2.bf16.msra.mxu0 0
  %1710 = vmatprep.subr.bf16.mxu0 0
  %1711 = vmatpush2.bf16.msra.mxu0 0
  %1712 = vmatprep.subr.bf16.mxu0 0
  %1713 = vmatpush2.bf16.msra.mxu0 0
  %1714 = vmatprep.subr.bf16.mxu0 0
  %1715 = vmatpush2.bf16.msra.mxu0 0
  %1716 = vmatprep.mubr.bf16.mxu0 0
  %1717 = vmatmul.mubr.bf16.gmra.mxu0 %v1682
  %v1718 = vpop.f32.mrf.mxu0
  %v1719 = vadd.f32 0.0, %v1718
  %v1720 = vpop.f32.mrf.mxu0
  %v1721 = vadd.f32 0.0, %v1720
  %v1722 = vpop.f32.mrf.mxu0
  %v1723 = vadd.f32 0.0, %v1722
  %v1724 = vpop.f32.mrf.mxu0
  %v1725 = vadd.f32 0.0, %v1724
  %1726 = vdwg.mxu0
  %s1727 = scalar_lea.vmem [#allocation2], 80
  %v1728 = vld [vmem:[%s1727] sm:$0xff]
  %v1729 = vld [vmem:[%s1727 + $0x8] sm:$0xff]
  %v1730 = vadd.f32 %v1719, %v1728
  %v1731 = vadd.f32 %v1723, %v1729
  %s1732 = scalar_lea.vmem [#allocation3], 32
  %v1733 = vld [vmem:[%s1732] sm:$0xff]
  %v1734 = vld [vmem:[%s1732 + $0x8] sm:$0xff]
  %v1735 = vadd.f32 %v1721, %v1733
  %v1736 = vadd.f32 %v1725, %v1734
  %v1737 = vxor.u32 %v1730, 2147483648
  %v1738 = vxor.u32 %v1731, 2147483648
  %v1739 = vmul.f32 %v1737, 1.442695
  %v1740 = vpow.pop %v1739
  %v1741 = vmul.f32 %v1738, 1.442695
  %v1742 = vpow.pop %v1741
  %v1743 = vadd.f32 %v1740, 1.0
  %v1744 = vadd.f32 %v1742, 1.0
  %v1745 = vrcp.pop %v1743
  %v1746 = vmul.f32 1.0, %v1745
  %v1747 = vrcp.pop %v1744
  %v1748 = vmul.f32 1.0, %v1747
  %v1749 = vtanh.pop %v1730
  %v1750 = vtanh.pop %v1731
  %1753 = vrot.lane.b32.xlu0 %v1678, 32
  %v1754 = vpop.permute.xlu0 %1753
  %1755 = vrot.lane.b32.xlu0 %v1679, 32
  %v1756 = vpop.permute.xlu0 %1755
  %v1759 = vmul.f32 %v1746, %v1754
  %v1760 = vmul.f32 %v1748, %v1756
  %1763 = vrot.lane.b32.xlu0 %v1749, 32
  %v1764 = vpop.permute.xlu0 %1763
  %1765 = vrot.lane.b32.xlu0 %v1750, 32
  %v1766 = vpop.permute.xlu0 %1765
  %v1769 = vmul.f32 %v1746, %v1764
  %v1770 = vmul.f32 %v1748, %v1766
  %1773 = vrot.lane.b32.xlu0 %v1769, 32
  %v1774 = vpop.permute.xlu0 %1773
  %1775 = vrot.lane.b32.xlu0 %v1770, 32
  %v1776 = vpop.permute.xlu0 %1775
  %v1779 = vadd.f32 %v1759, %v1774
  %v1780 = vadd.f32 %v1760, %v1776
  %v1781 = vtanh.pop %v1779
  %v1782 = vtanh.pop %v1780
  %1785 = vrot.lane.b32.xlu0 %v1781, 32
  %v1786 = vpop.permute.xlu0 %1785
  %1787 = vrot.lane.b32.xlu0 %v1782, 32
  %v1788 = vpop.permute.xlu0 %1787
  %v1791 = vmul.f32 %v1746, %v1786
  %v1792 = vmul.f32 %v1748, %v1788
  %v1793 = vxor.u32 %v1735, 2147483648
  %v1794 = vxor.u32 %v1736, 2147483648
  %v1795 = vmul.f32 %v1793, 1.442695
  %v1796 = vpow.pop %v1795
  %v1797 = vmul.f32 %v1794, 1.442695
  %v1798 = vpow.pop %v1797
  %v1799 = vadd.f32 %v1796, 1.0
  %v1800 = vadd.f32 %v1798, 1.0
  %v1801 = vrcp.pop %v1799
  %v1802 = vmul.f32 1.0, %v1801
  %v1803 = vrcp.pop %v1800
  %v1804 = vmul.f32 1.0, %v1803
  %v1805 = vtanh.pop %v1735
  %v1806 = vtanh.pop %v1736
  %v1807 = vmul.f32 %v1802, %v1678
  %v1808 = vmul.f32 %v1804, %v1679
  %1811 = vrot.lane.b32.xlu0 %v1805, 32
  %v1812 = vpop.permute.xlu0 %1811
  %1813 = vrot.lane.b32.xlu0 %v1806, 32
  %v1814 = vpop.permute.xlu0 %1813
  %v1817 = vmul.f32 %v1802, %v1812
  %v1818 = vmul.f32 %v1804, %v1814
  %1821 = vrot.lane.b32.xlu0 %v1817, 32
  %v1822 = vpop.permute.xlu0 %1821
  %1823 = vrot.lane.b32.xlu0 %v1818, 32
  %v1824 = vpop.permute.xlu0 %1823
  %v1827 = vadd.f32 %v1807, %v1822
  %v1828 = vadd.f32 %v1808, %v1824
  %v1829 = vtanh.pop %v1827
  %v1830 = vtanh.pop %v1828
  %1833 = vrot.lane.b32.xlu0 %v1829, 32
  %v1834 = vpop.permute.xlu0 %1833
  %1835 = vrot.lane.b32.xlu0 %v1830, 32
  %v1836 = vpop.permute.xlu0 %1835
  %v1839 = vmul.f32 %v1802, %v1834
  %v1840 = vmul.f32 %v1804, %v1836
  %1843 = vrot.lane.b32.xlu0 %v1791, 64
  %v1844 = vpop.permute.xlu0 %1843
  %1845 = vrot.lane.b32.xlu0 %v1792, 64
  %v1846 = vpop.permute.xlu0 %1845
  %1849 = vst.msk [vmem:[#allocation4] sm:$0xff] %vm712, %v1844
  %1850 = vst.msk [vmem:[#allocation4 + $0x8] sm:$0xff] %vm712, %v1846
  %1853 = vrot.lane.b32.xlu0 %v1839, 96
  %v1854 = vpop.permute.xlu0 %1853
  %1855 = vrot.lane.b32.xlu0 %v1840, 96
  %v1856 = vpop.permute.xlu0 %1855
  %1859 = vst.msk [vmem:[#allocation4] sm:$0xff] %vm723, %v1854
  %1860 = vst.msk [vmem:[#allocation4 + $0x8] sm:$0xff] %vm723, %v1856
  %1863 = vrot.lane.b32.xlu0 %v1779, 96
  %v1864 = vpop.permute.xlu0 %1863
  %1865 = vrot.lane.b32.xlu0 %v1780, 96
  %v1866 = vpop.permute.xlu0 %1865
  %1869 = vst.msk [vmem:[#allocation5] sm:$0xff] %vm712, %v1864
  %1870 = vst.msk [vmem:[#allocation5 + $0x8] sm:$0xff] %vm712, %v1866
  %1871 = vst.msk [vmem:[#allocation5] sm:$0xff] %vm723, %v1827
  %1872 = vst.msk [vmem:[#allocation5 + $0x8] sm:$0xff] %vm723, %v1828
  %v1873 = vpack.c.bf16 %v1792, %v1791
  %v1875 = vunpack.c.l.b16 %v1873
  %v1876 = vunpack.c.h.b16 %v1873
  %v1877 = vpack.c.b16 %v1875, %v1875
  %v1878 = vpack.c.b16 %v1876, %v1876
  %1879 = vrot.lane.b32.xlu0 %v1877, 64
  %v1880 = vpop.permute.xlu0 %1879
  %1881 = vrot.lane.b32.xlu0 %v1878, 64
  %v1882 = vpop.permute.xlu0 %1881
  %s1885 = scalar_lea.vmem %s7, 40
  %1886 = vst.msk [vmem:[%s1885] sm:$0xf] %vm750, %v1880
  %1887 = vst.msk [vmem:[%s1885 + $0x4] sm:$0xf] %vm750, %v1882
  %v1888 = vpack.c.bf16 %v1840, %v1839
  %v1890 = vunpack.c.l.b16 %v1888
  %v1891 = vunpack.c.h.b16 %v1888
  %v1892 = vpack.c.b16 %v1890, %v1890
  %v1893 = vpack.c.b16 %v1891, %v1891
  %1894 = vrot.lane.b32.xlu0 %v1892, 64
  %v1895 = vpop.permute.xlu0 %1894
  %1896 = vrot.lane.b32.xlu0 %v1893, 64
  %v1897 = vpop.permute.xlu0 %1896
  %s1900 = scalar_lea.vmem %s61, 16
  %1901 = vst.msk [vmem:[%s1900] sm:$0xf] %vm750, %v1895
  %1902 = vst.msk [vmem:[%s1900 + $0x4] sm:$0xf] %vm750, %v1897
  %v1903 = vld [vmem:[#allocation4] sm:$0xff]
  %v1904 = vld [vmem:[#allocation4 + $0x8] sm:$0xff]
  %v1905 = vld [vmem:[#allocation5] sm:$0xff]
  %v1906 = vld [vmem:[#allocation5 + $0x8] sm:$0xff]
  %v1907 = vpack.c.bf16 %v1904, %v1903
  %v1909 = vsel %vm544, %v1907, 0
  %1911 = vmatprep.subr.bf16.mxu0 0
  %1912 = vmatpush1.bf16.msra.mxu0 0
  %1913 = vmatprep.subr.bf16.mxu0 0
  %1914 = vmatpush1.bf16.msra.mxu0 0
  %1915 = vmatprep.subr.bf16.mxu0 0
  %1916 = vmatpush1.bf16.msra.mxu0 0
  %1917 = vmatprep.subr.bf16.mxu0 0
  %1918 = vmatpush1.bf16.msra.mxu0 0
  %1919 = vmatprep.subr.bf16.mxu0 %v535
  %1920 = vmatpush1.bf16.msra.mxu0 %v534
  %1921 = vmatprep.subr.bf16.mxu0 %v533
  %1922 = vmatpush1.bf16.msra.mxu0 %v532
  %1923 = vmatprep.subr.bf16.mxu0 %v531
  %1924 = vmatpush1.bf16.msra.mxu0 %v530
  %1925 = vmatprep.subr.bf16.mxu0 %v529
  %1926 = vmatpush1.bf16.msra.mxu0 %v528
  %1927 = vmatprep.subr.bf16.mxu0 0
  %1928 = vmatpush2.bf16.msra.mxu0 0
  %1929 = vmatprep.subr.bf16.mxu0 0
  %1930 = vmatpush2.bf16.msra.mxu0 0
  %1931 = vmatprep.subr.bf16.mxu0 0
  %1932 = vmatpush2.bf16.msra.mxu0 0
  %1933 = vmatprep.subr.bf16.mxu0 0
  %1934 = vmatpush2.bf16.msra.mxu0 0
  %1935 = vmatprep.subr.bf16.mxu0 0
  %1936 = vmatpush2.bf16.msra.mxu0 0
  %1937 = vmatprep.subr.bf16.mxu0 0
  %1938 = vmatpush2.bf16.msra.mxu0 0
  %1939 = vmatprep.subr.bf16.mxu0 0
  %1940 = vmatpush2.bf16.msra.mxu0 0
  %1941 = vmatprep.subr.bf16.mxu0 0
  %1942 = vmatpush2.bf16.msra.mxu0 0
  %1943 = vmatprep.mubr.bf16.mxu0 0
  %1944 = vmatmul.mubr.bf16.gmra.mxu0 %v1909
  %v1945 = vpop.f32.mrf.mxu0
  %v1946 = vadd.f32 0.0, %v1945
  %v1947 = vpop.f32.mrf.mxu0
  %v1948 = vadd.f32 0.0, %v1947
  %v1949 = vpop.f32.mrf.mxu0
  %v1950 = vadd.f32 0.0, %v1949
  %v1951 = vpop.f32.mrf.mxu0
  %v1952 = vadd.f32 0.0, %v1951
  %1953 = vdwg.mxu0
  %s1954 = scalar_lea.vmem [#allocation2], 96
  %v1955 = vld [vmem:[%s1954] sm:$0xff]
  %v1956 = vld [vmem:[%s1954 + $0x8] sm:$0xff]
  %v1957 = vadd.f32 %v1946, %v1955
  %v1958 = vadd.f32 %v1950, %v1956
  %s1959 = scalar_lea.vmem [#allocation3], 16
  %v1960 = vld [vmem:[%s1959] sm:$0xff]
  %v1961 = vld [vmem:[%s1959 + $0x8] sm:$0xff]
  %v1962 = vadd.f32 %v1948, %v1960
  %v1963 = vadd.f32 %v1952, %v1961
  %v1964 = vxor.u32 %v1957, 2147483648
  %v1965 = vxor.u32 %v1958, 2147483648
  %v1966 = vmul.f32 %v1964, 1.442695
  %v1967 = vpow.pop %v1966
  %v1968 = vmul.f32 %v1965, 1.442695
  %v1969 = vpow.pop %v1968
  %v1970 = vadd.f32 %v1967, 1.0
  %v1971 = vadd.f32 %v1969, 1.0
  %v1972 = vrcp.pop %v1970
  %v1973 = vmul.f32 1.0, %v1972
  %v1974 = vrcp.pop %v1971
  %v1975 = vmul.f32 1.0, %v1974
  %v1976 = vtanh.pop %v1957
  %v1977 = vtanh.pop %v1958
  %1980 = vrot.lane.b32.xlu0 %v1905, 32
  %v1981 = vpop.permute.xlu0 %1980
  %1982 = vrot.lane.b32.xlu0 %v1906, 32
  %v1983 = vpop.permute.xlu0 %1982
  %v1986 = vmul.f32 %v1973, %v1981
  %v1987 = vmul.f32 %v1975, %v1983
  %1990 = vrot.lane.b32.xlu0 %v1976, 32
  %v1991 = vpop.permute.xlu0 %1990
  %1992 = vrot.lane.b32.xlu0 %v1977, 32
  %v1993 = vpop.permute.xlu0 %1992
  %v1996 = vmul.f32 %v1973, %v1991
  %v1997 = vmul.f32 %v1975, %v1993
  %2000 = vrot.lane.b32.xlu0 %v1996, 32
  %v2001 = vpop.permute.xlu0 %2000
  %2002 = vrot.lane.b32.xlu0 %v1997, 32
  %v2003 = vpop.permute.xlu0 %2002
  %v2006 = vadd.f32 %v1986, %v2001
  %v2007 = vadd.f32 %v1987, %v2003
  %v2008 = vtanh.pop %v2006
  %v2009 = vtanh.pop %v2007
  %2012 = vrot.lane.b32.xlu0 %v2008, 32
  %v2013 = vpop.permute.xlu0 %2012
  %2014 = vrot.lane.b32.xlu0 %v2009, 32
  %v2015 = vpop.permute.xlu0 %2014
  %v2018 = vmul.f32 %v1973, %v2013
  %v2019 = vmul.f32 %v1975, %v2015
  %v2020 = vxor.u32 %v1962, 2147483648
  %v2021 = vxor.u32 %v1963, 2147483648
  %v2022 = vmul.f32 %v2020, 1.442695
  %v2023 = vpow.pop %v2022
  %v2024 = vmul.f32 %v2021, 1.442695
  %v2025 = vpow.pop %v2024
  %v2026 = vadd.f32 %v2023, 1.0
  %v2027 = vadd.f32 %v2025, 1.0
  %v2028 = vrcp.pop %v2026
  %v2029 = vmul.f32 1.0, %v2028
  %v2030 = vrcp.pop %v2027
  %v2031 = vmul.f32 1.0, %v2030
  %v2032 = vtanh.pop %v1962
  %v2033 = vtanh.pop %v1963
  %v2034 = vmul.f32 %v2029, %v1905
  %v2035 = vmul.f32 %v2031, %v1906
  %2038 = vrot.lane.b32.xlu0 %v2032, 32
  %v2039 = vpop.permute.xlu0 %2038
  %2040 = vrot.lane.b32.xlu0 %v2033, 32
  %v2041 = vpop.permute.xlu0 %2040
  %v2044 = vmul.f32 %v2029, %v2039
  %v2045 = vmul.f32 %v2031, %v2041
  %2048 = vrot.lane.b32.xlu0 %v2044, 32
  %v2049 = vpop.permute.xlu0 %2048
  %2050 = vrot.lane.b32.xlu0 %v2045, 32
  %v2051 = vpop.permute.xlu0 %2050
  %v2054 = vadd.f32 %v2034, %v2049
  %v2055 = vadd.f32 %v2035, %v2051
  %v2056 = vtanh.pop %v2054
  %v2057 = vtanh.pop %v2055
  %2060 = vrot.lane.b32.xlu0 %v2056, 32
  %v2061 = vpop.permute.xlu0 %2060
  %2062 = vrot.lane.b32.xlu0 %v2057, 32
  %v2063 = vpop.permute.xlu0 %2062
  %v2066 = vmul.f32 %v2029, %v2061
  %v2067 = vmul.f32 %v2031, %v2063
  %2070 = vrot.lane.b32.xlu0 %v2018, 64
  %v2071 = vpop.permute.xlu0 %2070
  %2072 = vrot.lane.b32.xlu0 %v2019, 64
  %v2073 = vpop.permute.xlu0 %2072
  %2076 = vst.msk [vmem:[#allocation4] sm:$0xff] %vm712, %v2071
  %2077 = vst.msk [vmem:[#allocation4 + $0x8] sm:$0xff] %vm712, %v2073
  %2080 = vrot.lane.b32.xlu0 %v2066, 96
  %v2081 = vpop.permute.xlu0 %2080
  %2082 = vrot.lane.b32.xlu0 %v2067, 96
  %v2083 = vpop.permute.xlu0 %2082
  %2086 = vst.msk [vmem:[#allocation4] sm:$0xff] %vm723, %v2081
  %2087 = vst.msk [vmem:[#allocation4 + $0x8] sm:$0xff] %vm723, %v2083
  %2090 = vrot.lane.b32.xlu0 %v2006, 96
  %v2091 = vpop.permute.xlu0 %2090
  %2092 = vrot.lane.b32.xlu0 %v2007, 96
  %v2093 = vpop.permute.xlu0 %2092
  %2096 = vst.msk [vmem:[#allocation5] sm:$0xff] %vm712, %v2091
  %2097 = vst.msk [vmem:[#allocation5 + $0x8] sm:$0xff] %vm712, %v2093
  %2098 = vst.msk [vmem:[#allocation5] sm:$0xff] %vm723, %v2054
  %2099 = vst.msk [vmem:[#allocation5 + $0x8] sm:$0xff] %vm723, %v2055
  %v2100 = vpack.c.bf16 %v2019, %v2018
  %v2102 = vunpack.c.l.b16 %v2100
  %v2103 = vunpack.c.h.b16 %v2100
  %v2104 = vpack.c.b16 %v2102, %v2102
  %v2105 = vpack.c.b16 %v2103, %v2103
  %2106 = vrot.lane.b32.xlu0 %v2104, 64
  %v2107 = vpop.permute.xlu0 %2106
  %2108 = vrot.lane.b32.xlu0 %v2105, 64
  %v2109 = vpop.permute.xlu0 %2108
  %s2112 = scalar_lea.vmem %s7, 48
  %2113 = vst.msk [vmem:[%s2112] sm:$0xf] %vm750, %v2107
  %2114 = vst.msk [vmem:[%s2112 + $0x4] sm:$0xf] %vm750, %v2109
  %v2115 = vpack.c.bf16 %v2067, %v2066
  %v2117 = vunpack.c.l.b16 %v2115
  %v2118 = vunpack.c.h.b16 %v2115
  %v2119 = vpack.c.b16 %v2117, %v2117
  %v2120 = vpack.c.b16 %v2118, %v2118
  %2121 = vrot.lane.b32.xlu0 %v2119, 64
  %v2122 = vpop.permute.xlu0 %2121
  %2123 = vrot.lane.b32.xlu0 %v2120, 64
  %v2124 = vpop.permute.xlu0 %2123
  %s2127 = scalar_lea.vmem %s61, 8
  %2128 = vst.msk [vmem:[%s2127] sm:$0xf] %vm750, %v2122
  %2129 = vst.msk [vmem:[%s2127 + $0x4] sm:$0xf] %vm750, %v2124
  %v2130 = vld [vmem:[#allocation4] sm:$0xff]
  %v2131 = vld [vmem:[#allocation4 + $0x8] sm:$0xff]
  %v2132 = vld [vmem:[#allocation5] sm:$0xff]
  %v2133 = vld [vmem:[#allocation5 + $0x8] sm:$0xff]
  %v2134 = vpack.c.bf16 %v2131, %v2130
  %v2136 = vsel %vm544, %v2134, 0
  %2138 = vmatprep.subr.bf16.mxu0 0
  %2139 = vmatpush1.bf16.msra.mxu0 0
  %2140 = vmatprep.subr.bf16.mxu0 0
  %2141 = vmatpush1.bf16.msra.mxu0 0
  %2142 = vmatprep.subr.bf16.mxu0 0
  %2143 = vmatpush1.bf16.msra.mxu0 0
  %2144 = vmatprep.subr.bf16.mxu0 0
  %2145 = vmatpush1.bf16.msra.mxu0 0
  %2146 = vmatprep.subr.bf16.mxu0 %v535
  %2147 = vmatpush1.bf16.msra.mxu0 %v534
  %2148 = vmatprep.subr.bf16.mxu0 %v533
  %2149 = vmatpush1.bf16.msra.mxu0 %v532
  %2150 = vmatprep.subr.bf16.mxu0 %v531
  %2151 = vmatpush1.bf16.msra.mxu0 %v530
  %2152 = vmatprep.subr.bf16.mxu0 %v529
  %2153 = vmatpush1.bf16.msra.mxu0 %v528
  %2154 = vmatprep.subr.bf16.mxu0 0
  %2155 = vmatpush2.bf16.msra.mxu0 0
  %2156 = vmatprep.subr.bf16.mxu0 0
  %2157 = vmatpush2.bf16.msra.mxu0 0
  %2158 = vmatprep.subr.bf16.mxu0 0
  %2159 = vmatpush2.bf16.msra.mxu0 0
  %2160 = vmatprep.subr.bf16.mxu0 0
  %2161 = vmatpush2.bf16.msra.mxu0 0
  %2162 = vmatprep.subr.bf16.mxu0 0
  %2163 = vmatpush2.bf16.msra.mxu0 0
  %2164 = vmatprep.subr.bf16.mxu0 0
  %2165 = vmatpush2.bf16.msra.mxu0 0
  %2166 = vmatprep.subr.bf16.mxu0 0
  %2167 = vmatpush2.bf16.msra.mxu0 0
  %2168 = vmatprep.subr.bf16.mxu0 0
  %2169 = vmatpush2.bf16.msra.mxu0 0
  %2170 = vmatprep.mubr.bf16.mxu0 0
  %2171 = vmatmul.mubr.bf16.gmra.mxu0 %v2136
  %v2172 = vpop.f32.mrf.mxu0
  %v2173 = vadd.f32 0.0, %v2172
  %v2174 = vpop.f32.mrf.mxu0
  %v2175 = vadd.f32 0.0, %v2174
  %v2176 = vpop.f32.mrf.mxu0
  %v2177 = vadd.f32 0.0, %v2176
  %v2178 = vpop.f32.mrf.mxu0
  %v2179 = vadd.f32 0.0, %v2178
  %2180 = vdwg.mxu0
  %s2181 = scalar_lea.vmem [#allocation2], 112
  %v2182 = vld [vmem:[%s2181] sm:$0xff]
  %v2183 = vld [vmem:[%s2181 + $0x8] sm:$0xff]
  %v2184 = vadd.f32 %v2173, %v2182
  %v2185 = vadd.f32 %v2177, %v2183
  %v2186 = vld [vmem:[#allocation3] sm:$0xff]
  %v2187 = vld [vmem:[#allocation3 + $0x8] sm:$0xff]
  %v2188 = vadd.f32 %v2175, %v2186
  %v2189 = vadd.f32 %v2179, %v2187
  %v2190 = vxor.u32 %v2184, 2147483648
  %v2191 = vxor.u32 %v2185, 2147483648
  %v2192 = vmul.f32 %v2190, 1.442695
  %v2193 = vpow.pop %v2192
  %v2194 = vmul.f32 %v2191, 1.442695
  %v2195 = vpow.pop %v2194
  %v2196 = vadd.f32 %v2193, 1.0
  %v2197 = vadd.f32 %v2195, 1.0
  %v2198 = vrcp.pop %v2196
  %v2199 = vmul.f32 1.0, %v2198
  %v2200 = vrcp.pop %v2197
  %v2201 = vmul.f32 1.0, %v2200
  %v2202 = vtanh.pop %v2184
  %v2203 = vtanh.pop %v2185
  %2206 = vrot.lane.b32.xlu0 %v2132, 32
  %v2207 = vpop.permute.xlu0 %2206
  %2208 = vrot.lane.b32.xlu0 %v2133, 32
  %v2209 = vpop.permute.xlu0 %2208
  %v2212 = vmul.f32 %v2199, %v2207
  %v2213 = vmul.f32 %v2201, %v2209
  %2216 = vrot.lane.b32.xlu0 %v2202, 32
  %v2217 = vpop.permute.xlu0 %2216
  %2218 = vrot.lane.b32.xlu0 %v2203, 32
  %v2219 = vpop.permute.xlu0 %2218
  %v2222 = vmul.f32 %v2199, %v2217
  %v2223 = vmul.f32 %v2201, %v2219
  %2226 = vrot.lane.b32.xlu0 %v2222, 32
  %v2227 = vpop.permute.xlu0 %2226
  %2228 = vrot.lane.b32.xlu0 %v2223, 32
  %v2229 = vpop.permute.xlu0 %2228
  %v2232 = vadd.f32 %v2212, %v2227
  %v2233 = vadd.f32 %v2213, %v2229
  %v2234 = vtanh.pop %v2232
  %v2235 = vtanh.pop %v2233
  %2238 = vrot.lane.b32.xlu0 %v2234, 32
  %v2239 = vpop.permute.xlu0 %2238
  %2240 = vrot.lane.b32.xlu0 %v2235, 32
  %v2241 = vpop.permute.xlu0 %2240
  %v2244 = vmul.f32 %v2199, %v2239
  %v2245 = vmul.f32 %v2201, %v2241
  %v2246 = vxor.u32 %v2188, 2147483648
  %v2247 = vxor.u32 %v2189, 2147483648
  %v2248 = vmul.f32 %v2246, 1.442695
  %v2249 = vpow.pop %v2248
  %v2250 = vmul.f32 %v2247, 1.442695
  %v2251 = vpow.pop %v2250
  %v2252 = vadd.f32 %v2249, 1.0
  %v2253 = vadd.f32 %v2251, 1.0
  %v2254 = vrcp.pop %v2252
  %v2255 = vmul.f32 1.0, %v2254
  %v2256 = vrcp.pop %v2253
  %v2257 = vmul.f32 1.0, %v2256
  %v2258 = vtanh.pop %v2188
  %v2259 = vtanh.pop %v2189
  %v2260 = vmul.f32 %v2255, %v2132
  %v2261 = vmul.f32 %v2257, %v2133
  %2264 = vrot.lane.b32.xlu0 %v2258, 32
  %v2265 = vpop.permute.xlu0 %2264
  %2266 = vrot.lane.b32.xlu0 %v2259, 32
  %v2267 = vpop.permute.xlu0 %2266
  %v2270 = vmul.f32 %v2255, %v2265
  %v2271 = vmul.f32 %v2257, %v2267
  %2274 = vrot.lane.b32.xlu0 %v2270, 32
  %v2275 = vpop.permute.xlu0 %2274
  %2276 = vrot.lane.b32.xlu0 %v2271, 32
  %v2277 = vpop.permute.xlu0 %2276
  %v2280 = vadd.f32 %v2260, %v2275
  %v2281 = vadd.f32 %v2261, %v2277
  %v2282 = vtanh.pop %v2280
  %v2283 = vtanh.pop %v2281
  %2286 = vrot.lane.b32.xlu0 %v2282, 32
  %v2287 = vpop.permute.xlu0 %2286
  %2288 = vrot.lane.b32.xlu0 %v2283, 32
  %v2289 = vpop.permute.xlu0 %2288
  %v2292 = vmul.f32 %v2255, %v2287
  %v2293 = vmul.f32 %v2257, %v2289
  %2296 = vrot.lane.b32.xlu0 %v2244, 64
  %v2297 = vpop.permute.xlu0 %2296
  %2298 = vrot.lane.b32.xlu0 %v2245, 64
  %v2299 = vpop.permute.xlu0 %2298
  %2302 = vst.msk [vmem:[#allocation4] sm:$0xff] %vm712, %v2297
  %2303 = vst.msk [vmem:[#allocation4 + $0x8] sm:$0xff] %vm712, %v2299
  %2306 = vrot.lane.b32.xlu0 %v2292, 96
  %v2307 = vpop.permute.xlu0 %2306
  %2308 = vrot.lane.b32.xlu0 %v2293, 96
  %v2309 = vpop.permute.xlu0 %2308
  %2312 = vst.msk [vmem:[#allocation4] sm:$0xff] %vm723, %v2307
  %2313 = vst.msk [vmem:[#allocation4 + $0x8] sm:$0xff] %vm723, %v2309
  %2316 = vrot.lane.b32.xlu0 %v2232, 96
  %v2317 = vpop.permute.xlu0 %2316
  %2318 = vrot.lane.b32.xlu0 %v2233, 96
  %v2319 = vpop.permute.xlu0 %2318
  %2322 = vst.msk [vmem:[#allocation5] sm:$0xff] %vm712, %v2317
  %2323 = vst.msk [vmem:[#allocation5 + $0x8] sm:$0xff] %vm712, %v2319
  %2324 = vst.msk [vmem:[#allocation5] sm:$0xff] %vm723, %v2280
  %2325 = vst.msk [vmem:[#allocation5 + $0x8] sm:$0xff] %vm723, %v2281
  %v2326 = vpack.c.bf16 %v2245, %v2244
  %v2328 = vunpack.c.l.b16 %v2326
  %v2329 = vunpack.c.h.b16 %v2326
  %v2330 = vpack.c.b16 %v2328, %v2328
  %v2331 = vpack.c.b16 %v2329, %v2329
  %2332 = vrot.lane.b32.xlu0 %v2330, 64
  %v2333 = vpop.permute.xlu0 %2332
  %2334 = vrot.lane.b32.xlu0 %v2331, 64
  %v2335 = vpop.permute.xlu0 %2334
  %s2338 = scalar_lea.vmem %s7, 56
  %2339 = vst.msk [vmem:[%s2338] sm:$0xf] %vm750, %v2333
  %2340 = vst.msk [vmem:[%s2338 + $0x4] sm:$0xf] %vm750, %v2335
  %v2341 = vpack.c.bf16 %v2293, %v2292
  %v2343 = vunpack.c.l.b16 %v2341
  %v2344 = vunpack.c.h.b16 %v2341
  %v2345 = vpack.c.b16 %v2343, %v2343
  %v2346 = vpack.c.b16 %v2344, %v2344
  %2347 = vrot.lane.b32.xlu0 %v2345, 64
  %v2348 = vpop.permute.xlu0 %2347
  %2349 = vrot.lane.b32.xlu0 %v2346, 64
  %v2350 = vpop.permute.xlu0 %2349
  %2353 = vst.msk [vmem:[%s61] sm:$0xf] %vm750, %v2348
  %2354 = vst.msk [vmem:[%s61 + $0x4] sm:$0xf] %vm750, %v2350
  %s2355 = ssub.s32 0, 0
  %s2356 = smul.u32 16, %s2355
  %p2357 = scmp.lt.s32.totalorder %s2356, 15
  %s2358 = scalar_select %p2357, %s2356, 15
  %s2359 = smul.addr %s2358, 4
  %s2360 = scalar_lea.vmem %s8, %s2359
  // Predicated region
  $region34: #{bilstm_forward.2} parent=0 // pred_check
    _
  $region35: #{bilstm_forward.2} parent=0 // pred_check_branch
    %2362 = sbr.rel (0) target = $region37
  $region36: #{bilstm_forward.2} parent=0 // pred_region
    _
  $region37: #{bilstm_forward.2} parent=0 // pred_fallthru
    _
  // Predicated region
  $region38: #{bilstm_forward.2} parent=0 // pred_check
    _
  $region39: #{bilstm_forward.2} parent=0 // pred_check_branch
    %2364 = sbr.rel (0) target = $region41
  $region40: #{bilstm_forward.2} parent=0 // pred_region
    %s2365 = ssub.s32 0, 0
    %s2366 = smul.u32 16, %s2365
  $region41: #{bilstm_forward.2} parent=0 // pred_fallthru
    _
  // Predicated region
  $region42: #{bilstm_forward.2} parent=0 // pred_check
    _
  $region43: #{bilstm_forward.2} parent=0 // pred_check_branch
    %2368 = sbr.rel (0) target = $region45
  $region44: #{bilstm_forward.2} parent=0 // pred_region
    _
  $region45: #{bilstm_forward.2} parent=0 // pred_fallthru
    _
  // Predicated region
  $region46: #{bilstm_forward.2} parent=0 // pred_check
    _
  $region47: #{bilstm_forward.2} parent=0 // pred_check_branch
    %2370 = sbr.rel (0) target = $region49
  $region48: #{bilstm_forward.2} parent=0 // pred_region
    %s2371 = ssub.s32 0, 0
    %s2372 = smul.u32 16, %s2371
    %p2373 = scmp.lt.s32.totalorder %s2372, 15
    %s2374 = scalar_select %p2373, %s2372, 15
    %s2375 = smul.addr %s2374, 4
    %s2376 = scalar_lea.vmem %s8, %s2375
  $region49: #{bilstm_forward.2} parent=0 // pred_fallthru
    _

// kernel: bilstm_forward.3
$region0: #{bilstm_forward.3}
  #allocation0 [shape = 'u32[]', space=smem, size = 0x4, offset = 0x4, fixed_abs, tag = 'smem constant byte address 0x4 - core index']
  #allocation1 [shape = 'u32[144,128]{1,0:T(1,128)}', space=vmem, size = 0x12000, scoped, tag = 'internal scratch']
  #allocation2 [shape = 'f32[128,128]{1,0:T(8,128)}', space=vmem, size = 0x10000, scoped, tag = 'scratch operand']
  #allocation3 [shape = 'f32[128,128]{1,0:T(8,128)}', space=vmem, size = 0x10000, scoped, tag = 'scratch operand']
  #allocation4 [shape = 'f32[16,64]{1,0:T(8,128)}', space=vmem, size = 0x2000, scoped, tag = 'scratch operand']
  #allocation5 [shape = 'f32[16,64]{1,0:T(8,128)}', space=vmem, size = 0x2000, scoped, tag = 'scratch operand']
  #allocation6 [shape = 'f32[16,32]{1,0:T(8,128)}', space=vmem, size = 0x2000, scoped, tag = 'scratch operand']
  %s0 = inlined_call_operand.vmem [shape: bf16[128,32], index: 0, kind: input, shape index: {}, may-alias: {0,2}]
  %s1 = inlined_call_operand.vmem [shape: bf16[128,32], index: 1, kind: input, shape index: {}, may-alias: {1,3}]
  %s2 = inlined_call_operand.vmem [shape: bf16[128,32], index: 2, kind: input, shape index: {}, may-alias: {0,2}]
  %s3 = inlined_call_operand.vmem [shape: bf16[128,32], index: 3, kind: input, shape index: {}, may-alias: {1,3}]
  %s4 = inlined_call_operand.vmem [shape: bf16[32,128], index: 4, kind: input, shape index: {}]
  %s5 = inlined_call_operand.vmem [shape: bf16[32,128], index: 5, kind: input, shape index: {}]
  %s6 = inlined_call_operand.vmem [shape: bf16[32,128], index: 6, kind: input, shape index: {}]
  %s7 = inlined_call_operand.vmem [shape: bf16[32,128], index: 7, kind: input, shape index: {}]
  %s8 = inlined_call_operand.vmem [shape: f32[1,128], index: 8, kind: input, shape index: {}]
  %s9 = inlined_call_operand.vmem [shape: f32[1,128], index: 9, kind: input, shape index: {}]
  %s10 = inlined_call_operand.vmem [shape: bf16[64,256], index: 10, kind: input, shape index: {}]
  %s11 = inlined_call_operand.vmem [shape: f32[32,8], index: 11, kind: input, shape index: {}]
  %s12 = inlined_call_operand.vmem [shape: f32[32,8], index: 12, kind: input, shape index: {}]
  %s13 = inlined_call_operand.vmem [shape: f32[1,8], index: 13, kind: input, shape index: {}]
  %s14 = inlined_call_operand.vmem [shape: f32[16,8], index: 14, kind: output, shape index: {}]
  %s15 = sld [smem:[#allocation0]]
  $region74: #{bilstm_forward.3} parent=0
    _
  %s17 = ssub.s32 1, %s15
  %s18 = scalar_select 0, %s17, %s15
  // Predicated region
  $region2: #{bilstm_forward.3} parent=0 // pred_check
    _
  $region3: #{bilstm_forward.3} parent=0 // pred_check_branch
    %20 = sbr.rel (0) target = $region5
  $region4: #{bilstm_forward.3} parent=0 // pred_region
    _
  $region5: #{bilstm_forward.3} parent=0 // pred_fallthru
    _
  // Predicated region
  $region6: #{bilstm_forward.3} parent=0 // pred_check
    _
  $region7: #{bilstm_forward.3} parent=0 // pred_check_branch
    %22 = sbr.rel (0) target = $region9
  $region8: #{bilstm_forward.3} parent=0 // pred_region
    _
  $region9: #{bilstm_forward.3} parent=0 // pred_fallthru
    _
  // Predicated region
  $region10: #{bilstm_forward.3} parent=0 // pred_check
    _
  $region11: #{bilstm_forward.3} parent=0 // pred_check_branch
    %24 = sbr.rel (0) target = $region13
  $region12: #{bilstm_forward.3} parent=0 // pred_region
    %s25 = ssub.s32 0, 0
    %s26 = smul.u32 16, %s25
    %p27 = scmp.lt.s32.totalorder %s26, 15
    %s28 = scalar_select %p27, %s26, 15
    %s29 = smul.addr %s28, 4
    %s30 = scalar_lea.vmem %s2, %s29
    %s31 = ssub.s32 0, 0
    %s32 = smul.u32 16, %s31
  $region13: #{bilstm_forward.3} parent=0 // pred_fallthru
    _
  // Predicated region
  $region14: #{bilstm_forward.3} parent=0 // pred_check
    _
  $region15: #{bilstm_forward.3} parent=0 // pred_check_branch
    %34 = sbr.rel (0) target = $region17
  $region16: #{bilstm_forward.3} parent=0 // pred_region
    %s35 = ssub.s32 0, 0
    %s36 = smul.u32 16, %s35
    %p37 = scmp.lt.s32.totalorder %s36, 15
    %s38 = scalar_select %p37, %s36, 15
    %s39 = smul.addr %s38, 4
    %s40 = scalar_lea.vmem %s3, %s39
    %s41 = ssub.s32 0, 0
    %s42 = smul.u32 16, %s41
  $region17: #{bilstm_forward.3} parent=0 // pred_fallthru
    _
  // Predicated region
  $region18: #{bilstm_forward.3} parent=0 // pred_check
    _
  $region19: #{bilstm_forward.3} parent=0 // pred_check_branch
    %44 = sbr.rel (0) target = $region21
  $region20: #{bilstm_forward.3} parent=0 // pred_region
    _
  $region21: #{bilstm_forward.3} parent=0 // pred_fallthru
    _
  // Predicated region
  $region22: #{bilstm_forward.3} parent=0 // pred_check
    _
  $region23: #{bilstm_forward.3} parent=0 // pred_check_branch
    %46 = sbr.rel (0) target = $region25
  $region24: #{bilstm_forward.3} parent=0 // pred_region
    _
  $region25: #{bilstm_forward.3} parent=0 // pred_fallthru
    _
  // Predicated region
  $region26: #{bilstm_forward.3} parent=0 // pred_check
    _
  $region27: #{bilstm_forward.3} parent=0 // pred_check_branch
    %48 = sbr.rel (0) target = $region29
  $region28: #{bilstm_forward.3} parent=0 // pred_region
    _
  $region29: #{bilstm_forward.3} parent=0 // pred_fallthru
    _
  // Predicated region
  $region30: #{bilstm_forward.3} parent=0 // pred_check
    _
  $region31: #{bilstm_forward.3} parent=0 // pred_check_branch
    %50 = sbr.rel (0) target = $region33
  $region32: #{bilstm_forward.3} parent=0 // pred_region
    _
  $region33: #{bilstm_forward.3} parent=0 // pred_fallthru
    _
  // Predicated region
  $region34: #{bilstm_forward.3} parent=0 // pred_check
    _
  $region35: #{bilstm_forward.3} parent=0 // pred_check_branch
    %52 = sbr.rel (0) target = $region37
  $region36: #{bilstm_forward.3} parent=0 // pred_region
    _
  $region37: #{bilstm_forward.3} parent=0 // pred_fallthru
    _
  // Predicated region
  $region38: #{bilstm_forward.3} parent=0 // pred_check
    _
  $region39: #{bilstm_forward.3} parent=0 // pred_check_branch
    %54 = sbr.rel (0) target = $region41
  $region40: #{bilstm_forward.3} parent=0 // pred_region
    _
  $region41: #{bilstm_forward.3} parent=0 // pred_fallthru
    _
  // Predicated region
  $region42: #{bilstm_forward.3} parent=0 // pred_check
    _
  $region43: #{bilstm_forward.3} parent=0 // pred_check_branch
    %56 = sbr.rel (0) target = $region45
  $region44: #{bilstm_forward.3} parent=0 // pred_region
    _
  $region45: #{bilstm_forward.3} parent=0 // pred_fallthru
    _
  // Predicated region
  $region46: #{bilstm_forward.3} parent=0 // pred_check
    _
  $region47: #{bilstm_forward.3} parent=0 // pred_check_branch
    %58 = sbr.rel (0) target = $region49
  $region48: #{bilstm_forward.3} parent=0 // pred_region
    _
  $region49: #{bilstm_forward.3} parent=0 // pred_fallthru
    _
  // Predicated region
  $region50: #{bilstm_forward.3} parent=0 // pred_check
    _
  $region51: #{bilstm_forward.3} parent=0 // pred_check_branch
    %60 = sbr.rel (0) target = $region53
  $region52: #{bilstm_forward.3} parent=0 // pred_region
    _
  $region53: #{bilstm_forward.3} parent=0 // pred_fallthru
    _
  // Predicated region
  $region54: #{bilstm_forward.3} parent=0 // pred_check
    _
  $region55: #{bilstm_forward.3} parent=0 // pred_check_branch
    %62 = sbr.rel (0) target = $region57
  $region56: #{bilstm_forward.3} parent=0 // pred_region
    _
  $region57: #{bilstm_forward.3} parent=0 // pred_fallthru
    _
  %s63 = ssub.s32 0, 0
  %s64 = smul.u32 16, %s63
  %p65 = scmp.lt.s32.totalorder %s64, 15
  %s66 = scalar_select %p65, %s64, 15
  %s67 = smul.addr %s66, 4
  %s68 = scalar_lea.vmem %s2, %s67
  %s69 = ssub.s32 0, 0
  %s70 = smul.u32 16, %s69
  %p71 = scmp.lt.s32.totalorder %s70, 15
  %s72 = scalar_select %p71, %s70, 15
  %s73 = smul.addr %s72, 4
  %s74 = scalar_lea.vmem %s3, %s73
  %s75 = ssub.s32 0, 0
  %s76 = smul.u32 16, %s75
  %p77 = scmp.lt.s32.totalorder %s76, 15
  %s78 = scalar_select %p77, %s76, 15
  %s79 = smul.addr %s78, 4
  %s80 = scalar_lea.vmem %s2, %s79
  %s81 = ssub.s32 0, 0
  %s82 = smul.u32 16, %s81
  %s83 = ssub.s32 0, 0
  %s84 = smul.u32 16, %s83
  %p85 = scmp.lt.s32.totalorder %s84, 15
  %s86 = scalar_select %p85, %s84, 15
  %s87 = smul.addr %s86, 4
  %s88 = scalar_lea.vmem %s3, %s87
  %s89 = ssub.s32 0, 0
  %s90 = smul.u32 16, %s89
  %p92 = scmp.eq.s32.totalorder 0, 0
  // Predicated region
  $region58: #{bilstm_forward.3} parent=0 // pred_check
    %p93 = pneg %p92
  $region59: #{bilstm_forward.3} parent=0 // pred_check_branch
    %95 = sbr.rel (%p93) target = $region61
  $region60: #{bilstm_forward.3} parent=0 // pred_region
    %vm96 = vcmask 523264
    %97 = vst.msk [vmem:[#allocation4] sm:$0xff] %vm96, 0.0
    %98 = vst.msk [vmem:[#allocation4 + $0x8] sm:$0xff] %vm96, 0.0
    %99 = vst.msk [vmem:[#allocation5] sm:$0xff] %vm96, 0.0
    %100 = vst.msk [vmem:[#allocation5 + $0x8] sm:$0xff] %vm96, 0.0
    %vm101 = vcmask 261120
    %102 = vst.msk [vmem:[#allocation6] sm:$0xff] %vm101, 0.0
    %103 = vst.msk [vmem:[#allocation6 + $0x8] sm:$0xff] %vm101, 0.0
  $region61: #{bilstm_forward.3} parent=0 // pred_fallthru
    _
  %v104 = vld [vmem:[%s0] sm:$0xf]
  %v105 = vld [vmem:[%s0 + $0x4] sm:$0xf]
  %v106 = vld [vmem:[%s0 + $0x8] sm:$0xf]
  %v107 = vld [vmem:[%s0 + $0xc] sm:$0xf]
  %v108 = vld [vmem:[%s0 + $0x10] sm:$0xf]
  %v109 = vld [vmem:[%s0 + $0x14] sm:$0xf]
  %v110 = vld [vmem:[%s0 + $0x18] sm:$0xf]
  %v111 = vld [vmem:[%s0 + $0x1c] sm:$0xf]
  %v112 = vld [vmem:[%s0 + $0x20] sm:$0xf]
  %v113 = vld [vmem:[%s0 + $0x24] sm:$0xf]
  %v114 = vld [vmem:[%s0 + $0x28] sm:$0xf]
  %v115 = vld [vmem:[%s0 + $0x2c] sm:$0xf]
  %v116 = vld [vmem:[%s0 + $0x30] sm:$0xf]
  %v117 = vld [vmem:[%s0 + $0x34] sm:$0xf]
  %v118 = vld [vmem:[%s0 + $0x38] sm:$0xf]
  %v119 = vld [vmem:[%s0 + $0x3c] sm:$0xf]
  %v120 = vld [vmem:[%s4] sm:$0xf]
  %v121 = vld [vmem:[%s4 + $0x4] sm:$0xf]
  %v122 = vld [vmem:[%s4 + $0x8] sm:$0xf]
  %v123 = vld [vmem:[%s4 + $0xc] sm:$0xf]
  %v124 = vld [vmem:[%s1] sm:$0xf]
  %v125 = vld [vmem:[%s1 + $0x4] sm:$0xf]
  %v126 = vld [vmem:[%s1 + $0x8] sm:$0xf]
  %v127 = vld [vmem:[%s1 + $0xc] sm:$0xf]
  %v128 = vld [vmem:[%s1 + $0x10] sm:$0xf]
  %v129 = vld [vmem:[%s1 + $0x14] sm:$0xf]
  %v130 = vld [vmem:[%s1 + $0x18] sm:$0xf]
  %v131 = vld [vmem:[%s1 + $0x1c] sm:$0xf]
  %v132 = vld [vmem:[%s1 + $0x20] sm:$0xf]
  %v133 = vld [vmem:[%s1 + $0x24] sm:$0xf]
  %v134 = vld [vmem:[%s1 + $0x28] sm:$0xf]
  %v135 = vld [vmem:[%s1 + $0x2c] sm:$0xf]
  %v136 = vld [vmem:[%s1 + $0x30] sm:$0xf]
  %v137 = vld [vmem:[%s1 + $0x34] sm:$0xf]
  %v138 = vld [vmem:[%s1 + $0x38] sm:$0xf]
  %v139 = vld [vmem:[%s1 + $0x3c] sm:$0xf]
  %v140 = vld [vmem:[%s5] sm:$0xf]
  %v141 = vld [vmem:[%s5 + $0x4] sm:$0xf]
  %v142 = vld [vmem:[%s5 + $0x8] sm:$0xf]
  %v143 = vld [vmem:[%s5 + $0xc] sm:$0xf]
  %v160 = vunpack.c.l.b16 %v124
  %v161 = vunpack.c.l.b16 %v125
  %v162 = vunpack.c.l.b16 %v126
  %v163 = vunpack.c.l.b16 %v127
  %v164 = vunpack.c.l.b16 %v128
  %v165 = vunpack.c.l.b16 %v129
  %v166 = vunpack.c.l.b16 %v130
  %v167 = vunpack.c.l.b16 %v131
  %v168 = vunpack.c.l.b16 %v132
  %v169 = vunpack.c.l.b16 %v133
  %v170 = vunpack.c.l.b16 %v134
  %v171 = vunpack.c.l.b16 %v135
  %v172 = vunpack.c.l.b16 %v136
  %v173 = vunpack.c.l.b16 %v137
  %v174 = vunpack.c.l.b16 %v138
  %v175 = vunpack.c.l.b16 %v139
  %v176 = vpack.c.b16 %v161, %v160
  %v177 = vpack.c.b16 %v163, %v162
  %v178 = vpack.c.b16 %v165, %v164
  %v179 = vpack.c.b16 %v167, %v166
  %v180 = vpack.c.b16 %v169, %v168
  %v181 = vpack.c.b16 %v171, %v170
  %v182 = vpack.c.b16 %v173, %v172
  %v183 = vpack.c.b16 %v175, %v174
  %v188 = vunpack.c.l.b16 %v140
  %v189 = vunpack.c.l.b16 %v141
  %v190 = vunpack.c.l.b16 %v142
  %v191 = vunpack.c.l.b16 %v143
  %v192 = vpack.c.b16 %v189, %v188
  %v193 = vpack.c.b16 %v191, %v190
  %vm196 = vcmask 261120
  %v198 = vsel %vm196, %v176, 0
  %v201 = vsel %vm196, %v177, 0
  %v204 = vsel %vm196, %v178, 0
  %v207 = vsel %vm196, %v179, 0
  %v210 = vsel %vm196, %v180, 0
  %v213 = vsel %vm196, %v181, 0
  %v216 = vsel %vm196, %v182, 0
  %v219 = vsel %vm196, %v183, 0
  %221 = vmatprep.subr.bf16.mxu0 0
  %222 = vmatpush1.bf16.msra.mxu0 0
  %223 = vmatprep.subr.bf16.mxu0 0
  %224 = vmatpush1.bf16.msra.mxu0 0
  %225 = vmatprep.subr.bf16.mxu0 0
  %226 = vmatpush1.bf16.msra.mxu0 0
  %227 = vmatprep.subr.bf16.mxu0 0
  %228 = vmatpush1.bf16.msra.mxu0 0
  %229 = vmatprep.subr.bf16.mxu0 0
  %230 = vmatpush1.bf16.msra.mxu0 0
  %231 = vmatprep.subr.bf16.mxu0 0
  %232 = vmatpush1.bf16.msra.mxu0 0
  %233 = vmatprep.subr.bf16.mxu0 0
  %234 = vmatpush1.bf16.msra.mxu0 %v193
  %235 = vmatprep.subr.bf16.mxu0 0
  %236 = vmatpush1.bf16.msra.mxu0 %v192
  %237 = vmatprep.subr.bf16.mxu0 0
  %238 = vmatpush2.bf16.msra.mxu0 0
  %239 = vmatprep.subr.bf16.mxu0 0
  %240 = vmatpush2.bf16.msra.mxu0 0
  %241 = vmatprep.subr.bf16.mxu0 0
  %242 = vmatpush2.bf16.msra.mxu0 0
  %243 = vmatprep.subr.bf16.mxu0 0
  %244 = vmatpush2.bf16.msra.mxu0 0
  %245 = vmatprep.subr.bf16.mxu0 0
  %246 = vmatpush2.bf16.msra.mxu0 0
  %247 = vmatprep.subr.bf16.mxu0 0
  %248 = vmatpush2.bf16.msra.mxu0 0
  %249 = vmatprep.subr.bf16.mxu0 0
  %250 = vmatpush2.bf16.msra.mxu0 0
  %251 = vmatprep.subr.bf16.mxu0 0
  %252 = vmatpush2.bf16.msra.mxu0 0
  %253 = vmatprep.mubr.bf16.mxu0 0
  %254 = vmatmul.mubr.bf16.gmra.mxu0 %v198
  %v255 = vpop.f32.mrf.mxu0
  %v256 = vadd.f32 0.0, %v255
  %v257 = vpop.f32.mrf.mxu0
  %v258 = vpop.f32.mrf.mxu0
  %v259 = vadd.f32 0.0, %v258
  %v260 = vpop.f32.mrf.mxu0
  %261 = vmatprep.mubr.bf16.mxu0 0
  %262 = vmatmul.mubr.bf16.gmra.mxu0 %v201
  %v263 = vpop.f32.mrf.mxu0
  %v264 = vadd.f32 0.0, %v263
  %v265 = vpop.f32.mrf.mxu0
  %v266 = vpop.f32.mrf.mxu0
  %v267 = vadd.f32 0.0, %v266
  %v268 = vpop.f32.mrf.mxu0
  %269 = vmatprep.mubr.bf16.mxu0 0
  %270 = vmatmul.mubr.bf16.gmra.mxu0 %v204
  %v271 = vpop.f32.mrf.mxu0
  %v272 = vadd.f32 0.0, %v271
  %v273 = vpop.f32.mrf.mxu0
  %v274 = vpop.f32.mrf.mxu0
  %v275 = vadd.f32 0.0, %v274
  %v276 = vpop.f32.mrf.mxu0
  %277 = vmatprep.mubr.bf16.mxu0 0
  %278 = vmatmul.mubr.bf16.gmra.mxu0 %v207
  %v279 = vpop.f32.mrf.mxu0
  %v280 = vadd.f32 0.0, %v279
  %v281 = vpop.f32.mrf.mxu0
  %v282 = vpop.f32.mrf.mxu0
  %v283 = vadd.f32 0.0, %v282
  %v284 = vpop.f32.mrf.mxu0
  %285 = vmatprep.mubr.bf16.mxu0 0
  %286 = vmatmul.mubr.bf16.gmra.mxu0 %v210
  %v287 = vpop.f32.mrf.mxu0
  %v288 = vadd.f32 0.0, %v287
  %v289 = vpop.f32.mrf.mxu0
  %v290 = vpop.f32.mrf.mxu0
  %v291 = vadd.f32 0.0, %v290
  %v292 = vpop.f32.mrf.mxu0
  %293 = vmatprep.mubr.bf16.mxu0 0
  %294 = vmatmul.mubr.bf16.gmra.mxu0 %v213
  %v295 = vpop.f32.mrf.mxu0
  %v296 = vadd.f32 0.0, %v295
  %v297 = vpop.f32.mrf.mxu0
  %v298 = vpop.f32.mrf.mxu0
  %v299 = vadd.f32 0.0, %v298
  %v300 = vpop.f32.mrf.mxu0
  %301 = vmatprep.mubr.bf16.mxu0 0
  %302 = vmatmul.mubr.bf16.gmra.mxu0 %v216
  %v303 = vpop.f32.mrf.mxu0
  %v304 = vadd.f32 0.0, %v303
  %v305 = vpop.f32.mrf.mxu0
  %v306 = vpop.f32.mrf.mxu0
  %v307 = vadd.f32 0.0, %v306
  %v308 = vpop.f32.mrf.mxu0
  %309 = vmatprep.mubr.bf16.mxu0 0
  %310 = vmatmul.mubr.bf16.gmra.mxu0 %v219
  %v311 = vpop.f32.mrf.mxu0
  %v312 = vadd.f32 0.0, %v311
  %v313 = vpop.f32.mrf.mxu0
  %v314 = vpop.f32.mrf.mxu0
  %v315 = vadd.f32 0.0, %v314
  %v316 = vpop.f32.mrf.mxu0
  %317 = vdwg.mxu0
  %v334 = vunpack.c.l.b16 %v104
  %v335 = vunpack.c.l.b16 %v105
  %v336 = vunpack.c.l.b16 %v106
  %v337 = vunpack.c.l.b16 %v107
  %v338 = vunpack.c.l.b16 %v108
  %v339 = vunpack.c.l.b16 %v109
  %v340 = vunpack.c.l.b16 %v110
  %v341 = vunpack.c.l.b16 %v111
  %v342 = vunpack.c.l.b16 %v112
  %v343 = vunpack.c.l.b16 %v113
  %v344 = vunpack.c.l.b16 %v114
  %v345 = vunpack.c.l.b16 %v115
  %v346 = vunpack.c.l.b16 %v116
  %v347 = vunpack.c.l.b16 %v117
  %v348 = vunpack.c.l.b16 %v118
  %v349 = vunpack.c.l.b16 %v119
  %v350 = vpack.c.b16 %v335, %v334
  %v351 = vpack.c.b16 %v337, %v336
  %v352 = vpack.c.b16 %v339, %v338
  %v353 = vpack.c.b16 %v341, %v340
  %v354 = vpack.c.b16 %v343, %v342
  %v355 = vpack.c.b16 %v345, %v344
  %v356 = vpack.c.b16 %v347, %v346
  %v357 = vpack.c.b16 %v349, %v348
  %v362 = vunpack.c.l.b16 %v120
  %v363 = vunpack.c.l.b16 %v121
  %v364 = vunpack.c.l.b16 %v122
  %v365 = vunpack.c.l.b16 %v123
  %v366 = vpack.c.b16 %v363, %v362
  %v367 = vpack.c.b16 %v365, %v364
  %v371 = vsel %vm196, %v350, 0
  %v374 = vsel %vm196, %v351, 0
  %v377 = vsel %vm196, %v352, 0
  %v380 = vsel %vm196, %v353, 0
  %v383 = vsel %vm196, %v354, 0
  %v386 = vsel %vm196, %v355, 0
  %v389 = vsel %vm196, %v356, 0
  %v392 = vsel %vm196, %v357, 0
  %394 = vmatprep.subr.bf16.mxu0 0
  %395 = vmatpush1.bf16.msra.mxu0 0
  %396 = vmatprep.subr.bf16.mxu0 0
  %397 = vmatpush1.bf16.msra.mxu0 0
  %398 = vmatprep.subr.bf16.mxu0 0
  %399 = vmatpush1.bf16.msra.mxu0 0
  %400 = vmatprep.subr.bf16.mxu0 0
  %401 = vmatpush1.bf16.msra.mxu0 0
  %402 = vmatprep.subr.bf16.mxu0 0
  %403 = vmatpush1.bf16.msra.mxu0 0
  %404 = vmatprep.subr.bf16.mxu0 0
  %405 = vmatpush1.bf16.msra.mxu0 0
  %406 = vmatprep.subr.bf16.mxu0 0
  %407 = vmatpush1.bf16.msra.mxu0 %v367
  %408 = vmatprep.subr.bf16.mxu0 0
  %409 = vmatpush1.bf16.msra.mxu0 %v366
  %410 = vmatprep.subr.bf16.mxu0 0
  %411 = vmatpush2.bf16.msra.mxu0 0
  %412 = vmatprep.subr.bf16.mxu0 0
  %413 = vmatpush2.bf16.msra.mxu0 0
  %414 = vmatprep.subr.bf16.mxu0 0
  %415 = vmatpush2.bf16.msra.mxu0 0
  %416 = vmatprep.subr.bf16.mxu0 0
  %417 = vmatpush2.bf16.msra.mxu0 0
  %418 = vmatprep.subr.bf16.mxu0 0
  %419 = vmatpush2.bf16.msra.mxu0 0
  %420 = vmatprep.subr.bf16.mxu0 0
  %421 = vmatpush2.bf16.msra.mxu0 0
  %422 = vmatprep.subr.bf16.mxu0 0
  %423 = vmatpush2.bf16.msra.mxu0 0
  %424 = vmatprep.subr.bf16.mxu0 0
  %425 = vmatpush2.bf16.msra.mxu0 0
  %426 = vmatprep.mubr.bf16.mxu0 0
  %427 = vmatmul.mubr.bf16.gmra.mxu0 %v371
  %v428 = vpop.f32.mrf.mxu0
  %v429 = vadd.f32 %v256, %v428
  %v430 = vpop.f32.mrf.mxu0
  %v431 = vpop.f32.mrf.mxu0
  %v432 = vadd.f32 %v259, %v431
  %v433 = vpop.f32.mrf.mxu0
  %434 = vmatprep.mubr.bf16.mxu0 0
  %435 = vmatmul.mubr.bf16.gmra.mxu0 %v374
  %v436 = vpop.f32.mrf.mxu0
  %v437 = vadd.f32 %v264, %v436
  %v438 = vpop.f32.mrf.mxu0
  %v439 = vpop.f32.mrf.mxu0
  %v440 = vadd.f32 %v267, %v439
  %v441 = vpop.f32.mrf.mxu0
  %442 = vmatprep.mubr.bf16.mxu0 0
  %443 = vmatmul.mubr.bf16.gmra.mxu0 %v377
  %v444 = vpop.f32.mrf.mxu0
  %v445 = vadd.f32 %v272, %v444
  %v446 = vpop.f32.mrf.mxu0
  %v447 = vpop.f32.mrf.mxu0
  %v448 = vadd.f32 %v275, %v447
  %v449 = vpop.f32.mrf.mxu0
  %450 = vmatprep.mubr.bf16.mxu0 0
  %451 = vmatmul.mubr.bf16.gmra.mxu0 %v380
  %v452 = vpop.f32.mrf.mxu0
  %v453 = vadd.f32 %v280, %v452
  %v454 = vpop.f32.mrf.mxu0
  %v455 = vpop.f32.mrf.mxu0
  %v456 = vadd.f32 %v283, %v455
  %v457 = vpop.f32.mrf.mxu0
  %458 = vmatprep.mubr.bf16.mxu0 0
  %459 = vmatmul.mubr.bf16.gmra.mxu0 %v383
  %v460 = vpop.f32.mrf.mxu0
  %v461 = vadd.f32 %v288, %v460
  %v462 = vpop.f32.mrf.mxu0
  %v463 = vpop.f32.mrf.mxu0
  %v464 = vadd.f32 %v291, %v463
  %v465 = vpop.f32.mrf.mxu0
  %466 = vmatprep.mubr.bf16.mxu0 0
  %467 = vmatmul.mubr.bf16.gmra.mxu0 %v386
  %v468 = vpop.f32.mrf.mxu0
  %v469 = vadd.f32 %v296, %v468
  %v470 = vpop.f32.mrf.mxu0
  %v471 = vpop.f32.mrf.mxu0
  %v472 = vadd.f32 %v299, %v471
  %v473 = vpop.f32.mrf.mxu0
  %474 = vmatprep.mubr.bf16.mxu0 0
  %475 = vmatmul.mubr.bf16.gmra.mxu0 %v389
  %v476 = vpop.f32.mrf.mxu0
  %v477 = vadd.f32 %v304, %v476
  %v478 = vpop.f32.mrf.mxu0
  %v479 = vpop.f32.mrf.mxu0
  %v480 = vadd.f32 %v307, %v479
  %v481 = vpop.f32.mrf.mxu0
  %482 = vmatprep.mubr.bf16.mxu0 0
  %483 = vmatmul.mubr.bf16.gmra.mxu0 %v392
  %v484 = vpop.f32.mrf.mxu0
  %v485 = vadd.f32 %v312, %v484
  %v486 = vpop.f32.mrf.mxu0
  %v487 = vpop.f32.mrf.mxu0
  %v488 = vadd.f32 %v315, %v487
  %v489 = vpop.f32.mrf.mxu0
  %490 = vdwg.mxu0
  %v491 = vld [vmem:[%s8] sm:$0x1]
  %v493 = vlaneseq
  %v494 = vshrl.u32 %v493, 7
  %v495 = vsub.s32 0, %v494
  %v496 = vrot.slane %v491, %v495
  %v498 = vadd.f32 %v429, %v496
  %v499 = vadd.f32 %v432, %v496
  %v500 = vadd.f32 %v437, %v496
  %v501 = vadd.f32 %v440, %v496
  %v502 = vadd.f32 %v445, %v496
  %v503 = vadd.f32 %v448, %v496
  %v504 = vadd.f32 %v453, %v496
  %v505 = vadd.f32 %v456, %v496
  %v506 = vadd.f32 %v461, %v496
  %v507 = vadd.f32 %v464, %v496
  %v508 = vadd.f32 %v469, %v496
  %v509 = vadd.f32 %v472, %v496
  %v510 = vadd.f32 %v477, %v496
  %v511 = vadd.f32 %v480, %v496
  %v512 = vadd.f32 %v485, %v496
  %v513 = vadd.f32 %v488, %v496
  %514 = vst [vmem:[#allocation2] sm:$0xff] %v498
  %515 = vst [vmem:[#allocation2 + $0x8] sm:$0xff] %v499
  %516 = vst [vmem:[#allocation2 + $0x10] sm:$0xff] %v500
  %517 = vst [vmem:[#allocation2 + $0x18] sm:$0xff] %v501
  %518 = vst [vmem:[#allocation2 + $0x20] sm:$0xff] %v502
  %519 = vst [vmem:[#allocation2 + $0x28] sm:$0xff] %v503
  %520 = vst [vmem:[#allocation2 + $0x30] sm:$0xff] %v504
  %521 = vst [vmem:[#allocation2 + $0x38] sm:$0xff] %v505
  %522 = vst [vmem:[#allocation2 + $0x40] sm:$0xff] %v506
  %523 = vst [vmem:[#allocation2 + $0x48] sm:$0xff] %v507
  %524 = vst [vmem:[#allocation2 + $0x50] sm:$0xff] %v508
  %525 = vst [vmem:[#allocation2 + $0x58] sm:$0xff] %v509
  %526 = vst [vmem:[#allocation2 + $0x60] sm:$0xff] %v510
  %527 = vst [vmem:[#allocation2 + $0x68] sm:$0xff] %v511
  %528 = vst [vmem:[#allocation2 + $0x70] sm:$0xff] %v512
  %529 = vst [vmem:[#allocation2 + $0x78] sm:$0xff] %v513
  %v530 = vld [vmem:[%s80] sm:$0xf]
  %v531 = vld [vmem:[%s80 + $0x4] sm:$0xf]
  %v532 = vld [vmem:[%s80 + $0x8] sm:$0xf]
  %v533 = vld [vmem:[%s80 + $0xc] sm:$0xf]
  %v534 = vld [vmem:[%s80 + $0x10] sm:$0xf]
  %v535 = vld [vmem:[%s80 + $0x14] sm:$0xf]
  %v536 = vld [vmem:[%s80 + $0x18] sm:$0xf]
  %v537 = vld [vmem:[%s80 + $0x1c] sm:$0xf]
  %v538 = vld [vmem:[%s80 + $0x20] sm:$0xf]
  %v539 = vld [vmem:[%s80 + $0x24] sm:$0xf]
  %v540 = vld [vmem:[%s80 + $0x28] sm:$0xf]
  %v541 = vld [vmem:[%s80 + $0x2c] sm:$0xf]
  %v542 = vld [vmem:[%s80 + $0x30] sm:$0xf]
  %v543 = vld [vmem:[%s80 + $0x34] sm:$0xf]
  %v544 = vld [vmem:[%s80 + $0x38] sm:$0xf]
  %v545 = vld [vmem:[%s80 + $0x3c] sm:$0xf]
  %v546 = vld [vmem:[%s6] sm:$0xf]
  %v547 = vld [vmem:[%s6 + $0x4] sm:$0xf]
  %v548 = vld [vmem:[%s6 + $0x8] sm:$0xf]
  %v549 = vld [vmem:[%s6 + $0xc] sm:$0xf]
  %v550 = vld [vmem:[%s88] sm:$0xf]
  %v551 = vld [vmem:[%s88 + $0x4] sm:$0xf]
  %v552 = vld [vmem:[%s88 + $0x8] sm:$0xf]
  %v553 = vld [vmem:[%s88 + $0xc] sm:$0xf]
  %v554 = vld [vmem:[%s88 + $0x10] sm:$0xf]
  %v555 = vld [vmem:[%s88 + $0x14] sm:$0xf]
  %v556 = vld [vmem:[%s88 + $0x18] sm:$0xf]
  %v557 = vld [vmem:[%s88 + $0x1c] sm:$0xf]
  %v558 = vld [vmem:[%s88 + $0x20] sm:$0xf]
  %v559 = vld [vmem:[%s88 + $0x24] sm:$0xf]
  %v560 = vld [vmem:[%s88 + $0x28] sm:$0xf]
  %v561 = vld [vmem:[%s88 + $0x2c] sm:$0xf]
  %v562 = vld [vmem:[%s88 + $0x30] sm:$0xf]
  %v563 = vld [vmem:[%s88 + $0x34] sm:$0xf]
  %v564 = vld [vmem:[%s88 + $0x38] sm:$0xf]
  %v565 = vld [vmem:[%s88 + $0x3c] sm:$0xf]
  %v566 = vld [vmem:[%s7] sm:$0xf]
  %v567 = vld [vmem:[%s7 + $0x4] sm:$0xf]
  %v568 = vld [vmem:[%s7 + $0x8] sm:$0xf]
  %v569 = vld [vmem:[%s7 + $0xc] sm:$0xf]
  %v586 = vunpack.c.l.b16 %v550
  %v587 = vunpack.c.l.b16 %v551
  %v588 = vunpack.c.l.b16 %v552
  %v589 = vunpack.c.l.b16 %v553
  %v590 = vunpack.c.l.b16 %v554
  %v591 = vunpack.c.l.b16 %v555
  %v592 = vunpack.c.l.b16 %v556
  %v593 = vunpack.c.l.b16 %v557
  %v594 = vunpack.c.l.b16 %v558
  %v595 = vunpack.c.l.b16 %v559
  %v596 = vunpack.c.l.b16 %v560
  %v597 = vunpack.c.l.b16 %v561
  %v598 = vunpack.c.l.b16 %v562
  %v599 = vunpack.c.l.b16 %v563
  %v600 = vunpack.c.l.b16 %v564
  %v601 = vunpack.c.l.b16 %v565
  %v602 = vpack.c.b16 %v587, %v586
  %v603 = vpack.c.b16 %v589, %v588
  %v604 = vpack.c.b16 %v591, %v590
  %v605 = vpack.c.b16 %v593, %v592
  %v606 = vpack.c.b16 %v595, %v594
  %v607 = vpack.c.b16 %v597, %v596
  %v608 = vpack.c.b16 %v599, %v598
  %v609 = vpack.c.b16 %v601, %v600
  %v614 = vunpack.c.l.b16 %v566
  %v615 = vunpack.c.l.b16 %v567
  %v616 = vunpack.c.l.b16 %v568
  %v617 = vunpack.c.l.b16 %v569
  %v618 = vpack.c.b16 %v615, %v614
  %v619 = vpack.c.b16 %v617, %v616
  %v623 = vsel %vm196, %v602, 0
  %v626 = vsel %vm196, %v603, 0
  %v629 = vsel %vm196, %v604, 0
  %v632 = vsel %vm196, %v605, 0
  %v635 = vsel %vm196, %v606, 0
  %v638 = vsel %vm196, %v607, 0
  %v641 = vsel %vm196, %v608, 0
  %v644 = vsel %vm196, %v609, 0
  %646 = vmatprep.subr.bf16.mxu0 0
  %647 = vmatpush1.bf16.msra.mxu0 0
  %648 = vmatprep.subr.bf16.mxu0 0
  %649 = vmatpush1.bf16.msra.mxu0 0
  %650 = vmatprep.subr.bf16.mxu0 0
  %651 = vmatpush1.bf16.msra.mxu0 0
  %652 = vmatprep.subr.bf16.mxu0 0
  %653 = vmatpush1.bf16.msra.mxu0 0
  %654 = vmatprep.subr.bf16.mxu0 0
  %655 = vmatpush1.bf16.msra.mxu0 0
  %656 = vmatprep.subr.bf16.mxu0 0
  %657 = vmatpush1.bf16.msra.mxu0 0
  %658 = vmatprep.subr.bf16.mxu0 0
  %659 = vmatpush1.bf16.msra.mxu0 %v619
  %660 = vmatprep.subr.bf16.mxu0 0
  %661 = vmatpush1.bf16.msra.mxu0 %v618
  %662 = vmatprep.subr.bf16.mxu0 0
  %663 = vmatpush2.bf16.msra.mxu0 0
  %664 = vmatprep.subr.bf16.mxu0 0
  %665 = vmatpush2.bf16.msra.mxu0 0
  %666 = vmatprep.subr.bf16.mxu0 0
  %667 = vmatpush2.bf16.msra.mxu0 0
  %668 = vmatprep.subr.bf16.mxu0 0
  %669 = vmatpush2.bf16.msra.mxu0 0
  %670 = vmatprep.subr.bf16.mxu0 0
  %671 = vmatpush2.bf16.msra.mxu0 0
  %672 = vmatprep.subr.bf16.mxu0 0
  %673 = vmatpush2.bf16.msra.mxu0 0
  %674 = vmatprep.subr.bf16.mxu0 0
  %675 = vmatpush2.bf16.msra.mxu0 0
  %676 = vmatprep.subr.bf16.mxu0 0
  %677 = vmatpush2.bf16.msra.mxu0 0
  %678 = vmatprep.mubr.bf16.mxu0 0
  %679 = vmatmul.mubr.bf16.gmra.mxu0 %v623
  %v680 = vpop.f32.mrf.mxu0
  %v681 = vadd.f32 0.0, %v680
  %v682 = vpop.f32.mrf.mxu0
  %v683 = vpop.f32.mrf.mxu0
  %v684 = vadd.f32 0.0, %v683
  %v685 = vpop.f32.mrf.mxu0
  %686 = vmatprep.mubr.bf16.mxu0 0
  %687 = vmatmul.mubr.bf16.gmra.mxu0 %v626
  %v688 = vpop.f32.mrf.mxu0
  %v689 = vadd.f32 0.0, %v688
  %v690 = vpop.f32.mrf.mxu0
  %v691 = vpop.f32.mrf.mxu0
  %v692 = vadd.f32 0.0, %v691
  %v693 = vpop.f32.mrf.mxu0
  %694 = vmatprep.mubr.bf16.mxu0 0
  %695 = vmatmul.mubr.bf16.gmra.mxu0 %v629
  %v696 = vpop.f32.mrf.mxu0
  %v697 = vadd.f32 0.0, %v696
  %v698 = vpop.f32.mrf.mxu0
  %v699 = vpop.f32.mrf.mxu0
  %v700 = vadd.f32 0.0, %v699
  %v701 = vpop.f32.mrf.mxu0
  %702 = vmatprep.mubr.bf16.mxu0 0
  %703 = vmatmul.mubr.bf16.gmra.mxu0 %v632
  %v704 = vpop.f32.mrf.mxu0
  %v705 = vadd.f32 0.0, %v704
  %v706 = vpop.f32.mrf.mxu0
  %v707 = vpop.f32.mrf.mxu0
  %v708 = vadd.f32 0.0, %v707
  %v709 = vpop.f32.mrf.mxu0
  %710 = vmatprep.mubr.bf16.mxu0 0
  %711 = vmatmul.mubr.bf16.gmra.mxu0 %v635
  %v712 = vpop.f32.mrf.mxu0
  %v713 = vadd.f32 0.0, %v712
  %v714 = vpop.f32.mrf.mxu0
  %v715 = vpop.f32.mrf.mxu0
  %v716 = vadd.f32 0.0, %v715
  %v717 = vpop.f32.mrf.mxu0
  %718 = vmatprep.mubr.bf16.mxu0 0
  %719 = vmatmul.mubr.bf16.gmra.mxu0 %v638
  %v720 = vpop.f32.mrf.mxu0
  %v721 = vadd.f32 0.0, %v720
  %v722 = vpop.f32.mrf.mxu0
  %v723 = vpop.f32.mrf.mxu0
  %v724 = vadd.f32 0.0, %v723
  %v725 = vpop.f32.mrf.mxu0
  %726 = vmatprep.mubr.bf16.mxu0 0
  %727 = vmatmul.mubr.bf16.gmra.mxu0 %v641
  %v728 = vpop.f32.mrf.mxu0
  %v729 = vadd.f32 0.0, %v728
  %v730 = vpop.f32.mrf.mxu0
  %v731 = vpop.f32.mrf.mxu0
  %v732 = vadd.f32 0.0, %v731
  %v733 = vpop.f32.mrf.mxu0
  %734 = vmatprep.mubr.bf16.mxu0 0
  %735 = vmatmul.mubr.bf16.gmra.mxu0 %v644
  %v736 = vpop.f32.mrf.mxu0
  %v737 = vadd.f32 0.0, %v736
  %v738 = vpop.f32.mrf.mxu0
  %v739 = vpop.f32.mrf.mxu0
  %v740 = vadd.f32 0.0, %v739
  %v741 = vpop.f32.mrf.mxu0
  %742 = vdwg.mxu0
  %v759 = vunpack.c.l.b16 %v530
  %v760 = vunpack.c.l.b16 %v531
  %v761 = vunpack.c.l.b16 %v532
  %v762 = vunpack.c.l.b16 %v533
  %v763 = vunpack.c.l.b16 %v534
  %v764 = vunpack.c.l.b16 %v535
  %v765 = vunpack.c.l.b16 %v536
  %v766 = vunpack.c.l.b16 %v537
  %v767 = vunpack.c.l.b16 %v538
  %v768 = vunpack.c.l.b16 %v539
  %v769 = vunpack.c.l.b16 %v540
  %v770 = vunpack.c.l.b16 %v541
  %v771 = vunpack.c.l.b16 %v542
  %v772 = vunpack.c.l.b16 %v543
  %v773 = vunpack.c.l.b16 %v544
  %v774 = vunpack.c.l.b16 %v545
  %v775 = vpack.c.b16 %v760, %v759
  %v776 = vpack.c.b16 %v762, %v761
  %v777 = vpack.c.b16 %v764, %v763
  %v778 = vpack.c.b16 %v766, %v765
  %v779 = vpack.c.b16 %v768, %v767
  %v780 = vpack.c.b16 %v770, %v769
  %v781 = vpack.c.b16 %v772, %v771
  %v782 = vpack.c.b16 %v774, %v773
  %v787 = vunpack.c.l.b16 %v546
  %v788 = vunpack.c.l.b16 %v547
  %v789 = vunpack.c.l.b16 %v548
  %v790 = vunpack.c.l.b16 %v549
  %v791 = vpack.c.b16 %v788, %v787
  %v792 = vpack.c.b16 %v790, %v789
  %v796 = vsel %vm196, %v775, 0
  %v799 = vsel %vm196, %v776, 0
  %v802 = vsel %vm196, %v777, 0
  %v805 = vsel %vm196, %v778, 0
  %v808 = vsel %vm196, %v779, 0
  %v811 = vsel %vm196, %v780, 0
  %v814 = vsel %vm196, %v781, 0
  %v817 = vsel %vm196, %v782, 0
  %819 = vmatprep.subr.bf16.mxu0 0
  %820 = vmatpush1.bf16.msra.mxu0 0
  %821 = vmatprep.subr.bf16.mxu0 0
  %822 = vmatpush1.bf16.msra.mxu0 0
  %823 = vmatprep.subr.bf16.mxu0 0
  %824 = vmatpush1.bf16.msra.mxu0 0
  %825 = vmatprep.subr.bf16.mxu0 0
  %826 = vmatpush1.bf16.msra.mxu0 0
  %827 = vmatprep.subr.bf16.mxu0 0
  %828 = vmatpush1.bf16.msra.mxu0 0
  %829 = vmatprep.subr.bf16.mxu0 0
  %830 = vmatpush1.bf16.msra.mxu0 0
  %831 = vmatprep.subr.bf16.mxu0 0
  %832 = vmatpush1.bf16.msra.mxu0 %v792
  %833 = vmatprep.subr.bf16.mxu0 0
  %834 = vmatpush1.bf16.msra.mxu0 %v791
  %835 = vmatprep.subr.bf16.mxu0 0
  %836 = vmatpush2.bf16.msra.mxu0 0
  %837 = vmatprep.subr.bf16.mxu0 0
  %838 = vmatpush2.bf16.msra.mxu0 0
  %839 = vmatprep.subr.bf16.mxu0 0
  %840 = vmatpush2.bf16.msra.mxu0 0
  %841 = vmatprep.subr.bf16.mxu0 0
  %842 = vmatpush2.bf16.msra.mxu0 0
  %843 = vmatprep.subr.bf16.mxu0 0
  %844 = vmatpush2.bf16.msra.mxu0 0
  %845 = vmatprep.subr.bf16.mxu0 0
  %846 = vmatpush2.bf16.msra.mxu0 0
  %847 = vmatprep.subr.bf16.mxu0 0
  %848 = vmatpush2.bf16.msra.mxu0 0
  %849 = vmatprep.subr.bf16.mxu0 0
  %850 = vmatpush2.bf16.msra.mxu0 0
  %851 = vmatprep.mubr.bf16.mxu0 0
  %852 = vmatmul.mubr.bf16.gmra.mxu0 %v796
  %v853 = vpop.f32.mrf.mxu0
  %v854 = vadd.f32 %v681, %v853
  %v855 = vpop.f32.mrf.mxu0
  %v856 = vpop.f32.mrf.mxu0
  %v857 = vadd.f32 %v684, %v856
  %v858 = vpop.f32.mrf.mxu0
  %859 = vmatprep.mubr.bf16.mxu0 0
  %860 = vmatmul.mubr.bf16.gmra.mxu0 %v799
  %v861 = vpop.f32.mrf.mxu0
  %v862 = vadd.f32 %v689, %v861
  %v863 = vpop.f32.mrf.mxu0
  %v864 = vpop.f32.mrf.mxu0
  %v865 = vadd.f32 %v692, %v864
  %v866 = vpop.f32.mrf.mxu0
  %867 = vmatprep.mubr.bf16.mxu0 0
  %868 = vmatmul.mubr.bf16.gmra.mxu0 %v802
  %v869 = vpop.f32.mrf.mxu0
  %v870 = vadd.f32 %v697, %v869
  %v871 = vpop.f32.mrf.mxu0
  %v872 = vpop.f32.mrf.mxu0
  %v873 = vadd.f32 %v700, %v872
  %v874 = vpop.f32.mrf.mxu0
  %875 = vmatprep.mubr.bf16.mxu0 0
  %876 = vmatmul.mubr.bf16.gmra.mxu0 %v805
  %v877 = vpop.f32.mrf.mxu0
  %v878 = vadd.f32 %v705, %v877
  %v879 = vpop.f32.mrf.mxu0
  %v880 = vpop.f32.mrf.mxu0
  %v881 = vadd.f32 %v708, %v880
  %v882 = vpop.f32.mrf.mxu0
  %883 = vmatprep.mubr.bf16.mxu0 0
  %884 = vmatmul.mubr.bf16.gmra.mxu0 %v808
  %v885 = vpop.f32.mrf.mxu0
  %v886 = vadd.f32 %v713, %v885
  %v887 = vpop.f32.mrf.mxu0
  %v888 = vpop.f32.mrf.mxu0
  %v889 = vadd.f32 %v716, %v888
  %v890 = vpop.f32.mrf.mxu0
  %891 = vmatprep.mubr.bf16.mxu0 0
  %892 = vmatmul.mubr.bf16.gmra.mxu0 %v811
  %v893 = vpop.f32.mrf.mxu0
  %v894 = vadd.f32 %v721, %v893
  %v895 = vpop.f32.mrf.mxu0
  %v896 = vpop.f32.mrf.mxu0
  %v897 = vadd.f32 %v724, %v896
  %v898 = vpop.f32.mrf.mxu0
  %899 = vmatprep.mubr.bf16.mxu0 0
  %900 = vmatmul.mubr.bf16.gmra.mxu0 %v814
  %v901 = vpop.f32.mrf.mxu0
  %v902 = vadd.f32 %v729, %v901
  %v903 = vpop.f32.mrf.mxu0
  %v904 = vpop.f32.mrf.mxu0
  %v905 = vadd.f32 %v732, %v904
  %v906 = vpop.f32.mrf.mxu0
  %907 = vmatprep.mubr.bf16.mxu0 0
  %908 = vmatmul.mubr.bf16.gmra.mxu0 %v817
  %v909 = vpop.f32.mrf.mxu0
  %v910 = vadd.f32 %v737, %v909
  %v911 = vpop.f32.mrf.mxu0
  %v912 = vpop.f32.mrf.mxu0
  %v913 = vadd.f32 %v740, %v912
  %v914 = vpop.f32.mrf.mxu0
  %915 = vdwg.mxu0
  %v916 = vld [vmem:[%s9] sm:$0x1]
  %v918 = vlaneseq
  %v919 = vshrl.u32 %v918, 7
  %v920 = vsub.s32 0, %v919
  %v921 = vrot.slane %v916, %v920
  %v923 = vadd.f32 %v854, %v921
  %v924 = vadd.f32 %v857, %v921
  %v925 = vadd.f32 %v862, %v921
  %v926 = vadd.f32 %v865, %v921
  %v927 = vadd.f32 %v870, %v921
  %v928 = vadd.f32 %v873, %v921
  %v929 = vadd.f32 %v878, %v921
  %v930 = vadd.f32 %v881, %v921
  %v931 = vadd.f32 %v886, %v921
  %v932 = vadd.f32 %v889, %v921
  %v933 = vadd.f32 %v894, %v921
  %v934 = vadd.f32 %v897, %v921
  %v935 = vadd.f32 %v902, %v921
  %v936 = vadd.f32 %v905, %v921
  %v937 = vadd.f32 %v910, %v921
  %v938 = vadd.f32 %v913, %v921
  %939 = vst [vmem:[#allocation3] sm:$0xff] %v923
  %940 = vst [vmem:[#allocation3 + $0x8] sm:$0xff] %v924
  %941 = vst [vmem:[#allocation3 + $0x10] sm:$0xff] %v925
  %942 = vst [vmem:[#allocation3 + $0x18] sm:$0xff] %v926
  %943 = vst [vmem:[#allocation3 + $0x20] sm:$0xff] %v927
  %944 = vst [vmem:[#allocation3 + $0x28] sm:$0xff] %v928
  %945 = vst [vmem:[#allocation3 + $0x30] sm:$0xff] %v929
  %946 = vst [vmem:[#allocation3 + $0x38] sm:$0xff] %v930
  %947 = vst [vmem:[#allocation3 + $0x40] sm:$0xff] %v931
  %948 = vst [vmem:[#allocation3 + $0x48] sm:$0xff] %v932
  %949 = vst [vmem:[#allocation3 + $0x50] sm:$0xff] %v933
  %950 = vst [vmem:[#allocation3 + $0x58] sm:$0xff] %v934
  %951 = vst [vmem:[#allocation3 + $0x60] sm:$0xff] %v935
  %952 = vst [vmem:[#allocation3 + $0x68] sm:$0xff] %v936
  %953 = vst [vmem:[#allocation3 + $0x70] sm:$0xff] %v937
  %954 = vst [vmem:[#allocation3 + $0x78] sm:$0xff] %v938
  %v955 = vld [vmem:[%s10] sm:$0xff]
  %v956 = vld [vmem:[%s10 + $0x8] sm:$0xff]
  %v957 = vld [vmem:[%s10 + $0x10] sm:$0xff]
  %v958 = vld [vmem:[%s10 + $0x18] sm:$0xff]
  %v959 = vld [vmem:[%s10 + $0x20] sm:$0xff]
  %v960 = vld [vmem:[%s10 + $0x28] sm:$0xff]
  %v961 = vld [vmem:[%s10 + $0x30] sm:$0xff]
  %v962 = vld [vmem:[%s10 + $0x38] sm:$0xff]
  %s963 = smul.u32 0, 8
  %v964 = vld [vmem:[#allocation4] sm:$0xff]
  %v965 = vld [vmem:[#allocation4 + $0x8] sm:$0xff]
  %v966 = vld [vmem:[#allocation5] sm:$0xff]
  %v967 = vld [vmem:[#allocation5 + $0x8] sm:$0xff]
  %v968 = vpack.c.bf16 %v965, %v964
  %v977 = vunpack.c.l.b16 %v955
  %v978 = vunpack.c.h.b16 %v955
  %v979 = vunpack.c.l.b16 %v956
  %v980 = vunpack.c.h.b16 %v956
  %v981 = vunpack.c.l.b16 %v957
  %v982 = vunpack.c.h.b16 %v957
  %v983 = vunpack.c.l.b16 %v958
  %v984 = vunpack.c.h.b16 %v958
  %v985 = vunpack.c.l.b16 %v959
  %v986 = vunpack.c.h.b16 %v959
  %v987 = vunpack.c.l.b16 %v960
  %v988 = vunpack.c.h.b16 %v960
  %v989 = vunpack.c.l.b16 %v961
  %v990 = vunpack.c.h.b16 %v961
  %v991 = vunpack.c.l.b16 %v962
  %v992 = vunpack.c.h.b16 %v962
  %v993 = vpack.c.b16 %v979, %v977
  %v994 = vpack.c.b16 %v980, %v978
  %v995 = vpack.c.b16 %v983, %v981
  %v996 = vpack.c.b16 %v984, %v982
  %v997 = vpack.c.b16 %v987, %v985
  %v998 = vpack.c.b16 %v988, %v986
  %v999 = vpack.c.b16 %v991, %v989
  %v1000 = vpack.c.b16 %v992, %v990
  %vm1009 = vcmask 523264
  %v1011 = vsel %vm1009, %v968, 0
  %1013 = vmatprep.subr.bf16.mxu0 0
  %1014 = vmatpush1.bf16.msra.mxu0 0
  %1015 = vmatprep.subr.bf16.mxu0 0
  %1016 = vmatpush1.bf16.msra.mxu0 0
  %1017 = vmatprep.subr.bf16.mxu0 0
  %1018 = vmatpush1.bf16.msra.mxu0 0
  %1019 = vmatprep.subr.bf16.mxu0 0
  %1020 = vmatpush1.bf16.msra.mxu0 0
  %1021 = vmatprep.subr.bf16.mxu0 %v1000
  %1022 = vmatpush1.bf16.msra.mxu0 %v999
  %1023 = vmatprep.subr.bf16.mxu0 %v998
  %1024 = vmatpush1.bf16.msra.mxu0 %v997
  %1025 = vmatprep.subr.bf16.mxu0 %v996
  %1026 = vmatpush1.bf16.msra.mxu0 %v995
  %1027 = vmatprep.subr.bf16.mxu0 %v994
  %1028 = vmatpush1.bf16.msra.mxu0 %v993
  %1029 = vmatprep.subr.bf16.mxu0 0
  %1030 = vmatpush2.bf16.msra.mxu0 0
  %1031 = vmatprep.subr.bf16.mxu0 0
  %1032 = vmatpush2.bf16.msra.mxu0 0
  %1033 = vmatprep.subr.bf16.mxu0 0
  %1034 = vmatpush2.bf16.msra.mxu0 0
  %1035 = vmatprep.subr.bf16.mxu0 0
  %1036 = vmatpush2.bf16.msra.mxu0 0
  %1037 = vmatprep.subr.bf16.mxu0 0
  %1038 = vmatpush2.bf16.msra.mxu0 0
  %1039 = vmatprep.subr.bf16.mxu0 0
  %1040 = vmatpush2.bf16.msra.mxu0 0
  %1041 = vmatprep.subr.bf16.mxu0 0
  %1042 = vmatpush2.bf16.msra.mxu0 0
  %1043 = vmatprep.subr.bf16.mxu0 0
  %1044 = vmatpush2.bf16.msra.mxu0 0
  %1045 = vmatprep.mubr.bf16.mxu0 0
  %1046 = vmatmul.mubr.bf16.gmra.mxu0 %v1011
  %v1047 = vpop.f32.mrf.mxu0
  %v1048 = vadd.f32 0.0, %v1047
  %v1049 = vpop.f32.mrf.mxu0
  %v1050 = vadd.f32 0.0, %v1049
  %v1051 = vpop.f32.mrf.mxu0
  %v1052 = vadd.f32 0.0, %v1051
  %v1053 = vpop.f32.mrf.mxu0
  %v1054 = vadd.f32 0.0, %v1053
  %1055 = vdwg.mxu0
  %v1056 = vld [vmem:[#allocation2] sm:$0xff]
  %v1057 = vld [vmem:[#allocation2 + $0x8] sm:$0xff]
  %v1058 = vadd.f32 %v1048, %v1056
  %v1059 = vadd.f32 %v1052, %v1057
  %s1060 = scalar_lea.vmem [#allocation3], 112
  %v1061 = vld [vmem:[%s1060] sm:$0xff]
  %v1062 = vld [vmem:[%s1060 + $0x8] sm:$0xff]
  %v1063 = vadd.f32 %v1050, %v1061
  %v1064 = vadd.f32 %v1054, %v1062
  %v1065 = vxor.u32 %v1058, 2147483648
  %v1066 = vxor.u32 %v1059, 2147483648
  %v1067 = vmul.f32 %v1065, 1.442695
  %v1068 = vpow.pop %v1067
  %v1069 = vmul.f32 %v1066, 1.442695
  %v1070 = vpow.pop %v1069
  %v1071 = vadd.f32 %v1068, 1.0
  %v1072 = vadd.f32 %v1070, 1.0
  %v1073 = vrcp.pop %v1071
  %v1074 = vmul.f32 1.0, %v1073
  %v1075 = vrcp.pop %v1072
  %v1076 = vmul.f32 1.0, %v1075
  %v1077 = vtanh.pop %v1058
  %v1078 = vtanh.pop %v1059
  %1081 = vrot.lane.b32.xlu0 %v966, 32
  %v1082 = vpop.permute.xlu0 %1081
  %1083 = vrot.lane.b32.xlu0 %v967, 32
  %v1084 = vpop.permute.xlu0 %1083
  %v1087 = vmul.f32 %v1074, %v1082
  %v1088 = vmul.f32 %v1076, %v1084
  %1091 = vrot.lane.b32.xlu0 %v1077, 32
  %v1092 = vpop.permute.xlu0 %1091
  %1093 = vrot.lane.b32.xlu0 %v1078, 32
  %v1094 = vpop.permute.xlu0 %1093
  %v1097 = vmul.f32 %v1074, %v1092
  %v1098 = vmul.f32 %v1076, %v1094
  %1101 = vrot.lane.b32.xlu0 %v1097, 32
  %v1102 = vpop.permute.xlu0 %1101
  %1103 = vrot.lane.b32.xlu0 %v1098, 32
  %v1104 = vpop.permute.xlu0 %1103
  %v1107 = vadd.f32 %v1087, %v1102
  %v1108 = vadd.f32 %v1088, %v1104
  %v1109 = vtanh.pop %v1107
  %v1110 = vtanh.pop %v1108
  %1113 = vrot.lane.b32.xlu0 %v1109, 32
  %v1114 = vpop.permute.xlu0 %1113
  %1115 = vrot.lane.b32.xlu0 %v1110, 32
  %v1116 = vpop.permute.xlu0 %1115
  %v1119 = vmul.f32 %v1074, %v1114
  %v1120 = vmul.f32 %v1076, %v1116
  %v1121 = vxor.u32 %v1063, 2147483648
  %v1122 = vxor.u32 %v1064, 2147483648
  %v1123 = vmul.f32 %v1121, 1.442695
  %v1124 = vpow.pop %v1123
  %v1125 = vmul.f32 %v1122, 1.442695
  %v1126 = vpow.pop %v1125
  %v1127 = vadd.f32 %v1124, 1.0
  %v1128 = vadd.f32 %v1126, 1.0
  %v1129 = vrcp.pop %v1127
  %v1130 = vmul.f32 1.0, %v1129
  %v1131 = vrcp.pop %v1128
  %v1132 = vmul.f32 1.0, %v1131
  %v1133 = vtanh.pop %v1063
  %v1134 = vtanh.pop %v1064
  %v1135 = vmul.f32 %v1130, %v966
  %v1136 = vmul.f32 %v1132, %v967
  %1139 = vrot.lane.b32.xlu0 %v1133, 32
  %v1140 = vpop.permute.xlu0 %1139
  %1141 = vrot.lane.b32.xlu0 %v1134, 32
  %v1142 = vpop.permute.xlu0 %1141
  %v1145 = vmul.f32 %v1130, %v1140
  %v1146 = vmul.f32 %v1132, %v1142
  %1149 = vrot.lane.b32.xlu0 %v1145, 32
  %v1150 = vpop.permute.xlu0 %1149
  %1151 = vrot.lane.b32.xlu0 %v1146, 32
  %v1152 = vpop.permute.xlu0 %1151
  %v1155 = vadd.f32 %v1135, %v1150
  %v1156 = vadd.f32 %v1136, %v1152
  %v1157 = vtanh.pop %v1155
  %v1158 = vtanh.pop %v1156
  %1161 = vrot.lane.b32.xlu0 %v1157, 32
  %v1162 = vpop.permute.xlu0 %1161
  %1163 = vrot.lane.b32.xlu0 %v1158, 32
  %v1164 = vpop.permute.xlu0 %1163
  %v1167 = vmul.f32 %v1130, %v1162
  %v1168 = vmul.f32 %v1132, %v1164
  %1171 = vrot.lane.b32.xlu0 %v1119, 64
  %v1172 = vpop.permute.xlu0 %1171
  %1173 = vrot.lane.b32.xlu0 %v1120, 64
  %v1174 = vpop.permute.xlu0 %1173
  %1177 = vst.msk [vmem:[#allocation4] sm:$0xff] %vm196, %v1172
  %1178 = vst.msk [vmem:[#allocation4 + $0x8] sm:$0xff] %vm196, %v1174
  %1181 = vrot.lane.b32.xlu0 %v1167, 96
  %v1182 = vpop.permute.xlu0 %1181
  %1183 = vrot.lane.b32.xlu0 %v1168, 96
  %v1184 = vpop.permute.xlu0 %1183
  %vm1187 = vcmask 523520
  %1188 = vst.msk [vmem:[#allocation4] sm:$0xff] %vm1187, %v1182
  %1189 = vst.msk [vmem:[#allocation4 + $0x8] sm:$0xff] %vm1187, %v1184
  %1192 = vrot.lane.b32.xlu0 %v1107, 96
  %v1193 = vpop.permute.xlu0 %1192
  %1194 = vrot.lane.b32.xlu0 %v1108, 96
  %v1195 = vpop.permute.xlu0 %1194
  %1198 = vst.msk [vmem:[#allocation5] sm:$0xff] %vm196, %v1193
  %1199 = vst.msk [vmem:[#allocation5 + $0x8] sm:$0xff] %vm196, %v1195
  %1200 = vst.msk [vmem:[#allocation5] sm:$0xff] %vm1187, %v1155
  %1201 = vst.msk [vmem:[#allocation5 + $0x8] sm:$0xff] %vm1187, %v1156
  %p1202 = scmp.eq.s32.totalorder %s963, 0
  %v1203 = vld [vmem:[#allocation6] sm:$0xff]
  %v1204 = vld [vmem:[#allocation6 + $0x8] sm:$0xff]
  %s1205 = scalar_select %p1202, 1, 0
  %v1206 = vstv %s1205
  %vm1207 = vcmp.eq.s32.totalorder %v1206, 1
  %1210 = vrot.lane.b32.xlu0 %v1203, 64
  %v1211 = vpop.permute.xlu0 %1210
  %1212 = vrot.lane.b32.xlu0 %v1204, 64
  %v1213 = vpop.permute.xlu0 %1212
  %v1216 = vsel %vm1207, %v1167, %v1211
  %v1217 = vsel %vm1207, %v1168, %v1213
  %1220 = vrot.lane.b32.xlu0 %v1216, 64
  %v1221 = vpop.permute.xlu0 %1220
  %1222 = vrot.lane.b32.xlu0 %v1217, 64
  %v1223 = vpop.permute.xlu0 %1222
  %1226 = vst.msk [vmem:[#allocation6] sm:$0xff] %vm196, %v1221
  %1227 = vst.msk [vmem:[#allocation6 + $0x8] sm:$0xff] %vm196, %v1223
  %v1228 = vld [vmem:[#allocation4] sm:$0xff]
  %v1229 = vld [vmem:[#allocation4 + $0x8] sm:$0xff]
  %v1230 = vld [vmem:[#allocation5] sm:$0xff]
  %v1231 = vld [vmem:[#allocation5 + $0x8] sm:$0xff]
  %v1232 = vpack.c.bf16 %v1229, %v1228
  %v1234 = vsel %vm1009, %v1232, 0
  %1236 = vmatprep.subr.bf16.mxu0 0
  %1237 = vmatpush1.bf16.msra.mxu0 0
  %1238 = vmatprep.subr.bf16.mxu0 0
  %1239 = vmatpush1.bf16.msra.mxu0 0
  %1240 = vmatprep.subr.bf16.mxu0 0
  %1241 = vmatpush1.bf16.msra.mxu0 0
  %1242 = vmatprep.subr.bf16.mxu0 0
  %1243 = vmatpush1.bf16.msra.mxu0 0
  %1244 = vmatprep.subr.bf16.mxu0 %v1000
  %1245 = vmatpush1.bf16.msra.mxu0 %v999
  %1246 = vmatprep.subr.bf16.mxu0 %v998
  %1247 = vmatpush1.bf16.msra.mxu0 %v997
  %1248 = vmatprep.subr.bf16.mxu0 %v996
  %1249 = vmatpush1.bf16.msra.mxu0 %v995
  %1250 = vmatprep.subr.bf16.mxu0 %v994
  %1251 = vmatpush1.bf16.msra.mxu0 %v993
  %1252 = vmatprep.subr.bf16.mxu0 0
  %1253 = vmatpush2.bf16.msra.mxu0 0
  %1254 = vmatprep.subr.bf16.mxu0 0
  %1255 = vmatpush2.bf16.msra.mxu0 0
  %1256 = vmatprep.subr.bf16.mxu0 0
  %1257 = vmatpush2.bf16.msra.mxu0 0
  %1258 = vmatprep.subr.bf16.mxu0 0
  %1259 = vmatpush2.bf16.msra.mxu0 0
  %1260 = vmatprep.subr.bf16.mxu0 0
  %1261 = vmatpush2.bf16.msra.mxu0 0
  %1262 = vmatprep.subr.bf16.mxu0 0
  %1263 = vmatpush2.bf16.msra.mxu0 0
  %1264 = vmatprep.subr.bf16.mxu0 0
  %1265 = vmatpush2.bf16.msra.mxu0 0
  %1266 = vmatprep.subr.bf16.mxu0 0
  %1267 = vmatpush2.bf16.msra.mxu0 0
  %1268 = vmatprep.mubr.bf16.mxu0 0
  %1269 = vmatmul.mubr.bf16.gmra.mxu0 %v1234
  %v1270 = vpop.f32.mrf.mxu0
  %v1271 = vadd.f32 0.0, %v1270
  %v1272 = vpop.f32.mrf.mxu0
  %v1273 = vadd.f32 0.0, %v1272
  %v1274 = vpop.f32.mrf.mxu0
  %v1275 = vadd.f32 0.0, %v1274
  %v1276 = vpop.f32.mrf.mxu0
  %v1277 = vadd.f32 0.0, %v1276
  %1278 = vdwg.mxu0
  %s1279 = scalar_lea.vmem [#allocation2], 16
  %v1280 = vld [vmem:[%s1279] sm:$0xff]
  %v1281 = vld [vmem:[%s1279 + $0x8] sm:$0xff]
  %v1282 = vadd.f32 %v1271, %v1280
  %v1283 = vadd.f32 %v1275, %v1281
  %s1284 = scalar_lea.vmem [#allocation3], 96
  %v1285 = vld [vmem:[%s1284] sm:$0xff]
  %v1286 = vld [vmem:[%s1284 + $0x8] sm:$0xff]
  %v1287 = vadd.f32 %v1273, %v1285
  %v1288 = vadd.f32 %v1277, %v1286
  %v1289 = vxor.u32 %v1282, 2147483648
  %v1290 = vxor.u32 %v1283, 2147483648
  %v1291 = vmul.f32 %v1289, 1.442695
  %v1292 = vpow.pop %v1291
  %v1293 = vmul.f32 %v1290, 1.442695
  %v1294 = vpow.pop %v1293
  %v1295 = vadd.f32 %v1292, 1.0
  %v1296 = vadd.f32 %v1294, 1.0
  %v1297 = vrcp.pop %v1295
  %v1298 = vmul.f32 1.0, %v1297
  %v1299 = vrcp.pop %v1296
  %v1300 = vmul.f32 1.0, %v1299
  %v1301 = vtanh.pop %v1282
  %v1302 = vtanh.pop %v1283
  %1305 = vrot.lane.b32.xlu0 %v1230, 32
  %v1306 = vpop.permute.xlu0 %1305
  %1307 = vrot.lane.b32.xlu0 %v1231, 32
  %v1308 = vpop.permute.xlu0 %1307
  %v1311 = vmul.f32 %v1298, %v1306
  %v1312 = vmul.f32 %v1300, %v1308
  %1315 = vrot.lane.b32.xlu0 %v1301, 32
  %v1316 = vpop.permute.xlu0 %1315
  %1317 = vrot.lane.b32.xlu0 %v1302, 32
  %v1318 = vpop.permute.xlu0 %1317
  %v1321 = vmul.f32 %v1298, %v1316
  %v1322 = vmul.f32 %v1300, %v1318
  %1325 = vrot.lane.b32.xlu0 %v1321, 32
  %v1326 = vpop.permute.xlu0 %1325
  %1327 = vrot.lane.b32.xlu0 %v1322, 32
  %v1328 = vpop.permute.xlu0 %1327
  %v1331 = vadd.f32 %v1311, %v1326
  %v1332 = vadd.f32 %v1312, %v1328
  %v1333 = vtanh.pop %v1331
  %v1334 = vtanh.pop %v1332
  %1337 = vrot.lane.b32.xlu0 %v1333, 32
  %v1338 = vpop.permute.xlu0 %1337
  %1339 = vrot.lane.b32.xlu0 %v1334, 32
  %v1340 = vpop.permute.xlu0 %1339
  %v1343 = vmul.f32 %v1298, %v1338
  %v1344 = vmul.f32 %v1300, %v1340
  %v1345 = vxor.u32 %v1287, 2147483648
  %v1346 = vxor.u32 %v1288, 2147483648
  %v1347 = vmul.f32 %v1345, 1.442695
  %v1348 = vpow.pop %v1347
  %v1349 = vmul.f32 %v1346, 1.442695
  %v1350 = vpow.pop %v1349
  %v1351 = vadd.f32 %v1348, 1.0
  %v1352 = vadd.f32 %v1350, 1.0
  %v1353 = vrcp.pop %v1351
  %v1354 = vmul.f32 1.0, %v1353
  %v1355 = vrcp.pop %v1352
  %v1356 = vmul.f32 1.0, %v1355
  %v1357 = vtanh.pop %v1287
  %v1358 = vtanh.pop %v1288
  %v1359 = vmul.f32 %v1354, %v1230
  %v1360 = vmul.f32 %v1356, %v1231
  %1363 = vrot.lane.b32.xlu0 %v1357, 32
  %v1364 = vpop.permute.xlu0 %1363
  %1365 = vrot.lane.b32.xlu0 %v1358, 32
  %v1366 = vpop.permute.xlu0 %1365
  %v1369 = vmul.f32 %v1354, %v1364
  %v1370 = vmul.f32 %v1356, %v1366
  %1373 = vrot.lane.b32.xlu0 %v1369, 32
  %v1374 = vpop.permute.xlu0 %1373
  %1375 = vrot.lane.b32.xlu0 %v1370, 32
  %v1376 = vpop.permute.xlu0 %1375
  %v1379 = vadd.f32 %v1359, %v1374
  %v1380 = vadd.f32 %v1360, %v1376
  %v1381 = vtanh.pop %v1379
  %v1382 = vtanh.pop %v1380
  %1385 = vrot.lane.b32.xlu0 %v1381, 32
  %v1386 = vpop.permute.xlu0 %1385
  %1387 = vrot.lane.b32.xlu0 %v1382, 32
  %v1388 = vpop.permute.xlu0 %1387
  %v1391 = vmul.f32 %v1354, %v1386
  %v1392 = vmul.f32 %v1356, %v1388
  %1395 = vrot.lane.b32.xlu0 %v1343, 64
  %v1396 = vpop.permute.xlu0 %1395
  %1397 = vrot.lane.b32.xlu0 %v1344, 64
  %v1398 = vpop.permute.xlu0 %1397
  %1401 = vst.msk [vmem:[#allocation4] sm:$0xff] %vm196, %v1396
  %1402 = vst.msk [vmem:[#allocation4 + $0x8] sm:$0xff] %vm196, %v1398
  %1405 = vrot.lane.b32.xlu0 %v1391, 96
  %v1406 = vpop.permute.xlu0 %1405
  %1407 = vrot.lane.b32.xlu0 %v1392, 96
  %v1408 = vpop.permute.xlu0 %1407
  %1411 = vst.msk [vmem:[#allocation4] sm:$0xff] %vm1187, %v1406
  %1412 = vst.msk [vmem:[#allocation4 + $0x8] sm:$0xff] %vm1187, %v1408
  %1415 = vrot.lane.b32.xlu0 %v1331, 96
  %v1416 = vpop.permute.xlu0 %1415
  %1417 = vrot.lane.b32.xlu0 %v1332, 96
  %v1418 = vpop.permute.xlu0 %1417
  %1421 = vst.msk [vmem:[#allocation5] sm:$0xff] %vm196, %v1416
  %1422 = vst.msk [vmem:[#allocation5 + $0x8] sm:$0xff] %vm196, %v1418
  %1423 = vst.msk [vmem:[#allocation5] sm:$0xff] %vm1187, %v1379
  %1424 = vst.msk [vmem:[#allocation5 + $0x8] sm:$0xff] %vm1187, %v1380
  %s1425 = sadd.s32 %s963, 1
  %p1426 = scmp.eq.s32.totalorder %s1425, 0
  %v1427 = vld [vmem:[#allocation6] sm:$0xff]
  %v1428 = vld [vmem:[#allocation6 + $0x8] sm:$0xff]
  %s1429 = scalar_select %p1426, 1, 0
  %v1430 = vstv %s1429
  %vm1431 = vcmp.eq.s32.totalorder %v1430, 1
  %1434 = vrot.lane.b32.xlu0 %v1427, 64
  %v1435 = vpop.permute.xlu0 %1434
  %1436 = vrot.lane.b32.xlu0 %v1428, 64
  %v1437 = vpop.permute.xlu0 %1436
  %v1440 = vsel %vm1431, %v1391, %v1435
  %v1441 = vsel %vm1431, %v1392, %v1437
  %1444 = vrot.lane.b32.xlu0 %v1440, 64
  %v1445 = vpop.permute.xlu0 %1444
  %1446 = vrot.lane.b32.xlu0 %v1441, 64
  %v1447 = vpop.permute.xlu0 %1446
  %1450 = vst.msk [vmem:[#allocation6] sm:$0xff] %vm196, %v1445
  %1451 = vst.msk [vmem:[#allocation6 + $0x8] sm:$0xff] %vm196, %v1447
  %v1452 = vld [vmem:[#allocation4] sm:$0xff]
  %v1453 = vld [vmem:[#allocation4 + $0x8] sm:$0xff]
  %v1454 = vld [vmem:[#allocation5] sm:$0xff]
  %v1455 = vld [vmem:[#allocation5 + $0x8] sm:$0xff]
  %v1456 = vpack.c.bf16 %v1453, %v1452
  %v1458 = vsel %vm1009, %v1456, 0
  %1460 = vmatprep.subr.bf16.mxu0 0
  %1461 = vmatpush1.bf16.msra.mxu0 0
  %1462 = vmatprep.subr.bf16.mxu0 0
  %1463 = vmatpush1.bf16.msra.mxu0 0
  %1464 = vmatprep.subr.bf16.mxu0 0
  %1465 = vmatpush1.bf16.msra.mxu0 0
  %1466 = vmatprep.subr.bf16.mxu0 0
  %1467 = vmatpush1.bf16.msra.mxu0 0
  %1468 = vmatprep.subr.bf16.mxu0 %v1000
  %1469 = vmatpush1.bf16.msra.mxu0 %v999
  %1470 = vmatprep.subr.bf16.mxu0 %v998
  %1471 = vmatpush1.bf16.msra.mxu0 %v997
  %1472 = vmatprep.subr.bf16.mxu0 %v996
  %1473 = vmatpush1.bf16.msra.mxu0 %v995
  %1474 = vmatprep.subr.bf16.mxu0 %v994
  %1475 = vmatpush1.bf16.msra.mxu0 %v993
  %1476 = vmatprep.subr.bf16.mxu0 0
  %1477 = vmatpush2.bf16.msra.mxu0 0
  %1478 = vmatprep.subr.bf16.mxu0 0
  %1479 = vmatpush2.bf16.msra.mxu0 0
  %1480 = vmatprep.subr.bf16.mxu0 0
  %1481 = vmatpush2.bf16.msra.mxu0 0
  %1482 = vmatprep.subr.bf16.mxu0 0
  %1483 = vmatpush2.bf16.msra.mxu0 0
  %1484 = vmatprep.subr.bf16.mxu0 0
  %1485 = vmatpush2.bf16.msra.mxu0 0
  %1486 = vmatprep.subr.bf16.mxu0 0
  %1487 = vmatpush2.bf16.msra.mxu0 0
  %1488 = vmatprep.subr.bf16.mxu0 0
  %1489 = vmatpush2.bf16.msra.mxu0 0
  %1490 = vmatprep.subr.bf16.mxu0 0
  %1491 = vmatpush2.bf16.msra.mxu0 0
  %1492 = vmatprep.mubr.bf16.mxu0 0
  %1493 = vmatmul.mubr.bf16.gmra.mxu0 %v1458
  %v1494 = vpop.f32.mrf.mxu0
  %v1495 = vadd.f32 0.0, %v1494
  %v1496 = vpop.f32.mrf.mxu0
  %v1497 = vadd.f32 0.0, %v1496
  %v1498 = vpop.f32.mrf.mxu0
  %v1499 = vadd.f32 0.0, %v1498
  %v1500 = vpop.f32.mrf.mxu0
  %v1501 = vadd.f32 0.0, %v1500
  %1502 = vdwg.mxu0
  %s1503 = scalar_lea.vmem [#allocation2], 32
  %v1504 = vld [vmem:[%s1503] sm:$0xff]
  %v1505 = vld [vmem:[%s1503 + $0x8] sm:$0xff]
  %v1506 = vadd.f32 %v1495, %v1504
  %v1507 = vadd.f32 %v1499, %v1505
  %s1508 = scalar_lea.vmem [#allocation3], 80
  %v1509 = vld [vmem:[%s1508] sm:$0xff]
  %v1510 = vld [vmem:[%s1508 + $0x8] sm:$0xff]
  %v1511 = vadd.f32 %v1497, %v1509
  %v1512 = vadd.f32 %v1501, %v1510
  %v1513 = vxor.u32 %v1506, 2147483648
  %v1514 = vxor.u32 %v1507, 2147483648
  %v1515 = vmul.f32 %v1513, 1.442695
  %v1516 = vpow.pop %v1515
  %v1517 = vmul.f32 %v1514, 1.442695
  %v1518 = vpow.pop %v1517
  %v1519 = vadd.f32 %v1516, 1.0
  %v1520 = vadd.f32 %v1518, 1.0
  %v1521 = vrcp.pop %v1519
  %v1522 = vmul.f32 1.0, %v1521
  %v1523 = vrcp.pop %v1520
  %v1524 = vmul.f32 1.0, %v1523
  %v1525 = vtanh.pop %v1506
  %v1526 = vtanh.pop %v1507
  %1529 = vrot.lane.b32.xlu0 %v1454, 32
  %v1530 = vpop.permute.xlu0 %1529
  %1531 = vrot.lane.b32.xlu0 %v1455, 32
  %v1532 = vpop.permute.xlu0 %1531
  %v1535 = vmul.f32 %v1522, %v1530
  %v1536 = vmul.f32 %v1524, %v1532
  %1539 = vrot.lane.b32.xlu0 %v1525, 32
  %v1540 = vpop.permute.xlu0 %1539
  %1541 = vrot.lane.b32.xlu0 %v1526, 32
  %v1542 = vpop.permute.xlu0 %1541
  %v1545 = vmul.f32 %v1522, %v1540
  %v1546 = vmul.f32 %v1524, %v1542
  %1549 = vrot.lane.b32.xlu0 %v1545, 32
  %v1550 = vpop.permute.xlu0 %1549
  %1551 = vrot.lane.b32.xlu0 %v1546, 32
  %v1552 = vpop.permute.xlu0 %1551
  %v1555 = vadd.f32 %v1535, %v1550
  %v1556 = vadd.f32 %v1536, %v1552
  %v1557 = vtanh.pop %v1555
  %v1558 = vtanh.pop %v1556
  %1561 = vrot.lane.b32.xlu0 %v1557, 32
  %v1562 = vpop.permute.xlu0 %1561
  %1563 = vrot.lane.b32.xlu0 %v1558, 32
  %v1564 = vpop.permute.xlu0 %1563
  %v1567 = vmul.f32 %v1522, %v1562
  %v1568 = vmul.f32 %v1524, %v1564
  %v1569 = vxor.u32 %v1511, 2147483648
  %v1570 = vxor.u32 %v1512, 2147483648
  %v1571 = vmul.f32 %v1569, 1.442695
  %v1572 = vpow.pop %v1571
  %v1573 = vmul.f32 %v1570, 1.442695
  %v1574 = vpow.pop %v1573
  %v1575 = vadd.f32 %v1572, 1.0
  %v1576 = vadd.f32 %v1574, 1.0
  %v1577 = vrcp.pop %v1575
  %v1578 = vmul.f32 1.0, %v1577
  %v1579 = vrcp.pop %v1576
  %v1580 = vmul.f32 1.0, %v1579
  %v1581 = vtanh.pop %v1511
  %v1582 = vtanh.pop %v1512
  %v1583 = vmul.f32 %v1578, %v1454
  %v1584 = vmul.f32 %v1580, %v1455
  %1587 = vrot.lane.b32.xlu0 %v1581, 32
  %v1588 = vpop.permute.xlu0 %1587
  %1589 = vrot.lane.b32.xlu0 %v1582, 32
  %v1590 = vpop.permute.xlu0 %1589
  %v1593 = vmul.f32 %v1578, %v1588
  %v1594 = vmul.f32 %v1580, %v1590
  %1597 = vrot.lane.b32.xlu0 %v1593, 32
  %v1598 = vpop.permute.xlu0 %1597
  %1599 = vrot.lane.b32.xlu0 %v1594, 32
  %v1600 = vpop.permute.xlu0 %1599
  %v1603 = vadd.f32 %v1583, %v1598
  %v1604 = vadd.f32 %v1584, %v1600
  %v1605 = vtanh.pop %v1603
  %v1606 = vtanh.pop %v1604
  %1609 = vrot.lane.b32.xlu0 %v1605, 32
  %v1610 = vpop.permute.xlu0 %1609
  %1611 = vrot.lane.b32.xlu0 %v1606, 32
  %v1612 = vpop.permute.xlu0 %1611
  %v1615 = vmul.f32 %v1578, %v1610
  %v1616 = vmul.f32 %v1580, %v1612
  %1619 = vrot.lane.b32.xlu0 %v1567, 64
  %v1620 = vpop.permute.xlu0 %1619
  %1621 = vrot.lane.b32.xlu0 %v1568, 64
  %v1622 = vpop.permute.xlu0 %1621
  %1625 = vst.msk [vmem:[#allocation4] sm:$0xff] %vm196, %v1620
  %1626 = vst.msk [vmem:[#allocation4 + $0x8] sm:$0xff] %vm196, %v1622
  %1629 = vrot.lane.b32.xlu0 %v1615, 96
  %v1630 = vpop.permute.xlu0 %1629
  %1631 = vrot.lane.b32.xlu0 %v1616, 96
  %v1632 = vpop.permute.xlu0 %1631
  %1635 = vst.msk [vmem:[#allocation4] sm:$0xff] %vm1187, %v1630
  %1636 = vst.msk [vmem:[#allocation4 + $0x8] sm:$0xff] %vm1187, %v1632
  %1639 = vrot.lane.b32.xlu0 %v1555, 96
  %v1640 = vpop.permute.xlu0 %1639
  %1641 = vrot.lane.b32.xlu0 %v1556, 96
  %v1642 = vpop.permute.xlu0 %1641
  %1645 = vst.msk [vmem:[#allocation5] sm:$0xff] %vm196, %v1640
  %1646 = vst.msk [vmem:[#allocation5 + $0x8] sm:$0xff] %vm196, %v1642
  %1647 = vst.msk [vmem:[#allocation5] sm:$0xff] %vm1187, %v1603
  %1648 = vst.msk [vmem:[#allocation5 + $0x8] sm:$0xff] %vm1187, %v1604
  %s1649 = sadd.s32 %s963, 2
  %p1650 = scmp.eq.s32.totalorder %s1649, 0
  %v1651 = vld [vmem:[#allocation6] sm:$0xff]
  %v1652 = vld [vmem:[#allocation6 + $0x8] sm:$0xff]
  %s1653 = scalar_select %p1650, 1, 0
  %v1654 = vstv %s1653
  %vm1655 = vcmp.eq.s32.totalorder %v1654, 1
  %1658 = vrot.lane.b32.xlu0 %v1651, 64
  %v1659 = vpop.permute.xlu0 %1658
  %1660 = vrot.lane.b32.xlu0 %v1652, 64
  %v1661 = vpop.permute.xlu0 %1660
  %v1664 = vsel %vm1655, %v1615, %v1659
  %v1665 = vsel %vm1655, %v1616, %v1661
  %1668 = vrot.lane.b32.xlu0 %v1664, 64
  %v1669 = vpop.permute.xlu0 %1668
  %1670 = vrot.lane.b32.xlu0 %v1665, 64
  %v1671 = vpop.permute.xlu0 %1670
  %1674 = vst.msk [vmem:[#allocation6] sm:$0xff] %vm196, %v1669
  %1675 = vst.msk [vmem:[#allocation6 + $0x8] sm:$0xff] %vm196, %v1671
  %v1676 = vld [vmem:[#allocation4] sm:$0xff]
  %v1677 = vld [vmem:[#allocation4 + $0x8] sm:$0xff]
  %v1678 = vld [vmem:[#allocation5] sm:$0xff]
  %v1679 = vld [vmem:[#allocation5 + $0x8] sm:$0xff]
  %v1680 = vpack.c.bf16 %v1677, %v1676
  %v1682 = vsel %vm1009, %v1680, 0
  %1684 = vmatprep.subr.bf16.mxu0 0
  %1685 = vmatpush1.bf16.msra.mxu0 0
  %1686 = vmatprep.subr.bf16.mxu0 0
  %1687 = vmatpush1.bf16.msra.mxu0 0
  %1688 = vmatprep.subr.bf16.mxu0 0
  %1689 = vmatpush1.bf16.msra.mxu0 0
  %1690 = vmatprep.subr.bf16.mxu0 0
  %1691 = vmatpush1.bf16.msra.mxu0 0
  %1692 = vmatprep.subr.bf16.mxu0 %v1000
  %1693 = vmatpush1.bf16.msra.mxu0 %v999
  %1694 = vmatprep.subr.bf16.mxu0 %v998
  %1695 = vmatpush1.bf16.msra.mxu0 %v997
  %1696 = vmatprep.subr.bf16.mxu0 %v996
  %1697 = vmatpush1.bf16.msra.mxu0 %v995
  %1698 = vmatprep.subr.bf16.mxu0 %v994
  %1699 = vmatpush1.bf16.msra.mxu0 %v993
  %1700 = vmatprep.subr.bf16.mxu0 0
  %1701 = vmatpush2.bf16.msra.mxu0 0
  %1702 = vmatprep.subr.bf16.mxu0 0
  %1703 = vmatpush2.bf16.msra.mxu0 0
  %1704 = vmatprep.subr.bf16.mxu0 0
  %1705 = vmatpush2.bf16.msra.mxu0 0
  %1706 = vmatprep.subr.bf16.mxu0 0
  %1707 = vmatpush2.bf16.msra.mxu0 0
  %1708 = vmatprep.subr.bf16.mxu0 0
  %1709 = vmatpush2.bf16.msra.mxu0 0
  %1710 = vmatprep.subr.bf16.mxu0 0
  %1711 = vmatpush2.bf16.msra.mxu0 0
  %1712 = vmatprep.subr.bf16.mxu0 0
  %1713 = vmatpush2.bf16.msra.mxu0 0
  %1714 = vmatprep.subr.bf16.mxu0 0
  %1715 = vmatpush2.bf16.msra.mxu0 0
  %1716 = vmatprep.mubr.bf16.mxu0 0
  %1717 = vmatmul.mubr.bf16.gmra.mxu0 %v1682
  %v1718 = vpop.f32.mrf.mxu0
  %v1719 = vadd.f32 0.0, %v1718
  %v1720 = vpop.f32.mrf.mxu0
  %v1721 = vadd.f32 0.0, %v1720
  %v1722 = vpop.f32.mrf.mxu0
  %v1723 = vadd.f32 0.0, %v1722
  %v1724 = vpop.f32.mrf.mxu0
  %v1725 = vadd.f32 0.0, %v1724
  %1726 = vdwg.mxu0
  %s1727 = scalar_lea.vmem [#allocation2], 48
  %v1728 = vld [vmem:[%s1727] sm:$0xff]
  %v1729 = vld [vmem:[%s1727 + $0x8] sm:$0xff]
  %v1730 = vadd.f32 %v1719, %v1728
  %v1731 = vadd.f32 %v1723, %v1729
  %s1732 = scalar_lea.vmem [#allocation3], 64
  %v1733 = vld [vmem:[%s1732] sm:$0xff]
  %v1734 = vld [vmem:[%s1732 + $0x8] sm:$0xff]
  %v1735 = vadd.f32 %v1721, %v1733
  %v1736 = vadd.f32 %v1725, %v1734
  %v1737 = vxor.u32 %v1730, 2147483648
  %v1738 = vxor.u32 %v1731, 2147483648
  %v1739 = vmul.f32 %v1737, 1.442695
  %v1740 = vpow.pop %v1739
  %v1741 = vmul.f32 %v1738, 1.442695
  %v1742 = vpow.pop %v1741
  %v1743 = vadd.f32 %v1740, 1.0
  %v1744 = vadd.f32 %v1742, 1.0
  %v1745 = vrcp.pop %v1743
  %v1746 = vmul.f32 1.0, %v1745
  %v1747 = vrcp.pop %v1744
  %v1748 = vmul.f32 1.0, %v1747
  %v1749 = vtanh.pop %v1730
  %v1750 = vtanh.pop %v1731
  %1753 = vrot.lane.b32.xlu0 %v1678, 32
  %v1754 = vpop.permute.xlu0 %1753
  %1755 = vrot.lane.b32.xlu0 %v1679, 32
  %v1756 = vpop.permute.xlu0 %1755
  %v1759 = vmul.f32 %v1746, %v1754
  %v1760 = vmul.f32 %v1748, %v1756
  %1763 = vrot.lane.b32.xlu0 %v1749, 32
  %v1764 = vpop.permute.xlu0 %1763
  %1765 = vrot.lane.b32.xlu0 %v1750, 32
  %v1766 = vpop.permute.xlu0 %1765
  %v1769 = vmul.f32 %v1746, %v1764
  %v1770 = vmul.f32 %v1748, %v1766
  %1773 = vrot.lane.b32.xlu0 %v1769, 32
  %v1774 = vpop.permute.xlu0 %1773
  %1775 = vrot.lane.b32.xlu0 %v1770, 32
  %v1776 = vpop.permute.xlu0 %1775
  %v1779 = vadd.f32 %v1759, %v1774
  %v1780 = vadd.f32 %v1760, %v1776
  %v1781 = vtanh.pop %v1779
  %v1782 = vtanh.pop %v1780
  %1785 = vrot.lane.b32.xlu0 %v1781, 32
  %v1786 = vpop.permute.xlu0 %1785
  %1787 = vrot.lane.b32.xlu0 %v1782, 32
  %v1788 = vpop.permute.xlu0 %1787
  %v1791 = vmul.f32 %v1746, %v1786
  %v1792 = vmul.f32 %v1748, %v1788
  %v1793 = vxor.u32 %v1735, 2147483648
  %v1794 = vxor.u32 %v1736, 2147483648
  %v1795 = vmul.f32 %v1793, 1.442695
  %v1796 = vpow.pop %v1795
  %v1797 = vmul.f32 %v1794, 1.442695
  %v1798 = vpow.pop %v1797
  %v1799 = vadd.f32 %v1796, 1.0
  %v1800 = vadd.f32 %v1798, 1.0
  %v1801 = vrcp.pop %v1799
  %v1802 = vmul.f32 1.0, %v1801
  %v1803 = vrcp.pop %v1800
  %v1804 = vmul.f32 1.0, %v1803
  %v1805 = vtanh.pop %v1735
  %v1806 = vtanh.pop %v1736
  %v1807 = vmul.f32 %v1802, %v1678
  %v1808 = vmul.f32 %v1804, %v1679
  %1811 = vrot.lane.b32.xlu0 %v1805, 32
  %v1812 = vpop.permute.xlu0 %1811
  %1813 = vrot.lane.b32.xlu0 %v1806, 32
  %v1814 = vpop.permute.xlu0 %1813
  %v1817 = vmul.f32 %v1802, %v1812
  %v1818 = vmul.f32 %v1804, %v1814
  %1821 = vrot.lane.b32.xlu0 %v1817, 32
  %v1822 = vpop.permute.xlu0 %1821
  %1823 = vrot.lane.b32.xlu0 %v1818, 32
  %v1824 = vpop.permute.xlu0 %1823
  %v1827 = vadd.f32 %v1807, %v1822
  %v1828 = vadd.f32 %v1808, %v1824
  %v1829 = vtanh.pop %v1827
  %v1830 = vtanh.pop %v1828
  %1833 = vrot.lane.b32.xlu0 %v1829, 32
  %v1834 = vpop.permute.xlu0 %1833
  %1835 = vrot.lane.b32.xlu0 %v1830, 32
  %v1836 = vpop.permute.xlu0 %1835
  %v1839 = vmul.f32 %v1802, %v1834
  %v1840 = vmul.f32 %v1804, %v1836
  %1843 = vrot.lane.b32.xlu0 %v1791, 64
  %v1844 = vpop.permute.xlu0 %1843
  %1845 = vrot.lane.b32.xlu0 %v1792, 64
  %v1846 = vpop.permute.xlu0 %1845
  %1849 = vst.msk [vmem:[#allocation4] sm:$0xff] %vm196, %v1844
  %1850 = vst.msk [vmem:[#allocation4 + $0x8] sm:$0xff] %vm196, %v1846
  %1853 = vrot.lane.b32.xlu0 %v1839, 96
  %v1854 = vpop.permute.xlu0 %1853
  %1855 = vrot.lane.b32.xlu0 %v1840, 96
  %v1856 = vpop.permute.xlu0 %1855
  %1859 = vst.msk [vmem:[#allocation4] sm:$0xff] %vm1187, %v1854
  %1860 = vst.msk [vmem:[#allocation4 + $0x8] sm:$0xff] %vm1187, %v1856
  %1863 = vrot.lane.b32.xlu0 %v1779, 96
  %v1864 = vpop.permute.xlu0 %1863
  %1865 = vrot.lane.b32.xlu0 %v1780, 96
  %v1866 = vpop.permute.xlu0 %1865
  %1869 = vst.msk [vmem:[#allocation5] sm:$0xff] %vm196, %v1864
  %1870 = vst.msk [vmem:[#allocation5 + $0x8] sm:$0xff] %vm196, %v1866
  %1871 = vst.msk [vmem:[#allocation5] sm:$0xff] %vm1187, %v1827
  %1872 = vst.msk [vmem:[#allocation5 + $0x8] sm:$0xff] %vm1187, %v1828
  %s1873 = sadd.s32 %s963, 3
  %p1874 = scmp.eq.s32.totalorder %s1873, 0
  %v1875 = vld [vmem:[#allocation6] sm:$0xff]
  %v1876 = vld [vmem:[#allocation6 + $0x8] sm:$0xff]
  %s1877 = scalar_select %p1874, 1, 0
  %v1878 = vstv %s1877
  %vm1879 = vcmp.eq.s32.totalorder %v1878, 1
  %1882 = vrot.lane.b32.xlu0 %v1875, 64
  %v1883 = vpop.permute.xlu0 %1882
  %1884 = vrot.lane.b32.xlu0 %v1876, 64
  %v1885 = vpop.permute.xlu0 %1884
  %v1888 = vsel %vm1879, %v1839, %v1883
  %v1889 = vsel %vm1879, %v1840, %v1885
  %1892 = vrot.lane.b32.xlu0 %v1888, 64
  %v1893 = vpop.permute.xlu0 %1892
  %1894 = vrot.lane.b32.xlu0 %v1889, 64
  %v1895 = vpop.permute.xlu0 %1894
  %1898 = vst.msk [vmem:[#allocation6] sm:$0xff] %vm196, %v1893
  %1899 = vst.msk [vmem:[#allocation6 + $0x8] sm:$0xff] %vm196, %v1895
  %v1900 = vld [vmem:[#allocation4] sm:$0xff]
  %v1901 = vld [vmem:[#allocation4 + $0x8] sm:$0xff]
  %v1902 = vld [vmem:[#allocation5] sm:$0xff]
  %v1903 = vld [vmem:[#allocation5 + $0x8] sm:$0xff]
  %v1904 = vpack.c.bf16 %v1901, %v1900
  %v1906 = vsel %vm1009, %v1904, 0
  %1908 = vmatprep.subr.bf16.mxu0 0
  %1909 = vmatpush1.bf16.msra.mxu0 0
  %1910 = vmatprep.subr.bf16.mxu0 0
  %1911 = vmatpush1.bf16.msra.mxu0 0
  %1912 = vmatprep.subr.bf16.mxu0 0
  %1913 = vmatpush1.bf16.msra.mxu0 0
  %1914 = vmatprep.subr.bf16.mxu0 0
  %1915 = vmatpush1.bf16.msra.mxu0 0
  %1916 = vmatprep.subr.bf16.mxu0 %v1000
  %1917 = vmatpush1.bf16.msra.mxu0 %v999
  %1918 = vmatprep.subr.bf16.mxu0 %v998
  %1919 = vmatpush1.bf16.msra.mxu0 %v997
  %1920 = vmatprep.subr.bf16.mxu0 %v996
  %1921 = vmatpush1.bf16.msra.mxu0 %v995
  %1922 = vmatprep.subr.bf16.mxu0 %v994
  %1923 = vmatpush1.bf16.msra.mxu0 %v993
  %1924 = vmatprep.subr.bf16.mxu0 0
  %1925 = vmatpush2.bf16.msra.mxu0 0
  %1926 = vmatprep.subr.bf16.mxu0 0
  %1927 = vmatpush2.bf16.msra.mxu0 0
  %1928 = vmatprep.subr.bf16.mxu0 0
  %1929 = vmatpush2.bf16.msra.mxu0 0
  %1930 = vmatprep.subr.bf16.mxu0 0
  %1931 = vmatpush2.bf16.msra.mxu0 0
  %1932 = vmatprep.subr.bf16.mxu0 0
  %1933 = vmatpush2.bf16.msra.mxu0 0
  %1934 = vmatprep.subr.bf16.mxu0 0
  %1935 = vmatpush2.bf16.msra.mxu0 0
  %1936 = vmatprep.subr.bf16.mxu0 0
  %1937 = vmatpush2.bf16.msra.mxu0 0
  %1938 = vmatprep.subr.bf16.mxu0 0
  %1939 = vmatpush2.bf16.msra.mxu0 0
  %1940 = vmatprep.mubr.bf16.mxu0 0
  %1941 = vmatmul.mubr.bf16.gmra.mxu0 %v1906
  %v1942 = vpop.f32.mrf.mxu0
  %v1943 = vadd.f32 0.0, %v1942
  %v1944 = vpop.f32.mrf.mxu0
  %v1945 = vadd.f32 0.0, %v1944
  %v1946 = vpop.f32.mrf.mxu0
  %v1947 = vadd.f32 0.0, %v1946
  %v1948 = vpop.f32.mrf.mxu0
  %v1949 = vadd.f32 0.0, %v1948
  %1950 = vdwg.mxu0
  %s1951 = scalar_lea.vmem [#allocation2], 64
  %v1952 = vld [vmem:[%s1951] sm:$0xff]
  %v1953 = vld [vmem:[%s1951 + $0x8] sm:$0xff]
  %v1954 = vadd.f32 %v1943, %v1952
  %v1955 = vadd.f32 %v1947, %v1953
  %s1956 = scalar_lea.vmem [#allocation3], 48
  %v1957 = vld [vmem:[%s1956] sm:$0xff]
  %v1958 = vld [vmem:[%s1956 + $0x8] sm:$0xff]
  %v1959 = vadd.f32 %v1945, %v1957
  %v1960 = vadd.f32 %v1949, %v1958
  %v1961 = vxor.u32 %v1954, 2147483648
  %v1962 = vxor.u32 %v1955, 2147483648
  %v1963 = vmul.f32 %v1961, 1.442695
  %v1964 = vpow.pop %v1963
  %v1965 = vmul.f32 %v1962, 1.442695
  %v1966 = vpow.pop %v1965
  %v1967 = vadd.f32 %v1964, 1.0
  %v1968 = vadd.f32 %v1966, 1.0
  %v1969 = vrcp.pop %v1967
  %v1970 = vmul.f32 1.0, %v1969
  %v1971 = vrcp.pop %v1968
  %v1972 = vmul.f32 1.0, %v1971
  %v1973 = vtanh.pop %v1954
  %v1974 = vtanh.pop %v1955
  %1977 = vrot.lane.b32.xlu0 %v1902, 32
  %v1978 = vpop.permute.xlu0 %1977
  %1979 = vrot.lane.b32.xlu0 %v1903, 32
  %v1980 = vpop.permute.xlu0 %1979
  %v1983 = vmul.f32 %v1970, %v1978
  %v1984 = vmul.f32 %v1972, %v1980
  %1987 = vrot.lane.b32.xlu0 %v1973, 32
  %v1988 = vpop.permute.xlu0 %1987
  %1989 = vrot.lane.b32.xlu0 %v1974, 32
  %v1990 = vpop.permute.xlu0 %1989
  %v1993 = vmul.f32 %v1970, %v1988
  %v1994 = vmul.f32 %v1972, %v1990
  %1997 = vrot.lane.b32.xlu0 %v1993, 32
  %v1998 = vpop.permute.xlu0 %1997
  %1999 = vrot.lane.b32.xlu0 %v1994, 32
  %v2000 = vpop.permute.xlu0 %1999
  %v2003 = vadd.f32 %v1983, %v1998
  %v2004 = vadd.f32 %v1984, %v2000
  %v2005 = vtanh.pop %v2003
  %v2006 = vtanh.pop %v2004
  %2009 = vrot.lane.b32.xlu0 %v2005, 32
  %v2010 = vpop.permute.xlu0 %2009
  %2011 = vrot.lane.b32.xlu0 %v2006, 32
  %v2012 = vpop.permute.xlu0 %2011
  %v2015 = vmul.f32 %v1970, %v2010
  %v2016 = vmul.f32 %v1972, %v2012
  %v2017 = vxor.u32 %v1959, 2147483648
  %v2018 = vxor.u32 %v1960, 2147483648
  %v2019 = vmul.f32 %v2017, 1.442695
  %v2020 = vpow.pop %v2019
  %v2021 = vmul.f32 %v2018, 1.442695
  %v2022 = vpow.pop %v2021
  %v2023 = vadd.f32 %v2020, 1.0
  %v2024 = vadd.f32 %v2022, 1.0
  %v2025 = vrcp.pop %v2023
  %v2026 = vmul.f32 1.0, %v2025
  %v2027 = vrcp.pop %v2024
  %v2028 = vmul.f32 1.0, %v2027
  %v2029 = vtanh.pop %v1959
  %v2030 = vtanh.pop %v1960
  %v2031 = vmul.f32 %v2026, %v1902
  %v2032 = vmul.f32 %v2028, %v1903
  %2035 = vrot.lane.b32.xlu0 %v2029, 32
  %v2036 = vpop.permute.xlu0 %2035
  %2037 = vrot.lane.b32.xlu0 %v2030, 32
  %v2038 = vpop.permute.xlu0 %2037
  %v2041 = vmul.f32 %v2026, %v2036
  %v2042 = vmul.f32 %v2028, %v2038
  %2045 = vrot.lane.b32.xlu0 %v2041, 32
  %v2046 = vpop.permute.xlu0 %2045
  %2047 = vrot.lane.b32.xlu0 %v2042, 32
  %v2048 = vpop.permute.xlu0 %2047
  %v2051 = vadd.f32 %v2031, %v2046
  %v2052 = vadd.f32 %v2032, %v2048
  %v2053 = vtanh.pop %v2051
  %v2054 = vtanh.pop %v2052
  %2057 = vrot.lane.b32.xlu0 %v2053, 32
  %v2058 = vpop.permute.xlu0 %2057
  %2059 = vrot.lane.b32.xlu0 %v2054, 32
  %v2060 = vpop.permute.xlu0 %2059
  %v2063 = vmul.f32 %v2026, %v2058
  %v2064 = vmul.f32 %v2028, %v2060
  %2067 = vrot.lane.b32.xlu0 %v2015, 64
  %v2068 = vpop.permute.xlu0 %2067
  %2069 = vrot.lane.b32.xlu0 %v2016, 64
  %v2070 = vpop.permute.xlu0 %2069
  %2073 = vst.msk [vmem:[#allocation4] sm:$0xff] %vm196, %v2068
  %2074 = vst.msk [vmem:[#allocation4 + $0x8] sm:$0xff] %vm196, %v2070
  %2077 = vrot.lane.b32.xlu0 %v2063, 96
  %v2078 = vpop.permute.xlu0 %2077
  %2079 = vrot.lane.b32.xlu0 %v2064, 96
  %v2080 = vpop.permute.xlu0 %2079
  %2083 = vst.msk [vmem:[#allocation4] sm:$0xff] %vm1187, %v2078
  %2084 = vst.msk [vmem:[#allocation4 + $0x8] sm:$0xff] %vm1187, %v2080
  %2087 = vrot.lane.b32.xlu0 %v2003, 96
  %v2088 = vpop.permute.xlu0 %2087
  %2089 = vrot.lane.b32.xlu0 %v2004, 96
  %v2090 = vpop.permute.xlu0 %2089
  %2093 = vst.msk [vmem:[#allocation5] sm:$0xff] %vm196, %v2088
  %2094 = vst.msk [vmem:[#allocation5 + $0x8] sm:$0xff] %vm196, %v2090
  %2095 = vst.msk [vmem:[#allocation5] sm:$0xff] %vm1187, %v2051
  %2096 = vst.msk [vmem:[#allocation5 + $0x8] sm:$0xff] %vm1187, %v2052
  %s2097 = sadd.s32 %s963, 4
  %p2098 = scmp.eq.s32.totalorder %s2097, 0
  %v2099 = vld [vmem:[#allocation6] sm:$0xff]
  %v2100 = vld [vmem:[#allocation6 + $0x8] sm:$0xff]
  %s2101 = scalar_select %p2098, 1, 0
  %v2102 = vstv %s2101
  %vm2103 = vcmp.eq.s32.totalorder %v2102, 1
  %2106 = vrot.lane.b32.xlu0 %v2099, 64
  %v2107 = vpop.permute.xlu0 %2106
  %2108 = vrot.lane.b32.xlu0 %v2100, 64
  %v2109 = vpop.permute.xlu0 %2108
  %v2112 = vsel %vm2103, %v2063, %v2107
  %v2113 = vsel %vm2103, %v2064, %v2109
  %2116 = vrot.lane.b32.xlu0 %v2112, 64
  %v2117 = vpop.permute.xlu0 %2116
  %2118 = vrot.lane.b32.xlu0 %v2113, 64
  %v2119 = vpop.permute.xlu0 %2118
  %2122 = vst.msk [vmem:[#allocation6] sm:$0xff] %vm196, %v2117
  %2123 = vst.msk [vmem:[#allocation6 + $0x8] sm:$0xff] %vm196, %v2119
  %v2124 = vld [vmem:[#allocation4] sm:$0xff]
  %v2125 = vld [vmem:[#allocation4 + $0x8] sm:$0xff]
  %v2126 = vld [vmem:[#allocation5] sm:$0xff]
  %v2127 = vld [vmem:[#allocation5 + $0x8] sm:$0xff]
  %v2128 = vpack.c.bf16 %v2125, %v2124
  %v2130 = vsel %vm1009, %v2128, 0
  %2132 = vmatprep.subr.bf16.mxu0 0
  %2133 = vmatpush1.bf16.msra.mxu0 0
  %2134 = vmatprep.subr.bf16.mxu0 0
  %2135 = vmatpush1.bf16.msra.mxu0 0
  %2136 = vmatprep.subr.bf16.mxu0 0
  %2137 = vmatpush1.bf16.msra.mxu0 0
  %2138 = vmatprep.subr.bf16.mxu0 0
  %2139 = vmatpush1.bf16.msra.mxu0 0
  %2140 = vmatprep.subr.bf16.mxu0 %v1000
  %2141 = vmatpush1.bf16.msra.mxu0 %v999
  %2142 = vmatprep.subr.bf16.mxu0 %v998
  %2143 = vmatpush1.bf16.msra.mxu0 %v997
  %2144 = vmatprep.subr.bf16.mxu0 %v996
  %2145 = vmatpush1.bf16.msra.mxu0 %v995
  %2146 = vmatprep.subr.bf16.mxu0 %v994
  %2147 = vmatpush1.bf16.msra.mxu0 %v993
  %2148 = vmatprep.subr.bf16.mxu0 0
  %2149 = vmatpush2.bf16.msra.mxu0 0
  %2150 = vmatprep.subr.bf16.mxu0 0
  %2151 = vmatpush2.bf16.msra.mxu0 0
  %2152 = vmatprep.subr.bf16.mxu0 0
  %2153 = vmatpush2.bf16.msra.mxu0 0
  %2154 = vmatprep.subr.bf16.mxu0 0
  %2155 = vmatpush2.bf16.msra.mxu0 0
  %2156 = vmatprep.subr.bf16.mxu0 0
  %2157 = vmatpush2.bf16.msra.mxu0 0
  %2158 = vmatprep.subr.bf16.mxu0 0
  %2159 = vmatpush2.bf16.msra.mxu0 0
  %2160 = vmatprep.subr.bf16.mxu0 0
  %2161 = vmatpush2.bf16.msra.mxu0 0
  %2162 = vmatprep.subr.bf16.mxu0 0
  %2163 = vmatpush2.bf16.msra.mxu0 0
  %2164 = vmatprep.mubr.bf16.mxu0 0
  %2165 = vmatmul.mubr.bf16.gmra.mxu0 %v2130
  %v2166 = vpop.f32.mrf.mxu0
  %v2167 = vadd.f32 0.0, %v2166
  %v2168 = vpop.f32.mrf.mxu0
  %v2169 = vadd.f32 0.0, %v2168
  %v2170 = vpop.f32.mrf.mxu0
  %v2171 = vadd.f32 0.0, %v2170
  %v2172 = vpop.f32.mrf.mxu0
  %v2173 = vadd.f32 0.0, %v2172
  %2174 = vdwg.mxu0
  %s2175 = scalar_lea.vmem [#allocation2], 80
  %v2176 = vld [vmem:[%s2175] sm:$0xff]
  %v2177 = vld [vmem:[%s2175 + $0x8] sm:$0xff]
  %v2178 = vadd.f32 %v2167, %v2176
  %v2179 = vadd.f32 %v2171, %v2177
  %s2180 = scalar_lea.vmem [#allocation3], 32
  %v2181 = vld [vmem:[%s2180] sm:$0xff]
  %v2182 = vld [vmem:[%s2180 + $0x8] sm:$0xff]
  %v2183 = vadd.f32 %v2169, %v2181
  %v2184 = vadd.f32 %v2173, %v2182
  %v2185 = vxor.u32 %v2178, 2147483648
  %v2186 = vxor.u32 %v2179, 2147483648
  %v2187 = vmul.f32 %v2185, 1.442695
  %v2188 = vpow.pop %v2187
  %v2189 = vmul.f32 %v2186, 1.442695
  %v2190 = vpow.pop %v2189
  %v2191 = vadd.f32 %v2188, 1.0
  %v2192 = vadd.f32 %v2190, 1.0
  %v2193 = vrcp.pop %v2191
  %v2194 = vmul.f32 1.0, %v2193
  %v2195 = vrcp.pop %v2192
  %v2196 = vmul.f32 1.0, %v2195
  %v2197 = vtanh.pop %v2178
  %v2198 = vtanh.pop %v2179
  %2201 = vrot.lane.b32.xlu0 %v2126, 32
  %v2202 = vpop.permute.xlu0 %2201
  %2203 = vrot.lane.b32.xlu0 %v2127, 32
  %v2204 = vpop.permute.xlu0 %2203
  %v2207 = vmul.f32 %v2194, %v2202
  %v2208 = vmul.f32 %v2196, %v2204
  %2211 = vrot.lane.b32.xlu0 %v2197, 32
  %v2212 = vpop.permute.xlu0 %2211
  %2213 = vrot.lane.b32.xlu0 %v2198, 32
  %v2214 = vpop.permute.xlu0 %2213
  %v2217 = vmul.f32 %v2194, %v2212
  %v2218 = vmul.f32 %v2196, %v2214
  %2221 = vrot.lane.b32.xlu0 %v2217, 32
  %v2222 = vpop.permute.xlu0 %2221
  %2223 = vrot.lane.b32.xlu0 %v2218, 32
  %v2224 = vpop.permute.xlu0 %2223
  %v2227 = vadd.f32 %v2207, %v2222
  %v2228 = vadd.f32 %v2208, %v2224
  %v2229 = vtanh.pop %v2227
  %v2230 = vtanh.pop %v2228
  %2233 = vrot.lane.b32.xlu0 %v2229, 32
  %v2234 = vpop.permute.xlu0 %2233
  %2235 = vrot.lane.b32.xlu0 %v2230, 32
  %v2236 = vpop.permute.xlu0 %2235
  %v2239 = vmul.f32 %v2194, %v2234
  %v2240 = vmul.f32 %v2196, %v2236
  %v2241 = vxor.u32 %v2183, 2147483648
  %v2242 = vxor.u32 %v2184, 2147483648
  %v2243 = vmul.f32 %v2241, 1.442695
  %v2244 = vpow.pop %v2243
  %v2245 = vmul.f32 %v2242, 1.442695
  %v2246 = vpow.pop %v2245
  %v2247 = vadd.f32 %v2244, 1.0
  %v2248 = vadd.f32 %v2246, 1.0
  %v2249 = vrcp.pop %v2247
  %v2250 = vmul.f32 1.0, %v2249
  %v2251 = vrcp.pop %v2248
  %v2252 = vmul.f32 1.0, %v2251
  %v2253 = vtanh.pop %v2183
  %v2254 = vtanh.pop %v2184
  %v2255 = vmul.f32 %v2250, %v2126
  %v2256 = vmul.f32 %v2252, %v2127
  %2259 = vrot.lane.b32.xlu0 %v2253, 32
  %v2260 = vpop.permute.xlu0 %2259
  %2261 = vrot.lane.b32.xlu0 %v2254, 32
  %v2262 = vpop.permute.xlu0 %2261
  %v2265 = vmul.f32 %v2250, %v2260
  %v2266 = vmul.f32 %v2252, %v2262
  %2269 = vrot.lane.b32.xlu0 %v2265, 32
  %v2270 = vpop.permute.xlu0 %2269
  %2271 = vrot.lane.b32.xlu0 %v2266, 32
  %v2272 = vpop.permute.xlu0 %2271
  %v2275 = vadd.f32 %v2255, %v2270
  %v2276 = vadd.f32 %v2256, %v2272
  %v2277 = vtanh.pop %v2275
  %v2278 = vtanh.pop %v2276
  %2281 = vrot.lane.b32.xlu0 %v2277, 32
  %v2282 = vpop.permute.xlu0 %2281
  %2283 = vrot.lane.b32.xlu0 %v2278, 32
  %v2284 = vpop.permute.xlu0 %2283
  %v2287 = vmul.f32 %v2250, %v2282
  %v2288 = vmul.f32 %v2252, %v2284
  %2291 = vrot.lane.b32.xlu0 %v2239, 64
  %v2292 = vpop.permute.xlu0 %2291
  %2293 = vrot.lane.b32.xlu0 %v2240, 64
  %v2294 = vpop.permute.xlu0 %2293
  %2297 = vst.msk [vmem:[#allocation4] sm:$0xff] %vm196, %v2292
  %2298 = vst.msk [vmem:[#allocation4 + $0x8] sm:$0xff] %vm196, %v2294
  %2301 = vrot.lane.b32.xlu0 %v2287, 96
  %v2302 = vpop.permute.xlu0 %2301
  %2303 = vrot.lane.b32.xlu0 %v2288, 96
  %v2304 = vpop.permute.xlu0 %2303
  %2307 = vst.msk [vmem:[#allocation4] sm:$0xff] %vm1187, %v2302
  %2308 = vst.msk [vmem:[#allocation4 + $0x8] sm:$0xff] %vm1187, %v2304
  %2311 = vrot.lane.b32.xlu0 %v2227, 96
  %v2312 = vpop.permute.xlu0 %2311
  %2313 = vrot.lane.b32.xlu0 %v2228, 96
  %v2314 = vpop.permute.xlu0 %2313
  %2317 = vst.msk [vmem:[#allocation5] sm:$0xff] %vm196, %v2312
  %2318 = vst.msk [vmem:[#allocation5 + $0x8] sm:$0xff] %vm196, %v2314
  %2319 = vst.msk [vmem:[#allocation5] sm:$0xff] %vm1187, %v2275
  %2320 = vst.msk [vmem:[#allocation5 + $0x8] sm:$0xff] %vm1187, %v2276
  %s2321 = sadd.s32 %s963, 5
  %p2322 = scmp.eq.s32.totalorder %s2321, 0
  %v2323 = vld [vmem:[#allocation6] sm:$0xff]
  %v2324 = vld [vmem:[#allocation6 + $0x8] sm:$0xff]
  %s2325 = scalar_select %p2322, 1, 0
  %v2326 = vstv %s2325
  %vm2327 = vcmp.eq.s32.totalorder %v2326, 1
  %2330 = vrot.lane.b32.xlu0 %v2323, 64
  %v2331 = vpop.permute.xlu0 %2330
  %2332 = vrot.lane.b32.xlu0 %v2324, 64
  %v2333 = vpop.permute.xlu0 %2332
  %v2336 = vsel %vm2327, %v2287, %v2331
  %v2337 = vsel %vm2327, %v2288, %v2333
  %2340 = vrot.lane.b32.xlu0 %v2336, 64
  %v2341 = vpop.permute.xlu0 %2340
  %2342 = vrot.lane.b32.xlu0 %v2337, 64
  %v2343 = vpop.permute.xlu0 %2342
  %2346 = vst.msk [vmem:[#allocation6] sm:$0xff] %vm196, %v2341
  %2347 = vst.msk [vmem:[#allocation6 + $0x8] sm:$0xff] %vm196, %v2343
  %v2348 = vld [vmem:[#allocation4] sm:$0xff]
  %v2349 = vld [vmem:[#allocation4 + $0x8] sm:$0xff]
  %v2350 = vld [vmem:[#allocation5] sm:$0xff]
  %v2351 = vld [vmem:[#allocation5 + $0x8] sm:$0xff]
  %v2352 = vpack.c.bf16 %v2349, %v2348
  %v2354 = vsel %vm1009, %v2352, 0
  %2356 = vmatprep.subr.bf16.mxu0 0
  %2357 = vmatpush1.bf16.msra.mxu0 0
  %2358 = vmatprep.subr.bf16.mxu0 0
  %2359 = vmatpush1.bf16.msra.mxu0 0
  %2360 = vmatprep.subr.bf16.mxu0 0
  %2361 = vmatpush1.bf16.msra.mxu0 0
  %2362 = vmatprep.subr.bf16.mxu0 0
  %2363 = vmatpush1.bf16.msra.mxu0 0
  %2364 = vmatprep.subr.bf16.mxu0 %v1000
  %2365 = vmatpush1.bf16.msra.mxu0 %v999
  %2366 = vmatprep.subr.bf16.mxu0 %v998
  %2367 = vmatpush1.bf16.msra.mxu0 %v997
  %2368 = vmatprep.subr.bf16.mxu0 %v996
  %2369 = vmatpush1.bf16.msra.mxu0 %v995
  %2370 = vmatprep.subr.bf16.mxu0 %v994
  %2371 = vmatpush1.bf16.msra.mxu0 %v993
  %2372 = vmatprep.subr.bf16.mxu0 0
  %2373 = vmatpush2.bf16.msra.mxu0 0
  %2374 = vmatprep.subr.bf16.mxu0 0
  %2375 = vmatpush2.bf16.msra.mxu0 0
  %2376 = vmatprep.subr.bf16.mxu0 0
  %2377 = vmatpush2.bf16.msra.mxu0 0
  %2378 = vmatprep.subr.bf16.mxu0 0
  %2379 = vmatpush2.bf16.msra.mxu0 0
  %2380 = vmatprep.subr.bf16.mxu0 0
  %2381 = vmatpush2.bf16.msra.mxu0 0
  %2382 = vmatprep.subr.bf16.mxu0 0
  %2383 = vmatpush2.bf16.msra.mxu0 0
  %2384 = vmatprep.subr.bf16.mxu0 0
  %2385 = vmatpush2.bf16.msra.mxu0 0
  %2386 = vmatprep.subr.bf16.mxu0 0
  %2387 = vmatpush2.bf16.msra.mxu0 0
  %2388 = vmatprep.mubr.bf16.mxu0 0
  %2389 = vmatmul.mubr.bf16.gmra.mxu0 %v2354
  %v2390 = vpop.f32.mrf.mxu0
  %v2391 = vadd.f32 0.0, %v2390
  %v2392 = vpop.f32.mrf.mxu0
  %v2393 = vadd.f32 0.0, %v2392
  %v2394 = vpop.f32.mrf.mxu0
  %v2395 = vadd.f32 0.0, %v2394
  %v2396 = vpop.f32.mrf.mxu0
  %v2397 = vadd.f32 0.0, %v2396
  %2398 = vdwg.mxu0
  %s2399 = scalar_lea.vmem [#allocation2], 96
  %v2400 = vld [vmem:[%s2399] sm:$0xff]
  %v2401 = vld [vmem:[%s2399 + $0x8] sm:$0xff]
  %v2402 = vadd.f32 %v2391, %v2400
  %v2403 = vadd.f32 %v2395, %v2401
  %s2404 = scalar_lea.vmem [#allocation3], 16
  %v2405 = vld [vmem:[%s2404] sm:$0xff]
  %v2406 = vld [vmem:[%s2404 + $0x8] sm:$0xff]
  %v2407 = vadd.f32 %v2393, %v2405
  %v2408 = vadd.f32 %v2397, %v2406
  %v2409 = vxor.u32 %v2402, 2147483648
  %v2410 = vxor.u32 %v2403, 2147483648
  %v2411 = vmul.f32 %v2409, 1.442695
  %v2412 = vpow.pop %v2411
  %v2413 = vmul.f32 %v2410, 1.442695
  %v2414 = vpow.pop %v2413
  %v2415 = vadd.f32 %v2412, 1.0
  %v2416 = vadd.f32 %v2414, 1.0
  %v2417 = vrcp.pop %v2415
  %v2418 = vmul.f32 1.0, %v2417
  %v2419 = vrcp.pop %v2416
  %v2420 = vmul.f32 1.0, %v2419
  %v2421 = vtanh.pop %v2402
  %v2422 = vtanh.pop %v2403
  %2425 = vrot.lane.b32.xlu0 %v2350, 32
  %v2426 = vpop.permute.xlu0 %2425
  %2427 = vrot.lane.b32.xlu0 %v2351, 32
  %v2428 = vpop.permute.xlu0 %2427
  %v2431 = vmul.f32 %v2418, %v2426
  %v2432 = vmul.f32 %v2420, %v2428
  %2435 = vrot.lane.b32.xlu0 %v2421, 32
  %v2436 = vpop.permute.xlu0 %2435
  %2437 = vrot.lane.b32.xlu0 %v2422, 32
  %v2438 = vpop.permute.xlu0 %2437
  %v2441 = vmul.f32 %v2418, %v2436
  %v2442 = vmul.f32 %v2420, %v2438
  %2445 = vrot.lane.b32.xlu0 %v2441, 32
  %v2446 = vpop.permute.xlu0 %2445
  %2447 = vrot.lane.b32.xlu0 %v2442, 32
  %v2448 = vpop.permute.xlu0 %2447
  %v2451 = vadd.f32 %v2431, %v2446
  %v2452 = vadd.f32 %v2432, %v2448
  %v2453 = vtanh.pop %v2451
  %v2454 = vtanh.pop %v2452
  %2457 = vrot.lane.b32.xlu0 %v2453, 32
  %v2458 = vpop.permute.xlu0 %2457
  %2459 = vrot.lane.b32.xlu0 %v2454, 32
  %v2460 = vpop.permute.xlu0 %2459
  %v2463 = vmul.f32 %v2418, %v2458
  %v2464 = vmul.f32 %v2420, %v2460
  %v2465 = vxor.u32 %v2407, 2147483648
  %v2466 = vxor.u32 %v2408, 2147483648
  %v2467 = vmul.f32 %v2465, 1.442695
  %v2468 = vpow.pop %v2467
  %v2469 = vmul.f32 %v2466, 1.442695
  %v2470 = vpow.pop %v2469
  %v2471 = vadd.f32 %v2468, 1.0
  %v2472 = vadd.f32 %v2470, 1.0
  %v2473 = vrcp.pop %v2471
  %v2474 = vmul.f32 1.0, %v2473
  %v2475 = vrcp.pop %v2472
  %v2476 = vmul.f32 1.0, %v2475
  %v2477 = vtanh.pop %v2407
  %v2478 = vtanh.pop %v2408
  %v2479 = vmul.f32 %v2474, %v2350
  %v2480 = vmul.f32 %v2476, %v2351
  %2483 = vrot.lane.b32.xlu0 %v2477, 32
  %v2484 = vpop.permute.xlu0 %2483
  %2485 = vrot.lane.b32.xlu0 %v2478, 32
  %v2486 = vpop.permute.xlu0 %2485
  %v2489 = vmul.f32 %v2474, %v2484
  %v2490 = vmul.f32 %v2476, %v2486
  %2493 = vrot.lane.b32.xlu0 %v2489, 32
  %v2494 = vpop.permute.xlu0 %2493
  %2495 = vrot.lane.b32.xlu0 %v2490, 32
  %v2496 = vpop.permute.xlu0 %2495
  %v2499 = vadd.f32 %v2479, %v2494
  %v2500 = vadd.f32 %v2480, %v2496
  %v2501 = vtanh.pop %v2499
  %v2502 = vtanh.pop %v2500
  %2505 = vrot.lane.b32.xlu0 %v2501, 32
  %v2506 = vpop.permute.xlu0 %2505
  %2507 = vrot.lane.b32.xlu0 %v2502, 32
  %v2508 = vpop.permute.xlu0 %2507
  %v2511 = vmul.f32 %v2474, %v2506
  %v2512 = vmul.f32 %v2476, %v2508
  %2515 = vrot.lane.b32.xlu0 %v2463, 64
  %v2516 = vpop.permute.xlu0 %2515
  %2517 = vrot.lane.b32.xlu0 %v2464, 64
  %v2518 = vpop.permute.xlu0 %2517
  %2521 = vst.msk [vmem:[#allocation4] sm:$0xff] %vm196, %v2516
  %2522 = vst.msk [vmem:[#allocation4 + $0x8] sm:$0xff] %vm196, %v2518
  %2525 = vrot.lane.b32.xlu0 %v2511, 96
  %v2526 = vpop.permute.xlu0 %2525
  %2527 = vrot.lane.b32.xlu0 %v2512, 96
  %v2528 = vpop.permute.xlu0 %2527
  %2531 = vst.msk [vmem:[#allocation4] sm:$0xff] %vm1187, %v2526
  %2532 = vst.msk [vmem:[#allocation4 + $0x8] sm:$0xff] %vm1187, %v2528
  %2535 = vrot.lane.b32.xlu0 %v2451, 96
  %v2536 = vpop.permute.xlu0 %2535
  %2537 = vrot.lane.b32.xlu0 %v2452, 96
  %v2538 = vpop.permute.xlu0 %2537
  %2541 = vst.msk [vmem:[#allocation5] sm:$0xff] %vm196, %v2536
  %2542 = vst.msk [vmem:[#allocation5 + $0x8] sm:$0xff] %vm196, %v2538
  %2543 = vst.msk [vmem:[#allocation5] sm:$0xff] %vm1187, %v2499
  %2544 = vst.msk [vmem:[#allocation5 + $0x8] sm:$0xff] %vm1187, %v2500
  %s2545 = sadd.s32 %s963, 6
  %p2546 = scmp.eq.s32.totalorder %s2545, 0
  %v2547 = vld [vmem:[#allocation6] sm:$0xff]
  %v2548 = vld [vmem:[#allocation6 + $0x8] sm:$0xff]
  %s2549 = scalar_select %p2546, 1, 0
  %v2550 = vstv %s2549
  %vm2551 = vcmp.eq.s32.totalorder %v2550, 1
  %2554 = vrot.lane.b32.xlu0 %v2547, 64
  %v2555 = vpop.permute.xlu0 %2554
  %2556 = vrot.lane.b32.xlu0 %v2548, 64
  %v2557 = vpop.permute.xlu0 %2556
  %v2560 = vsel %vm2551, %v2511, %v2555
  %v2561 = vsel %vm2551, %v2512, %v2557
  %2564 = vrot.lane.b32.xlu0 %v2560, 64
  %v2565 = vpop.permute.xlu0 %2564
  %2566 = vrot.lane.b32.xlu0 %v2561, 64
  %v2567 = vpop.permute.xlu0 %2566
  %2570 = vst.msk [vmem:[#allocation6] sm:$0xff] %vm196, %v2565
  %2571 = vst.msk [vmem:[#allocation6 + $0x8] sm:$0xff] %vm196, %v2567
  %v2572 = vld [vmem:[#allocation4] sm:$0xff]
  %v2573 = vld [vmem:[#allocation4 + $0x8] sm:$0xff]
  %v2574 = vld [vmem:[#allocation5] sm:$0xff]
  %v2575 = vld [vmem:[#allocation5 + $0x8] sm:$0xff]
  %v2576 = vpack.c.bf16 %v2573, %v2572
  %v2578 = vsel %vm1009, %v2576, 0
  %2580 = vmatprep.subr.bf16.mxu0 0
  %2581 = vmatpush1.bf16.msra.mxu0 0
  %2582 = vmatprep.subr.bf16.mxu0 0
  %2583 = vmatpush1.bf16.msra.mxu0 0
  %2584 = vmatprep.subr.bf16.mxu0 0
  %2585 = vmatpush1.bf16.msra.mxu0 0
  %2586 = vmatprep.subr.bf16.mxu0 0
  %2587 = vmatpush1.bf16.msra.mxu0 0
  %2588 = vmatprep.subr.bf16.mxu0 %v1000
  %2589 = vmatpush1.bf16.msra.mxu0 %v999
  %2590 = vmatprep.subr.bf16.mxu0 %v998
  %2591 = vmatpush1.bf16.msra.mxu0 %v997
  %2592 = vmatprep.subr.bf16.mxu0 %v996
  %2593 = vmatpush1.bf16.msra.mxu0 %v995
  %2594 = vmatprep.subr.bf16.mxu0 %v994
  %2595 = vmatpush1.bf16.msra.mxu0 %v993
  %2596 = vmatprep.subr.bf16.mxu0 0
  %2597 = vmatpush2.bf16.msra.mxu0 0
  %2598 = vmatprep.subr.bf16.mxu0 0
  %2599 = vmatpush2.bf16.msra.mxu0 0
  %2600 = vmatprep.subr.bf16.mxu0 0
  %2601 = vmatpush2.bf16.msra.mxu0 0
  %2602 = vmatprep.subr.bf16.mxu0 0
  %2603 = vmatpush2.bf16.msra.mxu0 0
  %2604 = vmatprep.subr.bf16.mxu0 0
  %2605 = vmatpush2.bf16.msra.mxu0 0
  %2606 = vmatprep.subr.bf16.mxu0 0
  %2607 = vmatpush2.bf16.msra.mxu0 0
  %2608 = vmatprep.subr.bf16.mxu0 0
  %2609 = vmatpush2.bf16.msra.mxu0 0
  %2610 = vmatprep.subr.bf16.mxu0 0
  %2611 = vmatpush2.bf16.msra.mxu0 0
  %2612 = vmatprep.mubr.bf16.mxu0 0
  %2613 = vmatmul.mubr.bf16.gmra.mxu0 %v2578
  %v2614 = vpop.f32.mrf.mxu0
  %v2615 = vadd.f32 0.0, %v2614
  %v2616 = vpop.f32.mrf.mxu0
  %v2617 = vadd.f32 0.0, %v2616
  %v2618 = vpop.f32.mrf.mxu0
  %v2619 = vadd.f32 0.0, %v2618
  %v2620 = vpop.f32.mrf.mxu0
  %v2621 = vadd.f32 0.0, %v2620
  %2622 = vdwg.mxu0
  %s2623 = scalar_lea.vmem [#allocation2], 112
  %v2624 = vld [vmem:[%s2623] sm:$0xff]
  %v2625 = vld [vmem:[%s2623 + $0x8] sm:$0xff]
  %v2626 = vadd.f32 %v2615, %v2624
  %v2627 = vadd.f32 %v2619, %v2625
  %v2628 = vld [vmem:[#allocation3] sm:$0xff]
  %v2629 = vld [vmem:[#allocation3 + $0x8] sm:$0xff]
  %v2630 = vadd.f32 %v2617, %v2628
  %v2631 = vadd.f32 %v2621, %v2629
  %v2632 = vxor.u32 %v2626, 2147483648
  %v2633 = vxor.u32 %v2627, 2147483648
  %v2634 = vmul.f32 %v2632, 1.442695
  %v2635 = vpow.pop %v2634
  %v2636 = vmul.f32 %v2633, 1.442695
  %v2637 = vpow.pop %v2636
  %v2638 = vadd.f32 %v2635, 1.0
  %v2639 = vadd.f32 %v2637, 1.0
  %v2640 = vrcp.pop %v2638
  %v2641 = vmul.f32 1.0, %v2640
  %v2642 = vrcp.pop %v2639
  %v2643 = vmul.f32 1.0, %v2642
  %v2644 = vtanh.pop %v2626
  %v2645 = vtanh.pop %v2627
  %2648 = vrot.lane.b32.xlu0 %v2574, 32
  %v2649 = vpop.permute.xlu0 %2648
  %2650 = vrot.lane.b32.xlu0 %v2575, 32
  %v2651 = vpop.permute.xlu0 %2650
  %v2654 = vmul.f32 %v2641, %v2649
  %v2655 = vmul.f32 %v2643, %v2651
  %2658 = vrot.lane.b32.xlu0 %v2644, 32
  %v2659 = vpop.permute.xlu0 %2658
  %2660 = vrot.lane.b32.xlu0 %v2645, 32
  %v2661 = vpop.permute.xlu0 %2660
  %v2664 = vmul.f32 %v2641, %v2659
  %v2665 = vmul.f32 %v2643, %v2661
  %2668 = vrot.lane.b32.xlu0 %v2664, 32
  %v2669 = vpop.permute.xlu0 %2668
  %2670 = vrot.lane.b32.xlu0 %v2665, 32
  %v2671 = vpop.permute.xlu0 %2670
  %v2674 = vadd.f32 %v2654, %v2669
  %v2675 = vadd.f32 %v2655, %v2671
  %v2676 = vtanh.pop %v2674
  %v2677 = vtanh.pop %v2675
  %2680 = vrot.lane.b32.xlu0 %v2676, 32
  %v2681 = vpop.permute.xlu0 %2680
  %2682 = vrot.lane.b32.xlu0 %v2677, 32
  %v2683 = vpop.permute.xlu0 %2682
  %v2686 = vmul.f32 %v2641, %v2681
  %v2687 = vmul.f32 %v2643, %v2683
  %v2688 = vxor.u32 %v2630, 2147483648
  %v2689 = vxor.u32 %v2631, 2147483648
  %v2690 = vmul.f32 %v2688, 1.442695
  %v2691 = vpow.pop %v2690
  %v2692 = vmul.f32 %v2689, 1.442695
  %v2693 = vpow.pop %v2692
  %v2694 = vadd.f32 %v2691, 1.0
  %v2695 = vadd.f32 %v2693, 1.0
  %v2696 = vrcp.pop %v2694
  %v2697 = vmul.f32 1.0, %v2696
  %v2698 = vrcp.pop %v2695
  %v2699 = vmul.f32 1.0, %v2698
  %v2700 = vtanh.pop %v2630
  %v2701 = vtanh.pop %v2631
  %v2702 = vmul.f32 %v2697, %v2574
  %v2703 = vmul.f32 %v2699, %v2575
  %2706 = vrot.lane.b32.xlu0 %v2700, 32
  %v2707 = vpop.permute.xlu0 %2706
  %2708 = vrot.lane.b32.xlu0 %v2701, 32
  %v2709 = vpop.permute.xlu0 %2708
  %v2712 = vmul.f32 %v2697, %v2707
  %v2713 = vmul.f32 %v2699, %v2709
  %2716 = vrot.lane.b32.xlu0 %v2712, 32
  %v2717 = vpop.permute.xlu0 %2716
  %2718 = vrot.lane.b32.xlu0 %v2713, 32
  %v2719 = vpop.permute.xlu0 %2718
  %v2722 = vadd.f32 %v2702, %v2717
  %v2723 = vadd.f32 %v2703, %v2719
  %v2724 = vtanh.pop %v2722
  %v2725 = vtanh.pop %v2723
  %2728 = vrot.lane.b32.xlu0 %v2724, 32
  %v2729 = vpop.permute.xlu0 %2728
  %2730 = vrot.lane.b32.xlu0 %v2725, 32
  %v2731 = vpop.permute.xlu0 %2730
  %v2734 = vmul.f32 %v2697, %v2729
  %v2735 = vmul.f32 %v2699, %v2731
  %2738 = vrot.lane.b32.xlu0 %v2686, 64
  %v2739 = vpop.permute.xlu0 %2738
  %2740 = vrot.lane.b32.xlu0 %v2687, 64
  %v2741 = vpop.permute.xlu0 %2740
  %2744 = vst.msk [vmem:[#allocation4] sm:$0xff] %vm196, %v2739
  %2745 = vst.msk [vmem:[#allocation4 + $0x8] sm:$0xff] %vm196, %v2741
  %2748 = vrot.lane.b32.xlu0 %v2734, 96
  %v2749 = vpop.permute.xlu0 %2748
  %2750 = vrot.lane.b32.xlu0 %v2735, 96
  %v2751 = vpop.permute.xlu0 %2750
  %2754 = vst.msk [vmem:[#allocation4] sm:$0xff] %vm1187, %v2749
  %2755 = vst.msk [vmem:[#allocation4 + $0x8] sm:$0xff] %vm1187, %v2751
  %2758 = vrot.lane.b32.xlu0 %v2674, 96
  %v2759 = vpop.permute.xlu0 %2758
  %2760 = vrot.lane.b32.xlu0 %v2675, 96
  %v2761 = vpop.permute.xlu0 %2760
  %2764 = vst.msk [vmem:[#allocation5] sm:$0xff] %vm196, %v2759
  %2765 = vst.msk [vmem:[#allocation5 + $0x8] sm:$0xff] %vm196, %v2761
  %2766 = vst.msk [vmem:[#allocation5] sm:$0xff] %vm1187, %v2722
  %2767 = vst.msk [vmem:[#allocation5 + $0x8] sm:$0xff] %vm1187, %v2723
  %s2768 = sadd.s32 %s963, 7
  %p2769 = scmp.eq.s32.totalorder %s2768, 0
  %v2770 = vld [vmem:[#allocation6] sm:$0xff]
  %v2771 = vld [vmem:[#allocation6 + $0x8] sm:$0xff]
  %s2772 = scalar_select %p2769, 1, 0
  %v2773 = vstv %s2772
  %vm2774 = vcmp.eq.s32.totalorder %v2773, 1
  %2777 = vrot.lane.b32.xlu0 %v2770, 64
  %v2778 = vpop.permute.xlu0 %2777
  %2779 = vrot.lane.b32.xlu0 %v2771, 64
  %v2780 = vpop.permute.xlu0 %2779
  %v2783 = vsel %vm2774, %v2734, %v2778
  %v2784 = vsel %vm2774, %v2735, %v2780
  %2787 = vrot.lane.b32.xlu0 %v2783, 64
  %v2788 = vpop.permute.xlu0 %2787
  %2789 = vrot.lane.b32.xlu0 %v2784, 64
  %v2790 = vpop.permute.xlu0 %2789
  %2793 = vst.msk [vmem:[#allocation6] sm:$0xff] %vm196, %v2788
  %2794 = vst.msk [vmem:[#allocation6 + $0x8] sm:$0xff] %vm196, %v2790
  // Predicated region
  $region62: #{bilstm_forward.3} parent=0 // pred_check
    %p2795 = pneg %p92
  $region63: #{bilstm_forward.3} parent=0 // pred_check_branch
    %2797 = sbr.rel (%p2795) target = $region65
  $region64: #{bilstm_forward.3} parent=0 // pred_region
    %v2798 = vld [vmem:[#allocation4] sm:$0xff]
    %v2799 = vld [vmem:[#allocation4 + $0x8] sm:$0xff]
    %v2800 = vld [vmem:[%s11] sm:$0xff]
    %v2801 = vld [vmem:[%s11 + $0x8] sm:$0xff]
    %v2802 = vld [vmem:[%s11 + $0x10] sm:$0xff]
    %v2803 = vld [vmem:[%s11 + $0x18] sm:$0xff]
    %v2804 = vld [vmem:[#allocation6] sm:$0xff]
    %v2805 = vld [vmem:[#allocation6 + $0x8] sm:$0xff]
    %v2806 = vld [vmem:[%s12] sm:$0xff]
    %v2807 = vld [vmem:[%s12 + $0x8] sm:$0xff]
    %v2808 = vld [vmem:[%s12 + $0x10] sm:$0xff]
    %v2809 = vld [vmem:[%s12 + $0x18] sm:$0xff]
    %v2811 = vsel %vm196, %v2804, 0
    %v2814 = vsel %vm196, %v2805, 0
    %2816 = vmatprep.subr.mxu0 0.0
    %2817 = vmatpush1.msra.mxu0 0.0
    %2818 = vmatprep.subr.mxu0 0.0
    %2819 = vmatpush1.msra.mxu0 0.0
    %2820 = vmatprep.subr.mxu0 0.0
    %2821 = vmatpush1.msra.mxu0 0.0
    %2822 = vmatprep.subr.mxu0 0.0
    %2823 = vmatpush1.msra.mxu0 0.0
    %2824 = vmatprep.subr.mxu0 0.0
    %2825 = vmatpush1.msra.mxu0 0.0
    %2826 = vmatprep.subr.mxu0 0.0
    %2827 = vmatpush1.msra.mxu0 0.0
    %2828 = vmatprep.subr.mxu0 0.0
    %2829 = vmatpush1.msra.mxu0 0.0
    %2830 = vmatprep.subr.mxu0 0.0
    %2831 = vmatpush1.msra.mxu0 0.0
    %2832 = vmatprep.subr.mxu0 0.0
    %2833 = vmatpush1.msra.mxu0 0.0
    %2834 = vmatprep.subr.mxu0 0.0
    %2835 = vmatpush1.msra.mxu0 0.0
    %2836 = vmatprep.subr.mxu0 0.0
    %2837 = vmatpush1.msra.mxu0 0.0
    %2838 = vmatprep.subr.mxu0 0.0
    %2839 = vmatpush1.msra.mxu0 0.0
    %2840 = vmatprep.subr.mxu0 0.0
    %2841 = vmatpush1.msra.mxu0 %v2809
    %2842 = vmatprep.subr.mxu0 0.0
    %2843 = vmatpush1.msra.mxu0 %v2808
    %2844 = vmatprep.subr.mxu0 0.0
    %2845 = vmatpush1.msra.mxu0 %v2807
    %2846 = vmatprep.subr.mxu0 0.0
    %2847 = vmatpush1.msra.mxu0 %v2806
    %2848 = vmatprep.subr.mxu0 0.0
    %2849 = vmatpush2.msra.mxu0 0.0
    %2850 = vmatprep.subr.mxu0 0.0
    %2851 = vmatpush2.msra.mxu0 0.0
    %2852 = vmatprep.subr.mxu0 0.0
    %2853 = vmatpush2.msra.mxu0 0.0
    %2854 = vmatprep.subr.mxu0 0.0
    %2855 = vmatpush2.msra.mxu0 0.0
    %2856 = vmatprep.subr.mxu0 0.0
    %2857 = vmatpush2.msra.mxu0 0.0
    %2858 = vmatprep.subr.mxu0 0.0
    %2859 = vmatpush2.msra.mxu0 0.0
    %2860 = vmatprep.subr.mxu0 0.0
    %2861 = vmatpush2.msra.mxu0 0.0
    %2862 = vmatprep.subr.mxu0 0.0
    %2863 = vmatpush2.msra.mxu0 0.0
    %2864 = vmatprep.subr.mxu0 0.0
    %2865 = vmatpush2.msra.mxu0 0.0
    %2866 = vmatprep.subr.mxu0 0.0
    %2867 = vmatpush2.msra.mxu0 0.0
    %2868 = vmatprep.subr.mxu0 0.0
    %2869 = vmatpush2.msra.mxu0 0.0
    %2870 = vmatprep.subr.mxu0 0.0
    %2871 = vmatpush2.msra.mxu0 0.0
    %2872 = vmatprep.subr.mxu0 0.0
    %2873 = vmatpush2.msra.mxu0 0.0
    %2874 = vmatprep.subr.mxu0 0.0
    %2875 = vmatpush2.msra.mxu0 0.0
    %2876 = vmatprep.subr.mxu0 0.0
    %2877 = vmatpush2.msra.mxu0 0.0
    %2878 = vmatprep.subr.mxu0 0.0
    %2879 = vmatpush2.msra.mxu0 0.0
    %2880 = vmatprep.mubr.f32.mxu0 0.0
    %2881 = vmatmul.mubr.f32.gmra.mxu0 %v2811
    %v2882 = vpop.f32.mrf.mxu0
    %v2883 = vadd.f32 0.0, %v2882
    %v2884 = vpop.f32.mrf.mxu0
    %2885 = vmatprep.mubr.f32.mxu0 0.0
    %2886 = vmatmul.mubr.f32.gmra.mxu0 %v2814
    %v2887 = vpop.f32.mrf.mxu0
    %v2888 = vadd.f32 0.0, %v2887
    %v2889 = vpop.f32.mrf.mxu0
    %2890 = vdwg.mxu0
    %v2892 = vsel %vm196, %v2798, 0
    %v2895 = vsel %vm196, %v2799, 0
    %2897 = vmatprep.subr.mxu0 0.0
    %2898 = vmatpush1.msra.mxu0 0.0
    %2899 = vmatprep.subr.mxu0 0.0
    %2900 = vmatpush1.msra.mxu0 0.0
    %2901 = vmatprep.subr.mxu0 0.0
    %2902 = vmatpush1.msra.mxu0 0.0
    %2903 = vmatprep.subr.mxu0 0.0
    %2904 = vmatpush1.msra.mxu0 0.0
    %2905 = vmatprep.subr.mxu0 0.0
    %2906 = vmatpush1.msra.mxu0 0.0
    %2907 = vmatprep.subr.mxu0 0.0
    %2908 = vmatpush1.msra.mxu0 0.0
    %2909 = vmatprep.subr.mxu0 0.0
    %2910 = vmatpush1.msra.mxu0 0.0
    %2911 = vmatprep.subr.mxu0 0.0
    %2912 = vmatpush1.msra.mxu0 0.0
    %2913 = vmatprep.subr.mxu0 0.0
    %2914 = vmatpush1.msra.mxu0 0.0
    %2915 = vmatprep.subr.mxu0 0.0
    %2916 = vmatpush1.msra.mxu0 0.0
    %2917 = vmatprep.subr.mxu0 0.0
    %2918 = vmatpush1.msra.mxu0 0.0
    %2919 = vmatprep.subr.mxu0 0.0
    %2920 = vmatpush1.msra.mxu0 0.0
    %2921 = vmatprep.subr.mxu0 0.0
    %2922 = vmatpush1.msra.mxu0 %v2803
    %2923 = vmatprep.subr.mxu0 0.0
    %2924 = vmatpush1.msra.mxu0 %v2802
    %2925 = vmatprep.subr.mxu0 0.0
    %2926 = vmatpush1.msra.mxu0 %v2801
    %2927 = vmatprep.subr.mxu0 0.0
    %2928 = vmatpush1.msra.mxu0 %v2800
    %2929 = vmatprep.subr.mxu0 0.0
    %2930 = vmatpush2.msra.mxu0 0.0
    %2931 = vmatprep.subr.mxu0 0.0
    %2932 = vmatpush2.msra.mxu0 0.0
    %2933 = vmatprep.subr.mxu0 0.0
    %2934 = vmatpush2.msra.mxu0 0.0
    %2935 = vmatprep.subr.mxu0 0.0
    %2936 = vmatpush2.msra.mxu0 0.0
    %2937 = vmatprep.subr.mxu0 0.0
    %2938 = vmatpush2.msra.mxu0 0.0
    %2939 = vmatprep.subr.mxu0 0.0
    %2940 = vmatpush2.msra.mxu0 0.0
    %2941 = vmatprep.subr.mxu0 0.0
    %2942 = vmatpush2.msra.mxu0 0.0
    %2943 = vmatprep.subr.mxu0 0.0
    %2944 = vmatpush2.msra.mxu0 0.0
    %2945 = vmatprep.subr.mxu0 0.0
    %2946 = vmatpush2.msra.mxu0 0.0
    %2947 = vmatprep.subr.mxu0 0.0
    %2948 = vmatpush2.msra.mxu0 0.0
    %2949 = vmatprep.subr.mxu0 0.0
    %2950 = vmatpush2.msra.mxu0 0.0
    %2951 = vmatprep.subr.mxu0 0.0
    %2952 = vmatpush2.msra.mxu0 0.0
    %2953 = vmatprep.subr.mxu0 0.0
    %2954 = vmatpush2.msra.mxu0 0.0
    %2955 = vmatprep.subr.mxu0 0.0
    %2956 = vmatpush2.msra.mxu0 0.0
    %2957 = vmatprep.subr.mxu0 0.0
    %2958 = vmatpush2.msra.mxu0 0.0
    %2959 = vmatprep.subr.mxu0 0.0
    %2960 = vmatpush2.msra.mxu0 0.0
    %2961 = vmatprep.mubr.f32.mxu0 0.0
    %2962 = vmatmul.mubr.f32.gmra.mxu0 %v2892
    %v2963 = vpop.f32.mrf.mxu0
    %v2964 = vadd.f32 %v2883, %v2963
    %v2965 = vpop.f32.mrf.mxu0
    %2966 = vmatprep.mubr.f32.mxu0 0.0
    %2967 = vmatmul.mubr.f32.gmra.mxu0 %v2895
    %v2968 = vpop.f32.mrf.mxu0
    %v2969 = vadd.f32 %v2888, %v2968
    %v2970 = vpop.f32.mrf.mxu0
    %2971 = vdwg.mxu0
    %v2972 = vld [vmem:[%s13] sm:$0x1]
    %v2974 = vlaneseq
    %v2975 = vshrl.u32 %v2974, 7
    %v2976 = vsub.s32 0, %v2975
    %v2977 = vrot.slane %v2972, %v2976
    %v2979 = vadd.f32 %v2964, %v2977
    %v2980 = vadd.f32 %v2969, %v2977
    %vm2981 = vcmask 64512
    %2982 = vst.msk [vmem:[%s14] sm:$0xff] %vm2981, %v2979
    %2983 = vst.msk [vmem:[%s14 + $0x8] sm:$0xff] %vm2981, %v2980
  $region65: #{bilstm_forward.3} parent=0 // pred_fallthru
    _
  // Predicated region
  $region66: #{bilstm_forward.3} parent=0 // pred_check
    _
  $region67: #{bilstm_forward.3} parent=0 // pred_check_branch
    %2985 = sbr.rel (0) target = $region69
  $region68: #{bilstm_forward.3} parent=0 // pred_region
    _
  $region69: #{bilstm_forward.3} parent=0 // pred_fallthru
    _
  // Predicated region
  $region70: #{bilstm_forward.3} parent=0 // pred_check
    _
  $region71: #{bilstm_forward.3} parent=0 // pred_check_branch
    %2987 = sbr.rel (0) target = $region73
  $region72: #{bilstm_forward.3} parent=0 // pred_region
    _
  $region73: #{bilstm_forward.3} parent=0 // pred_fallthru
    _

</llo_original>
